<compile_context>
chip_gen: v7x
topology: tpu7x:2x2x1
jax: 0.10.0
libtpu: 0.0.40
codegen_flags: <defaults>
</compile_context>

<pallas_src>
import functools

import jax
import jax.numpy as jnp
from jax.experimental import pallas as pl
from jax.experimental.pallas import tpu as pltpu


_LP = 8  # left pad (in packed-W positions) so the interior stash is sublane-aligned


# --------------------------------------------------------------------------------------
# Fused full-network Pallas kernel
# --------------------------------------------------------------------------------------
def _lpenet_kernel(x_ref, w_ref, b_ref, o_ref, ap_ref, res_ref, *, num_blocks):
    """One grid step == one image through the whole 12-layer network.

    x_ref  : (1, H, W2, 2C)       space-to-depth packed input image (2C = 128 lanes)
    w_ref  : (L*9, 2C, 2C)        per-layer, per-tap packed weights (BN scale folded in)
    b_ref  : (L, 1, 2C)           per-layer packed biases
    o_ref  : (1, H, W2, 2C)       packed output image
    ap_ref : (H+2, _LP+W2+1, 2C)  padded activation scratch; interior at aligned col _LP
    res_ref: (H*W2, 2C)           residual stash (kept off the vreg file)
    """
    _, H, W2, C2 = o_ref.shape
    M = H * W2

    # Zero ONLY the halo strips that the tap reads touch (cols _LP-1 .. _LP+W2),
    # not the whole buffer.  Re-done every grid step (parallel batch axis => no
    # "zero once at pid==0" trick).
    ap_ref[0:1, _LP - 1:_LP + W2 + 1, :] = jnp.zeros((1, W2 + 2, C2), jnp.float32)
    ap_ref[H + 1:H + 2, _LP - 1:_LP + W2 + 1, :] = jnp.zeros((1, W2 + 2, C2), jnp.float32)
    ap_ref[1:H + 1, _LP - 1:_LP, :] = jnp.zeros((H, 1, C2), jnp.float32)
    ap_ref[1:H + 1, _LP + W2:_LP + W2 + 1, :] = jnp.zeros((H, 1, C2), jnp.float32)

    def stash(y):
        # Interior write at sublane-aligned offset _LP (multiple of 8): unmasked stores.
        ap_ref[1:H + 1, _LP:_LP + W2, :] = y.reshape(H, W2, C2)

    def conv_layer(layer):
        # Direct-conv accumulation: 9 lane-dense (M, 128) x (128, 128) MXU dots.
        # No im2col LHS materialization, no jnp.concatenate.
        acc = None
        for ky in range(3):
            for si in range(3):                      # packed-W tap offset si-1
                lhs = ap_ref[ky:ky + H,
                             _LP - 1 + si:_LP - 1 + si + W2, :].reshape(M, C2)
                d = jnp.dot(lhs, w_ref[layer * 9 + ky * 3 + si],
                            preferred_element_type=jnp.float32)
                acc = d if acc is None else acc + d
        return acc + b_ref[layer]                    # bias only; BN scale is in w_ref

    # ---- head: conv + bias + ReLU ----------------------------------------------------
    ap_ref[1:H + 1, _LP:_LP + W2, :] = x_ref[0]
    y = jnp.maximum(conv_layer(0), 0.0)
    stash(y)
    res_ref[...] = y

    # ---- residual blocks: (conv+BN+ReLU, conv+BN, +residual, ReLU) --------------------
    def block_body(i, carry):
        layer = 1 + 2 * i
        h = jnp.maximum(conv_layer(layer), 0.0)
        stash(h)
        y2 = jnp.maximum(conv_layer(layer + 1) + res_ref[...], 0.0)
        stash(y2)
        res_ref[...] = y2
        return carry

    jax.lax.fori_loop(0, num_blocks, block_body, 0)

    # ---- tail: conv + bias, no ReLU ---------------------------------------------------
    y = conv_layer(1 + 2 * num_blocks)
    o_ref[...] = y.reshape(1, H, W2, C2)


# --------------------------------------------------------------------------------------
# Parameter packing: space-to-depth tap weights with structured zeros, BN folded in
# --------------------------------------------------------------------------------------
def _pack_params(params, width):
    """Returns (L*9, 2*width, 2*width) packed tap weights and (L, 1, 2*width) biases.

    Packed channel convention (matches a row-major reshape (H, W, C) -> (H, W/2, 2C)):
    packed index q*width + c  <->  original pixel column 2*w2 + q, channel c.
    Tap (ky, s) weight entry [q*width+ci, p*width+co] = w[ky, dx+1, ci, co] * scale[co]
    where dx = 2*s + q - p, zero if dx is outside {-1, 0, 1}.
    """
    C2 = 2 * width
    taps_all, biases = [], []

    def add(w, s, b):
        cin = w.shape[2]
        if cin < width:                                  # head: zero-pad Cin -> width
            w = jnp.pad(w, ((0, 0), (0, 0), (0, width - cin), (0, 0)))
        w = w * s[None, None, None, :]                   # fold BN scale into weights
        zero = jnp.zeros((width, width), jnp.float32)
        for ky in range(3):
            for s_off in (-1, 0, 1):
                blocks = []
                for q in range(2):
                    row = []
                    for p in range(2):
                        dx = 2 * s_off + q - p
                        row.append(w[ky, dx + 1] if dx in (-1, 0, 1) else zero)
                    blocks.append(row)
                taps_all.append(jnp.block(blocks))       # (2*width, 2*width)
        biases.append(jnp.tile(b, 2))                    # (2*width,)

    w0, b0 = params["head"]
    add(w0, jnp.ones((width,), jnp.float32), b0)
    for blk in params["blocks"]:
        add(blk["w1"], blk["s1"], blk["b1"])
        add(blk["w2"], blk["s2"], blk["b2"])
    wt, bt = params["tail"]
    add(wt, jnp.ones((width,), jnp.float32), bt)

    w_all = jnp.stack(taps_all)                          # (L*9, 2*width, 2*width)
    b_all = jnp.stack(biases).reshape(-1, 1, C2)         # (L, 1, 2*width)
    return w_all, b_all


def lpenet_forward(x_nhwc, params, *, width=64):
    N, H, W, Cin = x_nhwc.shape
    assert W % 2 == 0, "space-to-depth packing assumes even W"
    W2 = W // 2
    C2 = 2 * width
    num_blocks = len(params["blocks"])
    L = 2 * num_blocks + 2
    w_all, b_all = _pack_params(params, width)

    # One-time channel pad to the body width, then pure row-major space-to-depth
    # reshape: (N, H, W, width) -> (N, H, W/2, 2*width).  All kernel I/O is 128-lane.
    x_pad = jnp.pad(x_nhwc, ((0, 0), (0, 0), (0, 0), (0, width - Cin)))
    x_packed = x_pad.reshape(N, H, W2, C2)

    kernel = functools.partial(_lpenet_kernel, num_blocks=num_blocks)
    out_packed = pl.pallas_call(
        kernel,
        out_shape=jax.ShapeDtypeStruct((N, H, W2, C2), jnp.float32),
        grid=(N,),
        in_specs=[
            pl.BlockSpec((1, H, W2, C2), lambda n: (n, 0, 0, 0)),       # packed image
            pl.BlockSpec((L * 9, C2, C2), lambda n: (0, 0, 0)),         # packed weights
            pl.BlockSpec((L, 1, C2), lambda n: (0, 0, 0)),              # packed biases
        ],
        out_specs=pl.BlockSpec((1, H, W2, C2), lambda n: (n, 0, 0, 0)),
        scratch_shapes=[
            pltpu.VMEM((H + 2, _LP + W2 + 1, C2), jnp.float32),         # padded activation
            pltpu.VMEM((H * W2, C2), jnp.float32),                      # residual stash
        ],
        compiler_params=pltpu.CompilerParams(
            dimension_semantics=("parallel",),          # 2 images -> 2 TCs on v7x
            vmem_limit_bytes=32 * 1024 * 1024),         # weights double-buffered ~13.5 MiB
    )(x_packed, w_all, b_all)

    # Undo space-to-depth: (N, H, W/2, 2*width) -> (N, H, W, width).
    return out_packed.reshape(N, H, W, width)


# --------------------------------------------------------------------------------------
# Parameter construction (deterministic, synthetic) + BN folding (eval-mode stats)
# --------------------------------------------------------------------------------------
def _conv_params(key, cin, cout, scale=0.05):
    kw, kb = jax.random.split(key)
    w = scale * jax.random.normal(kw, (3, 3, cin, cout), jnp.float32)   # HWIO
    b = scale * jax.random.normal(kb, (cout,), jnp.float32)
    return w, b


def _bn_params(key, c):
    kg, kb, km, kv = jax.random.split(key, 4)
    gamma = 1.0 + 0.1 * jax.random.normal(kg, (c,), jnp.float32)
    beta = 0.1 * jax.random.normal(kb, (c,), jnp.float32)
    mean = 0.1 * jax.random.normal(km, (c,), jnp.float32)
    var = 1.0 + 0.1 * jax.random.uniform(kv, (c,), jnp.float32)
    return gamma, beta, mean, var


def _fold_bn(conv_b, gamma, beta, mean, var, eps=1e-5):
    s = gamma * jax.lax.rsqrt(var + eps)
    b = (conv_b - mean) * s + beta
    return s, b


def init_params(key, in_channels=6, num_blocks=5, width=64):
    params = {}
    keys = jax.random.split(key, 2 + num_blocks)

    params["head"] = _conv_params(keys[0], in_channels, width)

    blocks = []
    for i in range(num_blocks):
        k1, k2, k3, k4 = jax.random.split(keys[1 + i], 4)
        w1, b1 = _conv_params(k1, width, width)
        bn1 = _bn_params(k2, width)
        w2, b2 = _conv_params(k3, width, width)
        bn2 = _bn_params(k4, width)
        s1, sb1 = _fold_bn(b1, *bn1)
        s2, sb2 = _fold_bn(b2, *bn2)
        blocks.append(dict(w1=w1, s1=s1, b1=sb1, w2=w2, s2=s2, b2=sb2))
    params["blocks"] = blocks

    params["tail"] = _conv_params(keys[-1], width, width)
    return params


# --------------------------------------------------------------------------------------
# Pure-JAX reference
# --------------------------------------------------------------------------------------
def _ref_conv(x, w, scale, bias, residual=None, relu=True):
    y = jax.lax.conv_general_dilated(
        x, w, window_strides=(1, 1), padding="SAME",
        dimension_numbers=("NHWC", "HWIO", "NHWC"))
    y = y * scale[None, None, None, :] + bias[None, None, None, :]
    if residual is not None:
        y = y + residual
    if relu:
        y = jnp.maximum(y, 0.0)
    return y


def lpenet_reference(x_nhwc, params):
    w0, b0 = params["head"]
    out = _ref_conv(x_nhwc, w0, jnp.ones((w0.shape[-1],)), b0, relu=True)
    for blk in params["blocks"]:
        residual = out
        h = _ref_conv(out, blk["w1"], blk["s1"], blk["b1"], relu=True)
        out = _ref_conv(h, blk["w2"], blk["s2"], blk["b2"],
                        residual=residual, relu=True)
    wt, bt = params["tail"]
    return _ref_conv(out, wt, jnp.ones((wt.shape[-1],)), bt, relu=False)


# --------------------------------------------------------------------------------------
if __name__ == "__main__":
    key = jax.random.PRNGKey(0)
    kx, kp = jax.random.split(key)

    # PyTorch-style NCHW input: batch=2, in_channels=6, 16x16 spatial.
    x_nchw = jax.random.normal(kx, (2, 6, 16, 16), jnp.float32)
    x_nhwc = jnp.transpose(x_nchw, (0, 2, 3, 1))   # NHWC inside the kernel

    params = init_params(kp, in_channels=6, num_blocks=5, width=64)

    out = jax.block_until_ready(lpenet_forward(x_nhwc, params))
    ref = jax.block_until_ready(lpenet_reference(x_nhwc, params))

    assert out.shape == (2, 16, 16, 64), out.shape
    max_err = float(jnp.max(jnp.abs(out - ref)))
    assert max_err < 1e-3, f"mismatch vs reference: {max_err}"

    print("KERNEL_OK")
</pallas_src>

<mosaic_0001>
module attributes {stable_mosaic.version = 11 : i64} {
  func.func @_lpenet_kernel(%arg0: i32, %arg1: memref<1x16x8x128xf32, #tpu.memory_space<vmem>>, %arg2: memref<108x128x128xf32, #tpu.memory_space<vmem>>, %arg3: memref<12x1x128xf32, #tpu.memory_space<vmem>>, %arg4: memref<1x16x8x128xf32, #tpu.memory_space<vmem>>, %arg5: memref<18x17x128xf32, #tpu.memory_space<vmem>>, %arg6: memref<128x128xf32, #tpu.memory_space<vmem>>) attributes {dimension_semantics = [#tpu.dimension_semantics<parallel>], iteration_bounds = array<i64: 2>, scalar_prefetch = 0 : i64, scratch_operands = 2 : i64, tpu.core_type = #tpu.core_type<tc>, window_params = [{transform_indices = @transform_0, window_bounds = array<i64: 1, 16, 8, 128>}, {pipeline_mode = #tpu.pipeline_mode<synchronous>, transform_indices = @transform_1, window_bounds = array<i64: 108, 128, 128>}, {pipeline_mode = #tpu.pipeline_mode<synchronous>, transform_indices = @transform_2, window_bounds = array<i64: 12, 1, 128>}, {transform_indices = @transform_3, window_bounds = array<i64: 1, 16, 8, 128>}]} {
    %cst = arith.constant 0.000000e+00 : f32
    %0 = vector.broadcast %cst : f32 to vector<1x10x128xf32>
    %c0 = arith.constant 0 : index
    %c7 = arith.constant 7 : index
    %c0_0 = arith.constant 0 : index
    %1 = vector.load %arg5[%c0, %c7, %c0_0] : memref<18x17x128xf32, #tpu.memory_space<vmem>>, vector<1x10x128xf32>
    tpu.vector_store %arg5[%c0, %c7, %c0_0], %0 {strides = array<i32>} : memref<18x17x128xf32, #tpu.memory_space<vmem>>, vector<1x10x128xf32>,
    %cst_1 = arith.constant 0.000000e+00 : f32
    %2 = vector.broadcast %cst_1 : f32 to vector<1x10x128xf32>
    %c17 = arith.constant 17 : index
    %c7_2 = arith.constant 7 : index
    %c0_3 = arith.constant 0 : index
    %3 = vector.load %arg5[%c17, %c7_2, %c0_3] : memref<18x17x128xf32, #tpu.memory_space<vmem>>, vector<1x10x128xf32>
    tpu.vector_store %arg5[%c17, %c7_2, %c0_3], %2 {strides = array<i32>} : memref<18x17x128xf32, #tpu.memory_space<vmem>>, vector<1x10x128xf32>,
    %cst_4 = arith.constant 0.000000e+00 : f32
    %4 = vector.broadcast %cst_4 : f32 to vector<16x1x128xf32>
    %c1 = arith.constant 1 : index
    %c7_5 = arith.constant 7 : index
    %c0_6 = arith.constant 0 : index
    %5 = vector.load %arg5[%c1, %c7_5, %c0_6] : memref<18x17x128xf32, #tpu.memory_space<vmem>>, vector<16x1x128xf32>
    tpu.vector_store %arg5[%c1, %c7_5, %c0_6], %4 {strides = array<i32>} : memref<18x17x128xf32, #tpu.memory_space<vmem>>, vector<16x1x128xf32>,
    %cst_7 = arith.constant 0.000000e+00 : f32
    %6 = vector.broadcast %cst_7 : f32 to vector<16x1x128xf32>
    %c1_8 = arith.constant 1 : index
    %c16 = arith.constant 16 : index
    %c0_9 = arith.constant 0 : index
    %7 = vector.load %arg5[%c1_8, %c16, %c0_9] : memref<18x17x128xf32, #tpu.memory_space<vmem>>, vector<16x1x128xf32>
    tpu.vector_store %arg5[%c1_8, %c16, %c0_9], %6 {strides = array<i32>} : memref<18x17x128xf32, #tpu.memory_space<vmem>>, vector<16x1x128xf32>,
    %c0_10 = arith.constant 0 : index
    %c0_11 = arith.constant 0 : index
    %c0_12 = arith.constant 0 : index
    %c0_13 = arith.constant 0 : index
    %8 = vector.load %arg1[%c0_10, %c0_11, %c0_12, %c0_13] : memref<1x16x8x128xf32, #tpu.memory_space<vmem>>, vector<1x16x8x128xf32>
    %9 = vector.shape_cast %8 : vector<1x16x8x128xf32> to vector<16x8x128xf32>
    %c1_14 = arith.constant 1 : index
    %c8 = arith.constant 8 : index
    %c0_15 = arith.constant 0 : index
    %10 = vector.load %arg5[%c1_14, %c8, %c0_15] : memref<18x17x128xf32, #tpu.memory_space<vmem>>, vector<16x8x128xf32>
    tpu.vector_store %arg5[%c1_14, %c8, %c0_15], %9 {strides = array<i32>} : memref<18x17x128xf32, #tpu.memory_space<vmem>>, vector<16x8x128xf32>,
    %c0_16 = arith.constant 0 : index
    %c7_17 = arith.constant 7 : index
    %c0_18 = arith.constant 0 : index
    %11 = vector.load %arg5[%c0_16, %c7_17, %c0_18] : memref<18x17x128xf32, #tpu.memory_space<vmem>>, vector<16x8x128xf32>
    %12 = vector.shape_cast %11 : vector<16x8x128xf32> to vector<128x128xf32>
    %c0_19 = arith.constant 0 : index
    %c0_20 = arith.constant 0 : index
    %c0_21 = arith.constant 0 : index
    %13 = vector.load %arg2[%c0_19, %c0_20, %c0_21] : memref<108x128x128xf32, #tpu.memory_space<vmem>>, vector<1x128x128xf32>
    %14 = vector.shape_cast %13 : vector<1x128x128xf32> to vector<128x128xf32>
    %cst_22 = arith.constant dense<0.000000e+00> : vector<128x128xf32>
    %15 = tpu.matmul %12, %14, %cst_22 {dimension_numbers = #tpu.dot_dimension_numbers<[1], [0], [0], [1], [0, 0, 1, 1], [], []>} : vector<128x128xf32>, vector<128x128xf32>, vector<128x128xf32> -> vector<128x128xf32>
    %c0_23 = arith.constant 0 : index
    %c8_24 = arith.constant 8 : index
    %c0_25 = arith.constant 0 : index
    %16 = vector.load %arg5[%c0_23, %c8_24, %c0_25] : memref<18x17x128xf32, #tpu.memory_space<vmem>>, vector<16x8x128xf32>
    %17 = vector.shape_cast %16 : vector<16x8x128xf32> to vector<128x128xf32>
    %c1_26 = arith.constant 1 : index
    %c0_27 = arith.constant 0 : index
    %c0_28 = arith.constant 0 : index
    %18 = vector.load %arg2[%c1_26, %c0_27, %c0_28] : memref<108x128x128xf32, #tpu.memory_space<vmem>>, vector<1x128x128xf32>
    %19 = vector.shape_cast %18 : vector<1x128x128xf32> to vector<128x128xf32>
    %cst_29 = arith.constant dense<0.000000e+00> : vector<128x128xf32>
    %20 = tpu.matmul %17, %19, %cst_29 {dimension_numbers = #tpu.dot_dimension_numbers<[1], [0], [0], [1], [0, 0, 1, 1], [], []>} : vector<128x128xf32>, vector<128x128xf32>, vector<128x128xf32> -> vector<128x128xf32>
    %21 = arith.addf %15, %20 : vector<128x128xf32>
    %c0_30 = arith.constant 0 : index
    %c9 = arith.constant 9 : index
    %c0_31 = arith.constant 0 : index
    %22 = vector.load %arg5[%c0_30, %c9, %c0_31] : memref<18x17x128xf32, #tpu.memory_space<vmem>>, vector<16x8x128xf32>
    %23 = vector.shape_cast %22 : vector<16x8x128xf32> to vector<128x128xf32>
    %c2 = arith.constant 2 : index
    %c0_32 = arith.constant 0 : index
    %c0_33 = arith.constant 0 : index
    %24 = vector.load %arg2[%c2, %c0_32, %c0_33] : memref<108x128x128xf32, #tpu.memory_space<vmem>>, vector<1x128x128xf32>
    %25 = vector.shape_cast %24 : vector<1x128x128xf32> to vector<128x128xf32>
    %cst_34 = arith.constant dense<0.000000e+00> : vector<128x128xf32>
    %26 = tpu.matmul %23, %25, %cst_34 {dimension_numbers = #tpu.dot_dimension_numbers<[1], [0], [0], [1], [0, 0, 1, 1], [], []>} : vector<128x128xf32>, vector<128x128xf32>, vector<128x128xf32> -> vector<128x128xf32>
    %27 = arith.addf %21, %26 : vector<128x128xf32>
    %c1_35 = arith.constant 1 : index
    %c7_36 = arith.constant 7 : index
    %c0_37 = arith.constant 0 : index
    %28 = vector.load %arg5[%c1_35, %c7_36, %c0_37] : memref<18x17x128xf32, #tpu.memory_space<vmem>>, vector<16x8x128xf32>
    %29 = vector.shape_cast %28 : vector<16x8x128xf32> to vector<128x128xf32>
    %c3 = arith.constant 3 : index
    %c0_38 = arith.constant 0 : index
    %c0_39 = arith.constant 0 : index
    %30 = vector.load %arg2[%c3, %c0_38, %c0_39] : memref<108x128x128xf32, #tpu.memory_space<vmem>>, vector<1x128x128xf32>
    %31 = vector.shape_cast %30 : vector<1x128x128xf32> to vector<128x128xf32>
    %cst_40 = arith.constant dense<0.000000e+00> : vector<128x128xf32>
    %32 = tpu.matmul %29, %31, %cst_40 {dimension_numbers = #tpu.dot_dimension_numbers<[1], [0], [0], [1], [0, 0, 1, 1], [], []>} : vector<128x128xf32>, vector<128x128xf32>, vector<128x128xf32> -> vector<128x128xf32>
    %33 = arith.addf %27, %32 : vector<128x128xf32>
    %c1_41 = arith.constant 1 : index
    %c8_42 = arith.constant 8 : index
    %c0_43 = arith.constant 0 : index
    %34 = vector.load %arg5[%c1_41, %c8_42, %c0_43] : memref<18x17x128xf32, #tpu.memory_space<vmem>>, vector<16x8x128xf32>
    %35 = vector.shape_cast %34 : vector<16x8x128xf32> to vector<128x128xf32>
    %c4 = arith.constant 4 : index
    %c0_44 = arith.constant 0 : index
    %c0_45 = arith.constant 0 : index
    %36 = vector.load %arg2[%c4, %c0_44, %c0_45] : memref<108x128x128xf32, #tpu.memory_space<vmem>>, vector<1x128x128xf32>
    %37 = vector.shape_cast %36 : vector<1x128x128xf32> to vector<128x128xf32>
    %cst_46 = arith.constant dense<0.000000e+00> : vector<128x128xf32>
    %38 = tpu.matmul %35, %37, %cst_46 {dimension_numbers = #tpu.dot_dimension_numbers<[1], [0], [0], [1], [0, 0, 1, 1], [], []>} : vector<128x128xf32>, vector<128x128xf32>, vector<128x128xf32> -> vector<128x128xf32>
    %39 = arith.addf %33, %38 : vector<128x128xf32>
    %c1_47 = arith.constant 1 : index
    %c9_48 = arith.constant 9 : index
    %c0_49 = arith.constant 0 : index
    %40 = vector.load %arg5[%c1_47, %c9_48, %c0_49] : memref<18x17x128xf32, #tpu.memory_space<vmem>>, vector<16x8x128xf32>
    %41 = vector.shape_cast %40 : vector<16x8x128xf32> to vector<128x128xf32>
    %c5 = arith.constant 5 : index
    %c0_50 = arith.constant 0 : index
    %c0_51 = arith.constant 0 : index
    %42 = vector.load %arg2[%c5, %c0_50, %c0_51] : memref<108x128x128xf32, #tpu.memory_space<vmem>>, vector<1x128x128xf32>
    %43 = vector.shape_cast %42 : vector<1x128x128xf32> to vector<128x128xf32>
    %cst_52 = arith.constant dense<0.000000e+00> : vector<128x128xf32>
    %44 = tpu.matmul %41, %43, %cst_52 {dimension_numbers = #tpu.dot_dimension_numbers<[1], [0], [0], [1], [0, 0, 1, 1], [], []>} : vector<128x128xf32>, vector<128x128xf32>, vector<128x128xf32> -> vector<128x128xf32>
    %45 = arith.addf %39, %44 : vector<128x128xf32>
    %c2_53 = arith.constant 2 : index
    %c7_54 = arith.constant 7 : index
    %c0_55 = arith.constant 0 : index
    %46 = vector.load %arg5[%c2_53, %c7_54, %c0_55] : memref<18x17x128xf32, #tpu.memory_space<vmem>>, vector<16x8x128xf32>
    %47 = vector.shape_cast %46 : vector<16x8x128xf32> to vector<128x128xf32>
    %c6 = arith.constant 6 : index
    %c0_56 = arith.constant 0 : index
    %c0_57 = arith.constant 0 : index
    %48 = vector.load %arg2[%c6, %c0_56, %c0_57] : memref<108x128x128xf32, #tpu.memory_space<vmem>>, vector<1x128x128xf32>
    %49 = vector.shape_cast %48 : vector<1x128x128xf32> to vector<128x128xf32>
    %cst_58 = arith.constant dense<0.000000e+00> : vector<128x128xf32>
    %50 = tpu.matmul %47, %49, %cst_58 {dimension_numbers = #tpu.dot_dimension_numbers<[1], [0], [0], [1], [0, 0, 1, 1], [], []>} : vector<128x128xf32>, vector<128x128xf32>, vector<128x128xf32> -> vector<128x128xf32>
    %51 = arith.addf %45, %50 : vector<128x128xf32>
    %c2_59 = arith.constant 2 : index
    %c8_60 = arith.constant 8 : index
    %c0_61 = arith.constant 0 : index
    %52 = vector.load %arg5[%c2_59, %c8_60, %c0_61] : memref<18x17x128xf32, #tpu.memory_space<vmem>>, vector<16x8x128xf32>
    %53 = vector.shape_cast %52 : vector<16x8x128xf32> to vector<128x128xf32>
    %c7_62 = arith.constant 7 : index
    %c0_63 = arith.constant 0 : index
    %c0_64 = arith.constant 0 : index
    %54 = vector.load %arg2[%c7_62, %c0_63, %c0_64] : memref<108x128x128xf32, #tpu.memory_space<vmem>>, vector<1x128x128xf32>
    %55 = vector.shape_cast %54 : vector<1x128x128xf32> to vector<128x128xf32>
    %cst_65 = arith.constant dense<0.000000e+00> : vector<128x128xf32>
    %56 = tpu.matmul %53, %55, %cst_65 {dimension_numbers = #tpu.dot_dimension_numbers<[1], [0], [0], [1], [0, 0, 1, 1], [], []>} : vector<128x128xf32>, vector<128x128xf32>, vector<128x128xf32> -> vector<128x128xf32>
    %57 = arith.addf %51, %56 : vector<128x128xf32>
    %c2_66 = arith.constant 2 : index
    %c9_67 = arith.constant 9 : index
    %c0_68 = arith.constant 0 : index
    %58 = vector.load %arg5[%c2_66, %c9_67, %c0_68] : memref<18x17x128xf32, #tpu.memory_space<vmem>>, vector<16x8x128xf32>
    %59 = vector.shape_cast %58 : vector<16x8x128xf32> to vector<128x128xf32>
    %c8_69 = arith.constant 8 : index
    %c0_70 = arith.constant 0 : index
    %c0_71 = arith.constant 0 : index
    %60 = vector.load %arg2[%c8_69, %c0_70, %c0_71] : memref<108x128x128xf32, #tpu.memory_space<vmem>>, vector<1x128x128xf32>
    %61 = vector.shape_cast %60 : vector<1x128x128xf32> to vector<128x128xf32>
    %cst_72 = arith.constant dense<0.000000e+00> : vector<128x128xf32>
    %62 = tpu.matmul %59, %61, %cst_72 {dimension_numbers = #tpu.dot_dimension_numbers<[1], [0], [0], [1], [0, 0, 1, 1], [], []>} : vector<128x128xf32>, vector<128x128xf32>, vector<128x128xf32> -> vector<128x128xf32>
    %63 = arith.addf %57, %62 : vector<128x128xf32>
    %c0_73 = arith.constant 0 : index
    %c0_74 = arith.constant 0 : index
    %c0_75 = arith.constant 0 : index
    %64 = vector.load %arg3[%c0_73, %c0_74, %c0_75] : memref<12x1x128xf32, #tpu.memory_space<vmem>>, vector<1x1x128xf32>
    %65 = vector.shape_cast %64 : vector<1x1x128xf32> to vector<1x128xf32>
    %66 = vector.broadcast %65 : vector<1x128xf32> to vector<128x128xf32>
    %67 = arith.addf %63, %66 : vector<128x128xf32>
    %cst_76 = arith.constant 0.000000e+00 : f32
    %68 = vector.broadcast %cst_76 : f32 to vector<128x128xf32>
    %69 = arith.maximumf %67, %68 : vector<128x128xf32>
    %70 = vector.shape_cast %69 : vector<128x128xf32> to vector<16x8x128xf32>
    %c1_77 = arith.constant 1 : index
    %c8_78 = arith.constant 8 : index
    %c0_79 = arith.constant 0 : index
    %71 = vector.load %arg5[%c1_77, %c8_78, %c0_79] : memref<18x17x128xf32, #tpu.memory_space<vmem>>, vector<16x8x128xf32>
    tpu.vector_store %arg5[%c1_77, %c8_78, %c0_79], %70 {strides = array<i32>} : memref<18x17x128xf32, #tpu.memory_space<vmem>>, vector<16x8x128xf32>,
    %c0_80 = arith.constant 0 : index
    %c0_81 = arith.constant 0 : index
    %72 = vector.load %arg6[%c0_80, %c0_81] : memref<128x128xf32, #tpu.memory_space<vmem>>, vector<128x128xf32>
    tpu.vector_store %arg6[%c0_80, %c0_81], %69 {strides = array<i32>} : memref<128x128xf32, #tpu.memory_space<vmem>>, vector<128x128xf32>,
    %c0_i32 = arith.constant 0 : i32
    %c5_i32 = arith.constant 5 : i32
    %73 = arith.addi %c0_i32, %c5_i32 : i32
    %c1_i32 = arith.constant 1 : i32
    scf.for %arg7 = %c0_i32 to %73 step %c1_i32  : i32 {
      %c2_i32 = arith.constant 2 : i32
      %133 = arith.muli %c2_i32, %arg7 : i32
      %c1_i32_143 = arith.constant 1 : i32
      %134 = arith.addi %c1_i32_143, %133 : i32
      %c0_144 = arith.constant 0 : index
      %c7_145 = arith.constant 7 : index
      %c0_146 = arith.constant 0 : index
      %135 = vector.load %arg5[%c0_144, %c7_145, %c0_146] : memref<18x17x128xf32, #tpu.memory_space<vmem>>, vector<16x8x128xf32>
      %136 = vector.shape_cast %135 : vector<16x8x128xf32> to vector<128x128xf32>
      %c9_i32 = arith.constant 9 : i32
      %137 = arith.muli %134, %c9_i32 : i32
      %c0_i32_147 = arith.constant 0 : i32
      %138 = arith.addi %137, %c0_i32_147 : i32
      %c0_i32_148 = arith.constant 0 : i32
      %139 = arith.addi %138, %c0_i32_148 : i32
      %140 = arith.index_cast %139 : i32 to index
      %c0_149 = arith.constant 0 : index
      %c0_150 = arith.constant 0 : index
      %141 = vector.load %arg2[%140, %c0_149, %c0_150] : memref<108x128x128xf32, #tpu.memory_space<vmem>>, vector<1x128x128xf32>
      %142 = vector.shape_cast %141 : vector<1x128x128xf32> to vector<128x128xf32>
      %cst_151 = arith.constant dense<0.000000e+00> : vector<128x128xf32>
      %143 = tpu.matmul %136, %142, %cst_151 {dimension_numbers = #tpu.dot_dimension_numbers<[1], [0], [0], [1], [0, 0, 1, 1], [], []>} : vector<128x128xf32>, vector<128x128xf32>, vector<128x128xf32> -> vector<128x128xf32>
      %c0_152 = arith.constant 0 : index
      %c8_153 = arith.constant 8 : index
      %c0_154 = arith.constant 0 : index
      %144 = vector.load %arg5[%c0_152, %c8_153, %c0_154] : memref<18x17x128xf32, #tpu.memory_space<vmem>>, vector<16x8x128xf32>
      %145 = vector.shape_cast %144 : vector<16x8x128xf32> to vector<128x128xf32>
      %c9_i32_155 = arith.constant 9 : i32
      %146 = arith.muli %134, %c9_i32_155 : i32
      %c0_i32_156 = arith.constant 0 : i32
      %147 = arith.addi %146, %c0_i32_156 : i32
      %c1_i32_157 = arith.constant 1 : i32
      %148 = arith.addi %147, %c1_i32_157 : i32
      %149 = arith.index_cast %148 : i32 to index
      %c0_158 = arith.constant 0 : index
      %c0_159 = arith.constant 0 : index
      %150 = vector.load %arg2[%149, %c0_158, %c0_159] : memref<108x128x128xf32, #tpu.memory_space<vmem>>, vector<1x128x128xf32>
      %151 = vector.shape_cast %150 : vector<1x128x128xf32> to vector<128x128xf32>
      %cst_160 = arith.constant dense<0.000000e+00> : vector<128x128xf32>
      %152 = tpu.matmul %145, %151, %cst_160 {dimension_numbers = #tpu.dot_dimension_numbers<[1], [0], [0], [1], [0, 0, 1, 1], [], []>} : vector<128x128xf32>, vector<128x128xf32>, vector<128x128xf32> -> vector<128x128xf32>
      %153 = arith.addf %143, %152 : vector<128x128xf32>
      %c0_161 = arith.constant 0 : index
      %c9_162 = arith.constant 9 : index
      %c0_163 = arith.constant 0 : index
      %154 = vector.load %arg5[%c0_161, %c9_162, %c0_163] : memref<18x17x128xf32, #tpu.memory_space<vmem>>, vector<16x8x128xf32>
      %155 = vector.shape_cast %154 : vector<16x8x128xf32> to vector<128x128xf32>
      %c9_i32_164 = arith.constant 9 : i32
      %156 = arith.muli %134, %c9_i32_164 : i32
      %c0_i32_165 = arith.constant 0 : i32
      %157 = arith.addi %156, %c0_i32_165 : i32
      %c2_i32_166 = arith.constant 2 : i32
      %158 = arith.addi %157, %c2_i32_166 : i32
      %159 = arith.index_cast %158 : i32 to index
      %c0_167 = arith.constant 0 : index
      %c0_168 = arith.constant 0 : index
      %160 = vector.load %arg2[%159, %c0_167, %c0_168] : memref<108x128x128xf32, #tpu.memory_space<vmem>>, vector<1x128x128xf32>
      %161 = vector.shape_cast %160 : vector<1x128x128xf32> to vector<128x128xf32>
      %cst_169 = arith.constant dense<0.000000e+00> : vector<128x128xf32>
      %162 = tpu.matmul %155, %161, %cst_169 {dimension_numbers = #tpu.dot_dimension_numbers<[1], [0], [0], [1], [0, 0, 1, 1], [], []>} : vector<128x128xf32>, vector<128x128xf32>, vector<128x128xf32> -> vector<128x128xf32>
      %163 = arith.addf %153, %162 : vector<128x128xf32>
      %c1_170 = arith.constant 1 : index
      %c7_171 = arith.constant 7 : index
      %c0_172 = arith.constant 0 : index
      %164 = vector.load %arg5[%c1_170, %c7_171, %c0_172] : memref<18x17x128xf32, #tpu.memory_space<vmem>>, vector<16x8x128xf32>
      %165 = vector.shape_cast %164 : vector<16x8x128xf32> to vector<128x128xf32>
      %c9_i32_173 = arith.constant 9 : i32
      %166 = arith.muli %134, %c9_i32_173 : i32
      %c3_i32 = arith.constant 3 : i32
      %167 = arith.addi %166, %c3_i32 : i32
      %c0_i32_174 = arith.constant 0 : i32
      %168 = arith.addi %167, %c0_i32_174 : i32
      %169 = arith.index_cast %168 : i32 to index
      %c0_175 = arith.constant 0 : index
      %c0_176 = arith.constant 0 : index
      %170 = vector.load %arg2[%169, %c0_175, %c0_176] : memref<108x128x128xf32, #tpu.memory_space<vmem>>, vector<1x128x128xf32>
      %171 = vector.shape_cast %170 : vector<1x128x128xf32> to vector<128x128xf32>
      %cst_177 = arith.constant dense<0.000000e+00> : vector<128x128xf32>
      %172 = tpu.matmul %165, %171, %cst_177 {dimension_numbers = #tpu.dot_dimension_numbers<[1], [0], [0], [1], [0, 0, 1, 1], [], []>} : vector<128x128xf32>, vector<128x128xf32>, vector<128x128xf32> -> vector<128x128xf32>
      %173 = arith.addf %163, %172 : vector<128x128xf32>
      %c1_178 = arith.constant 1 : index
      %c8_179 = arith.constant 8 : index
      %c0_180 = arith.constant 0 : index
      %174 = vector.load %arg5[%c1_178, %c8_179, %c0_180] : memref<18x17x128xf32, #tpu.memory_space<vmem>>, vector<16x8x128xf32>
      %175 = vector.shape_cast %174 : vector<16x8x128xf32> to vector<128x128xf32>
      %c9_i32_181 = arith.constant 9 : i32
      %176 = arith.muli %134, %c9_i32_181 : i32
      %c3_i32_182 = arith.constant 3 : i32
      %177 = arith.addi %176, %c3_i32_182 : i32
      %c1_i32_183 = arith.constant 1 : i32
      %178 = arith.addi %177, %c1_i32_183 : i32
      %179 = arith.index_cast %178 : i32 to index
      %c0_184 = arith.constant 0 : index
      %c0_185 = arith.constant 0 : index
      %180 = vector.load %arg2[%179, %c0_184, %c0_185] : memref<108x128x128xf32, #tpu.memory_space<vmem>>, vector<1x128x128xf32>
      %181 = vector.shape_cast %180 : vector<1x128x128xf32> to vector<128x128xf32>
      %cst_186 = arith.constant dense<0.000000e+00> : vector<128x128xf32>
      %182 = tpu.matmul %175, %181, %cst_186 {dimension_numbers = #tpu.dot_dimension_numbers<[1], [0], [0], [1], [0, 0, 1, 1], [], []>} : vector<128x128xf32>, vector<128x128xf32>, vector<128x128xf32> -> vector<128x128xf32>
      %183 = arith.addf %173, %182 : vector<128x128xf32>
      %c1_187 = arith.constant 1 : index
      %c9_188 = arith.constant 9 : index
      %c0_189 = arith.constant 0 : index
      %184 = vector.load %arg5[%c1_187, %c9_188, %c0_189] : memref<18x17x128xf32, #tpu.memory_space<vmem>>, vector<16x8x128xf32>
      %185 = vector.shape_cast %184 : vector<16x8x128xf32> to vector<128x128xf32>
      %c9_i32_190 = arith.constant 9 : i32
      %186 = arith.muli %134, %c9_i32_190 : i32
      %c3_i32_191 = arith.constant 3 : i32
      %187 = arith.addi %186, %c3_i32_191 : i32
      %c2_i32_192 = arith.constant 2 : i32
      %188 = arith.addi %187, %c2_i32_192 : i32
      %189 = arith.index_cast %188 : i32 to index
      %c0_193 = arith.constant 0 : index
      %c0_194 = arith.constant 0 : index
      %190 = vector.load %arg2[%189, %c0_193, %c0_194] : memref<108x128x128xf32, #tpu.memory_space<vmem>>, vector<1x128x128xf32>
      %191 = vector.shape_cast %190 : vector<1x128x128xf32> to vector<128x128xf32>
      %cst_195 = arith.constant dense<0.000000e+00> : vector<128x128xf32>
      %192 = tpu.matmul %185, %191, %cst_195 {dimension_numbers = #tpu.dot_dimension_numbers<[1], [0], [0], [1], [0, 0, 1, 1], [], []>} : vector<128x128xf32>, vector<128x128xf32>, vector<128x128xf32> -> vector<128x128xf32>
      %193 = arith.addf %183, %192 : vector<128x128xf32>
      %c2_196 = arith.constant 2 : index
      %c7_197 = arith.constant 7 : index
      %c0_198 = arith.constant 0 : index
      %194 = vector.load %arg5[%c2_196, %c7_197, %c0_198] : memref<18x17x128xf32, #tpu.memory_space<vmem>>, vector<16x8x128xf32>
      %195 = vector.shape_cast %194 : vector<16x8x128xf32> to vector<128x128xf32>
      %c9_i32_199 = arith.constant 9 : i32
      %196 = arith.muli %134, %c9_i32_199 : i32
      %c6_i32 = arith.constant 6 : i32
      %197 = arith.addi %196, %c6_i32 : i32
      %c0_i32_200 = arith.constant 0 : i32
      %198 = arith.addi %197, %c0_i32_200 : i32
      %199 = arith.index_cast %198 : i32 to index
      %c0_201 = arith.constant 0 : index
      %c0_202 = arith.constant 0 : index
      %200 = vector.load %arg2[%199, %c0_201, %c0_202] : memref<108x128x128xf32, #tpu.memory_space<vmem>>, vector<1x128x128xf32>
      %201 = vector.shape_cast %200 : vector<1x128x128xf32> to vector<128x128xf32>
      %cst_203 = arith.constant dense<0.000000e+00> : vector<128x128xf32>
      %202 = tpu.matmul %195, %201, %cst_203 {dimension_numbers = #tpu.dot_dimension_numbers<[1], [0], [0], [1], [0, 0, 1, 1], [], []>} : vector<128x128xf32>, vector<128x128xf32>, vector<128x128xf32> -> vector<128x128xf32>
      %203 = arith.addf %193, %202 : vector<128x128xf32>
      %c2_204 = arith.constant 2 : index
      %c8_205 = arith.constant 8 : index
      %c0_206 = arith.constant 0 : index
      %204 = vector.load %arg5[%c2_204, %c8_205, %c0_206] : memref<18x17x128xf32, #tpu.memory_space<vmem>>, vector<16x8x128xf32>
      %205 = vector.shape_cast %204 : vector<16x8x128xf32> to vector<128x128xf32>
      %c9_i32_207 = arith.constant 9 : i32
      %206 = arith.muli %134, %c9_i32_207 : i32
      %c6_i32_208 = arith.constant 6 : i32
      %207 = arith.addi %206, %c6_i32_208 : i32
      %c1_i32_209 = arith.constant 1 : i32
      %208 = arith.addi %207, %c1_i32_209 : i32
      %209 = arith.index_cast %208 : i32 to index
      %c0_210 = arith.constant 0 : index
      %c0_211 = arith.constant 0 : index
      %210 = vector.load %arg2[%209, %c0_210, %c0_211] : memref<108x128x128xf32, #tpu.memory_space<vmem>>, vector<1x128x128xf32>
      %211 = vector.shape_cast %210 : vector<1x128x128xf32> to vector<128x128xf32>
      %cst_212 = arith.constant dense<0.000000e+00> : vector<128x128xf32>
      %212 = tpu.matmul %205, %211, %cst_212 {dimension_numbers = #tpu.dot_dimension_numbers<[1], [0], [0], [1], [0, 0, 1, 1], [], []>} : vector<128x128xf32>, vector<128x128xf32>, vector<128x128xf32> -> vector<128x128xf32>
      %213 = arith.addf %203, %212 : vector<128x128xf32>
      %c2_213 = arith.constant 2 : index
      %c9_214 = arith.constant 9 : index
      %c0_215 = arith.constant 0 : index
      %214 = vector.load %arg5[%c2_213, %c9_214, %c0_215] : memref<18x17x128xf32, #tpu.memory_space<vmem>>, vector<16x8x128xf32>
      %215 = vector.shape_cast %214 : vector<16x8x128xf32> to vector<128x128xf32>
      %c9_i32_216 = arith.constant 9 : i32
      %216 = arith.muli %134, %c9_i32_216 : i32
      %c6_i32_217 = arith.constant 6 : i32
      %217 = arith.addi %216, %c6_i32_217 : i32
      %c2_i32_218 = arith.constant 2 : i32
      %218 = arith.addi %217, %c2_i32_218 : i32
      %219 = arith.index_cast %218 : i32 to index
      %c0_219 = arith.constant 0 : index
      %c0_220 = arith.constant 0 : index
      %220 = vector.load %arg2[%219, %c0_219, %c0_220] : memref<108x128x128xf32, #tpu.memory_space<vmem>>, vector<1x128x128xf32>
      %221 = vector.shape_cast %220 : vector<1x128x128xf32> to vector<128x128xf32>
      %cst_221 = arith.constant dense<0.000000e+00> : vector<128x128xf32>
      %222 = tpu.matmul %215, %221, %cst_221 {dimension_numbers = #tpu.dot_dimension_numbers<[1], [0], [0], [1], [0, 0, 1, 1], [], []>} : vector<128x128xf32>, vector<128x128xf32>, vector<128x128xf32> -> vector<128x128xf32>
      %223 = arith.addf %213, %222 : vector<128x128xf32>
      %224 = arith.index_cast %134 : i32 to index
      %c0_222 = arith.constant 0 : index
      %c0_223 = arith.constant 0 : index
      %225 = vector.load %arg3[%224, %c0_222, %c0_223] : memref<12x1x128xf32, #tpu.memory_space<vmem>>, vector<1x1x128xf32>
      %226 = vector.shape_cast %225 : vector<1x1x128xf32> to vector<1x128xf32>
      %227 = vector.broadcast %226 : vector<1x128xf32> to vector<128x128xf32>
      %228 = arith.addf %223, %227 : vector<128x128xf32>
      %cst_224 = arith.constant 0.000000e+00 : f32
      %229 = vector.broadcast %cst_224 : f32 to vector<128x128xf32>
      %230 = arith.maximumf %228, %229 : vector<128x128xf32>
      %231 = vector.shape_cast %230 : vector<128x128xf32> to vector<16x8x128xf32>
      %c1_225 = arith.constant 1 : index
      %c8_226 = arith.constant 8 : index
      %c0_227 = arith.constant 0 : index
      %232 = vector.load %arg5[%c1_225, %c8_226, %c0_227] : memref<18x17x128xf32, #tpu.memory_space<vmem>>, vector<16x8x128xf32>
      tpu.vector_store %arg5[%c1_225, %c8_226, %c0_227], %231 {strides = array<i32>} : memref<18x17x128xf32, #tpu.memory_space<vmem>>, vector<16x8x128xf32>,
      %c1_i32_228 = arith.constant 1 : i32
      %233 = arith.addi %134, %c1_i32_228 : i32
      %c0_229 = arith.constant 0 : index
      %c7_230 = arith.constant 7 : index
      %c0_231 = arith.constant 0 : index
      %234 = vector.load %arg5[%c0_229, %c7_230, %c0_231] : memref<18x17x128xf32, #tpu.memory_space<vmem>>, vector<16x8x128xf32>
      %235 = vector.shape_cast %234 : vector<16x8x128xf32> to vector<128x128xf32>
      %c9_i32_232 = arith.constant 9 : i32
      %236 = arith.muli %233, %c9_i32_232 : i32
      %c0_i32_233 = arith.constant 0 : i32
      %237 = arith.addi %236, %c0_i32_233 : i32
      %c0_i32_234 = arith.constant 0 : i32
      %238 = arith.addi %237, %c0_i32_234 : i32
      %239 = arith.index_cast %238 : i32 to index
      %c0_235 = arith.constant 0 : index
      %c0_236 = arith.constant 0 : index
      %240 = vector.load %arg2[%239, %c0_235, %c0_236] : memref<108x128x128xf32, #tpu.memory_space<vmem>>, vector<1x128x128xf32>
      %241 = vector.shape_cast %240 : vector<1x128x128xf32> to vector<128x128xf32>
      %cst_237 = arith.constant dense<0.000000e+00> : vector<128x128xf32>
      %242 = tpu.matmul %235, %241, %cst_237 {dimension_numbers = #tpu.dot_dimension_numbers<[1], [0], [0], [1], [0, 0, 1, 1], [], []>} : vector<128x128xf32>, vector<128x128xf32>, vector<128x128xf32> -> vector<128x128xf32>
      %c0_238 = arith.constant 0 : index
      %c8_239 = arith.constant 8 : index
      %c0_240 = arith.constant 0 : index
      %243 = vector.load %arg5[%c0_238, %c8_239, %c0_240] : memref<18x17x128xf32, #tpu.memory_space<vmem>>, vector<16x8x128xf32>
      %244 = vector.shape_cast %243 : vector<16x8x128xf32> to vector<128x128xf32>
      %c9_i32_241 = arith.constant 9 : i32
      %245 = arith.muli %233, %c9_i32_241 : i32
      %c0_i32_242 = arith.constant 0 : i32
      %246 = arith.addi %245, %c0_i32_242 : i32
      %c1_i32_243 = arith.constant 1 : i32
      %247 = arith.addi %246, %c1_i32_243 : i32
      %248 = arith.index_cast %247 : i32 to index
      %c0_244 = arith.constant 0 : index
      %c0_245 = arith.constant 0 : index
      %249 = vector.load %arg2[%248, %c0_244, %c0_245] : memref<108x128x128xf32, #tpu.memory_space<vmem>>, vector<1x128x128xf32>
      %250 = vector.shape_cast %249 : vector<1x128x128xf32> to vector<128x128xf32>
      %cst_246 = arith.constant dense<0.000000e+00> : vector<128x128xf32>
      %251 = tpu.matmul %244, %250, %cst_246 {dimension_numbers = #tpu.dot_dimension_numbers<[1], [0], [0], [1], [0, 0, 1, 1], [], []>} : vector<128x128xf32>, vector<128x128xf32>, vector<128x128xf32> -> vector<128x128xf32>
      %252 = arith.addf %242, %251 : vector<128x128xf32>
      %c0_247 = arith.constant 0 : index
      %c9_248 = arith.constant 9 : index
      %c0_249 = arith.constant 0 : index
      %253 = vector.load %arg5[%c0_247, %c9_248, %c0_249] : memref<18x17x128xf32, #tpu.memory_space<vmem>>, vector<16x8x128xf32>
      %254 = vector.shape_cast %253 : vector<16x8x128xf32> to vector<128x128xf32>
      %c9_i32_250 = arith.constant 9 : i32
      %255 = arith.muli %233, %c9_i32_250 : i32
      %c0_i32_251 = arith.constant 0 : i32
      %256 = arith.addi %255, %c0_i32_251 : i32
      %c2_i32_252 = arith.constant 2 : i32
      %257 = arith.addi %256, %c2_i32_252 : i32
      %258 = arith.index_cast %257 : i32 to index
      %c0_253 = arith.constant 0 : index
      %c0_254 = arith.constant 0 : index
      %259 = vector.load %arg2[%258, %c0_253, %c0_254] : memref<108x128x128xf32, #tpu.memory_space<vmem>>, vector<1x128x128xf32>
      %260 = vector.shape_cast %259 : vector<1x128x128xf32> to vector<128x128xf32>
      %cst_255 = arith.constant dense<0.000000e+00> : vector<128x128xf32>
      %261 = tpu.matmul %254, %260, %cst_255 {dimension_numbers = #tpu.dot_dimension_numbers<[1], [0], [0], [1], [0, 0, 1, 1], [], []>} : vector<128x128xf32>, vector<128x128xf32>, vector<128x128xf32> -> vector<128x128xf32>
      %262 = arith.addf %252, %261 : vector<128x128xf32>
      %c1_256 = arith.constant 1 : index
      %c7_257 = arith.constant 7 : index
      %c0_258 = arith.constant 0 : index
      %263 = vector.load %arg5[%c1_256, %c7_257, %c0_258] : memref<18x17x128xf32, #tpu.memory_space<vmem>>, vector<16x8x128xf32>
      %264 = vector.shape_cast %263 : vector<16x8x128xf32> to vector<128x128xf32>
      %c9_i32_259 = arith.constant 9 : i32
      %265 = arith.muli %233, %c9_i32_259 : i32
      %c3_i32_260 = arith.constant 3 : i32
      %266 = arith.addi %265, %c3_i32_260 : i32
      %c0_i32_261 = arith.constant 0 : i32
      %267 = arith.addi %266, %c0_i32_261 : i32
      %268 = arith.index_cast %267 : i32 to index
      %c0_262 = arith.constant 0 : index
      %c0_263 = arith.constant 0 : index
      %269 = vector.load %arg2[%268, %c0_262, %c0_263] : memref<108x128x128xf32, #tpu.memory_space<vmem>>, vector<1x128x128xf32>
      %270 = vector.shape_cast %269 : vector<1x128x128xf32> to vector<128x128xf32>
      %cst_264 = arith.constant dense<0.000000e+00> : vector<128x128xf32>
      %271 = tpu.matmul %264, %270, %cst_264 {dimension_numbers = #tpu.dot_dimension_numbers<[1], [0], [0], [1], [0, 0, 1, 1], [], []>} : vector<128x128xf32>, vector<128x128xf32>, vector<128x128xf32> -> vector<128x128xf32>
      %272 = arith.addf %262, %271 : vector<128x128xf32>
      %c1_265 = arith.constant 1 : index
      %c8_266 = arith.constant 8 : index
      %c0_267 = arith.constant 0 : index
      %273 = vector.load %arg5[%c1_265, %c8_266, %c0_267] : memref<18x17x128xf32, #tpu.memory_space<vmem>>, vector<16x8x128xf32>
      %274 = vector.shape_cast %273 : vector<16x8x128xf32> to vector<128x128xf32>
      %c9_i32_268 = arith.constant 9 : i32
      %275 = arith.muli %233, %c9_i32_268 : i32
      %c3_i32_269 = arith.constant 3 : i32
      %276 = arith.addi %275, %c3_i32_269 : i32
      %c1_i32_270 = arith.constant 1 : i32
      %277 = arith.addi %276, %c1_i32_270 : i32
      %278 = arith.index_cast %277 : i32 to index
      %c0_271 = arith.constant 0 : index
      %c0_272 = arith.constant 0 : index
      %279 = vector.load %arg2[%278, %c0_271, %c0_272] : memref<108x128x128xf32, #tpu.memory_space<vmem>>, vector<1x128x128xf32>
      %280 = vector.shape_cast %279 : vector<1x128x128xf32> to vector<128x128xf32>
      %cst_273 = arith.constant dense<0.000000e+00> : vector<128x128xf32>
      %281 = tpu.matmul %274, %280, %cst_273 {dimension_numbers = #tpu.dot_dimension_numbers<[1], [0], [0], [1], [0, 0, 1, 1], [], []>} : vector<128x128xf32>, vector<128x128xf32>, vector<128x128xf32> -> vector<128x128xf32>
      %282 = arith.addf %272, %281 : vector<128x128xf32>
      %c1_274 = arith.constant 1 : index
      %c9_275 = arith.constant 9 : index
      %c0_276 = arith.constant 0 : index
      %283 = vector.load %arg5[%c1_274, %c9_275, %c0_276] : memref<18x17x128xf32, #tpu.memory_space<vmem>>, vector<16x8x128xf32>
      %284 = vector.shape_cast %283 : vector<16x8x128xf32> to vector<128x128xf32>
      %c9_i32_277 = arith.constant 9 : i32
      %285 = arith.muli %233, %c9_i32_277 : i32
      %c3_i32_278 = arith.constant 3 : i32
      %286 = arith.addi %285, %c3_i32_278 : i32
      %c2_i32_279 = arith.constant 2 : i32
      %287 = arith.addi %286, %c2_i32_279 : i32
      %288 = arith.index_cast %287 : i32 to index
      %c0_280 = arith.constant 0 : index
      %c0_281 = arith.constant 0 : index
      %289 = vector.load %arg2[%288, %c0_280, %c0_281] : memref<108x128x128xf32, #tpu.memory_space<vmem>>, vector<1x128x128xf32>
      %290 = vector.shape_cast %289 : vector<1x128x128xf32> to vector<128x128xf32>
      %cst_282 = arith.constant dense<0.000000e+00> : vector<128x128xf32>
      %291 = tpu.matmul %284, %290, %cst_282 {dimension_numbers = #tpu.dot_dimension_numbers<[1], [0], [0], [1], [0, 0, 1, 1], [], []>} : vector<128x128xf32>, vector<128x128xf32>, vector<128x128xf32> -> vector<128x128xf32>
      %292 = arith.addf %282, %291 : vector<128x128xf32>
      %c2_283 = arith.constant 2 : index
      %c7_284 = arith.constant 7 : index
      %c0_285 = arith.constant 0 : index
      %293 = vector.load %arg5[%c2_283, %c7_284, %c0_285] : memref<18x17x128xf32, #tpu.memory_space<vmem>>, vector<16x8x128xf32>
      %294 = vector.shape_cast %293 : vector<16x8x128xf32> to vector<128x128xf32>
      %c9_i32_286 = arith.constant 9 : i32
      %295 = arith.muli %233, %c9_i32_286 : i32
      %c6_i32_287 = arith.constant 6 : i32
      %296 = arith.addi %295, %c6_i32_287 : i32
      %c0_i32_288 = arith.constant 0 : i32
      %297 = arith.addi %296, %c0_i32_288 : i32
      %298 = arith.index_cast %297 : i32 to index
      %c0_289 = arith.constant 0 : index
      %c0_290 = arith.constant 0 : index
      %299 = vector.load %arg2[%298, %c0_289, %c0_290] : memref<108x128x128xf32, #tpu.memory_space<vmem>>, vector<1x128x128xf32>
      %300 = vector.shape_cast %299 : vector<1x128x128xf32> to vector<128x128xf32>
      %cst_291 = arith.constant dense<0.000000e+00> : vector<128x128xf32>
      %301 = tpu.matmul %294, %300, %cst_291 {dimension_numbers = #tpu.dot_dimension_numbers<[1], [0], [0], [1], [0, 0, 1, 1], [], []>} : vector<128x128xf32>, vector<128x128xf32>, vector<128x128xf32> -> vector<128x128xf32>
      %302 = arith.addf %292, %301 : vector<128x128xf32>
      %c2_292 = arith.constant 2 : index
      %c8_293 = arith.constant 8 : index
      %c0_294 = arith.constant 0 : index
      %303 = vector.load %arg5[%c2_292, %c8_293, %c0_294] : memref<18x17x128xf32, #tpu.memory_space<vmem>>, vector<16x8x128xf32>
      %304 = vector.shape_cast %303 : vector<16x8x128xf32> to vector<128x128xf32>
      %c9_i32_295 = arith.constant 9 : i32
      %305 = arith.muli %233, %c9_i32_295 : i32
      %c6_i32_296 = arith.constant 6 : i32
      %306 = arith.addi %305, %c6_i32_296 : i32
      %c1_i32_297 = arith.constant 1 : i32
      %307 = arith.addi %306, %c1_i32_297 : i32
      %308 = arith.index_cast %307 : i32 to index
      %c0_298 = arith.constant 0 : index
      %c0_299 = arith.constant 0 : index
      %309 = vector.load %arg2[%308, %c0_298, %c0_299] : memref<108x128x128xf32, #tpu.memory_space<vmem>>, vector<1x128x128xf32>
      %310 = vector.shape_cast %309 : vector<1x128x128xf32> to vector<128x128xf32>
      %cst_300 = arith.constant dense<0.000000e+00> : vector<128x128xf32>
      %311 = tpu.matmul %304, %310, %cst_300 {dimension_numbers = #tpu.dot_dimension_numbers<[1], [0], [0], [1], [0, 0, 1, 1], [], []>} : vector<128x128xf32>, vector<128x128xf32>, vector<128x128xf32> -> vector<128x128xf32>
      %312 = arith.addf %302, %311 : vector<128x128xf32>
      %c2_301 = arith.constant 2 : index
      %c9_302 = arith.constant 9 : index
      %c0_303 = arith.constant 0 : index
      %313 = vector.load %arg5[%c2_301, %c9_302, %c0_303] : memref<18x17x128xf32, #tpu.memory_space<vmem>>, vector<16x8x128xf32>
      %314 = vector.shape_cast %313 : vector<16x8x128xf32> to vector<128x128xf32>
      %c9_i32_304 = arith.constant 9 : i32
      %315 = arith.muli %233, %c9_i32_304 : i32
      %c6_i32_305 = arith.constant 6 : i32
      %316 = arith.addi %315, %c6_i32_305 : i32
      %c2_i32_306 = arith.constant 2 : i32
      %317 = arith.addi %316, %c2_i32_306 : i32
      %318 = arith.index_cast %317 : i32 to index
      %c0_307 = arith.constant 0 : index
      %c0_308 = arith.constant 0 : index
      %319 = vector.load %arg2[%318, %c0_307, %c0_308] : memref<108x128x128xf32, #tpu.memory_space<vmem>>, vector<1x128x128xf32>
      %320 = vector.shape_cast %319 : vector<1x128x128xf32> to vector<128x128xf32>
      %cst_309 = arith.constant dense<0.000000e+00> : vector<128x128xf32>
      %321 = tpu.matmul %314, %320, %cst_309 {dimension_numbers = #tpu.dot_dimension_numbers<[1], [0], [0], [1], [0, 0, 1, 1], [], []>} : vector<128x128xf32>, vector<128x128xf32>, vector<128x128xf32> -> vector<128x128xf32>
      %322 = arith.addf %312, %321 : vector<128x128xf32>
      %323 = arith.index_cast %233 : i32 to index
      %c0_310 = arith.constant 0 : index
      %c0_311 = arith.constant 0 : index
      %324 = vector.load %arg3[%323, %c0_310, %c0_311] : memref<12x1x128xf32, #tpu.memory_space<vmem>>, vector<1x1x128xf32>
      %325 = vector.shape_cast %324 : vector<1x1x128xf32> to vector<1x128xf32>
      %326 = vector.broadcast %325 : vector<1x128xf32> to vector<128x128xf32>
      %327 = arith.addf %322, %326 : vector<128x128xf32>
      %c0_312 = arith.constant 0 : index
      %c0_313 = arith.constant 0 : index
      %328 = vector.load %arg6[%c0_312, %c0_313] : memref<128x128xf32, #tpu.memory_space<vmem>>, vector<128x128xf32>
      %329 = arith.addf %327, %328 : vector<128x128xf32>
      %cst_314 = arith.constant 0.000000e+00 : f32
      %330 = vector.broadcast %cst_314 : f32 to vector<128x128xf32>
      %331 = arith.maximumf %329, %330 : vector<128x128xf32>
      %332 = vector.shape_cast %331 : vector<128x128xf32> to vector<16x8x128xf32>
      %c1_315 = arith.constant 1 : index
      %c8_316 = arith.constant 8 : index
      %c0_317 = arith.constant 0 : index
      %333 = vector.load %arg5[%c1_315, %c8_316, %c0_317] : memref<18x17x128xf32, #tpu.memory_space<vmem>>, vector<16x8x128xf32>
      tpu.vector_store %arg5[%c1_315, %c8_316, %c0_317], %332 {strides = array<i32>} : memref<18x17x128xf32, #tpu.memory_space<vmem>>, vector<16x8x128xf32>,
      %c0_318 = arith.constant 0 : index
      %c0_319 = arith.constant 0 : index
      %334 = vector.load %arg6[%c0_318, %c0_319] : memref<128x128xf32, #tpu.memory_space<vmem>>, vector<128x128xf32>
      tpu.vector_store %arg6[%c0_318, %c0_319], %331 {strides = array<i32>} : memref<128x128xf32, #tpu.memory_space<vmem>>, vector<128x128xf32>,
    }
    %c5_i32_82 = arith.constant 5 : i32
    %c0_83 = arith.constant 0 : index
    %c7_84 = arith.constant 7 : index
    %c0_85 = arith.constant 0 : index
    %74 = vector.load %arg5[%c0_83, %c7_84, %c0_85] : memref<18x17x128xf32, #tpu.memory_space<vmem>>, vector<16x8x128xf32>
    %75 = vector.shape_cast %74 : vector<16x8x128xf32> to vector<128x128xf32>
    %c99 = arith.constant 99 : index
    %c0_86 = arith.constant 0 : index
    %c0_87 = arith.constant 0 : index
    %76 = vector.load %arg2[%c99, %c0_86, %c0_87] : memref<108x128x128xf32, #tpu.memory_space<vmem>>, vector<1x128x128xf32>
    %77 = vector.shape_cast %76 : vector<1x128x128xf32> to vector<128x128xf32>
    %cst_88 = arith.constant dense<0.000000e+00> : vector<128x128xf32>
    %78 = tpu.matmul %75, %77, %cst_88 {dimension_numbers = #tpu.dot_dimension_numbers<[1], [0], [0], [1], [0, 0, 1, 1], [], []>} : vector<128x128xf32>, vector<128x128xf32>, vector<128x128xf32> -> vector<128x128xf32>
    %c0_89 = arith.constant 0 : index
    %c8_90 = arith.constant 8 : index
    %c0_91 = arith.constant 0 : index
    %79 = vector.load %arg5[%c0_89, %c8_90, %c0_91] : memref<18x17x128xf32, #tpu.memory_space<vmem>>, vector<16x8x128xf32>
    %80 = vector.shape_cast %79 : vector<16x8x128xf32> to vector<128x128xf32>
    %c100 = arith.constant 100 : index
    %c0_92 = arith.constant 0 : index
    %c0_93 = arith.constant 0 : index
    %81 = vector.load %arg2[%c100, %c0_92, %c0_93] : memref<108x128x128xf32, #tpu.memory_space<vmem>>, vector<1x128x128xf32>
    %82 = vector.shape_cast %81 : vector<1x128x128xf32> to vector<128x128xf32>
    %cst_94 = arith.constant dense<0.000000e+00> : vector<128x128xf32>
    %83 = tpu.matmul %80, %82, %cst_94 {dimension_numbers = #tpu.dot_dimension_numbers<[1], [0], [0], [1], [0, 0, 1, 1], [], []>} : vector<128x128xf32>, vector<128x128xf32>, vector<128x128xf32> -> vector<128x128xf32>
    %84 = arith.addf %78, %83 : vector<128x128xf32>
    %c0_95 = arith.constant 0 : index
    %c9_96 = arith.constant 9 : index
    %c0_97 = arith.constant 0 : index
    %85 = vector.load %arg5[%c0_95, %c9_96, %c0_97] : memref<18x17x128xf32, #tpu.memory_space<vmem>>, vector<16x8x128xf32>
    %86 = vector.shape_cast %85 : vector<16x8x128xf32> to vector<128x128xf32>
    %c101 = arith.constant 101 : index
    %c0_98 = arith.constant 0 : index
    %c0_99 = arith.constant 0 : index
    %87 = vector.load %arg2[%c101, %c0_98, %c0_99] : memref<108x128x128xf32, #tpu.memory_space<vmem>>, vector<1x128x128xf32>
    %88 = vector.shape_cast %87 : vector<1x128x128xf32> to vector<128x128xf32>
    %cst_100 = arith.constant dense<0.000000e+00> : vector<128x128xf32>
    %89 = tpu.matmul %86, %88, %cst_100 {dimension_numbers = #tpu.dot_dimension_numbers<[1], [0], [0], [1], [0, 0, 1, 1], [], []>} : vector<128x128xf32>, vector<128x128xf32>, vector<128x128xf32> -> vector<128x128xf32>
    %90 = arith.addf %84, %89 : vector<128x128xf32>
    %c1_101 = arith.constant 1 : index
    %c7_102 = arith.constant 7 : index
    %c0_103 = arith.constant 0 : index
    %91 = vector.load %arg5[%c1_101, %c7_102, %c0_103] : memref<18x17x128xf32, #tpu.memory_space<vmem>>, vector<16x8x128xf32>
    %92 = vector.shape_cast %91 : vector<16x8x128xf32> to vector<128x128xf32>
    %c102 = arith.constant 102 : index
    %c0_104 = arith.constant 0 : index
    %c0_105 = arith.constant 0 : index
    %93 = vector.load %arg2[%c102, %c0_104, %c0_105] : memref<108x128x128xf32, #tpu.memory_space<vmem>>, vector<1x128x128xf32>
    %94 = vector.shape_cast %93 : vector<1x128x128xf32> to vector<128x128xf32>
    %cst_106 = arith.constant dense<0.000000e+00> : vector<128x128xf32>
    %95 = tpu.matmul %92, %94, %cst_106 {dimension_numbers = #tpu.dot_dimension_numbers<[1], [0], [0], [1], [0, 0, 1, 1], [], []>} : vector<128x128xf32>, vector<128x128xf32>, vector<128x128xf32> -> vector<128x128xf32>
    %96 = arith.addf %90, %95 : vector<128x128xf32>
    %c1_107 = arith.constant 1 : index
    %c8_108 = arith.constant 8 : index
    %c0_109 = arith.constant 0 : index
    %97 = vector.load %arg5[%c1_107, %c8_108, %c0_109] : memref<18x17x128xf32, #tpu.memory_space<vmem>>, vector<16x8x128xf32>
    %98 = vector.shape_cast %97 : vector<16x8x128xf32> to vector<128x128xf32>
    %c103 = arith.constant 103 : index
    %c0_110 = arith.constant 0 : index
    %c0_111 = arith.constant 0 : index
    %99 = vector.load %arg2[%c103, %c0_110, %c0_111] : memref<108x128x128xf32, #tpu.memory_space<vmem>>, vector<1x128x128xf32>
    %100 = vector.shape_cast %99 : vector<1x128x128xf32> to vector<128x128xf32>
    %cst_112 = arith.constant dense<0.000000e+00> : vector<128x128xf32>
    %101 = tpu.matmul %98, %100, %cst_112 {dimension_numbers = #tpu.dot_dimension_numbers<[1], [0], [0], [1], [0, 0, 1, 1], [], []>} : vector<128x128xf32>, vector<128x128xf32>, vector<128x128xf32> -> vector<128x128xf32>
    %102 = arith.addf %96, %101 : vector<128x128xf32>
    %c1_113 = arith.constant 1 : index
    %c9_114 = arith.constant 9 : index
    %c0_115 = arith.constant 0 : index
    %103 = vector.load %arg5[%c1_113, %c9_114, %c0_115] : memref<18x17x128xf32, #tpu.memory_space<vmem>>, vector<16x8x128xf32>
    %104 = vector.shape_cast %103 : vector<16x8x128xf32> to vector<128x128xf32>
    %c104 = arith.constant 104 : index
    %c0_116 = arith.constant 0 : index
    %c0_117 = arith.constant 0 : index
    %105 = vector.load %arg2[%c104, %c0_116, %c0_117] : memref<108x128x128xf32, #tpu.memory_space<vmem>>, vector<1x128x128xf32>
    %106 = vector.shape_cast %105 : vector<1x128x128xf32> to vector<128x128xf32>
    %cst_118 = arith.constant dense<0.000000e+00> : vector<128x128xf32>
    %107 = tpu.matmul %104, %106, %cst_118 {dimension_numbers = #tpu.dot_dimension_numbers<[1], [0], [0], [1], [0, 0, 1, 1], [], []>} : vector<128x128xf32>, vector<128x128xf32>, vector<128x128xf32> -> vector<128x128xf32>
    %108 = arith.addf %102, %107 : vector<128x128xf32>
    %c2_119 = arith.constant 2 : index
    %c7_120 = arith.constant 7 : index
    %c0_121 = arith.constant 0 : index
    %109 = vector.load %arg5[%c2_119, %c7_120, %c0_121] : memref<18x17x128xf32, #tpu.memory_space<vmem>>, vector<16x8x128xf32>
    %110 = vector.shape_cast %109 : vector<16x8x128xf32> to vector<128x128xf32>
    %c105 = arith.constant 105 : index
    %c0_122 = arith.constant 0 : index
    %c0_123 = arith.constant 0 : index
    %111 = vector.load %arg2[%c105, %c0_122, %c0_123] : memref<108x128x128xf32, #tpu.memory_space<vmem>>, vector<1x128x128xf32>
    %112 = vector.shape_cast %111 : vector<1x128x128xf32> to vector<128x128xf32>
    %cst_124 = arith.constant dense<0.000000e+00> : vector<128x128xf32>
    %113 = tpu.matmul %110, %112, %cst_124 {dimension_numbers = #tpu.dot_dimension_numbers<[1], [0], [0], [1], [0, 0, 1, 1], [], []>} : vector<128x128xf32>, vector<128x128xf32>, vector<128x128xf32> -> vector<128x128xf32>
    %114 = arith.addf %108, %113 : vector<128x128xf32>
    %c2_125 = arith.constant 2 : index
    %c8_126 = arith.constant 8 : index
    %c0_127 = arith.constant 0 : index
    %115 = vector.load %arg5[%c2_125, %c8_126, %c0_127] : memref<18x17x128xf32, #tpu.memory_space<vmem>>, vector<16x8x128xf32>
    %116 = vector.shape_cast %115 : vector<16x8x128xf32> to vector<128x128xf32>
    %c106 = arith.constant 106 : index
    %c0_128 = arith.constant 0 : index
    %c0_129 = arith.constant 0 : index
    %117 = vector.load %arg2[%c106, %c0_128, %c0_129] : memref<108x128x128xf32, #tpu.memory_space<vmem>>, vector<1x128x128xf32>
    %118 = vector.shape_cast %117 : vector<1x128x128xf32> to vector<128x128xf32>
    %cst_130 = arith.constant dense<0.000000e+00> : vector<128x128xf32>
    %119 = tpu.matmul %116, %118, %cst_130 {dimension_numbers = #tpu.dot_dimension_numbers<[1], [0], [0], [1], [0, 0, 1, 1], [], []>} : vector<128x128xf32>, vector<128x128xf32>, vector<128x128xf32> -> vector<128x128xf32>
    %120 = arith.addf %114, %119 : vector<128x128xf32>
    %c2_131 = arith.constant 2 : index
    %c9_132 = arith.constant 9 : index
    %c0_133 = arith.constant 0 : index
    %121 = vector.load %arg5[%c2_131, %c9_132, %c0_133] : memref<18x17x128xf32, #tpu.memory_space<vmem>>, vector<16x8x128xf32>
    %122 = vector.shape_cast %121 : vector<16x8x128xf32> to vector<128x128xf32>
    %c107 = arith.constant 107 : index
    %c0_134 = arith.constant 0 : index
    %c0_135 = arith.constant 0 : index
    %123 = vector.load %arg2[%c107, %c0_134, %c0_135] : memref<108x128x128xf32, #tpu.memory_space<vmem>>, vector<1x128x128xf32>
    %124 = vector.shape_cast %123 : vector<1x128x128xf32> to vector<128x128xf32>
    %cst_136 = arith.constant dense<0.000000e+00> : vector<128x128xf32>
    %125 = tpu.matmul %122, %124, %cst_136 {dimension_numbers = #tpu.dot_dimension_numbers<[1], [0], [0], [1], [0, 0, 1, 1], [], []>} : vector<128x128xf32>, vector<128x128xf32>, vector<128x128xf32> -> vector<128x128xf32>
    %126 = arith.addf %120, %125 : vector<128x128xf32>
    %c11 = arith.constant 11 : index
    %c0_137 = arith.constant 0 : index
    %c0_138 = arith.constant 0 : index
    %127 = vector.load %arg3[%c11, %c0_137, %c0_138] : memref<12x1x128xf32, #tpu.memory_space<vmem>>, vector<1x1x128xf32>
    %128 = vector.shape_cast %127 : vector<1x1x128xf32> to vector<1x128xf32>
    %129 = vector.broadcast %128 : vector<1x128xf32> to vector<128x128xf32>
    %130 = arith.addf %126, %129 : vector<128x128xf32>
    %131 = vector.shape_cast %130 : vector<128x128xf32> to vector<1x16x8x128xf32>
    %c0_139 = arith.constant 0 : index
    %c0_140 = arith.constant 0 : index
    %c0_141 = arith.constant 0 : index
    %c0_142 = arith.constant 0 : index
    %132 = vector.load %arg4[%c0_139, %c0_140, %c0_141, %c0_142] : memref<1x16x8x128xf32, #tpu.memory_space<vmem>>, vector<1x16x8x128xf32>
    tpu.vector_store %arg4[%c0_139, %c0_140, %c0_141, %c0_142], %131 {strides = array<i32>} : memref<1x16x8x128xf32, #tpu.memory_space<vmem>>, vector<1x16x8x128xf32>,
    return
  }
  func.func @transform_0(%arg0: i32) -> (i32, i32, i32, i32) {
    %c0_i32 = arith.constant 0 : i32
    %c0_i32_0 = arith.constant 0 : i32
    %c0_i32_1 = arith.constant 0 : i32
    %c0_i32_2 = arith.constant 0 : i32
    return %arg0, %c0_i32, %c0_i32_0, %c0_i32_1 : i32, i32, i32, i32
  }
  func.func @transform_1(%arg0: i32) -> (i32, i32, i32) {
    %c0_i32 = arith.constant 0 : i32
    %c0_i32_0 = arith.constant 0 : i32
    %c0_i32_1 = arith.constant 0 : i32
    %c0_i32_2 = arith.constant 0 : i32
    return %c0_i32, %c0_i32_0, %c0_i32_1 : i32, i32, i32
  }
  func.func @transform_2(%arg0: i32) -> (i32, i32, i32) {
    %c0_i32 = arith.constant 0 : i32
    %c0_i32_0 = arith.constant 0 : i32
    %c0_i32_1 = arith.constant 0 : i32
    %c0_i32_2 = arith.constant 0 : i32
    return %c0_i32, %c0_i32_0, %c0_i32_1 : i32, i32, i32
  }
  func.func @transform_3(%arg0: i32) -> (i32, i32, i32, i32) {
    %c0_i32 = arith.constant 0 : i32
    %c0_i32_0 = arith.constant 0 : i32
    %c0_i32_1 = arith.constant 0 : i32
    %c0_i32_2 = arith.constant 0 : i32
    return %arg0, %c0_i32, %c0_i32_0, %c0_i32_1 : i32, i32, i32, i32
  }
}

</mosaic_0001>

<llo_original>
// kernel: tpu_custom_call.1
$region0: #{tpu_custom_call.1}
  #allocation0 [shape = 'u32[]', space=smem, size = 0x4, offset = 0x4, fixed_abs, tag = 'smem constant byte address 0x4 - core index']
  #allocation1 [shape = 'u32[144,128]{1,0:T(1,128)}', space=vmem, size = 0x12000, scoped, tag = 'internal scratch']
  #allocation2 [shape = 'f32[18,17,128]{2,1,0:T(8,128)}', space=vmem, size = 0x36000, scoped, tag = 'scratch operand']
  #allocation3 [shape = 'f32[128,128]{1,0:T(8,128)}', space=vmem, size = 0x10000, scoped, tag = 'scratch operand']
  %s0 = inlined_call_operand.hbm [shape: f32[2,16,8,128], index: 0, kind: input, shape index: {}]
  %s1 = inlined_call_operand.hbm [shape: f32[108,128,128], index: 1, kind: input, shape index: {}]
  %s2 = inlined_call_operand.hbm [shape: f32[12,1,128], index: 2, kind: input, shape index: {}]
  %s3 = inlined_call_operand.hbm [shape: f32[2,16,8,128], index: 3, kind: output, shape index: {}]
  %s4 = sld [smem:[#allocation0]]
  $region64: #{tpu_custom_call.1} parent=0
    _
  %s6 = ssub.s32 1, %s4
  %s7 = scalar_select 0, %s6, %s4
  $region1: #{tpu_custom_call.1} parent=0
    #allocation4 [shape = 'u8[131072]{0}', space=vmem, size = 0x20000, scoped, tag = 'input window, operand 0']
    #allocation5 [shape = 's32[2]{0}', space=sflag, size = 0x8, scoped, tag = 'scoped memory for tpu_custom_call.1']
    #allocation6 [shape = 's32[2]{0}', space=sflag, size = 0x8, scoped, tag = 'scoped memory for tpu_custom_call.1']
    #allocation7 [shape = 'u8[7077888]{0}', space=vmem, size = 0x6c0000, scoped, tag = 'input window, operand 1, single buffered']
    #allocation8 [shape = 's32[1]{0}', space=sflag, size = 0x4, scoped, tag = 'scoped memory for tpu_custom_call.1']
    #allocation9 [shape = 'u8[6144]{0}', space=vmem, size = 0x1800, scoped, tag = 'input window, operand 2, single buffered']
    #allocation10 [shape = 'u8[131072]{0}', space=vmem, size = 0x20000, scoped, tag = 'output window, operand 0']
    %8 = vsyncpa [#allocation5], 0
    %s9 = scalar_lea.sflag [#allocation5], 1
    %10 = vsyncpa %s9, 0
    %11 = vsyncpa [#allocation8], 0
    %12 = vsyncpa [#allocation6], 0
    %s13 = scalar_lea.sflag [#allocation6], 1
    %14 = vsyncpa %s13, 0
    loop: start=0, step=1, limit=4
    $region2: #{tpu_custom_call.1} parent=1 // loop_pre_header
      _
    $region3: #{tpu_custom_call.1} parent=1 // loop_header
      %s16 = sphi 0, %s20
      %p17 = scmp.ge.s32.totalorder %s16, 4
      %s26 = sphi 0, %s28
      %s29 = sphi 0, %s26
      %s30 = sphi 0, %s29
      %s46 = sphi 0, %s30
      %s50 = sphi 0, %s50
      %s52 = sphi 0, %s50
      %s53 = sphi 0, %s52
      %s67 = sphi 0, %s53
      %s71 = sphi 0, %s71
      %s73 = sphi 0, %s71
      %s74 = sphi 0, %s73
      %s88 = sphi 0, %s74
      %s94 = sphi 0, %s96
      %s97 = sphi 0, %s94
      %s98 = sphi 0, %s97
      %s114 = sphi 0, %s98
    $region4: #{tpu_custom_call.1} parent=1 // loop_header_branch
      %19 = sbr.rel (%p17) target = $region8
    $region5: #{tpu_custom_call.1} parent=1 // loop_body
      %s21 = ssub.s32 %s16, 1
      %s22 = ssub.s32 %s16, 2
      %s23 = sadd.s32 %s16, 1
      %s24 = ssub.s32 %s16, %s23
      %p25 = scmp.eq.s32.totalorder %s24, 0
      %s27 = sadd.s32 %s26, 1
      %s28 = scalar_select %p25, %s26, %s27
      %p31 = pneg %p25
      %p32 = scmp.eq.s32.totalorder %s16, 1
      %p33 = por %p31, %p32
      %p34 = scmp.ne.s32.totalorder %s26, %s29
      %p35 = scmp.eq.s32.totalorder %s16, 0
      %p36 = por %p34, %p35
      %p37 = scmp.ne.s32.totalorder %s26, %s29
      %p38 = scmp.eq.s32.totalorder %s21, 1
      %p39 = por %p37, %p38
      %p40 = scmp.ne.s32.totalorder %s29, %s30
      %p41 = scmp.eq.s32.totalorder %s21, 0
      %p42 = por %p40, %p41
      %p43 = scmp.ne.s32.totalorder %s29, %s30
      %p44 = scmp.eq.s32.totalorder %s22, 1
      %p45 = por %p43, %p44
      %p47 = scmp.ne.s32.totalorder %s30, %s46
      %p48 = scmp.eq.s32.totalorder %s22, 0
      %p49 = por %p47, %p48
      %s51 = sadd.s32 %s50, 1
      %p54 = scmp.eq.s32.totalorder %s16, 1
      %p55 = scmp.ne.s32.totalorder %s50, %s52
      %p56 = scmp.eq.s32.totalorder %s16, 0
      %p57 = por %p55, %p56
      %p58 = scmp.ne.s32.totalorder %s50, %s52
      %p59 = scmp.eq.s32.totalorder %s21, 1
      %p60 = por %p58, %p59
      %p61 = scmp.ne.s32.totalorder %s52, %s53
      %p62 = scmp.eq.s32.totalorder %s21, 0
      %p63 = por %p61, %p62
      %p64 = scmp.ne.s32.totalorder %s52, %s53
      %p65 = scmp.eq.s32.totalorder %s22, 1
      %p66 = por %p64, %p65
      %p68 = scmp.ne.s32.totalorder %s53, %s67
      %p69 = scmp.eq.s32.totalorder %s22, 0
      %p70 = por %p68, %p69
      %s72 = sadd.s32 %s71, 1
      %p75 = scmp.eq.s32.totalorder %s16, 1
      %p76 = scmp.ne.s32.totalorder %s71, %s73
      %p77 = scmp.eq.s32.totalorder %s16, 0
      %p78 = por %p76, %p77
      %p79 = scmp.ne.s32.totalorder %s71, %s73
      %p80 = scmp.eq.s32.totalorder %s21, 1
      %p81 = por %p79, %p80
      %p82 = scmp.ne.s32.totalorder %s73, %s74
      %p83 = scmp.eq.s32.totalorder %s21, 0
      %p84 = por %p82, %p83
      %p85 = scmp.ne.s32.totalorder %s73, %s74
      %p86 = scmp.eq.s32.totalorder %s22, 1
      %p87 = por %p85, %p86
      %p89 = scmp.ne.s32.totalorder %s74, %s88
      %p90 = scmp.eq.s32.totalorder %s22, 0
      %p91 = por %p89, %p90
      %s92 = ssub.s32 %s16, %s23
      %p93 = scmp.eq.s32.totalorder %s92, 0
      %s95 = sadd.s32 %s94, 1
      %s96 = scalar_select %p93, %s94, %s95
      %p99 = pneg %p93
      %p100 = scmp.eq.s32.totalorder %s16, 1
      %p101 = por %p99, %p100
      %p102 = scmp.ne.s32.totalorder %s94, %s97
      %p103 = scmp.eq.s32.totalorder %s16, 0
      %p104 = por %p102, %p103
      %p105 = scmp.ne.s32.totalorder %s94, %s97
      %p106 = scmp.eq.s32.totalorder %s21, 1
      %p107 = por %p105, %p106
      %p108 = scmp.ne.s32.totalorder %s97, %s98
      %p109 = scmp.eq.s32.totalorder %s21, 0
      %p110 = por %p108, %p109
      %p111 = scmp.ne.s32.totalorder %s97, %s98
      %p112 = scmp.eq.s32.totalorder %s22, 1
      %p113 = por %p111, %p112
      %p115 = scmp.ne.s32.totalorder %s98, %s114
      %p116 = scmp.eq.s32.totalorder %s22, 0
      %p117 = por %p115, %p116
      %p118 = scmp.le.s32.totalorder 1, %s16
      %p119 = scmp.lt.s32.totalorder %s16, 3
      %p120 = pnand %p118, %p119
      %p121 = pneg %p120
      // Predicated region
      $region9: #{tpu_custom_call.1} parent=5 // pred_check
        _
      $region10: #{tpu_custom_call.1} parent=5 // pred_check_branch
        %123 = sbr.rel (%p120) target = $region12
      $region11: #{tpu_custom_call.1} parent=5 // pred_region
        %s124 = ssub.s32 %s16, 1
        // Predicated region
        $region13: #{tpu_custom_call.1} parent=11 // pred_check
          %p125 = pneg %p63
        $region14: #{tpu_custom_call.1} parent=11 // pred_check_branch
          %127 = sbr.rel (%p125) target = $region16
        $region15: #{tpu_custom_call.1} parent=11 // pred_region
          %s129 = ssub.s32 221184, 221184
          %130 = vsyncadd [#allocation8], %s129
          %s131 = sshll.u32 [#allocation7], 4
          %s132 = int_to_ptr.vmem [resolvable:$true] %s131
          %137 = dma.hbm_to_vmem [thread:$0]  %s1, 221184, %s132, [#allocation8], 128, 128, 8
        $region16: #{tpu_custom_call.1} parent=11 // pred_fallthru
          _
        // Predicated region
        $region17: #{tpu_custom_call.1} parent=11 // pred_check
          %p138 = pneg %p84
        $region18: #{tpu_custom_call.1} parent=11 // pred_check_branch
          %140 = sbr.rel (%p138) target = $region20
        $region19: #{tpu_custom_call.1} parent=11 // pred_region
          %s142 = ssub.s32 192, 192
          %143 = vsyncadd [#allocation8], %s142
          %s144 = sshll.u32 [#allocation9], 4
          %s145 = int_to_ptr.vmem [resolvable:$true] %s144
          %150 = dma.hbm_to_vmem [thread:$0]  %s2, 192, %s145, [#allocation8], 16, 16, 1
        $region20: #{tpu_custom_call.1} parent=11 // pred_fallthru
          _
      $region12: #{tpu_custom_call.1} parent=5 // pred_fallthru
        _
      %p151 = scmp.lt.s32.totalorder %s16, 2
      // Predicated region
      $region21: #{tpu_custom_call.1} parent=5 // pred_check
        %p152 = pneg %p151
      $region22: #{tpu_custom_call.1} parent=5 // pred_check_branch
        %154 = sbr.rel (%p152) target = $region24
      $region23: #{tpu_custom_call.1} parent=5 // pred_region
        // Predicated region
        $region25: #{tpu_custom_call.1} parent=23 // pred_check
          %p155 = pneg %p36
        $region26: #{tpu_custom_call.1} parent=23 // pred_check_branch
          %157 = sbr.rel (%p155) target = $region28
        $region27: #{tpu_custom_call.1} parent=23 // pred_region
          %s158 = sand.u32 %s26, 1
          %s159 = scalar_lea.sflag [#allocation5], %s158
          %s160 = sand.u32 %s26, 1
          %s161 = smul.addr %s160, 128
          %s162 = scalar_lea.vmem [#allocation4], %s161
          %s164 = ssub.s32 2048, 2048
          %165 = vsyncadd %s159, %s164
          %s166 = smul.addr %s16, 16
          %s167 = smul.addr %s166, 128
          %s168 = scalar_lea.hbm %s0, %s167
          %s169 = sshll.u32 %s162, 4
          %s170 = int_to_ptr.vmem [resolvable:$true] %s169
          %175 = dma.hbm_to_vmem [thread:$0]  %s168, 2048, %s170, %s159, 128, 128, 8
        $region28: #{tpu_custom_call.1} parent=23 // pred_fallthru
          _
      $region24: #{tpu_custom_call.1} parent=5 // pred_fallthru
        _
      %p176 = scmp.le.s32.totalorder 1, %s16
      %p177 = scmp.lt.s32.totalorder %s16, 3
      %p178 = pnand %p176, %p177
      %p179 = pneg %p178
      // Predicated region
      $region29: #{tpu_custom_call.1} parent=5 // pred_check
        _
      $region30: #{tpu_custom_call.1} parent=5 // pred_check_branch
        %181 = sbr.rel (%p178) target = $region32
      $region31: #{tpu_custom_call.1} parent=5 // pred_region
        %s182 = ssub.s32 %s16, 1
        %s183 = sand.u32 %s29, 1
        %s184 = scalar_lea.sflag [#allocation5], %s183
        %s185 = sand.u32 %s29, 1
        %s186 = smul.addr %s185, 128
        %s187 = scalar_lea.vmem [#allocation4], %s186
        // Predicated region
        $region33: #{tpu_custom_call.1} parent=31 // pred_check
          %p188 = pneg %p42
        $region34: #{tpu_custom_call.1} parent=31 // pred_check_branch
          %190 = sbr.rel (%p188) target = $region36
        $region35: #{tpu_custom_call.1} parent=31 // pred_region
          %191 = dma.done %s184, 2048
        $region36: #{tpu_custom_call.1} parent=31 // pred_fallthru
          _
        // Predicated region
        $region37: #{tpu_custom_call.1} parent=31 // pred_check
          %p192 = pneg %p63
        $region38: #{tpu_custom_call.1} parent=31 // pred_check_branch
          %194 = sbr.rel (%p192) target = $region40
        $region39: #{tpu_custom_call.1} parent=31 // pred_region
          %195 = dma.done [#allocation8], 221184
        $region40: #{tpu_custom_call.1} parent=31 // pred_fallthru
          _
        // Predicated region
        $region41: #{tpu_custom_call.1} parent=31 // pred_check
          %p196 = pneg %p84
        $region42: #{tpu_custom_call.1} parent=31 // pred_check_branch
          %198 = sbr.rel (%p196) target = $region44
        $region43: #{tpu_custom_call.1} parent=31 // pred_region
          %199 = dma.done [#allocation8], 192
        $region44: #{tpu_custom_call.1} parent=31 // pred_fallthru
          _
        %s200 = sand.u32 %s29, 1
        %s201 = scalar_lea.sflag [#allocation5], %s200
        %s202 = sand.u32 %s29, 1
        %s203 = smul.addr %s202, 128
        %s204 = scalar_lea.vmem [#allocation4], %s203
        %p205 = pneg %p42
        %p206 = pneg %p39
        %p207 = pneg %p63
        %p208 = pneg %p60
        %p209 = pneg %p84
        %p210 = pneg %p81
        %p211 = pneg %p110
        %p212 = pneg %p107
        %s213 = sand.u32 %s97, 1
        %s214 = scalar_lea.sflag [#allocation6], %s213
        %s215 = sand.u32 %s97, 1
        %s216 = smul.addr %s215, 128
        %s217 = scalar_lea.vmem [#allocation10], %s216
        %218 = vst [vmem:[#allocation2 + $0x7] sm:$0xff] 0.0
        %219 = vst [vmem:[#allocation2 + $0xf] sm:$0x3] 0.0
        %s220 = scalar_lea.vmem [#allocation2], 408
        %221 = vst [vmem:[%s220 + $0x7] sm:$0xff] 0.0
        %222 = vst [vmem:[%s220 + $0xf] sm:$0x3] 0.0
        %s223 = scalar_lea.vmem [#allocation2], 24
        %224 = vst [vmem:[%s223 + $0x7] sm:$0x1] 0.0
        %225 = vst [vmem:[%s223 + $0x1f] sm:$0x1] 0.0
        %226 = vst [vmem:[%s223 + $0x37] sm:$0x1] 0.0
        %227 = vst [vmem:[%s223 + $0x4f] sm:$0x1] 0.0
        %228 = vst [vmem:[%s223 + $0x67] sm:$0x1] 0.0
        %229 = vst [vmem:[%s223 + $0x7f] sm:$0x1] 0.0
        %230 = vst [vmem:[%s223 + $0x97] sm:$0x1] 0.0
        %231 = vst [vmem:[%s223 + $0xaf] sm:$0x1] 0.0
        %232 = vst [vmem:[%s223 + $0xc7] sm:$0x1] 0.0
        %233 = vst [vmem:[%s223 + $0xdf] sm:$0x1] 0.0
        %234 = vst [vmem:[%s223 + $0xf7] sm:$0x1] 0.0
        %235 = vst [vmem:[%s223 + $0x10f] sm:$0x1] 0.0
        %236 = vst [vmem:[%s223 + $0x127] sm:$0x1] 0.0
        %237 = vst [vmem:[%s223 + $0x13f] sm:$0x1] 0.0
        %238 = vst [vmem:[%s223 + $0x157] sm:$0x1] 0.0
        %239 = vst [vmem:[%s223 + $0x16f] sm:$0x1] 0.0
        %240 = vst [vmem:[%s223 + $0x10] sm:$0x1] 0.0
        %241 = vst [vmem:[%s223 + $0x28] sm:$0x1] 0.0
        %242 = vst [vmem:[%s223 + $0x40] sm:$0x1] 0.0
        %243 = vst [vmem:[%s223 + $0x58] sm:$0x1] 0.0
        %244 = vst [vmem:[%s223 + $0x70] sm:$0x1] 0.0
        %245 = vst [vmem:[%s223 + $0x88] sm:$0x1] 0.0
        %246 = vst [vmem:[%s223 + $0xa0] sm:$0x1] 0.0
        %247 = vst [vmem:[%s223 + $0xb8] sm:$0x1] 0.0
        %248 = vst [vmem:[%s223 + $0xd0] sm:$0x1] 0.0
        %249 = vst [vmem:[%s223 + $0xe8] sm:$0x1] 0.0
        %250 = vst [vmem:[%s223 + $0x100] sm:$0x1] 0.0
        %251 = vst [vmem:[%s223 + $0x118] sm:$0x1] 0.0
        %252 = vst [vmem:[%s223 + $0x130] sm:$0x1] 0.0
        %253 = vst [vmem:[%s223 + $0x148] sm:$0x1] 0.0
        %254 = vst [vmem:[%s223 + $0x160] sm:$0x1] 0.0
        %255 = vst [vmem:[%s223 + $0x178] sm:$0x1] 0.0
        %v256 = vld [vmem:[%s187] sm:$0xff]
        %v257 = vld [vmem:[%s187 + $0x8] sm:$0xff]
        %v258 = vld [vmem:[%s187 + $0x10] sm:$0xff]
        %v259 = vld [vmem:[%s187 + $0x18] sm:$0xff]
        %v260 = vld [vmem:[%s187 + $0x20] sm:$0xff]
        %v261 = vld [vmem:[%s187 + $0x28] sm:$0xff]
        %v262 = vld [vmem:[%s187 + $0x30] sm:$0xff]
        %v263 = vld [vmem:[%s187 + $0x38] sm:$0xff]
        %v264 = vld [vmem:[%s187 + $0x40] sm:$0xff]
        %v265 = vld [vmem:[%s187 + $0x48] sm:$0xff]
        %v266 = vld [vmem:[%s187 + $0x50] sm:$0xff]
        %v267 = vld [vmem:[%s187 + $0x58] sm:$0xff]
        %v268 = vld [vmem:[%s187 + $0x60] sm:$0xff]
        %v269 = vld [vmem:[%s187 + $0x68] sm:$0xff]
        %v270 = vld [vmem:[%s187 + $0x70] sm:$0xff]
        %v271 = vld [vmem:[%s187 + $0x78] sm:$0xff]
        %272 = vst [vmem:[%s223 + $0x8] sm:$0xff] %v256
        %273 = vst [vmem:[%s223 + $0x20] sm:$0xff] %v257
        %274 = vst [vmem:[%s223 + $0x38] sm:$0xff] %v258
        %275 = vst [vmem:[%s223 + $0x50] sm:$0xff] %v259
        %276 = vst [vmem:[%s223 + $0x68] sm:$0xff] %v260
        %277 = vst [vmem:[%s223 + $0x80] sm:$0xff] %v261
        %278 = vst [vmem:[%s223 + $0x98] sm:$0xff] %v262
        %279 = vst [vmem:[%s223 + $0xb0] sm:$0xff] %v263
        %280 = vst [vmem:[%s223 + $0xc8] sm:$0xff] %v264
        %281 = vst [vmem:[%s223 + $0xe0] sm:$0xff] %v265
        %282 = vst [vmem:[%s223 + $0xf8] sm:$0xff] %v266
        %283 = vst [vmem:[%s223 + $0x110] sm:$0xff] %v267
        %284 = vst [vmem:[%s223 + $0x128] sm:$0xff] %v268
        %285 = vst [vmem:[%s223 + $0x140] sm:$0xff] %v269
        %286 = vst [vmem:[%s223 + $0x158] sm:$0xff] %v270
        %287 = vst [vmem:[%s223 + $0x170] sm:$0xff] %v271
        %v288 = vld [vmem:[#allocation2 + $0x7] sm:$0xff]
        %v289 = vld [vmem:[#allocation2 + $0x1f] sm:$0xff]
        %v290 = vld [vmem:[#allocation2 + $0x37] sm:$0xff]
        %v291 = vld [vmem:[#allocation2 + $0x4f] sm:$0xff]
        %v292 = vld [vmem:[#allocation2 + $0x67] sm:$0xff]
        %v293 = vld [vmem:[#allocation2 + $0x7f] sm:$0xff]
        %v294 = vld [vmem:[#allocation2 + $0x97] sm:$0xff]
        %v295 = vld [vmem:[#allocation2 + $0xaf] sm:$0xff]
        %v296 = vld [vmem:[#allocation2 + $0xc7] sm:$0xff]
        %v297 = vld [vmem:[#allocation2 + $0xdf] sm:$0xff]
        %v298 = vld [vmem:[#allocation2 + $0xf7] sm:$0xff]
        %v299 = vld [vmem:[#allocation2 + $0x10f] sm:$0xff]
        %v300 = vld [vmem:[#allocation2 + $0x127] sm:$0xff]
        %v301 = vld [vmem:[#allocation2 + $0x13f] sm:$0xff]
        %v302 = vld [vmem:[#allocation2 + $0x157] sm:$0xff]
        %v303 = vld [vmem:[#allocation2 + $0x16f] sm:$0xff]
        %v304 = vld [vmem:[#allocation7] sm:$0xff]
        %v305 = vld [vmem:[#allocation7 + $0x8] sm:$0xff]
        %v306 = vld [vmem:[#allocation7 + $0x10] sm:$0xff]
        %v307 = vld [vmem:[#allocation7 + $0x18] sm:$0xff]
        %v308 = vld [vmem:[#allocation7 + $0x20] sm:$0xff]
        %v309 = vld [vmem:[#allocation7 + $0x28] sm:$0xff]
        %v310 = vld [vmem:[#allocation7 + $0x30] sm:$0xff]
        %v311 = vld [vmem:[#allocation7 + $0x38] sm:$0xff]
        %v312 = vld [vmem:[#allocation7 + $0x40] sm:$0xff]
        %v313 = vld [vmem:[#allocation7 + $0x48] sm:$0xff]
        %v314 = vld [vmem:[#allocation7 + $0x50] sm:$0xff]
        %v315 = vld [vmem:[#allocation7 + $0x58] sm:$0xff]
        %v316 = vld [vmem:[#allocation7 + $0x60] sm:$0xff]
        %v317 = vld [vmem:[#allocation7 + $0x68] sm:$0xff]
        %v318 = vld [vmem:[#allocation7 + $0x70] sm:$0xff]
        %v319 = vld [vmem:[#allocation7 + $0x78] sm:$0xff]
        %v320 = vld [vmem:[#allocation2 + $0x8] sm:$0xff]
        %v321 = vld [vmem:[#allocation2 + $0x20] sm:$0xff]
        %v322 = vld [vmem:[#allocation2 + $0x38] sm:$0xff]
        %v323 = vld [vmem:[#allocation2 + $0x50] sm:$0xff]
        %v324 = vld [vmem:[#allocation2 + $0x68] sm:$0xff]
        %v325 = vld [vmem:[#allocation2 + $0x80] sm:$0xff]
        %v326 = vld [vmem:[#allocation2 + $0x98] sm:$0xff]
        %v327 = vld [vmem:[#allocation2 + $0xb0] sm:$0xff]
        %v328 = vld [vmem:[#allocation2 + $0xc8] sm:$0xff]
        %v329 = vld [vmem:[#allocation2 + $0xe0] sm:$0xff]
        %v330 = vld [vmem:[#allocation2 + $0xf8] sm:$0xff]
        %v331 = vld [vmem:[#allocation2 + $0x110] sm:$0xff]
        %v332 = vld [vmem:[#allocation2 + $0x128] sm:$0xff]
        %v333 = vld [vmem:[#allocation2 + $0x140] sm:$0xff]
        %v334 = vld [vmem:[#allocation2 + $0x158] sm:$0xff]
        %v335 = vld [vmem:[#allocation2 + $0x170] sm:$0xff]
        %s336 = scalar_lea.vmem [#allocation7], 128
        %v337 = vld [vmem:[%s336] sm:$0xff]
        %v338 = vld [vmem:[%s336 + $0x8] sm:$0xff]
        %v339 = vld [vmem:[%s336 + $0x10] sm:$0xff]
        %v340 = vld [vmem:[%s336 + $0x18] sm:$0xff]
        %v341 = vld [vmem:[%s336 + $0x20] sm:$0xff]
        %v342 = vld [vmem:[%s336 + $0x28] sm:$0xff]
        %v343 = vld [vmem:[%s336 + $0x30] sm:$0xff]
        %v344 = vld [vmem:[%s336 + $0x38] sm:$0xff]
        %v345 = vld [vmem:[%s336 + $0x40] sm:$0xff]
        %v346 = vld [vmem:[%s336 + $0x48] sm:$0xff]
        %v347 = vld [vmem:[%s336 + $0x50] sm:$0xff]
        %v348 = vld [vmem:[%s336 + $0x58] sm:$0xff]
        %v349 = vld [vmem:[%s336 + $0x60] sm:$0xff]
        %v350 = vld [vmem:[%s336 + $0x68] sm:$0xff]
        %v351 = vld [vmem:[%s336 + $0x70] sm:$0xff]
        %v352 = vld [vmem:[%s336 + $0x78] sm:$0xff]
        %353 = vmatprep.subr.mxu0 0.0
        %354 = vmatpush1.msra.mxu0 %v337
        %355 = vmatprep.subr.mxu0 0.0
        %356 = vmatpush1.msra.mxu0 %v338
        %357 = vmatprep.subr.mxu0 0.0
        %358 = vmatpush1.msra.mxu0 %v339
        %359 = vmatprep.subr.mxu0 0.0
        %360 = vmatpush1.msra.mxu0 %v340
        %361 = vmatprep.subr.mxu0 0.0
        %362 = vmatpush1.msra.mxu0 %v341
        %363 = vmatprep.subr.mxu0 0.0
        %364 = vmatpush1.msra.mxu0 %v342
        %365 = vmatprep.subr.mxu0 0.0
        %366 = vmatpush1.msra.mxu0 %v343
        %367 = vmatprep.subr.mxu0 0.0
        %368 = vmatpush1.msra.mxu0 %v344
        %369 = vmatprep.subr.mxu0 0.0
        %370 = vmatpush1.msra.mxu0 %v345
        %371 = vmatprep.subr.mxu0 0.0
        %372 = vmatpush1.msra.mxu0 %v346
        %373 = vmatprep.subr.mxu0 0.0
        %374 = vmatpush1.msra.mxu0 %v347
        %375 = vmatprep.subr.mxu0 0.0
        %376 = vmatpush1.msra.mxu0 %v348
        %377 = vmatprep.subr.mxu0 0.0
        %378 = vmatpush1.msra.mxu0 %v349
        %379 = vmatprep.subr.mxu0 0.0
        %380 = vmatpush1.msra.mxu0 %v350
        %381 = vmatprep.subr.mxu0 0.0
        %382 = vmatpush1.msra.mxu0 %v351
        %383 = vmatprep.subr.mxu0 0.0
        %384 = vmatpush1.msra.mxu0 %v352
        %385 = vmatprep.subr.mxu0 0.0
        %386 = vmatpush1.msra.mxu0 0.0
        %387 = vmatprep.subr.mxu0 0.0
        %388 = vmatpush1.msra.mxu0 0.0
        %389 = vmatprep.subr.mxu0 0.0
        %390 = vmatpush1.msra.mxu0 0.0
        %391 = vmatprep.subr.mxu0 0.0
        %392 = vmatpush1.msra.mxu0 0.0
        %393 = vmatprep.subr.mxu0 0.0
        %394 = vmatpush1.msra.mxu0 0.0
        %395 = vmatprep.subr.mxu0 0.0
        %396 = vmatpush1.msra.mxu0 0.0
        %397 = vmatprep.subr.mxu0 0.0
        %398 = vmatpush1.msra.mxu0 0.0
        %399 = vmatprep.subr.mxu0 0.0
        %400 = vmatpush1.msra.mxu0 0.0
        %401 = vmatprep.subr.mxu0 0.0
        %402 = vmatpush1.msra.mxu0 0.0
        %403 = vmatprep.subr.mxu0 0.0
        %404 = vmatpush1.msra.mxu0 0.0
        %405 = vmatprep.subr.mxu0 0.0
        %406 = vmatpush1.msra.mxu0 0.0
        %407 = vmatprep.subr.mxu0 0.0
        %408 = vmatpush1.msra.mxu0 0.0
        %409 = vmatprep.subr.mxu0 0.0
        %410 = vmatpush1.msra.mxu0 0.0
        %411 = vmatprep.subr.mxu0 0.0
        %412 = vmatpush1.msra.mxu0 0.0
        %413 = vmatprep.subr.mxu0 0.0
        %414 = vmatpush1.msra.mxu0 0.0
        %415 = vmatprep.subr.mxu0 0.0
        %416 = vmatpush1.msra.mxu0 0.0
        %417 = vmatprep.mubr.f32.mxu0 0.0
        %418 = vmatmul.mubr.f32.gmra.mrb[0].mxu0 %v320
        %v419 = vpop.f32.mrb[0].mxu0
        %v420 = vadd.f32 0.0, %v419
        %v421 = vpop.f32.mrb[0].mxu0
        %422 = vmatprep.mubr.f32.mxu0 0.0
        %423 = vmatmul.mubr.f32.gmra.mrb[0].mxu0 %v321
        %v424 = vpop.f32.mrb[0].mxu0
        %v425 = vadd.f32 0.0, %v424
        %v426 = vpop.f32.mrb[0].mxu0
        %427 = vmatprep.mubr.f32.mxu0 0.0
        %428 = vmatmul.mubr.f32.gmra.mrb[0].mxu0 %v322
        %v429 = vpop.f32.mrb[0].mxu0
        %v430 = vadd.f32 0.0, %v429
        %v431 = vpop.f32.mrb[0].mxu0
        %432 = vmatprep.mubr.f32.mxu0 0.0
        %433 = vmatmul.mubr.f32.gmra.mrb[0].mxu0 %v323
        %v434 = vpop.f32.mrb[0].mxu0
        %v435 = vadd.f32 0.0, %v434
        %v436 = vpop.f32.mrb[0].mxu0
        %437 = vmatprep.mubr.f32.mxu0 0.0
        %438 = vmatmul.mubr.f32.gmra.mrb[0].mxu0 %v324
        %v439 = vpop.f32.mrb[0].mxu0
        %v440 = vadd.f32 0.0, %v439
        %v441 = vpop.f32.mrb[0].mxu0
        %442 = vmatprep.mubr.f32.mxu0 0.0
        %443 = vmatmul.mubr.f32.gmra.mrb[0].mxu0 %v325
        %v444 = vpop.f32.mrb[0].mxu0
        %v445 = vadd.f32 0.0, %v444
        %v446 = vpop.f32.mrb[0].mxu0
        %447 = vmatprep.mubr.f32.mxu0 0.0
        %448 = vmatmul.mubr.f32.gmra.mrb[0].mxu0 %v326
        %v449 = vpop.f32.mrb[0].mxu0
        %v450 = vadd.f32 0.0, %v449
        %v451 = vpop.f32.mrb[0].mxu0
        %452 = vmatprep.mubr.f32.mxu0 0.0
        %453 = vmatmul.mubr.f32.gmra.mrb[0].mxu0 %v327
        %v454 = vpop.f32.mrb[0].mxu0
        %v455 = vadd.f32 0.0, %v454
        %v456 = vpop.f32.mrb[0].mxu0
        %457 = vmatprep.mubr.f32.mxu0 0.0
        %458 = vmatmul.mubr.f32.gmra.mrb[0].mxu0 %v328
        %v459 = vpop.f32.mrb[0].mxu0
        %v460 = vadd.f32 0.0, %v459
        %v461 = vpop.f32.mrb[0].mxu0
        %462 = vmatprep.mubr.f32.mxu0 0.0
        %463 = vmatmul.mubr.f32.gmra.mrb[0].mxu0 %v329
        %v464 = vpop.f32.mrb[0].mxu0
        %v465 = vadd.f32 0.0, %v464
        %v466 = vpop.f32.mrb[0].mxu0
        %467 = vmatprep.mubr.f32.mxu0 0.0
        %468 = vmatmul.mubr.f32.gmra.mrb[0].mxu0 %v330
        %v469 = vpop.f32.mrb[0].mxu0
        %v470 = vadd.f32 0.0, %v469
        %v471 = vpop.f32.mrb[0].mxu0
        %472 = vmatprep.mubr.f32.mxu0 0.0
        %473 = vmatmul.mubr.f32.gmra.mrb[0].mxu0 %v331
        %v474 = vpop.f32.mrb[0].mxu0
        %v475 = vadd.f32 0.0, %v474
        %v476 = vpop.f32.mrb[0].mxu0
        %477 = vmatprep.mubr.f32.mxu0 0.0
        %478 = vmatmul.mubr.f32.gmra.mrb[0].mxu0 %v332
        %v479 = vpop.f32.mrb[0].mxu0
        %v480 = vadd.f32 0.0, %v479
        %v481 = vpop.f32.mrb[0].mxu0
        %482 = vmatprep.mubr.f32.mxu0 0.0
        %483 = vmatmul.mubr.f32.gmra.mrb[0].mxu0 %v333
        %v484 = vpop.f32.mrb[0].mxu0
        %v485 = vadd.f32 0.0, %v484
        %v486 = vpop.f32.mrb[0].mxu0
        %487 = vmatprep.mubr.f32.mxu0 0.0
        %488 = vmatmul.mubr.f32.gmra.mrb[0].mxu0 %v334
        %v489 = vpop.f32.mrb[0].mxu0
        %v490 = vadd.f32 0.0, %v489
        %v491 = vpop.f32.mrb[0].mxu0
        %492 = vmatprep.mubr.f32.mxu0 0.0
        %493 = vmatmul.mubr.f32.gmra.mrb[0].mxu0 %v335
        %v494 = vpop.f32.mrb[0].mxu0
        %v495 = vadd.f32 0.0, %v494
        %v496 = vpop.f32.mrb[0].mxu0
        %497 = vdwg.mxu0
        %498 = vmatprep.subr.mxu0 0.0
        %499 = vmatpush1.msra.mxu0 %v304
        %500 = vmatprep.subr.mxu0 0.0
        %501 = vmatpush1.msra.mxu0 %v305
        %502 = vmatprep.subr.mxu0 0.0
        %503 = vmatpush1.msra.mxu0 %v306
        %504 = vmatprep.subr.mxu0 0.0
        %505 = vmatpush1.msra.mxu0 %v307
        %506 = vmatprep.subr.mxu0 0.0
        %507 = vmatpush1.msra.mxu0 %v308
        %508 = vmatprep.subr.mxu0 0.0
        %509 = vmatpush1.msra.mxu0 %v309
        %510 = vmatprep.subr.mxu0 0.0
        %511 = vmatpush1.msra.mxu0 %v310
        %512 = vmatprep.subr.mxu0 0.0
        %513 = vmatpush1.msra.mxu0 %v311
        %514 = vmatprep.subr.mxu0 0.0
        %515 = vmatpush1.msra.mxu0 %v312
        %516 = vmatprep.subr.mxu0 0.0
        %517 = vmatpush1.msra.mxu0 %v313
        %518 = vmatprep.subr.mxu0 0.0
        %519 = vmatpush1.msra.mxu0 %v314
        %520 = vmatprep.subr.mxu0 0.0
        %521 = vmatpush1.msra.mxu0 %v315
        %522 = vmatprep.subr.mxu0 0.0
        %523 = vmatpush1.msra.mxu0 %v316
        %524 = vmatprep.subr.mxu0 0.0
        %525 = vmatpush1.msra.mxu0 %v317
        %526 = vmatprep.subr.mxu0 0.0
        %527 = vmatpush1.msra.mxu0 %v318
        %528 = vmatprep.subr.mxu0 0.0
        %529 = vmatpush1.msra.mxu0 %v319
        %530 = vmatprep.subr.mxu0 0.0
        %531 = vmatpush1.msra.mxu0 0.0
        %532 = vmatprep.subr.mxu0 0.0
        %533 = vmatpush1.msra.mxu0 0.0
        %534 = vmatprep.subr.mxu0 0.0
        %535 = vmatpush1.msra.mxu0 0.0
        %536 = vmatprep.subr.mxu0 0.0
        %537 = vmatpush1.msra.mxu0 0.0
        %538 = vmatprep.subr.mxu0 0.0
        %539 = vmatpush1.msra.mxu0 0.0
        %540 = vmatprep.subr.mxu0 0.0
        %541 = vmatpush1.msra.mxu0 0.0
        %542 = vmatprep.subr.mxu0 0.0
        %543 = vmatpush1.msra.mxu0 0.0
        %544 = vmatprep.subr.mxu0 0.0
        %545 = vmatpush1.msra.mxu0 0.0
        %546 = vmatprep.subr.mxu0 0.0
        %547 = vmatpush1.msra.mxu0 0.0
        %548 = vmatprep.subr.mxu0 0.0
        %549 = vmatpush1.msra.mxu0 0.0
        %550 = vmatprep.subr.mxu0 0.0
        %551 = vmatpush1.msra.mxu0 0.0
        %552 = vmatprep.subr.mxu0 0.0
        %553 = vmatpush1.msra.mxu0 0.0
        %554 = vmatprep.subr.mxu0 0.0
        %555 = vmatpush1.msra.mxu0 0.0
        %556 = vmatprep.subr.mxu0 0.0
        %557 = vmatpush1.msra.mxu0 0.0
        %558 = vmatprep.subr.mxu0 0.0
        %559 = vmatpush1.msra.mxu0 0.0
        %560 = vmatprep.subr.mxu0 0.0
        %561 = vmatpush1.msra.mxu0 0.0
        %562 = vmatprep.mubr.f32.mxu0 0.0
        %563 = vmatmul.mubr.f32.gmra.mrb[0].mxu0 %v288
        %v564 = vpop.f32.mrb[0].mxu0
        %v565 = vadd.f32 %v420, %v564
        %v566 = vpop.f32.mrb[0].mxu0
        %567 = vmatprep.mubr.f32.mxu0 0.0
        %568 = vmatmul.mubr.f32.gmra.mrb[0].mxu0 %v289
        %v569 = vpop.f32.mrb[0].mxu0
        %v570 = vadd.f32 %v425, %v569
        %v571 = vpop.f32.mrb[0].mxu0
        %572 = vmatprep.mubr.f32.mxu0 0.0
        %573 = vmatmul.mubr.f32.gmra.mrb[0].mxu0 %v290
        %v574 = vpop.f32.mrb[0].mxu0
        %v575 = vadd.f32 %v430, %v574
        %v576 = vpop.f32.mrb[0].mxu0
        %577 = vmatprep.mubr.f32.mxu0 0.0
        %578 = vmatmul.mubr.f32.gmra.mrb[0].mxu0 %v291
        %v579 = vpop.f32.mrb[0].mxu0
        %v580 = vadd.f32 %v435, %v579
        %v581 = vpop.f32.mrb[0].mxu0
        %582 = vmatprep.mubr.f32.mxu0 0.0
        %583 = vmatmul.mubr.f32.gmra.mrb[0].mxu0 %v292
        %v584 = vpop.f32.mrb[0].mxu0
        %v585 = vadd.f32 %v440, %v584
        %v586 = vpop.f32.mrb[0].mxu0
        %587 = vmatprep.mubr.f32.mxu0 0.0
        %588 = vmatmul.mubr.f32.gmra.mrb[0].mxu0 %v293
        %v589 = vpop.f32.mrb[0].mxu0
        %v590 = vadd.f32 %v445, %v589
        %v591 = vpop.f32.mrb[0].mxu0
        %592 = vmatprep.mubr.f32.mxu0 0.0
        %593 = vmatmul.mubr.f32.gmra.mrb[0].mxu0 %v294
        %v594 = vpop.f32.mrb[0].mxu0
        %v595 = vadd.f32 %v450, %v594
        %v596 = vpop.f32.mrb[0].mxu0
        %597 = vmatprep.mubr.f32.mxu0 0.0
        %598 = vmatmul.mubr.f32.gmra.mrb[0].mxu0 %v295
        %v599 = vpop.f32.mrb[0].mxu0
        %v600 = vadd.f32 %v455, %v599
        %v601 = vpop.f32.mrb[0].mxu0
        %602 = vmatprep.mubr.f32.mxu0 0.0
        %603 = vmatmul.mubr.f32.gmra.mrb[0].mxu0 %v296
        %v604 = vpop.f32.mrb[0].mxu0
        %v605 = vadd.f32 %v460, %v604
        %v606 = vpop.f32.mrb[0].mxu0
        %607 = vmatprep.mubr.f32.mxu0 0.0
        %608 = vmatmul.mubr.f32.gmra.mrb[0].mxu0 %v297
        %v609 = vpop.f32.mrb[0].mxu0
        %v610 = vadd.f32 %v465, %v609
        %v611 = vpop.f32.mrb[0].mxu0
        %612 = vmatprep.mubr.f32.mxu0 0.0
        %613 = vmatmul.mubr.f32.gmra.mrb[0].mxu0 %v298
        %v614 = vpop.f32.mrb[0].mxu0
        %v615 = vadd.f32 %v470, %v614
        %v616 = vpop.f32.mrb[0].mxu0
        %617 = vmatprep.mubr.f32.mxu0 0.0
        %618 = vmatmul.mubr.f32.gmra.mrb[0].mxu0 %v299
        %v619 = vpop.f32.mrb[0].mxu0
        %v620 = vadd.f32 %v475, %v619
        %v621 = vpop.f32.mrb[0].mxu0
        %622 = vmatprep.mubr.f32.mxu0 0.0
        %623 = vmatmul.mubr.f32.gmra.mrb[0].mxu0 %v300
        %v624 = vpop.f32.mrb[0].mxu0
        %v625 = vadd.f32 %v480, %v624
        %v626 = vpop.f32.mrb[0].mxu0
        %627 = vmatprep.mubr.f32.mxu0 0.0
        %628 = vmatmul.mubr.f32.gmra.mrb[0].mxu0 %v301
        %v629 = vpop.f32.mrb[0].mxu0
        %v630 = vadd.f32 %v485, %v629
        %v631 = vpop.f32.mrb[0].mxu0
        %632 = vmatprep.mubr.f32.mxu0 0.0
        %633 = vmatmul.mubr.f32.gmra.mrb[0].mxu0 %v302
        %v634 = vpop.f32.mrb[0].mxu0
        %v635 = vadd.f32 %v490, %v634
        %v636 = vpop.f32.mrb[0].mxu0
        %637 = vmatprep.mubr.f32.mxu0 0.0
        %638 = vmatmul.mubr.f32.gmra.mrb[0].mxu0 %v303
        %v639 = vpop.f32.mrb[0].mxu0
        %v640 = vadd.f32 %v495, %v639
        %v641 = vpop.f32.mrb[0].mxu0
        %642 = vdwg.mxu0
        %v643 = vld [vmem:[#allocation2 + $0x9] sm:$0xff]
        %v644 = vld [vmem:[#allocation2 + $0x21] sm:$0xff]
        %v645 = vld [vmem:[#allocation2 + $0x39] sm:$0xff]
        %v646 = vld [vmem:[#allocation2 + $0x51] sm:$0xff]
        %v647 = vld [vmem:[#allocation2 + $0x69] sm:$0xff]
        %v648 = vld [vmem:[#allocation2 + $0x81] sm:$0xff]
        %v649 = vld [vmem:[#allocation2 + $0x99] sm:$0xff]
        %v650 = vld [vmem:[#allocation2 + $0xb1] sm:$0xff]
        %v651 = vld [vmem:[#allocation2 + $0xc9] sm:$0xff]
        %v652 = vld [vmem:[#allocation2 + $0xe1] sm:$0xff]
        %v653 = vld [vmem:[#allocation2 + $0xf9] sm:$0xff]
        %v654 = vld [vmem:[#allocation2 + $0x111] sm:$0xff]
        %v655 = vld [vmem:[#allocation2 + $0x129] sm:$0xff]
        %v656 = vld [vmem:[#allocation2 + $0x141] sm:$0xff]
        %v657 = vld [vmem:[#allocation2 + $0x159] sm:$0xff]
        %v658 = vld [vmem:[#allocation2 + $0x171] sm:$0xff]
        %s659 = scalar_lea.vmem [#allocation7], 256
        %v660 = vld [vmem:[%s659] sm:$0xff]
        %v661 = vld [vmem:[%s659 + $0x8] sm:$0xff]
        %v662 = vld [vmem:[%s659 + $0x10] sm:$0xff]
        %v663 = vld [vmem:[%s659 + $0x18] sm:$0xff]
        %v664 = vld [vmem:[%s659 + $0x20] sm:$0xff]
        %v665 = vld [vmem:[%s659 + $0x28] sm:$0xff]
        %v666 = vld [vmem:[%s659 + $0x30] sm:$0xff]
        %v667 = vld [vmem:[%s659 + $0x38] sm:$0xff]
        %v668 = vld [vmem:[%s659 + $0x40] sm:$0xff]
        %v669 = vld [vmem:[%s659 + $0x48] sm:$0xff]
        %v670 = vld [vmem:[%s659 + $0x50] sm:$0xff]
        %v671 = vld [vmem:[%s659 + $0x58] sm:$0xff]
        %v672 = vld [vmem:[%s659 + $0x60] sm:$0xff]
        %v673 = vld [vmem:[%s659 + $0x68] sm:$0xff]
        %v674 = vld [vmem:[%s659 + $0x70] sm:$0xff]
        %v675 = vld [vmem:[%s659 + $0x78] sm:$0xff]
        %676 = vmatprep.subr.mxu0 0.0
        %677 = vmatpush1.msra.mxu0 %v660
        %678 = vmatprep.subr.mxu0 0.0
        %679 = vmatpush1.msra.mxu0 %v661
        %680 = vmatprep.subr.mxu0 0.0
        %681 = vmatpush1.msra.mxu0 %v662
        %682 = vmatprep.subr.mxu0 0.0
        %683 = vmatpush1.msra.mxu0 %v663
        %684 = vmatprep.subr.mxu0 0.0
        %685 = vmatpush1.msra.mxu0 %v664
        %686 = vmatprep.subr.mxu0 0.0
        %687 = vmatpush1.msra.mxu0 %v665
        %688 = vmatprep.subr.mxu0 0.0
        %689 = vmatpush1.msra.mxu0 %v666
        %690 = vmatprep.subr.mxu0 0.0
        %691 = vmatpush1.msra.mxu0 %v667
        %692 = vmatprep.subr.mxu0 0.0
        %693 = vmatpush1.msra.mxu0 %v668
        %694 = vmatprep.subr.mxu0 0.0
        %695 = vmatpush1.msra.mxu0 %v669
        %696 = vmatprep.subr.mxu0 0.0
        %697 = vmatpush1.msra.mxu0 %v670
        %698 = vmatprep.subr.mxu0 0.0
        %699 = vmatpush1.msra.mxu0 %v671
        %700 = vmatprep.subr.mxu0 0.0
        %701 = vmatpush1.msra.mxu0 %v672
        %702 = vmatprep.subr.mxu0 0.0
        %703 = vmatpush1.msra.mxu0 %v673
        %704 = vmatprep.subr.mxu0 0.0
        %705 = vmatpush1.msra.mxu0 %v674
        %706 = vmatprep.subr.mxu0 0.0
        %707 = vmatpush1.msra.mxu0 %v675
        %708 = vmatprep.subr.mxu0 0.0
        %709 = vmatpush1.msra.mxu0 0.0
        %710 = vmatprep.subr.mxu0 0.0
        %711 = vmatpush1.msra.mxu0 0.0
        %712 = vmatprep.subr.mxu0 0.0
        %713 = vmatpush1.msra.mxu0 0.0
        %714 = vmatprep.subr.mxu0 0.0
        %715 = vmatpush1.msra.mxu0 0.0
        %716 = vmatprep.subr.mxu0 0.0
        %717 = vmatpush1.msra.mxu0 0.0
        %718 = vmatprep.subr.mxu0 0.0
        %719 = vmatpush1.msra.mxu0 0.0
        %720 = vmatprep.subr.mxu0 0.0
        %721 = vmatpush1.msra.mxu0 0.0
        %722 = vmatprep.subr.mxu0 0.0
        %723 = vmatpush1.msra.mxu0 0.0
        %724 = vmatprep.subr.mxu0 0.0
        %725 = vmatpush1.msra.mxu0 0.0
        %726 = vmatprep.subr.mxu0 0.0
        %727 = vmatpush1.msra.mxu0 0.0
        %728 = vmatprep.subr.mxu0 0.0
        %729 = vmatpush1.msra.mxu0 0.0
        %730 = vmatprep.subr.mxu0 0.0
        %731 = vmatpush1.msra.mxu0 0.0
        %732 = vmatprep.subr.mxu0 0.0
        %733 = vmatpush1.msra.mxu0 0.0
        %734 = vmatprep.subr.mxu0 0.0
        %735 = vmatpush1.msra.mxu0 0.0
        %736 = vmatprep.subr.mxu0 0.0
        %737 = vmatpush1.msra.mxu0 0.0
        %738 = vmatprep.subr.mxu0 0.0
        %739 = vmatpush1.msra.mxu0 0.0
        %740 = vmatprep.mubr.f32.mxu0 0.0
        %741 = vmatmul.mubr.f32.gmra.mrb[0].mxu0 %v643
        %v742 = vpop.f32.mrb[0].mxu0
        %v743 = vadd.f32 0.0, %v742
        %v744 = vpop.f32.mrb[0].mxu0
        %745 = vmatprep.mubr.f32.mxu0 0.0
        %746 = vmatmul.mubr.f32.gmra.mrb[0].mxu0 %v644
        %v747 = vpop.f32.mrb[0].mxu0
        %v748 = vadd.f32 0.0, %v747
        %v749 = vpop.f32.mrb[0].mxu0
        %750 = vmatprep.mubr.f32.mxu0 0.0
        %751 = vmatmul.mubr.f32.gmra.mrb[0].mxu0 %v645
        %v752 = vpop.f32.mrb[0].mxu0
        %v753 = vadd.f32 0.0, %v752
        %v754 = vpop.f32.mrb[0].mxu0
        %755 = vmatprep.mubr.f32.mxu0 0.0
        %756 = vmatmul.mubr.f32.gmra.mrb[0].mxu0 %v646
        %v757 = vpop.f32.mrb[0].mxu0
        %v758 = vadd.f32 0.0, %v757
        %v759 = vpop.f32.mrb[0].mxu0
        %760 = vmatprep.mubr.f32.mxu0 0.0
        %761 = vmatmul.mubr.f32.gmra.mrb[0].mxu0 %v647
        %v762 = vpop.f32.mrb[0].mxu0
        %v763 = vadd.f32 0.0, %v762
        %v764 = vpop.f32.mrb[0].mxu0
        %765 = vmatprep.mubr.f32.mxu0 0.0
        %766 = vmatmul.mubr.f32.gmra.mrb[0].mxu0 %v648
        %v767 = vpop.f32.mrb[0].mxu0
        %v768 = vadd.f32 0.0, %v767
        %v769 = vpop.f32.mrb[0].mxu0
        %770 = vmatprep.mubr.f32.mxu0 0.0
        %771 = vmatmul.mubr.f32.gmra.mrb[0].mxu0 %v649
        %v772 = vpop.f32.mrb[0].mxu0
        %v773 = vadd.f32 0.0, %v772
        %v774 = vpop.f32.mrb[0].mxu0
        %775 = vmatprep.mubr.f32.mxu0 0.0
        %776 = vmatmul.mubr.f32.gmra.mrb[0].mxu0 %v650
        %v777 = vpop.f32.mrb[0].mxu0
        %v778 = vadd.f32 0.0, %v777
        %v779 = vpop.f32.mrb[0].mxu0
        %780 = vmatprep.mubr.f32.mxu0 0.0
        %781 = vmatmul.mubr.f32.gmra.mrb[0].mxu0 %v651
        %v782 = vpop.f32.mrb[0].mxu0
        %v783 = vadd.f32 0.0, %v782
        %v784 = vpop.f32.mrb[0].mxu0
        %785 = vmatprep.mubr.f32.mxu0 0.0
        %786 = vmatmul.mubr.f32.gmra.mrb[0].mxu0 %v652
        %v787 = vpop.f32.mrb[0].mxu0
        %v788 = vadd.f32 0.0, %v787
        %v789 = vpop.f32.mrb[0].mxu0
        %790 = vmatprep.mubr.f32.mxu0 0.0
        %791 = vmatmul.mubr.f32.gmra.mrb[0].mxu0 %v653
        %v792 = vpop.f32.mrb[0].mxu0
        %v793 = vadd.f32 0.0, %v792
        %v794 = vpop.f32.mrb[0].mxu0
        %795 = vmatprep.mubr.f32.mxu0 0.0
        %796 = vmatmul.mubr.f32.gmra.mrb[0].mxu0 %v654
        %v797 = vpop.f32.mrb[0].mxu0
        %v798 = vadd.f32 0.0, %v797
        %v799 = vpop.f32.mrb[0].mxu0
        %800 = vmatprep.mubr.f32.mxu0 0.0
        %801 = vmatmul.mubr.f32.gmra.mrb[0].mxu0 %v655
        %v802 = vpop.f32.mrb[0].mxu0
        %v803 = vadd.f32 0.0, %v802
        %v804 = vpop.f32.mrb[0].mxu0
        %805 = vmatprep.mubr.f32.mxu0 0.0
        %806 = vmatmul.mubr.f32.gmra.mrb[0].mxu0 %v656
        %v807 = vpop.f32.mrb[0].mxu0
        %v808 = vadd.f32 0.0, %v807
        %v809 = vpop.f32.mrb[0].mxu0
        %810 = vmatprep.mubr.f32.mxu0 0.0
        %811 = vmatmul.mubr.f32.gmra.mrb[0].mxu0 %v657
        %v812 = vpop.f32.mrb[0].mxu0
        %v813 = vadd.f32 0.0, %v812
        %v814 = vpop.f32.mrb[0].mxu0
        %815 = vmatprep.mubr.f32.mxu0 0.0
        %816 = vmatmul.mubr.f32.gmra.mrb[0].mxu0 %v658
        %v817 = vpop.f32.mrb[0].mxu0
        %v818 = vadd.f32 0.0, %v817
        %v819 = vpop.f32.mrb[0].mxu0
        %820 = vdwg.mxu0
        %v821 = vadd.f32 %v565, %v743
        %v822 = vadd.f32 %v570, %v748
        %v823 = vadd.f32 %v575, %v753
        %v824 = vadd.f32 %v580, %v758
        %v825 = vadd.f32 %v585, %v763
        %v826 = vadd.f32 %v590, %v768
        %v827 = vadd.f32 %v595, %v773
        %v828 = vadd.f32 %v600, %v778
        %v829 = vadd.f32 %v605, %v783
        %v830 = vadd.f32 %v610, %v788
        %v831 = vadd.f32 %v615, %v793
        %v832 = vadd.f32 %v620, %v798
        %v833 = vadd.f32 %v625, %v803
        %v834 = vadd.f32 %v630, %v808
        %v835 = vadd.f32 %v635, %v813
        %v836 = vadd.f32 %v640, %v818
        %v837 = vld [vmem:[%s223 + $0x7] sm:$0xff]
        %v838 = vld [vmem:[%s223 + $0x1f] sm:$0xff]
        %v839 = vld [vmem:[%s223 + $0x37] sm:$0xff]
        %v840 = vld [vmem:[%s223 + $0x4f] sm:$0xff]
        %v841 = vld [vmem:[%s223 + $0x67] sm:$0xff]
        %v842 = vld [vmem:[%s223 + $0x7f] sm:$0xff]
        %v843 = vld [vmem:[%s223 + $0x97] sm:$0xff]
        %v844 = vld [vmem:[%s223 + $0xaf] sm:$0xff]
        %v845 = vld [vmem:[%s223 + $0xc7] sm:$0xff]
        %v846 = vld [vmem:[%s223 + $0xdf] sm:$0xff]
        %v847 = vld [vmem:[%s223 + $0xf7] sm:$0xff]
        %v848 = vld [vmem:[%s223 + $0x10f] sm:$0xff]
        %v849 = vld [vmem:[%s223 + $0x127] sm:$0xff]
        %v850 = vld [vmem:[%s223 + $0x13f] sm:$0xff]
        %v851 = vld [vmem:[%s223 + $0x157] sm:$0xff]
        %v852 = vld [vmem:[%s223 + $0x16f] sm:$0xff]
        %s853 = scalar_lea.vmem [#allocation7], 384
        %v854 = vld [vmem:[%s853] sm:$0xff]
        %v855 = vld [vmem:[%s853 + $0x8] sm:$0xff]
        %v856 = vld [vmem:[%s853 + $0x10] sm:$0xff]
        %v857 = vld [vmem:[%s853 + $0x18] sm:$0xff]
        %v858 = vld [vmem:[%s853 + $0x20] sm:$0xff]
        %v859 = vld [vmem:[%s853 + $0x28] sm:$0xff]
        %v860 = vld [vmem:[%s853 + $0x30] sm:$0xff]
        %v861 = vld [vmem:[%s853 + $0x38] sm:$0xff]
        %v862 = vld [vmem:[%s853 + $0x40] sm:$0xff]
        %v863 = vld [vmem:[%s853 + $0x48] sm:$0xff]
        %v864 = vld [vmem:[%s853 + $0x50] sm:$0xff]
        %v865 = vld [vmem:[%s853 + $0x58] sm:$0xff]
        %v866 = vld [vmem:[%s853 + $0x60] sm:$0xff]
        %v867 = vld [vmem:[%s853 + $0x68] sm:$0xff]
        %v868 = vld [vmem:[%s853 + $0x70] sm:$0xff]
        %v869 = vld [vmem:[%s853 + $0x78] sm:$0xff]
        %870 = vmatprep.subr.mxu0 0.0
        %871 = vmatpush1.msra.mxu0 %v854
        %872 = vmatprep.subr.mxu0 0.0
        %873 = vmatpush1.msra.mxu0 %v855
        %874 = vmatprep.subr.mxu0 0.0
        %875 = vmatpush1.msra.mxu0 %v856
        %876 = vmatprep.subr.mxu0 0.0
        %877 = vmatpush1.msra.mxu0 %v857
        %878 = vmatprep.subr.mxu0 0.0
        %879 = vmatpush1.msra.mxu0 %v858
        %880 = vmatprep.subr.mxu0 0.0
        %881 = vmatpush1.msra.mxu0 %v859
        %882 = vmatprep.subr.mxu0 0.0
        %883 = vmatpush1.msra.mxu0 %v860
        %884 = vmatprep.subr.mxu0 0.0
        %885 = vmatpush1.msra.mxu0 %v861
        %886 = vmatprep.subr.mxu0 0.0
        %887 = vmatpush1.msra.mxu0 %v862
        %888 = vmatprep.subr.mxu0 0.0
        %889 = vmatpush1.msra.mxu0 %v863
        %890 = vmatprep.subr.mxu0 0.0
        %891 = vmatpush1.msra.mxu0 %v864
        %892 = vmatprep.subr.mxu0 0.0
        %893 = vmatpush1.msra.mxu0 %v865
        %894 = vmatprep.subr.mxu0 0.0
        %895 = vmatpush1.msra.mxu0 %v866
        %896 = vmatprep.subr.mxu0 0.0
        %897 = vmatpush1.msra.mxu0 %v867
        %898 = vmatprep.subr.mxu0 0.0
        %899 = vmatpush1.msra.mxu0 %v868
        %900 = vmatprep.subr.mxu0 0.0
        %901 = vmatpush1.msra.mxu0 %v869
        %902 = vmatprep.subr.mxu0 0.0
        %903 = vmatpush1.msra.mxu0 0.0
        %904 = vmatprep.subr.mxu0 0.0
        %905 = vmatpush1.msra.mxu0 0.0
        %906 = vmatprep.subr.mxu0 0.0
        %907 = vmatpush1.msra.mxu0 0.0
        %908 = vmatprep.subr.mxu0 0.0
        %909 = vmatpush1.msra.mxu0 0.0
        %910 = vmatprep.subr.mxu0 0.0
        %911 = vmatpush1.msra.mxu0 0.0
        %912 = vmatprep.subr.mxu0 0.0
        %913 = vmatpush1.msra.mxu0 0.0
        %914 = vmatprep.subr.mxu0 0.0
        %915 = vmatpush1.msra.mxu0 0.0
        %916 = vmatprep.subr.mxu0 0.0
        %917 = vmatpush1.msra.mxu0 0.0
        %918 = vmatprep.subr.mxu0 0.0
        %919 = vmatpush1.msra.mxu0 0.0
        %920 = vmatprep.subr.mxu0 0.0
        %921 = vmatpush1.msra.mxu0 0.0
        %922 = vmatprep.subr.mxu0 0.0
        %923 = vmatpush1.msra.mxu0 0.0
        %924 = vmatprep.subr.mxu0 0.0
        %925 = vmatpush1.msra.mxu0 0.0
        %926 = vmatprep.subr.mxu0 0.0
        %927 = vmatpush1.msra.mxu0 0.0
        %928 = vmatprep.subr.mxu0 0.0
        %929 = vmatpush1.msra.mxu0 0.0
        %930 = vmatprep.subr.mxu0 0.0
        %931 = vmatpush1.msra.mxu0 0.0
        %932 = vmatprep.subr.mxu0 0.0
        %933 = vmatpush1.msra.mxu0 0.0
        %934 = vmatprep.mubr.f32.mxu0 0.0
        %935 = vmatmul.mubr.f32.gmra.mrb[0].mxu0 %v837
        %v936 = vpop.f32.mrb[0].mxu0
        %v937 = vadd.f32 0.0, %v936
        %v938 = vpop.f32.mrb[0].mxu0
        %939 = vmatprep.mubr.f32.mxu0 0.0
        %940 = vmatmul.mubr.f32.gmra.mrb[0].mxu0 %v838
        %v941 = vpop.f32.mrb[0].mxu0
        %v942 = vadd.f32 0.0, %v941
        %v943 = vpop.f32.mrb[0].mxu0
        %944 = vmatprep.mubr.f32.mxu0 0.0
        %945 = vmatmul.mubr.f32.gmra.mrb[0].mxu0 %v839
        %v946 = vpop.f32.mrb[0].mxu0
        %v947 = vadd.f32 0.0, %v946
        %v948 = vpop.f32.mrb[0].mxu0
        %949 = vmatprep.mubr.f32.mxu0 0.0
        %950 = vmatmul.mubr.f32.gmra.mrb[0].mxu0 %v840
        %v951 = vpop.f32.mrb[0].mxu0
        %v952 = vadd.f32 0.0, %v951
        %v953 = vpop.f32.mrb[0].mxu0
        %954 = vmatprep.mubr.f32.mxu0 0.0
        %955 = vmatmul.mubr.f32.gmra.mrb[0].mxu0 %v841
        %v956 = vpop.f32.mrb[0].mxu0
        %v957 = vadd.f32 0.0, %v956
        %v958 = vpop.f32.mrb[0].mxu0
        %959 = vmatprep.mubr.f32.mxu0 0.0
        %960 = vmatmul.mubr.f32.gmra.mrb[0].mxu0 %v842
        %v961 = vpop.f32.mrb[0].mxu0
        %v962 = vadd.f32 0.0, %v961
        %v963 = vpop.f32.mrb[0].mxu0
        %964 = vmatprep.mubr.f32.mxu0 0.0
        %965 = vmatmul.mubr.f32.gmra.mrb[0].mxu0 %v843
        %v966 = vpop.f32.mrb[0].mxu0
        %v967 = vadd.f32 0.0, %v966
        %v968 = vpop.f32.mrb[0].mxu0
        %969 = vmatprep.mubr.f32.mxu0 0.0
        %970 = vmatmul.mubr.f32.gmra.mrb[0].mxu0 %v844
        %v971 = vpop.f32.mrb[0].mxu0
        %v972 = vadd.f32 0.0, %v971
        %v973 = vpop.f32.mrb[0].mxu0
        %974 = vmatprep.mubr.f32.mxu0 0.0
        %975 = vmatmul.mubr.f32.gmra.mrb[0].mxu0 %v845
        %v976 = vpop.f32.mrb[0].mxu0
        %v977 = vadd.f32 0.0, %v976
        %v978 = vpop.f32.mrb[0].mxu0
        %979 = vmatprep.mubr.f32.mxu0 0.0
        %980 = vmatmul.mubr.f32.gmra.mrb[0].mxu0 %v846
        %v981 = vpop.f32.mrb[0].mxu0
        %v982 = vadd.f32 0.0, %v981
        %v983 = vpop.f32.mrb[0].mxu0
        %984 = vmatprep.mubr.f32.mxu0 0.0
        %985 = vmatmul.mubr.f32.gmra.mrb[0].mxu0 %v847
        %v986 = vpop.f32.mrb[0].mxu0
        %v987 = vadd.f32 0.0, %v986
        %v988 = vpop.f32.mrb[0].mxu0
        %989 = vmatprep.mubr.f32.mxu0 0.0
        %990 = vmatmul.mubr.f32.gmra.mrb[0].mxu0 %v848
        %v991 = vpop.f32.mrb[0].mxu0
        %v992 = vadd.f32 0.0, %v991
        %v993 = vpop.f32.mrb[0].mxu0
        %994 = vmatprep.mubr.f32.mxu0 0.0
        %995 = vmatmul.mubr.f32.gmra.mrb[0].mxu0 %v849
        %v996 = vpop.f32.mrb[0].mxu0
        %v997 = vadd.f32 0.0, %v996
        %v998 = vpop.f32.mrb[0].mxu0
        %999 = vmatprep.mubr.f32.mxu0 0.0
        %1000 = vmatmul.mubr.f32.gmra.mrb[0].mxu0 %v850
        %v1001 = vpop.f32.mrb[0].mxu0
        %v1002 = vadd.f32 0.0, %v1001
        %v1003 = vpop.f32.mrb[0].mxu0
        %1004 = vmatprep.mubr.f32.mxu0 0.0
        %1005 = vmatmul.mubr.f32.gmra.mrb[0].mxu0 %v851
        %v1006 = vpop.f32.mrb[0].mxu0
        %v1007 = vadd.f32 0.0, %v1006
        %v1008 = vpop.f32.mrb[0].mxu0
        %1009 = vmatprep.mubr.f32.mxu0 0.0
        %1010 = vmatmul.mubr.f32.gmra.mrb[0].mxu0 %v852
        %v1011 = vpop.f32.mrb[0].mxu0
        %v1012 = vadd.f32 0.0, %v1011
        %v1013 = vpop.f32.mrb[0].mxu0
        %1014 = vdwg.mxu0
        %v1015 = vadd.f32 %v821, %v937
        %v1016 = vadd.f32 %v822, %v942
        %v1017 = vadd.f32 %v823, %v947
        %v1018 = vadd.f32 %v824, %v952
        %v1019 = vadd.f32 %v825, %v957
        %v1020 = vadd.f32 %v826, %v962
        %v1021 = vadd.f32 %v827, %v967
        %v1022 = vadd.f32 %v828, %v972
        %v1023 = vadd.f32 %v829, %v977
        %v1024 = vadd.f32 %v830, %v982
        %v1025 = vadd.f32 %v831, %v987
        %v1026 = vadd.f32 %v832, %v992
        %v1027 = vadd.f32 %v833, %v997
        %v1028 = vadd.f32 %v834, %v1002
        %v1029 = vadd.f32 %v835, %v1007
        %v1030 = vadd.f32 %v836, %v1012
        %v1031 = vld [vmem:[%s223 + $0x8] sm:$0xff]
        %v1032 = vld [vmem:[%s223 + $0x20] sm:$0xff]
        %v1033 = vld [vmem:[%s223 + $0x38] sm:$0xff]
        %v1034 = vld [vmem:[%s223 + $0x50] sm:$0xff]
        %v1035 = vld [vmem:[%s223 + $0x68] sm:$0xff]
        %v1036 = vld [vmem:[%s223 + $0x80] sm:$0xff]
        %v1037 = vld [vmem:[%s223 + $0x98] sm:$0xff]
        %v1038 = vld [vmem:[%s223 + $0xb0] sm:$0xff]
        %v1039 = vld [vmem:[%s223 + $0xc8] sm:$0xff]
        %v1040 = vld [vmem:[%s223 + $0xe0] sm:$0xff]
        %v1041 = vld [vmem:[%s223 + $0xf8] sm:$0xff]
        %v1042 = vld [vmem:[%s223 + $0x110] sm:$0xff]
        %v1043 = vld [vmem:[%s223 + $0x128] sm:$0xff]
        %v1044 = vld [vmem:[%s223 + $0x140] sm:$0xff]
        %v1045 = vld [vmem:[%s223 + $0x158] sm:$0xff]
        %v1046 = vld [vmem:[%s223 + $0x170] sm:$0xff]
        %s1047 = scalar_lea.vmem [#allocation7], 512
        %v1048 = vld [vmem:[%s1047] sm:$0xff]
        %v1049 = vld [vmem:[%s1047 + $0x8] sm:$0xff]
        %v1050 = vld [vmem:[%s1047 + $0x10] sm:$0xff]
        %v1051 = vld [vmem:[%s1047 + $0x18] sm:$0xff]
        %v1052 = vld [vmem:[%s1047 + $0x20] sm:$0xff]
        %v1053 = vld [vmem:[%s1047 + $0x28] sm:$0xff]
        %v1054 = vld [vmem:[%s1047 + $0x30] sm:$0xff]
        %v1055 = vld [vmem:[%s1047 + $0x38] sm:$0xff]
        %v1056 = vld [vmem:[%s1047 + $0x40] sm:$0xff]
        %v1057 = vld [vmem:[%s1047 + $0x48] sm:$0xff]
        %v1058 = vld [vmem:[%s1047 + $0x50] sm:$0xff]
        %v1059 = vld [vmem:[%s1047 + $0x58] sm:$0xff]
        %v1060 = vld [vmem:[%s1047 + $0x60] sm:$0xff]
        %v1061 = vld [vmem:[%s1047 + $0x68] sm:$0xff]
        %v1062 = vld [vmem:[%s1047 + $0x70] sm:$0xff]
        %v1063 = vld [vmem:[%s1047 + $0x78] sm:$0xff]
        %1064 = vmatprep.subr.mxu0 0.0
        %1065 = vmatpush1.msra.mxu0 %v1048
        %1066 = vmatprep.subr.mxu0 0.0
        %1067 = vmatpush1.msra.mxu0 %v1049
        %1068 = vmatprep.subr.mxu0 0.0
        %1069 = vmatpush1.msra.mxu0 %v1050
        %1070 = vmatprep.subr.mxu0 0.0
        %1071 = vmatpush1.msra.mxu0 %v1051
        %1072 = vmatprep.subr.mxu0 0.0
        %1073 = vmatpush1.msra.mxu0 %v1052
        %1074 = vmatprep.subr.mxu0 0.0
        %1075 = vmatpush1.msra.mxu0 %v1053
        %1076 = vmatprep.subr.mxu0 0.0
        %1077 = vmatpush1.msra.mxu0 %v1054
        %1078 = vmatprep.subr.mxu0 0.0
        %1079 = vmatpush1.msra.mxu0 %v1055
        %1080 = vmatprep.subr.mxu0 0.0
        %1081 = vmatpush1.msra.mxu0 %v1056
        %1082 = vmatprep.subr.mxu0 0.0
        %1083 = vmatpush1.msra.mxu0 %v1057
        %1084 = vmatprep.subr.mxu0 0.0
        %1085 = vmatpush1.msra.mxu0 %v1058
        %1086 = vmatprep.subr.mxu0 0.0
        %1087 = vmatpush1.msra.mxu0 %v1059
        %1088 = vmatprep.subr.mxu0 0.0
        %1089 = vmatpush1.msra.mxu0 %v1060
        %1090 = vmatprep.subr.mxu0 0.0
        %1091 = vmatpush1.msra.mxu0 %v1061
        %1092 = vmatprep.subr.mxu0 0.0
        %1093 = vmatpush1.msra.mxu0 %v1062
        %1094 = vmatprep.subr.mxu0 0.0
        %1095 = vmatpush1.msra.mxu0 %v1063
        %1096 = vmatprep.subr.mxu0 0.0
        %1097 = vmatpush1.msra.mxu0 0.0
        %1098 = vmatprep.subr.mxu0 0.0
        %1099 = vmatpush1.msra.mxu0 0.0
        %1100 = vmatprep.subr.mxu0 0.0
        %1101 = vmatpush1.msra.mxu0 0.0
        %1102 = vmatprep.subr.mxu0 0.0
        %1103 = vmatpush1.msra.mxu0 0.0
        %1104 = vmatprep.subr.mxu0 0.0
        %1105 = vmatpush1.msra.mxu0 0.0
        %1106 = vmatprep.subr.mxu0 0.0
        %1107 = vmatpush1.msra.mxu0 0.0
        %1108 = vmatprep.subr.mxu0 0.0
        %1109 = vmatpush1.msra.mxu0 0.0
        %1110 = vmatprep.subr.mxu0 0.0
        %1111 = vmatpush1.msra.mxu0 0.0
        %1112 = vmatprep.subr.mxu0 0.0
        %1113 = vmatpush1.msra.mxu0 0.0
        %1114 = vmatprep.subr.mxu0 0.0
        %1115 = vmatpush1.msra.mxu0 0.0
        %1116 = vmatprep.subr.mxu0 0.0
        %1117 = vmatpush1.msra.mxu0 0.0
        %1118 = vmatprep.subr.mxu0 0.0
        %1119 = vmatpush1.msra.mxu0 0.0
        %1120 = vmatprep.subr.mxu0 0.0
        %1121 = vmatpush1.msra.mxu0 0.0
        %1122 = vmatprep.subr.mxu0 0.0
        %1123 = vmatpush1.msra.mxu0 0.0
        %1124 = vmatprep.subr.mxu0 0.0
        %1125 = vmatpush1.msra.mxu0 0.0
        %1126 = vmatprep.subr.mxu0 0.0
        %1127 = vmatpush1.msra.mxu0 0.0
        %1128 = vmatprep.mubr.f32.mxu0 0.0
        %1129 = vmatmul.mubr.f32.gmra.mrb[0].mxu0 %v1031
        %v1130 = vpop.f32.mrb[0].mxu0
        %v1131 = vadd.f32 0.0, %v1130
        %v1132 = vpop.f32.mrb[0].mxu0
        %1133 = vmatprep.mubr.f32.mxu0 0.0
        %1134 = vmatmul.mubr.f32.gmra.mrb[0].mxu0 %v1032
        %v1135 = vpop.f32.mrb[0].mxu0
        %v1136 = vadd.f32 0.0, %v1135
        %v1137 = vpop.f32.mrb[0].mxu0
        %1138 = vmatprep.mubr.f32.mxu0 0.0
        %1139 = vmatmul.mubr.f32.gmra.mrb[0].mxu0 %v1033
        %v1140 = vpop.f32.mrb[0].mxu0
        %v1141 = vadd.f32 0.0, %v1140
        %v1142 = vpop.f32.mrb[0].mxu0
        %1143 = vmatprep.mubr.f32.mxu0 0.0
        %1144 = vmatmul.mubr.f32.gmra.mrb[0].mxu0 %v1034
        %v1145 = vpop.f32.mrb[0].mxu0
        %v1146 = vadd.f32 0.0, %v1145
        %v1147 = vpop.f32.mrb[0].mxu0
        %1148 = vmatprep.mubr.f32.mxu0 0.0
        %1149 = vmatmul.mubr.f32.gmra.mrb[0].mxu0 %v1035
        %v1150 = vpop.f32.mrb[0].mxu0
        %v1151 = vadd.f32 0.0, %v1150
        %v1152 = vpop.f32.mrb[0].mxu0
        %1153 = vmatprep.mubr.f32.mxu0 0.0
        %1154 = vmatmul.mubr.f32.gmra.mrb[0].mxu0 %v1036
        %v1155 = vpop.f32.mrb[0].mxu0
        %v1156 = vadd.f32 0.0, %v1155
        %v1157 = vpop.f32.mrb[0].mxu0
        %1158 = vmatprep.mubr.f32.mxu0 0.0
        %1159 = vmatmul.mubr.f32.gmra.mrb[0].mxu0 %v1037
        %v1160 = vpop.f32.mrb[0].mxu0
        %v1161 = vadd.f32 0.0, %v1160
        %v1162 = vpop.f32.mrb[0].mxu0
        %1163 = vmatprep.mubr.f32.mxu0 0.0
        %1164 = vmatmul.mubr.f32.gmra.mrb[0].mxu0 %v1038
        %v1165 = vpop.f32.mrb[0].mxu0
        %v1166 = vadd.f32 0.0, %v1165
        %v1167 = vpop.f32.mrb[0].mxu0
        %1168 = vmatprep.mubr.f32.mxu0 0.0
        %1169 = vmatmul.mubr.f32.gmra.mrb[0].mxu0 %v1039
        %v1170 = vpop.f32.mrb[0].mxu0
        %v1171 = vadd.f32 0.0, %v1170
        %v1172 = vpop.f32.mrb[0].mxu0
        %1173 = vmatprep.mubr.f32.mxu0 0.0
        %1174 = vmatmul.mubr.f32.gmra.mrb[0].mxu0 %v1040
        %v1175 = vpop.f32.mrb[0].mxu0
        %v1176 = vadd.f32 0.0, %v1175
        %v1177 = vpop.f32.mrb[0].mxu0
        %1178 = vmatprep.mubr.f32.mxu0 0.0
        %1179 = vmatmul.mubr.f32.gmra.mrb[0].mxu0 %v1041
        %v1180 = vpop.f32.mrb[0].mxu0
        %v1181 = vadd.f32 0.0, %v1180
        %v1182 = vpop.f32.mrb[0].mxu0
        %1183 = vmatprep.mubr.f32.mxu0 0.0
        %1184 = vmatmul.mubr.f32.gmra.mrb[0].mxu0 %v1042
        %v1185 = vpop.f32.mrb[0].mxu0
        %v1186 = vadd.f32 0.0, %v1185
        %v1187 = vpop.f32.mrb[0].mxu0
        %1188 = vmatprep.mubr.f32.mxu0 0.0
        %1189 = vmatmul.mubr.f32.gmra.mrb[0].mxu0 %v1043
        %v1190 = vpop.f32.mrb[0].mxu0
        %v1191 = vadd.f32 0.0, %v1190
        %v1192 = vpop.f32.mrb[0].mxu0
        %1193 = vmatprep.mubr.f32.mxu0 0.0
        %1194 = vmatmul.mubr.f32.gmra.mrb[0].mxu0 %v1044
        %v1195 = vpop.f32.mrb[0].mxu0
        %v1196 = vadd.f32 0.0, %v1195
        %v1197 = vpop.f32.mrb[0].mxu0
        %1198 = vmatprep.mubr.f32.mxu0 0.0
        %1199 = vmatmul.mubr.f32.gmra.mrb[0].mxu0 %v1045
        %v1200 = vpop.f32.mrb[0].mxu0
        %v1201 = vadd.f32 0.0, %v1200
        %v1202 = vpop.f32.mrb[0].mxu0
        %1203 = vmatprep.mubr.f32.mxu0 0.0
        %1204 = vmatmul.mubr.f32.gmra.mrb[0].mxu0 %v1046
        %v1205 = vpop.f32.mrb[0].mxu0
        %v1206 = vadd.f32 0.0, %v1205
        %v1207 = vpop.f32.mrb[0].mxu0
        %1208 = vdwg.mxu0
        %v1209 = vadd.f32 %v1015, %v1131
        %v1210 = vadd.f32 %v1016, %v1136
        %v1211 = vadd.f32 %v1017, %v1141
        %v1212 = vadd.f32 %v1018, %v1146
        %v1213 = vadd.f32 %v1019, %v1151
        %v1214 = vadd.f32 %v1020, %v1156
        %v1215 = vadd.f32 %v1021, %v1161
        %v1216 = vadd.f32 %v1022, %v1166
        %v1217 = vadd.f32 %v1023, %v1171
        %v1218 = vadd.f32 %v1024, %v1176
        %v1219 = vadd.f32 %v1025, %v1181
        %v1220 = vadd.f32 %v1026, %v1186
        %v1221 = vadd.f32 %v1027, %v1191
        %v1222 = vadd.f32 %v1028, %v1196
        %v1223 = vadd.f32 %v1029, %v1201
        %v1224 = vadd.f32 %v1030, %v1206
        %v1225 = vld [vmem:[%s223 + $0x9] sm:$0xff]
        %v1226 = vld [vmem:[%s223 + $0x21] sm:$0xff]
        %v1227 = vld [vmem:[%s223 + $0x39] sm:$0xff]
        %v1228 = vld [vmem:[%s223 + $0x51] sm:$0xff]
        %v1229 = vld [vmem:[%s223 + $0x69] sm:$0xff]
        %v1230 = vld [vmem:[%s223 + $0x81] sm:$0xff]
        %v1231 = vld [vmem:[%s223 + $0x99] sm:$0xff]
        %v1232 = vld [vmem:[%s223 + $0xb1] sm:$0xff]
        %v1233 = vld [vmem:[%s223 + $0xc9] sm:$0xff]
        %v1234 = vld [vmem:[%s223 + $0xe1] sm:$0xff]
        %v1235 = vld [vmem:[%s223 + $0xf9] sm:$0xff]
        %v1236 = vld [vmem:[%s223 + $0x111] sm:$0xff]
        %v1237 = vld [vmem:[%s223 + $0x129] sm:$0xff]
        %v1238 = vld [vmem:[%s223 + $0x141] sm:$0xff]
        %v1239 = vld [vmem:[%s223 + $0x159] sm:$0xff]
        %v1240 = vld [vmem:[%s223 + $0x171] sm:$0xff]
        %s1241 = scalar_lea.vmem [#allocation7], 640
        %v1242 = vld [vmem:[%s1241] sm:$0xff]
        %v1243 = vld [vmem:[%s1241 + $0x8] sm:$0xff]
        %v1244 = vld [vmem:[%s1241 + $0x10] sm:$0xff]
        %v1245 = vld [vmem:[%s1241 + $0x18] sm:$0xff]
        %v1246 = vld [vmem:[%s1241 + $0x20] sm:$0xff]
        %v1247 = vld [vmem:[%s1241 + $0x28] sm:$0xff]
        %v1248 = vld [vmem:[%s1241 + $0x30] sm:$0xff]
        %v1249 = vld [vmem:[%s1241 + $0x38] sm:$0xff]
        %v1250 = vld [vmem:[%s1241 + $0x40] sm:$0xff]
        %v1251 = vld [vmem:[%s1241 + $0x48] sm:$0xff]
        %v1252 = vld [vmem:[%s1241 + $0x50] sm:$0xff]
        %v1253 = vld [vmem:[%s1241 + $0x58] sm:$0xff]
        %v1254 = vld [vmem:[%s1241 + $0x60] sm:$0xff]
        %v1255 = vld [vmem:[%s1241 + $0x68] sm:$0xff]
        %v1256 = vld [vmem:[%s1241 + $0x70] sm:$0xff]
        %v1257 = vld [vmem:[%s1241 + $0x78] sm:$0xff]
        %1258 = vmatprep.subr.mxu0 0.0
        %1259 = vmatpush1.msra.mxu0 %v1242
        %1260 = vmatprep.subr.mxu0 0.0
        %1261 = vmatpush1.msra.mxu0 %v1243
        %1262 = vmatprep.subr.mxu0 0.0
        %1263 = vmatpush1.msra.mxu0 %v1244
        %1264 = vmatprep.subr.mxu0 0.0
        %1265 = vmatpush1.msra.mxu0 %v1245
        %1266 = vmatprep.subr.mxu0 0.0
        %1267 = vmatpush1.msra.mxu0 %v1246
        %1268 = vmatprep.subr.mxu0 0.0
        %1269 = vmatpush1.msra.mxu0 %v1247
        %1270 = vmatprep.subr.mxu0 0.0
        %1271 = vmatpush1.msra.mxu0 %v1248
        %1272 = vmatprep.subr.mxu0 0.0
        %1273 = vmatpush1.msra.mxu0 %v1249
        %1274 = vmatprep.subr.mxu0 0.0
        %1275 = vmatpush1.msra.mxu0 %v1250
        %1276 = vmatprep.subr.mxu0 0.0
        %1277 = vmatpush1.msra.mxu0 %v1251
        %1278 = vmatprep.subr.mxu0 0.0
        %1279 = vmatpush1.msra.mxu0 %v1252
        %1280 = vmatprep.subr.mxu0 0.0
        %1281 = vmatpush1.msra.mxu0 %v1253
        %1282 = vmatprep.subr.mxu0 0.0
        %1283 = vmatpush1.msra.mxu0 %v1254
        %1284 = vmatprep.subr.mxu0 0.0
        %1285 = vmatpush1.msra.mxu0 %v1255
        %1286 = vmatprep.subr.mxu0 0.0
        %1287 = vmatpush1.msra.mxu0 %v1256
        %1288 = vmatprep.subr.mxu0 0.0
        %1289 = vmatpush1.msra.mxu0 %v1257
        %1290 = vmatprep.subr.mxu0 0.0
        %1291 = vmatpush1.msra.mxu0 0.0
        %1292 = vmatprep.subr.mxu0 0.0
        %1293 = vmatpush1.msra.mxu0 0.0
        %1294 = vmatprep.subr.mxu0 0.0
        %1295 = vmatpush1.msra.mxu0 0.0
        %1296 = vmatprep.subr.mxu0 0.0
        %1297 = vmatpush1.msra.mxu0 0.0
        %1298 = vmatprep.subr.mxu0 0.0
        %1299 = vmatpush1.msra.mxu0 0.0
        %1300 = vmatprep.subr.mxu0 0.0
        %1301 = vmatpush1.msra.mxu0 0.0
        %1302 = vmatprep.subr.mxu0 0.0
        %1303 = vmatpush1.msra.mxu0 0.0
        %1304 = vmatprep.subr.mxu0 0.0
        %1305 = vmatpush1.msra.mxu0 0.0
        %1306 = vmatprep.subr.mxu0 0.0
        %1307 = vmatpush1.msra.mxu0 0.0
        %1308 = vmatprep.subr.mxu0 0.0
        %1309 = vmatpush1.msra.mxu0 0.0
        %1310 = vmatprep.subr.mxu0 0.0
        %1311 = vmatpush1.msra.mxu0 0.0
        %1312 = vmatprep.subr.mxu0 0.0
        %1313 = vmatpush1.msra.mxu0 0.0
        %1314 = vmatprep.subr.mxu0 0.0
        %1315 = vmatpush1.msra.mxu0 0.0
        %1316 = vmatprep.subr.mxu0 0.0
        %1317 = vmatpush1.msra.mxu0 0.0
        %1318 = vmatprep.subr.mxu0 0.0
        %1319 = vmatpush1.msra.mxu0 0.0
        %1320 = vmatprep.subr.mxu0 0.0
        %1321 = vmatpush1.msra.mxu0 0.0
        %1322 = vmatprep.mubr.f32.mxu0 0.0
        %1323 = vmatmul.mubr.f32.gmra.mrb[0].mxu0 %v1225
        %v1324 = vpop.f32.mrb[0].mxu0
        %v1325 = vadd.f32 0.0, %v1324
        %v1326 = vpop.f32.mrb[0].mxu0
        %1327 = vmatprep.mubr.f32.mxu0 0.0
        %1328 = vmatmul.mubr.f32.gmra.mrb[0].mxu0 %v1226
        %v1329 = vpop.f32.mrb[0].mxu0
        %v1330 = vadd.f32 0.0, %v1329
        %v1331 = vpop.f32.mrb[0].mxu0
        %1332 = vmatprep.mubr.f32.mxu0 0.0
        %1333 = vmatmul.mubr.f32.gmra.mrb[0].mxu0 %v1227
        %v1334 = vpop.f32.mrb[0].mxu0
        %v1335 = vadd.f32 0.0, %v1334
        %v1336 = vpop.f32.mrb[0].mxu0
        %1337 = vmatprep.mubr.f32.mxu0 0.0
        %1338 = vmatmul.mubr.f32.gmra.mrb[0].mxu0 %v1228
        %v1339 = vpop.f32.mrb[0].mxu0
        %v1340 = vadd.f32 0.0, %v1339
        %v1341 = vpop.f32.mrb[0].mxu0
        %1342 = vmatprep.mubr.f32.mxu0 0.0
        %1343 = vmatmul.mubr.f32.gmra.mrb[0].mxu0 %v1229
        %v1344 = vpop.f32.mrb[0].mxu0
        %v1345 = vadd.f32 0.0, %v1344
        %v1346 = vpop.f32.mrb[0].mxu0
        %1347 = vmatprep.mubr.f32.mxu0 0.0
        %1348 = vmatmul.mubr.f32.gmra.mrb[0].mxu0 %v1230
        %v1349 = vpop.f32.mrb[0].mxu0
        %v1350 = vadd.f32 0.0, %v1349
        %v1351 = vpop.f32.mrb[0].mxu0
        %1352 = vmatprep.mubr.f32.mxu0 0.0
        %1353 = vmatmul.mubr.f32.gmra.mrb[0].mxu0 %v1231
        %v1354 = vpop.f32.mrb[0].mxu0
        %v1355 = vadd.f32 0.0, %v1354
        %v1356 = vpop.f32.mrb[0].mxu0
        %1357 = vmatprep.mubr.f32.mxu0 0.0
        %1358 = vmatmul.mubr.f32.gmra.mrb[0].mxu0 %v1232
        %v1359 = vpop.f32.mrb[0].mxu0
        %v1360 = vadd.f32 0.0, %v1359
        %v1361 = vpop.f32.mrb[0].mxu0
        %1362 = vmatprep.mubr.f32.mxu0 0.0
        %1363 = vmatmul.mubr.f32.gmra.mrb[0].mxu0 %v1233
        %v1364 = vpop.f32.mrb[0].mxu0
        %v1365 = vadd.f32 0.0, %v1364
        %v1366 = vpop.f32.mrb[0].mxu0
        %1367 = vmatprep.mubr.f32.mxu0 0.0
        %1368 = vmatmul.mubr.f32.gmra.mrb[0].mxu0 %v1234
        %v1369 = vpop.f32.mrb[0].mxu0
        %v1370 = vadd.f32 0.0, %v1369
        %v1371 = vpop.f32.mrb[0].mxu0
        %1372 = vmatprep.mubr.f32.mxu0 0.0
        %1373 = vmatmul.mubr.f32.gmra.mrb[0].mxu0 %v1235
        %v1374 = vpop.f32.mrb[0].mxu0
        %v1375 = vadd.f32 0.0, %v1374
        %v1376 = vpop.f32.mrb[0].mxu0
        %1377 = vmatprep.mubr.f32.mxu0 0.0
        %1378 = vmatmul.mubr.f32.gmra.mrb[0].mxu0 %v1236
        %v1379 = vpop.f32.mrb[0].mxu0
        %v1380 = vadd.f32 0.0, %v1379
        %v1381 = vpop.f32.mrb[0].mxu0
        %1382 = vmatprep.mubr.f32.mxu0 0.0
        %1383 = vmatmul.mubr.f32.gmra.mrb[0].mxu0 %v1237
        %v1384 = vpop.f32.mrb[0].mxu0
        %v1385 = vadd.f32 0.0, %v1384
        %v1386 = vpop.f32.mrb[0].mxu0
        %1387 = vmatprep.mubr.f32.mxu0 0.0
        %1388 = vmatmul.mubr.f32.gmra.mrb[0].mxu0 %v1238
        %v1389 = vpop.f32.mrb[0].mxu0
        %v1390 = vadd.f32 0.0, %v1389
        %v1391 = vpop.f32.mrb[0].mxu0
        %1392 = vmatprep.mubr.f32.mxu0 0.0
        %1393 = vmatmul.mubr.f32.gmra.mrb[0].mxu0 %v1239
        %v1394 = vpop.f32.mrb[0].mxu0
        %v1395 = vadd.f32 0.0, %v1394
        %v1396 = vpop.f32.mrb[0].mxu0
        %1397 = vmatprep.mubr.f32.mxu0 0.0
        %1398 = vmatmul.mubr.f32.gmra.mrb[0].mxu0 %v1240
        %v1399 = vpop.f32.mrb[0].mxu0
        %v1400 = vadd.f32 0.0, %v1399
        %v1401 = vpop.f32.mrb[0].mxu0
        %1402 = vdwg.mxu0
        %v1403 = vadd.f32 %v1209, %v1325
        %v1404 = vadd.f32 %v1210, %v1330
        %v1405 = vadd.f32 %v1211, %v1335
        %v1406 = vadd.f32 %v1212, %v1340
        %v1407 = vadd.f32 %v1213, %v1345
        %v1408 = vadd.f32 %v1214, %v1350
        %v1409 = vadd.f32 %v1215, %v1355
        %v1410 = vadd.f32 %v1216, %v1360
        %v1411 = vadd.f32 %v1217, %v1365
        %v1412 = vadd.f32 %v1218, %v1370
        %v1413 = vadd.f32 %v1219, %v1375
        %v1414 = vadd.f32 %v1220, %v1380
        %v1415 = vadd.f32 %v1221, %v1385
        %v1416 = vadd.f32 %v1222, %v1390
        %v1417 = vadd.f32 %v1223, %v1395
        %v1418 = vadd.f32 %v1224, %v1400
        %s1419 = scalar_lea.vmem [#allocation2], 48
        %v1420 = vld [vmem:[%s1419 + $0x7] sm:$0xff]
        %v1421 = vld [vmem:[%s1419 + $0x1f] sm:$0xff]
        %v1422 = vld [vmem:[%s1419 + $0x37] sm:$0xff]
        %v1423 = vld [vmem:[%s1419 + $0x4f] sm:$0xff]
        %v1424 = vld [vmem:[%s1419 + $0x67] sm:$0xff]
        %v1425 = vld [vmem:[%s1419 + $0x7f] sm:$0xff]
        %v1426 = vld [vmem:[%s1419 + $0x97] sm:$0xff]
        %v1427 = vld [vmem:[%s1419 + $0xaf] sm:$0xff]
        %v1428 = vld [vmem:[%s1419 + $0xc7] sm:$0xff]
        %v1429 = vld [vmem:[%s1419 + $0xdf] sm:$0xff]
        %v1430 = vld [vmem:[%s1419 + $0xf7] sm:$0xff]
        %v1431 = vld [vmem:[%s1419 + $0x10f] sm:$0xff]
        %v1432 = vld [vmem:[%s1419 + $0x127] sm:$0xff]
        %v1433 = vld [vmem:[%s1419 + $0x13f] sm:$0xff]
        %v1434 = vld [vmem:[%s1419 + $0x157] sm:$0xff]
        %v1435 = vld [vmem:[%s1419 + $0x16f] sm:$0xff]
        %s1436 = scalar_lea.vmem [#allocation7], 768
        %v1437 = vld [vmem:[%s1436] sm:$0xff]
        %v1438 = vld [vmem:[%s1436 + $0x8] sm:$0xff]
        %v1439 = vld [vmem:[%s1436 + $0x10] sm:$0xff]
        %v1440 = vld [vmem:[%s1436 + $0x18] sm:$0xff]
        %v1441 = vld [vmem:[%s1436 + $0x20] sm:$0xff]
        %v1442 = vld [vmem:[%s1436 + $0x28] sm:$0xff]
        %v1443 = vld [vmem:[%s1436 + $0x30] sm:$0xff]
        %v1444 = vld [vmem:[%s1436 + $0x38] sm:$0xff]
        %v1445 = vld [vmem:[%s1436 + $0x40] sm:$0xff]
        %v1446 = vld [vmem:[%s1436 + $0x48] sm:$0xff]
        %v1447 = vld [vmem:[%s1436 + $0x50] sm:$0xff]
        %v1448 = vld [vmem:[%s1436 + $0x58] sm:$0xff]
        %v1449 = vld [vmem:[%s1436 + $0x60] sm:$0xff]
        %v1450 = vld [vmem:[%s1436 + $0x68] sm:$0xff]
        %v1451 = vld [vmem:[%s1436 + $0x70] sm:$0xff]
        %v1452 = vld [vmem:[%s1436 + $0x78] sm:$0xff]
        %1453 = vmatprep.subr.mxu0 0.0
        %1454 = vmatpush1.msra.mxu0 %v1437
        %1455 = vmatprep.subr.mxu0 0.0
        %1456 = vmatpush1.msra.mxu0 %v1438
        %1457 = vmatprep.subr.mxu0 0.0
        %1458 = vmatpush1.msra.mxu0 %v1439
        %1459 = vmatprep.subr.mxu0 0.0
        %1460 = vmatpush1.msra.mxu0 %v1440
        %1461 = vmatprep.subr.mxu0 0.0
        %1462 = vmatpush1.msra.mxu0 %v1441
        %1463 = vmatprep.subr.mxu0 0.0
        %1464 = vmatpush1.msra.mxu0 %v1442
        %1465 = vmatprep.subr.mxu0 0.0
        %1466 = vmatpush1.msra.mxu0 %v1443
        %1467 = vmatprep.subr.mxu0 0.0
        %1468 = vmatpush1.msra.mxu0 %v1444
        %1469 = vmatprep.subr.mxu0 0.0
        %1470 = vmatpush1.msra.mxu0 %v1445
        %1471 = vmatprep.subr.mxu0 0.0
        %1472 = vmatpush1.msra.mxu0 %v1446
        %1473 = vmatprep.subr.mxu0 0.0
        %1474 = vmatpush1.msra.mxu0 %v1447
        %1475 = vmatprep.subr.mxu0 0.0
        %1476 = vmatpush1.msra.mxu0 %v1448
        %1477 = vmatprep.subr.mxu0 0.0
        %1478 = vmatpush1.msra.mxu0 %v1449
        %1479 = vmatprep.subr.mxu0 0.0
        %1480 = vmatpush1.msra.mxu0 %v1450
        %1481 = vmatprep.subr.mxu0 0.0
        %1482 = vmatpush1.msra.mxu0 %v1451
        %1483 = vmatprep.subr.mxu0 0.0
        %1484 = vmatpush1.msra.mxu0 %v1452
        %1485 = vmatprep.subr.mxu0 0.0
        %1486 = vmatpush1.msra.mxu0 0.0
        %1487 = vmatprep.subr.mxu0 0.0
        %1488 = vmatpush1.msra.mxu0 0.0
        %1489 = vmatprep.subr.mxu0 0.0
        %1490 = vmatpush1.msra.mxu0 0.0
        %1491 = vmatprep.subr.mxu0 0.0
        %1492 = vmatpush1.msra.mxu0 0.0
        %1493 = vmatprep.subr.mxu0 0.0
        %1494 = vmatpush1.msra.mxu0 0.0
        %1495 = vmatprep.subr.mxu0 0.0
        %1496 = vmatpush1.msra.mxu0 0.0
        %1497 = vmatprep.subr.mxu0 0.0
        %1498 = vmatpush1.msra.mxu0 0.0
        %1499 = vmatprep.subr.mxu0 0.0
        %1500 = vmatpush1.msra.mxu0 0.0
        %1501 = vmatprep.subr.mxu0 0.0
        %1502 = vmatpush1.msra.mxu0 0.0
        %1503 = vmatprep.subr.mxu0 0.0
        %1504 = vmatpush1.msra.mxu0 0.0
        %1505 = vmatprep.subr.mxu0 0.0
        %1506 = vmatpush1.msra.mxu0 0.0
        %1507 = vmatprep.subr.mxu0 0.0
        %1508 = vmatpush1.msra.mxu0 0.0
        %1509 = vmatprep.subr.mxu0 0.0
        %1510 = vmatpush1.msra.mxu0 0.0
        %1511 = vmatprep.subr.mxu0 0.0
        %1512 = vmatpush1.msra.mxu0 0.0
        %1513 = vmatprep.subr.mxu0 0.0
        %1514 = vmatpush1.msra.mxu0 0.0
        %1515 = vmatprep.subr.mxu0 0.0
        %1516 = vmatpush1.msra.mxu0 0.0
        %1517 = vmatprep.mubr.f32.mxu0 0.0
        %1518 = vmatmul.mubr.f32.gmra.mrb[0].mxu0 %v1420
        %v1519 = vpop.f32.mrb[0].mxu0
        %v1520 = vadd.f32 0.0, %v1519
        %v1521 = vpop.f32.mrb[0].mxu0
        %1522 = vmatprep.mubr.f32.mxu0 0.0
        %1523 = vmatmul.mubr.f32.gmra.mrb[0].mxu0 %v1421
        %v1524 = vpop.f32.mrb[0].mxu0
        %v1525 = vadd.f32 0.0, %v1524
        %v1526 = vpop.f32.mrb[0].mxu0
        %1527 = vmatprep.mubr.f32.mxu0 0.0
        %1528 = vmatmul.mubr.f32.gmra.mrb[0].mxu0 %v1422
        %v1529 = vpop.f32.mrb[0].mxu0
        %v1530 = vadd.f32 0.0, %v1529
        %v1531 = vpop.f32.mrb[0].mxu0
        %1532 = vmatprep.mubr.f32.mxu0 0.0
        %1533 = vmatmul.mubr.f32.gmra.mrb[0].mxu0 %v1423
        %v1534 = vpop.f32.mrb[0].mxu0
        %v1535 = vadd.f32 0.0, %v1534
        %v1536 = vpop.f32.mrb[0].mxu0
        %1537 = vmatprep.mubr.f32.mxu0 0.0
        %1538 = vmatmul.mubr.f32.gmra.mrb[0].mxu0 %v1424
        %v1539 = vpop.f32.mrb[0].mxu0
        %v1540 = vadd.f32 0.0, %v1539
        %v1541 = vpop.f32.mrb[0].mxu0
        %1542 = vmatprep.mubr.f32.mxu0 0.0
        %1543 = vmatmul.mubr.f32.gmra.mrb[0].mxu0 %v1425
        %v1544 = vpop.f32.mrb[0].mxu0
        %v1545 = vadd.f32 0.0, %v1544
        %v1546 = vpop.f32.mrb[0].mxu0
        %1547 = vmatprep.mubr.f32.mxu0 0.0
        %1548 = vmatmul.mubr.f32.gmra.mrb[0].mxu0 %v1426
        %v1549 = vpop.f32.mrb[0].mxu0
        %v1550 = vadd.f32 0.0, %v1549
        %v1551 = vpop.f32.mrb[0].mxu0
        %1552 = vmatprep.mubr.f32.mxu0 0.0
        %1553 = vmatmul.mubr.f32.gmra.mrb[0].mxu0 %v1427
        %v1554 = vpop.f32.mrb[0].mxu0
        %v1555 = vadd.f32 0.0, %v1554
        %v1556 = vpop.f32.mrb[0].mxu0
        %1557 = vmatprep.mubr.f32.mxu0 0.0
        %1558 = vmatmul.mubr.f32.gmra.mrb[0].mxu0 %v1428
        %v1559 = vpop.f32.mrb[0].mxu0
        %v1560 = vadd.f32 0.0, %v1559
        %v1561 = vpop.f32.mrb[0].mxu0
        %1562 = vmatprep.mubr.f32.mxu0 0.0
        %1563 = vmatmul.mubr.f32.gmra.mrb[0].mxu0 %v1429
        %v1564 = vpop.f32.mrb[0].mxu0
        %v1565 = vadd.f32 0.0, %v1564
        %v1566 = vpop.f32.mrb[0].mxu0
        %1567 = vmatprep.mubr.f32.mxu0 0.0
        %1568 = vmatmul.mubr.f32.gmra.mrb[0].mxu0 %v1430
        %v1569 = vpop.f32.mrb[0].mxu0
        %v1570 = vadd.f32 0.0, %v1569
        %v1571 = vpop.f32.mrb[0].mxu0
        %1572 = vmatprep.mubr.f32.mxu0 0.0
        %1573 = vmatmul.mubr.f32.gmra.mrb[0].mxu0 %v1431
        %v1574 = vpop.f32.mrb[0].mxu0
        %v1575 = vadd.f32 0.0, %v1574
        %v1576 = vpop.f32.mrb[0].mxu0
        %1577 = vmatprep.mubr.f32.mxu0 0.0
        %1578 = vmatmul.mubr.f32.gmra.mrb[0].mxu0 %v1432
        %v1579 = vpop.f32.mrb[0].mxu0
        %v1580 = vadd.f32 0.0, %v1579
        %v1581 = vpop.f32.mrb[0].mxu0
        %1582 = vmatprep.mubr.f32.mxu0 0.0
        %1583 = vmatmul.mubr.f32.gmra.mrb[0].mxu0 %v1433
        %v1584 = vpop.f32.mrb[0].mxu0
        %v1585 = vadd.f32 0.0, %v1584
        %v1586 = vpop.f32.mrb[0].mxu0
        %1587 = vmatprep.mubr.f32.mxu0 0.0
        %1588 = vmatmul.mubr.f32.gmra.mrb[0].mxu0 %v1434
        %v1589 = vpop.f32.mrb[0].mxu0
        %v1590 = vadd.f32 0.0, %v1589
        %v1591 = vpop.f32.mrb[0].mxu0
        %1592 = vmatprep.mubr.f32.mxu0 0.0
        %1593 = vmatmul.mubr.f32.gmra.mrb[0].mxu0 %v1435
        %v1594 = vpop.f32.mrb[0].mxu0
        %v1595 = vadd.f32 0.0, %v1594
        %v1596 = vpop.f32.mrb[0].mxu0
        %1597 = vdwg.mxu0
        %v1598 = vadd.f32 %v1403, %v1520
        %v1599 = vadd.f32 %v1404, %v1525
        %v1600 = vadd.f32 %v1405, %v1530
        %v1601 = vadd.f32 %v1406, %v1535
        %v1602 = vadd.f32 %v1407, %v1540
        %v1603 = vadd.f32 %v1408, %v1545
        %v1604 = vadd.f32 %v1409, %v1550
        %v1605 = vadd.f32 %v1410, %v1555
        %v1606 = vadd.f32 %v1411, %v1560
        %v1607 = vadd.f32 %v1412, %v1565
        %v1608 = vadd.f32 %v1413, %v1570
        %v1609 = vadd.f32 %v1414, %v1575
        %v1610 = vadd.f32 %v1415, %v1580
        %v1611 = vadd.f32 %v1416, %v1585
        %v1612 = vadd.f32 %v1417, %v1590
        %v1613 = vadd.f32 %v1418, %v1595
        %v1614 = vld [vmem:[%s1419 + $0x8] sm:$0xff]
        %v1615 = vld [vmem:[%s1419 + $0x20] sm:$0xff]
        %v1616 = vld [vmem:[%s1419 + $0x38] sm:$0xff]
        %v1617 = vld [vmem:[%s1419 + $0x50] sm:$0xff]
        %v1618 = vld [vmem:[%s1419 + $0x68] sm:$0xff]
        %v1619 = vld [vmem:[%s1419 + $0x80] sm:$0xff]
        %v1620 = vld [vmem:[%s1419 + $0x98] sm:$0xff]
        %v1621 = vld [vmem:[%s1419 + $0xb0] sm:$0xff]
        %v1622 = vld [vmem:[%s1419 + $0xc8] sm:$0xff]
        %v1623 = vld [vmem:[%s1419 + $0xe0] sm:$0xff]
        %v1624 = vld [vmem:[%s1419 + $0xf8] sm:$0xff]
        %v1625 = vld [vmem:[%s1419 + $0x110] sm:$0xff]
        %v1626 = vld [vmem:[%s1419 + $0x128] sm:$0xff]
        %v1627 = vld [vmem:[%s1419 + $0x140] sm:$0xff]
        %v1628 = vld [vmem:[%s1419 + $0x158] sm:$0xff]
        %v1629 = vld [vmem:[%s1419 + $0x170] sm:$0xff]
        %s1630 = scalar_lea.vmem [#allocation7], 896
        %v1631 = vld [vmem:[%s1630] sm:$0xff]
        %v1632 = vld [vmem:[%s1630 + $0x8] sm:$0xff]
        %v1633 = vld [vmem:[%s1630 + $0x10] sm:$0xff]
        %v1634 = vld [vmem:[%s1630 + $0x18] sm:$0xff]
        %v1635 = vld [vmem:[%s1630 + $0x20] sm:$0xff]
        %v1636 = vld [vmem:[%s1630 + $0x28] sm:$0xff]
        %v1637 = vld [vmem:[%s1630 + $0x30] sm:$0xff]
        %v1638 = vld [vmem:[%s1630 + $0x38] sm:$0xff]
        %v1639 = vld [vmem:[%s1630 + $0x40] sm:$0xff]
        %v1640 = vld [vmem:[%s1630 + $0x48] sm:$0xff]
        %v1641 = vld [vmem:[%s1630 + $0x50] sm:$0xff]
        %v1642 = vld [vmem:[%s1630 + $0x58] sm:$0xff]
        %v1643 = vld [vmem:[%s1630 + $0x60] sm:$0xff]
        %v1644 = vld [vmem:[%s1630 + $0x68] sm:$0xff]
        %v1645 = vld [vmem:[%s1630 + $0x70] sm:$0xff]
        %v1646 = vld [vmem:[%s1630 + $0x78] sm:$0xff]
        %1647 = vmatprep.subr.mxu0 0.0
        %1648 = vmatpush1.msra.mxu0 %v1631
        %1649 = vmatprep.subr.mxu0 0.0
        %1650 = vmatpush1.msra.mxu0 %v1632
        %1651 = vmatprep.subr.mxu0 0.0
        %1652 = vmatpush1.msra.mxu0 %v1633
        %1653 = vmatprep.subr.mxu0 0.0
        %1654 = vmatpush1.msra.mxu0 %v1634
        %1655 = vmatprep.subr.mxu0 0.0
        %1656 = vmatpush1.msra.mxu0 %v1635
        %1657 = vmatprep.subr.mxu0 0.0
        %1658 = vmatpush1.msra.mxu0 %v1636
        %1659 = vmatprep.subr.mxu0 0.0
        %1660 = vmatpush1.msra.mxu0 %v1637
        %1661 = vmatprep.subr.mxu0 0.0
        %1662 = vmatpush1.msra.mxu0 %v1638
        %1663 = vmatprep.subr.mxu0 0.0
        %1664 = vmatpush1.msra.mxu0 %v1639
        %1665 = vmatprep.subr.mxu0 0.0
        %1666 = vmatpush1.msra.mxu0 %v1640
        %1667 = vmatprep.subr.mxu0 0.0
        %1668 = vmatpush1.msra.mxu0 %v1641
        %1669 = vmatprep.subr.mxu0 0.0
        %1670 = vmatpush1.msra.mxu0 %v1642
        %1671 = vmatprep.subr.mxu0 0.0
        %1672 = vmatpush1.msra.mxu0 %v1643
        %1673 = vmatprep.subr.mxu0 0.0
        %1674 = vmatpush1.msra.mxu0 %v1644
        %1675 = vmatprep.subr.mxu0 0.0
        %1676 = vmatpush1.msra.mxu0 %v1645
        %1677 = vmatprep.subr.mxu0 0.0
        %1678 = vmatpush1.msra.mxu0 %v1646
        %1679 = vmatprep.subr.mxu0 0.0
        %1680 = vmatpush1.msra.mxu0 0.0
        %1681 = vmatprep.subr.mxu0 0.0
        %1682 = vmatpush1.msra.mxu0 0.0
        %1683 = vmatprep.subr.mxu0 0.0
        %1684 = vmatpush1.msra.mxu0 0.0
        %1685 = vmatprep.subr.mxu0 0.0
        %1686 = vmatpush1.msra.mxu0 0.0
        %1687 = vmatprep.subr.mxu0 0.0
        %1688 = vmatpush1.msra.mxu0 0.0
        %1689 = vmatprep.subr.mxu0 0.0
        %1690 = vmatpush1.msra.mxu0 0.0
        %1691 = vmatprep.subr.mxu0 0.0
        %1692 = vmatpush1.msra.mxu0 0.0
        %1693 = vmatprep.subr.mxu0 0.0
        %1694 = vmatpush1.msra.mxu0 0.0
        %1695 = vmatprep.subr.mxu0 0.0
        %1696 = vmatpush1.msra.mxu0 0.0
        %1697 = vmatprep.subr.mxu0 0.0
        %1698 = vmatpush1.msra.mxu0 0.0
        %1699 = vmatprep.subr.mxu0 0.0
        %1700 = vmatpush1.msra.mxu0 0.0
        %1701 = vmatprep.subr.mxu0 0.0
        %1702 = vmatpush1.msra.mxu0 0.0
        %1703 = vmatprep.subr.mxu0 0.0
        %1704 = vmatpush1.msra.mxu0 0.0
        %1705 = vmatprep.subr.mxu0 0.0
        %1706 = vmatpush1.msra.mxu0 0.0
        %1707 = vmatprep.subr.mxu0 0.0
        %1708 = vmatpush1.msra.mxu0 0.0
        %1709 = vmatprep.subr.mxu0 0.0
        %1710 = vmatpush1.msra.mxu0 0.0
        %1711 = vmatprep.mubr.f32.mxu0 0.0
        %1712 = vmatmul.mubr.f32.gmra.mrb[0].mxu0 %v1614
        %v1713 = vpop.f32.mrb[0].mxu0
        %v1714 = vadd.f32 0.0, %v1713
        %v1715 = vpop.f32.mrb[0].mxu0
        %1716 = vmatprep.mubr.f32.mxu0 0.0
        %1717 = vmatmul.mubr.f32.gmra.mrb[0].mxu0 %v1615
        %v1718 = vpop.f32.mrb[0].mxu0
        %v1719 = vadd.f32 0.0, %v1718
        %v1720 = vpop.f32.mrb[0].mxu0
        %1721 = vmatprep.mubr.f32.mxu0 0.0
        %1722 = vmatmul.mubr.f32.gmra.mrb[0].mxu0 %v1616
        %v1723 = vpop.f32.mrb[0].mxu0
        %v1724 = vadd.f32 0.0, %v1723
        %v1725 = vpop.f32.mrb[0].mxu0
        %1726 = vmatprep.mubr.f32.mxu0 0.0
        %1727 = vmatmul.mubr.f32.gmra.mrb[0].mxu0 %v1617
        %v1728 = vpop.f32.mrb[0].mxu0
        %v1729 = vadd.f32 0.0, %v1728
        %v1730 = vpop.f32.mrb[0].mxu0
        %1731 = vmatprep.mubr.f32.mxu0 0.0
        %1732 = vmatmul.mubr.f32.gmra.mrb[0].mxu0 %v1618
        %v1733 = vpop.f32.mrb[0].mxu0
        %v1734 = vadd.f32 0.0, %v1733
        %v1735 = vpop.f32.mrb[0].mxu0
        %1736 = vmatprep.mubr.f32.mxu0 0.0
        %1737 = vmatmul.mubr.f32.gmra.mrb[0].mxu0 %v1619
        %v1738 = vpop.f32.mrb[0].mxu0
        %v1739 = vadd.f32 0.0, %v1738
        %v1740 = vpop.f32.mrb[0].mxu0
        %1741 = vmatprep.mubr.f32.mxu0 0.0
        %1742 = vmatmul.mubr.f32.gmra.mrb[0].mxu0 %v1620
        %v1743 = vpop.f32.mrb[0].mxu0
        %v1744 = vadd.f32 0.0, %v1743
        %v1745 = vpop.f32.mrb[0].mxu0
        %1746 = vmatprep.mubr.f32.mxu0 0.0
        %1747 = vmatmul.mubr.f32.gmra.mrb[0].mxu0 %v1621
        %v1748 = vpop.f32.mrb[0].mxu0
        %v1749 = vadd.f32 0.0, %v1748
        %v1750 = vpop.f32.mrb[0].mxu0
        %1751 = vmatprep.mubr.f32.mxu0 0.0
        %1752 = vmatmul.mubr.f32.gmra.mrb[0].mxu0 %v1622
        %v1753 = vpop.f32.mrb[0].mxu0
        %v1754 = vadd.f32 0.0, %v1753
        %v1755 = vpop.f32.mrb[0].mxu0
        %1756 = vmatprep.mubr.f32.mxu0 0.0
        %1757 = vmatmul.mubr.f32.gmra.mrb[0].mxu0 %v1623
        %v1758 = vpop.f32.mrb[0].mxu0
        %v1759 = vadd.f32 0.0, %v1758
        %v1760 = vpop.f32.mrb[0].mxu0
        %1761 = vmatprep.mubr.f32.mxu0 0.0
        %1762 = vmatmul.mubr.f32.gmra.mrb[0].mxu0 %v1624
        %v1763 = vpop.f32.mrb[0].mxu0
        %v1764 = vadd.f32 0.0, %v1763
        %v1765 = vpop.f32.mrb[0].mxu0
        %1766 = vmatprep.mubr.f32.mxu0 0.0
        %1767 = vmatmul.mubr.f32.gmra.mrb[0].mxu0 %v1625
        %v1768 = vpop.f32.mrb[0].mxu0
        %v1769 = vadd.f32 0.0, %v1768
        %v1770 = vpop.f32.mrb[0].mxu0
        %1771 = vmatprep.mubr.f32.mxu0 0.0
        %1772 = vmatmul.mubr.f32.gmra.mrb[0].mxu0 %v1626
        %v1773 = vpop.f32.mrb[0].mxu0
        %v1774 = vadd.f32 0.0, %v1773
        %v1775 = vpop.f32.mrb[0].mxu0
        %1776 = vmatprep.mubr.f32.mxu0 0.0
        %1777 = vmatmul.mubr.f32.gmra.mrb[0].mxu0 %v1627
        %v1778 = vpop.f32.mrb[0].mxu0
        %v1779 = vadd.f32 0.0, %v1778
        %v1780 = vpop.f32.mrb[0].mxu0
        %1781 = vmatprep.mubr.f32.mxu0 0.0
        %1782 = vmatmul.mubr.f32.gmra.mrb[0].mxu0 %v1628
        %v1783 = vpop.f32.mrb[0].mxu0
        %v1784 = vadd.f32 0.0, %v1783
        %v1785 = vpop.f32.mrb[0].mxu0
        %1786 = vmatprep.mubr.f32.mxu0 0.0
        %1787 = vmatmul.mubr.f32.gmra.mrb[0].mxu0 %v1629
        %v1788 = vpop.f32.mrb[0].mxu0
        %v1789 = vadd.f32 0.0, %v1788
        %v1790 = vpop.f32.mrb[0].mxu0
        %1791 = vdwg.mxu0
        %v1792 = vadd.f32 %v1598, %v1714
        %v1793 = vadd.f32 %v1599, %v1719
        %v1794 = vadd.f32 %v1600, %v1724
        %v1795 = vadd.f32 %v1601, %v1729
        %v1796 = vadd.f32 %v1602, %v1734
        %v1797 = vadd.f32 %v1603, %v1739
        %v1798 = vadd.f32 %v1604, %v1744
        %v1799 = vadd.f32 %v1605, %v1749
        %v1800 = vadd.f32 %v1606, %v1754
        %v1801 = vadd.f32 %v1607, %v1759
        %v1802 = vadd.f32 %v1608, %v1764
        %v1803 = vadd.f32 %v1609, %v1769
        %v1804 = vadd.f32 %v1610, %v1774
        %v1805 = vadd.f32 %v1611, %v1779
        %v1806 = vadd.f32 %v1612, %v1784
        %v1807 = vadd.f32 %v1613, %v1789
        %v1808 = vld [vmem:[%s1419 + $0x9] sm:$0xff]
        %v1809 = vld [vmem:[%s1419 + $0x21] sm:$0xff]
        %v1810 = vld [vmem:[%s1419 + $0x39] sm:$0xff]
        %v1811 = vld [vmem:[%s1419 + $0x51] sm:$0xff]
        %v1812 = vld [vmem:[%s1419 + $0x69] sm:$0xff]
        %v1813 = vld [vmem:[%s1419 + $0x81] sm:$0xff]
        %v1814 = vld [vmem:[%s1419 + $0x99] sm:$0xff]
        %v1815 = vld [vmem:[%s1419 + $0xb1] sm:$0xff]
        %v1816 = vld [vmem:[%s1419 + $0xc9] sm:$0xff]
        %v1817 = vld [vmem:[%s1419 + $0xe1] sm:$0xff]
        %v1818 = vld [vmem:[%s1419 + $0xf9] sm:$0xff]
        %v1819 = vld [vmem:[%s1419 + $0x111] sm:$0xff]
        %v1820 = vld [vmem:[%s1419 + $0x129] sm:$0xff]
        %v1821 = vld [vmem:[%s1419 + $0x141] sm:$0xff]
        %v1822 = vld [vmem:[%s1419 + $0x159] sm:$0xff]
        %v1823 = vld [vmem:[%s1419 + $0x171] sm:$0xff]
        %s1824 = scalar_lea.vmem [#allocation7], 1024
        %v1825 = vld [vmem:[%s1824] sm:$0xff]
        %v1826 = vld [vmem:[%s1824 + $0x8] sm:$0xff]
        %v1827 = vld [vmem:[%s1824 + $0x10] sm:$0xff]
        %v1828 = vld [vmem:[%s1824 + $0x18] sm:$0xff]
        %v1829 = vld [vmem:[%s1824 + $0x20] sm:$0xff]
        %v1830 = vld [vmem:[%s1824 + $0x28] sm:$0xff]
        %v1831 = vld [vmem:[%s1824 + $0x30] sm:$0xff]
        %v1832 = vld [vmem:[%s1824 + $0x38] sm:$0xff]
        %v1833 = vld [vmem:[%s1824 + $0x40] sm:$0xff]
        %v1834 = vld [vmem:[%s1824 + $0x48] sm:$0xff]
        %v1835 = vld [vmem:[%s1824 + $0x50] sm:$0xff]
        %v1836 = vld [vmem:[%s1824 + $0x58] sm:$0xff]
        %v1837 = vld [vmem:[%s1824 + $0x60] sm:$0xff]
        %v1838 = vld [vmem:[%s1824 + $0x68] sm:$0xff]
        %v1839 = vld [vmem:[%s1824 + $0x70] sm:$0xff]
        %v1840 = vld [vmem:[%s1824 + $0x78] sm:$0xff]
        %1841 = vmatprep.subr.mxu0 0.0
        %1842 = vmatpush1.msra.mxu0 %v1825
        %1843 = vmatprep.subr.mxu0 0.0
        %1844 = vmatpush1.msra.mxu0 %v1826
        %1845 = vmatprep.subr.mxu0 0.0
        %1846 = vmatpush1.msra.mxu0 %v1827
        %1847 = vmatprep.subr.mxu0 0.0
        %1848 = vmatpush1.msra.mxu0 %v1828
        %1849 = vmatprep.subr.mxu0 0.0
        %1850 = vmatpush1.msra.mxu0 %v1829
        %1851 = vmatprep.subr.mxu0 0.0
        %1852 = vmatpush1.msra.mxu0 %v1830
        %1853 = vmatprep.subr.mxu0 0.0
        %1854 = vmatpush1.msra.mxu0 %v1831
        %1855 = vmatprep.subr.mxu0 0.0
        %1856 = vmatpush1.msra.mxu0 %v1832
        %1857 = vmatprep.subr.mxu0 0.0
        %1858 = vmatpush1.msra.mxu0 %v1833
        %1859 = vmatprep.subr.mxu0 0.0
        %1860 = vmatpush1.msra.mxu0 %v1834
        %1861 = vmatprep.subr.mxu0 0.0
        %1862 = vmatpush1.msra.mxu0 %v1835
        %1863 = vmatprep.subr.mxu0 0.0
        %1864 = vmatpush1.msra.mxu0 %v1836
        %1865 = vmatprep.subr.mxu0 0.0
        %1866 = vmatpush1.msra.mxu0 %v1837
        %1867 = vmatprep.subr.mxu0 0.0
        %1868 = vmatpush1.msra.mxu0 %v1838
        %1869 = vmatprep.subr.mxu0 0.0
        %1870 = vmatpush1.msra.mxu0 %v1839
        %1871 = vmatprep.subr.mxu0 0.0
        %1872 = vmatpush1.msra.mxu0 %v1840
        %1873 = vmatprep.subr.mxu0 0.0
        %1874 = vmatpush1.msra.mxu0 0.0
        %1875 = vmatprep.subr.mxu0 0.0
        %1876 = vmatpush1.msra.mxu0 0.0
        %1877 = vmatprep.subr.mxu0 0.0
        %1878 = vmatpush1.msra.mxu0 0.0
        %1879 = vmatprep.subr.mxu0 0.0
        %1880 = vmatpush1.msra.mxu0 0.0
        %1881 = vmatprep.subr.mxu0 0.0
        %1882 = vmatpush1.msra.mxu0 0.0
        %1883 = vmatprep.subr.mxu0 0.0
        %1884 = vmatpush1.msra.mxu0 0.0
        %1885 = vmatprep.subr.mxu0 0.0
        %1886 = vmatpush1.msra.mxu0 0.0
        %1887 = vmatprep.subr.mxu0 0.0
        %1888 = vmatpush1.msra.mxu0 0.0
        %1889 = vmatprep.subr.mxu0 0.0
        %1890 = vmatpush1.msra.mxu0 0.0
        %1891 = vmatprep.subr.mxu0 0.0
        %1892 = vmatpush1.msra.mxu0 0.0
        %1893 = vmatprep.subr.mxu0 0.0
        %1894 = vmatpush1.msra.mxu0 0.0
        %1895 = vmatprep.subr.mxu0 0.0
        %1896 = vmatpush1.msra.mxu0 0.0
        %1897 = vmatprep.subr.mxu0 0.0
        %1898 = vmatpush1.msra.mxu0 0.0
        %1899 = vmatprep.subr.mxu0 0.0
        %1900 = vmatpush1.msra.mxu0 0.0
        %1901 = vmatprep.subr.mxu0 0.0
        %1902 = vmatpush1.msra.mxu0 0.0
        %1903 = vmatprep.subr.mxu0 0.0
        %1904 = vmatpush1.msra.mxu0 0.0
        %1905 = vmatprep.mubr.f32.mxu0 0.0
        %1906 = vmatmul.mubr.f32.gmra.mrb[0].mxu0 %v1808
        %v1907 = vpop.f32.mrb[0].mxu0
        %v1908 = vadd.f32 0.0, %v1907
        %v1909 = vpop.f32.mrb[0].mxu0
        %1910 = vmatprep.mubr.f32.mxu0 0.0
        %1911 = vmatmul.mubr.f32.gmra.mrb[0].mxu0 %v1809
        %v1912 = vpop.f32.mrb[0].mxu0
        %v1913 = vadd.f32 0.0, %v1912
        %v1914 = vpop.f32.mrb[0].mxu0
        %1915 = vmatprep.mubr.f32.mxu0 0.0
        %1916 = vmatmul.mubr.f32.gmra.mrb[0].mxu0 %v1810
        %v1917 = vpop.f32.mrb[0].mxu0
        %v1918 = vadd.f32 0.0, %v1917
        %v1919 = vpop.f32.mrb[0].mxu0
        %1920 = vmatprep.mubr.f32.mxu0 0.0
        %1921 = vmatmul.mubr.f32.gmra.mrb[0].mxu0 %v1811
        %v1922 = vpop.f32.mrb[0].mxu0
        %v1923 = vadd.f32 0.0, %v1922
        %v1924 = vpop.f32.mrb[0].mxu0
        %1925 = vmatprep.mubr.f32.mxu0 0.0
        %1926 = vmatmul.mubr.f32.gmra.mrb[0].mxu0 %v1812
        %v1927 = vpop.f32.mrb[0].mxu0
        %v1928 = vadd.f32 0.0, %v1927
        %v1929 = vpop.f32.mrb[0].mxu0
        %1930 = vmatprep.mubr.f32.mxu0 0.0
        %1931 = vmatmul.mubr.f32.gmra.mrb[0].mxu0 %v1813
        %v1932 = vpop.f32.mrb[0].mxu0
        %v1933 = vadd.f32 0.0, %v1932
        %v1934 = vpop.f32.mrb[0].mxu0
        %1935 = vmatprep.mubr.f32.mxu0 0.0
        %1936 = vmatmul.mubr.f32.gmra.mrb[0].mxu0 %v1814
        %v1937 = vpop.f32.mrb[0].mxu0
        %v1938 = vadd.f32 0.0, %v1937
        %v1939 = vpop.f32.mrb[0].mxu0
        %1940 = vmatprep.mubr.f32.mxu0 0.0
        %1941 = vmatmul.mubr.f32.gmra.mrb[0].mxu0 %v1815
        %v1942 = vpop.f32.mrb[0].mxu0
        %v1943 = vadd.f32 0.0, %v1942
        %v1944 = vpop.f32.mrb[0].mxu0
        %1945 = vmatprep.mubr.f32.mxu0 0.0
        %1946 = vmatmul.mubr.f32.gmra.mrb[0].mxu0 %v1816
        %v1947 = vpop.f32.mrb[0].mxu0
        %v1948 = vadd.f32 0.0, %v1947
        %v1949 = vpop.f32.mrb[0].mxu0
        %1950 = vmatprep.mubr.f32.mxu0 0.0
        %1951 = vmatmul.mubr.f32.gmra.mrb[0].mxu0 %v1817
        %v1952 = vpop.f32.mrb[0].mxu0
        %v1953 = vadd.f32 0.0, %v1952
        %v1954 = vpop.f32.mrb[0].mxu0
        %1955 = vmatprep.mubr.f32.mxu0 0.0
        %1956 = vmatmul.mubr.f32.gmra.mrb[0].mxu0 %v1818
        %v1957 = vpop.f32.mrb[0].mxu0
        %v1958 = vadd.f32 0.0, %v1957
        %v1959 = vpop.f32.mrb[0].mxu0
        %1960 = vmatprep.mubr.f32.mxu0 0.0
        %1961 = vmatmul.mubr.f32.gmra.mrb[0].mxu0 %v1819
        %v1962 = vpop.f32.mrb[0].mxu0
        %v1963 = vadd.f32 0.0, %v1962
        %v1964 = vpop.f32.mrb[0].mxu0
        %1965 = vmatprep.mubr.f32.mxu0 0.0
        %1966 = vmatmul.mubr.f32.gmra.mrb[0].mxu0 %v1820
        %v1967 = vpop.f32.mrb[0].mxu0
        %v1968 = vadd.f32 0.0, %v1967
        %v1969 = vpop.f32.mrb[0].mxu0
        %1970 = vmatprep.mubr.f32.mxu0 0.0
        %1971 = vmatmul.mubr.f32.gmra.mrb[0].mxu0 %v1821
        %v1972 = vpop.f32.mrb[0].mxu0
        %v1973 = vadd.f32 0.0, %v1972
        %v1974 = vpop.f32.mrb[0].mxu0
        %1975 = vmatprep.mubr.f32.mxu0 0.0
        %1976 = vmatmul.mubr.f32.gmra.mrb[0].mxu0 %v1822
        %v1977 = vpop.f32.mrb[0].mxu0
        %v1978 = vadd.f32 0.0, %v1977
        %v1979 = vpop.f32.mrb[0].mxu0
        %1980 = vmatprep.mubr.f32.mxu0 0.0
        %1981 = vmatmul.mubr.f32.gmra.mrb[0].mxu0 %v1823
        %v1982 = vpop.f32.mrb[0].mxu0
        %v1983 = vadd.f32 0.0, %v1982
        %v1984 = vpop.f32.mrb[0].mxu0
        %1985 = vdwg.mxu0
        %v1986 = vadd.f32 %v1792, %v1908
        %v1987 = vadd.f32 %v1793, %v1913
        %v1988 = vadd.f32 %v1794, %v1918
        %v1989 = vadd.f32 %v1795, %v1923
        %v1990 = vadd.f32 %v1796, %v1928
        %v1991 = vadd.f32 %v1797, %v1933
        %v1992 = vadd.f32 %v1798, %v1938
        %v1993 = vadd.f32 %v1799, %v1943
        %v1994 = vadd.f32 %v1800, %v1948
        %v1995 = vadd.f32 %v1801, %v1953
        %v1996 = vadd.f32 %v1802, %v1958
        %v1997 = vadd.f32 %v1803, %v1963
        %v1998 = vadd.f32 %v1804, %v1968
        %v1999 = vadd.f32 %v1805, %v1973
        %v2000 = vadd.f32 %v1806, %v1978
        %v2001 = vadd.f32 %v1807, %v1983
        %v2002 = vld [vmem:[#allocation9] sm:$0x1]
        %v2004 = vlaneseq
        %v2005 = vshrl.u32 %v2004, 7
        %v2006 = vsub.s32 0, %v2005
        %v2007 = vrot.slane %v2002, %v2006
        %v2009 = vadd.f32 %v1986, %v2007
        %v2010 = vadd.f32 %v1987, %v2007
        %v2011 = vadd.f32 %v1988, %v2007
        %v2012 = vadd.f32 %v1989, %v2007
        %v2013 = vadd.f32 %v1990, %v2007
        %v2014 = vadd.f32 %v1991, %v2007
        %v2015 = vadd.f32 %v1992, %v2007
        %v2016 = vadd.f32 %v1993, %v2007
        %v2017 = vadd.f32 %v1994, %v2007
        %v2018 = vadd.f32 %v1995, %v2007
        %v2019 = vadd.f32 %v1996, %v2007
        %v2020 = vadd.f32 %v1997, %v2007
        %v2021 = vadd.f32 %v1998, %v2007
        %v2022 = vadd.f32 %v1999, %v2007
        %v2023 = vadd.f32 %v2000, %v2007
        %v2024 = vadd.f32 %v2001, %v2007
        %v2025 = vmax.f32 %v2009, 0.0
        %v2026 = vmax.f32 %v2010, 0.0
        %v2027 = vmax.f32 %v2011, 0.0
        %v2028 = vmax.f32 %v2012, 0.0
        %v2029 = vmax.f32 %v2013, 0.0
        %v2030 = vmax.f32 %v2014, 0.0
        %v2031 = vmax.f32 %v2015, 0.0
        %v2032 = vmax.f32 %v2016, 0.0
        %v2033 = vmax.f32 %v2017, 0.0
        %v2034 = vmax.f32 %v2018, 0.0
        %v2035 = vmax.f32 %v2019, 0.0
        %v2036 = vmax.f32 %v2020, 0.0
        %v2037 = vmax.f32 %v2021, 0.0
        %v2038 = vmax.f32 %v2022, 0.0
        %v2039 = vmax.f32 %v2023, 0.0
        %v2040 = vmax.f32 %v2024, 0.0
        %2041 = vst [vmem:[%s223 + $0x8] sm:$0xff] %v2025
        %2042 = vst [vmem:[%s223 + $0x20] sm:$0xff] %v2026
        %2043 = vst [vmem:[%s223 + $0x38] sm:$0xff] %v2027
        %2044 = vst [vmem:[%s223 + $0x50] sm:$0xff] %v2028
        %2045 = vst [vmem:[%s223 + $0x68] sm:$0xff] %v2029
        %2046 = vst [vmem:[%s223 + $0x80] sm:$0xff] %v2030
        %2047 = vst [vmem:[%s223 + $0x98] sm:$0xff] %v2031
        %2048 = vst [vmem:[%s223 + $0xb0] sm:$0xff] %v2032
        %2049 = vst [vmem:[%s223 + $0xc8] sm:$0xff] %v2033
        %2050 = vst [vmem:[%s223 + $0xe0] sm:$0xff] %v2034
        %2051 = vst [vmem:[%s223 + $0xf8] sm:$0xff] %v2035
        %2052 = vst [vmem:[%s223 + $0x110] sm:$0xff] %v2036
        %2053 = vst [vmem:[%s223 + $0x128] sm:$0xff] %v2037
        %2054 = vst [vmem:[%s223 + $0x140] sm:$0xff] %v2038
        %2055 = vst [vmem:[%s223 + $0x158] sm:$0xff] %v2039
        %2056 = vst [vmem:[%s223 + $0x170] sm:$0xff] %v2040
        %2057 = vst [vmem:[#allocation3] sm:$0xff] %v2025
        %2058 = vst [vmem:[#allocation3 + $0x8] sm:$0xff] %v2026
        %2059 = vst [vmem:[#allocation3 + $0x10] sm:$0xff] %v2027
        %2060 = vst [vmem:[#allocation3 + $0x18] sm:$0xff] %v2028
        %2061 = vst [vmem:[#allocation3 + $0x20] sm:$0xff] %v2029
        %2062 = vst [vmem:[#allocation3 + $0x28] sm:$0xff] %v2030
        %2063 = vst [vmem:[#allocation3 + $0x30] sm:$0xff] %v2031
        %2064 = vst [vmem:[#allocation3 + $0x38] sm:$0xff] %v2032
        %2065 = vst [vmem:[#allocation3 + $0x40] sm:$0xff] %v2033
        %2066 = vst [vmem:[#allocation3 + $0x48] sm:$0xff] %v2034
        %2067 = vst [vmem:[#allocation3 + $0x50] sm:$0xff] %v2035
        %2068 = vst [vmem:[#allocation3 + $0x58] sm:$0xff] %v2036
        %2069 = vst [vmem:[#allocation3 + $0x60] sm:$0xff] %v2037
        %2070 = vst [vmem:[#allocation3 + $0x68] sm:$0xff] %v2038
        %2071 = vst [vmem:[#allocation3 + $0x70] sm:$0xff] %v2039
        %2072 = vst [vmem:[#allocation3 + $0x78] sm:$0xff] %v2040
        loop: start=0, step=1, limit=5
        $region45: #{tpu_custom_call.1} parent=31 // loop_pre_header
          _
        $region46: #{tpu_custom_call.1} parent=31 // loop_header
          %s2074 = sphi 0, %s2078
          %p2075 = scmp.ge.s32.totalorder %s2074, 5
        $region47: #{tpu_custom_call.1} parent=31 // loop_header_branch
          %2077 = sbr.rel (%p2075) target = $region51
        $region48: #{tpu_custom_call.1} parent=31 // loop_body
          %s2079 = smul.u32 %s2074, 2
          %s2080 = sadd.s32 %s2079, 1
          %v2081 = vld [vmem:[#allocation2 + $0x7] sm:$0xff]
          %v2082 = vld [vmem:[#allocation2 + $0x1f] sm:$0xff]
          %v2083 = vld [vmem:[#allocation2 + $0x37] sm:$0xff]
          %v2084 = vld [vmem:[#allocation2 + $0x4f] sm:$0xff]
          %v2085 = vld [vmem:[#allocation2 + $0x67] sm:$0xff]
          %v2086 = vld [vmem:[#allocation2 + $0x7f] sm:$0xff]
          %v2087 = vld [vmem:[#allocation2 + $0x97] sm:$0xff]
          %v2088 = vld [vmem:[#allocation2 + $0xaf] sm:$0xff]
          %v2089 = vld [vmem:[#allocation2 + $0xc7] sm:$0xff]
          %v2090 = vld [vmem:[#allocation2 + $0xdf] sm:$0xff]
          %v2091 = vld [vmem:[#allocation2 + $0xf7] sm:$0xff]
          %v2092 = vld [vmem:[#allocation2 + $0x10f] sm:$0xff]
          %v2093 = vld [vmem:[#allocation2 + $0x127] sm:$0xff]
          %v2094 = vld [vmem:[#allocation2 + $0x13f] sm:$0xff]
          %v2095 = vld [vmem:[#allocation2 + $0x157] sm:$0xff]
          %v2096 = vld [vmem:[#allocation2 + $0x16f] sm:$0xff]
          %s2097 = smul.u32 %s2080, 9
          %s2098 = smul.u32 %s2097, 128
          %s2099 = scalar_lea.vmem [#allocation7], %s2098
          %v2100 = vld [vmem:[%s2099] sm:$0xff]
          %v2101 = vld [vmem:[%s2099 + $0x8] sm:$0xff]
          %v2102 = vld [vmem:[%s2099 + $0x10] sm:$0xff]
          %v2103 = vld [vmem:[%s2099 + $0x18] sm:$0xff]
          %v2104 = vld [vmem:[%s2099 + $0x20] sm:$0xff]
          %v2105 = vld [vmem:[%s2099 + $0x28] sm:$0xff]
          %v2106 = vld [vmem:[%s2099 + $0x30] sm:$0xff]
          %v2107 = vld [vmem:[%s2099 + $0x38] sm:$0xff]
          %v2108 = vld [vmem:[%s2099 + $0x40] sm:$0xff]
          %v2109 = vld [vmem:[%s2099 + $0x48] sm:$0xff]
          %v2110 = vld [vmem:[%s2099 + $0x50] sm:$0xff]
          %v2111 = vld [vmem:[%s2099 + $0x58] sm:$0xff]
          %v2112 = vld [vmem:[%s2099 + $0x60] sm:$0xff]
          %v2113 = vld [vmem:[%s2099 + $0x68] sm:$0xff]
          %v2114 = vld [vmem:[%s2099 + $0x70] sm:$0xff]
          %v2115 = vld [vmem:[%s2099 + $0x78] sm:$0xff]
          %v2116 = vld [vmem:[#allocation2 + $0x8] sm:$0xff]
          %v2117 = vld [vmem:[#allocation2 + $0x20] sm:$0xff]
          %v2118 = vld [vmem:[#allocation2 + $0x38] sm:$0xff]
          %v2119 = vld [vmem:[#allocation2 + $0x50] sm:$0xff]
          %v2120 = vld [vmem:[#allocation2 + $0x68] sm:$0xff]
          %v2121 = vld [vmem:[#allocation2 + $0x80] sm:$0xff]
          %v2122 = vld [vmem:[#allocation2 + $0x98] sm:$0xff]
          %v2123 = vld [vmem:[#allocation2 + $0xb0] sm:$0xff]
          %v2124 = vld [vmem:[#allocation2 + $0xc8] sm:$0xff]
          %v2125 = vld [vmem:[#allocation2 + $0xe0] sm:$0xff]
          %v2126 = vld [vmem:[#allocation2 + $0xf8] sm:$0xff]
          %v2127 = vld [vmem:[#allocation2 + $0x110] sm:$0xff]
          %v2128 = vld [vmem:[#allocation2 + $0x128] sm:$0xff]
          %v2129 = vld [vmem:[#allocation2 + $0x140] sm:$0xff]
          %v2130 = vld [vmem:[#allocation2 + $0x158] sm:$0xff]
          %v2131 = vld [vmem:[#allocation2 + $0x170] sm:$0xff]
          %s2132 = sadd.s32 %s2097, 1
          %s2133 = smul.u32 %s2132, 128
          %s2134 = scalar_lea.vmem [#allocation7], %s2133
          %v2135 = vld [vmem:[%s2134] sm:$0xff]
          %v2136 = vld [vmem:[%s2134 + $0x8] sm:$0xff]
          %v2137 = vld [vmem:[%s2134 + $0x10] sm:$0xff]
          %v2138 = vld [vmem:[%s2134 + $0x18] sm:$0xff]
          %v2139 = vld [vmem:[%s2134 + $0x20] sm:$0xff]
          %v2140 = vld [vmem:[%s2134 + $0x28] sm:$0xff]
          %v2141 = vld [vmem:[%s2134 + $0x30] sm:$0xff]
          %v2142 = vld [vmem:[%s2134 + $0x38] sm:$0xff]
          %v2143 = vld [vmem:[%s2134 + $0x40] sm:$0xff]
          %v2144 = vld [vmem:[%s2134 + $0x48] sm:$0xff]
          %v2145 = vld [vmem:[%s2134 + $0x50] sm:$0xff]
          %v2146 = vld [vmem:[%s2134 + $0x58] sm:$0xff]
          %v2147 = vld [vmem:[%s2134 + $0x60] sm:$0xff]
          %v2148 = vld [vmem:[%s2134 + $0x68] sm:$0xff]
          %v2149 = vld [vmem:[%s2134 + $0x70] sm:$0xff]
          %v2150 = vld [vmem:[%s2134 + $0x78] sm:$0xff]
          %2151 = vmatprep.subr.mxu0 0.0
          %2152 = vmatpush1.msra.mxu0 %v2135
          %2153 = vmatprep.subr.mxu0 0.0
          %2154 = vmatpush1.msra.mxu0 %v2136
          %2155 = vmatprep.subr.mxu0 0.0
          %2156 = vmatpush1.msra.mxu0 %v2137
          %2157 = vmatprep.subr.mxu0 0.0
          %2158 = vmatpush1.msra.mxu0 %v2138
          %2159 = vmatprep.subr.mxu0 0.0
          %2160 = vmatpush1.msra.mxu0 %v2139
          %2161 = vmatprep.subr.mxu0 0.0
          %2162 = vmatpush1.msra.mxu0 %v2140
          %2163 = vmatprep.subr.mxu0 0.0
          %2164 = vmatpush1.msra.mxu0 %v2141
          %2165 = vmatprep.subr.mxu0 0.0
          %2166 = vmatpush1.msra.mxu0 %v2142
          %2167 = vmatprep.subr.mxu0 0.0
          %2168 = vmatpush1.msra.mxu0 %v2143
          %2169 = vmatprep.subr.mxu0 0.0
          %2170 = vmatpush1.msra.mxu0 %v2144
          %2171 = vmatprep.subr.mxu0 0.0
          %2172 = vmatpush1.msra.mxu0 %v2145
          %2173 = vmatprep.subr.mxu0 0.0
          %2174 = vmatpush1.msra.mxu0 %v2146
          %2175 = vmatprep.subr.mxu0 0.0
          %2176 = vmatpush1.msra.mxu0 %v2147
          %2177 = vmatprep.subr.mxu0 0.0
          %2178 = vmatpush1.msra.mxu0 %v2148
          %2179 = vmatprep.subr.mxu0 0.0
          %2180 = vmatpush1.msra.mxu0 %v2149
          %2181 = vmatprep.subr.mxu0 0.0
          %2182 = vmatpush1.msra.mxu0 %v2150
          %2183 = vmatprep.subr.mxu0 0.0
          %2184 = vmatpush1.msra.mxu0 0.0
          %2185 = vmatprep.subr.mxu0 0.0
          %2186 = vmatpush1.msra.mxu0 0.0
          %2187 = vmatprep.subr.mxu0 0.0
          %2188 = vmatpush1.msra.mxu0 0.0
          %2189 = vmatprep.subr.mxu0 0.0
          %2190 = vmatpush1.msra.mxu0 0.0
          %2191 = vmatprep.subr.mxu0 0.0
          %2192 = vmatpush1.msra.mxu0 0.0
          %2193 = vmatprep.subr.mxu0 0.0
          %2194 = vmatpush1.msra.mxu0 0.0
          %2195 = vmatprep.subr.mxu0 0.0
          %2196 = vmatpush1.msra.mxu0 0.0
          %2197 = vmatprep.subr.mxu0 0.0
          %2198 = vmatpush1.msra.mxu0 0.0
          %2199 = vmatprep.subr.mxu0 0.0
          %2200 = vmatpush1.msra.mxu0 0.0
          %2201 = vmatprep.subr.mxu0 0.0
          %2202 = vmatpush1.msra.mxu0 0.0
          %2203 = vmatprep.subr.mxu0 0.0
          %2204 = vmatpush1.msra.mxu0 0.0
          %2205 = vmatprep.subr.mxu0 0.0
          %2206 = vmatpush1.msra.mxu0 0.0
          %2207 = vmatprep.subr.mxu0 0.0
          %2208 = vmatpush1.msra.mxu0 0.0
          %2209 = vmatprep.subr.mxu0 0.0
          %2210 = vmatpush1.msra.mxu0 0.0
          %2211 = vmatprep.subr.mxu0 0.0
          %2212 = vmatpush1.msra.mxu0 0.0
          %2213 = vmatprep.subr.mxu0 0.0
          %2214 = vmatpush1.msra.mxu0 0.0
          %2215 = vmatprep.mubr.f32.mxu0 0.0
          %2216 = vmatmul.mubr.f32.gmra.mrb[0].mxu0 %v2116
          %v2217 = vpop.f32.mrb[0].mxu0
          %v2218 = vadd.f32 0.0, %v2217
          %v2219 = vpop.f32.mrb[0].mxu0
          %2220 = vmatprep.mubr.f32.mxu0 0.0
          %2221 = vmatmul.mubr.f32.gmra.mrb[0].mxu0 %v2117
          %v2222 = vpop.f32.mrb[0].mxu0
          %v2223 = vadd.f32 0.0, %v2222
          %v2224 = vpop.f32.mrb[0].mxu0
          %2225 = vmatprep.mubr.f32.mxu0 0.0
          %2226 = vmatmul.mubr.f32.gmra.mrb[0].mxu0 %v2118
          %v2227 = vpop.f32.mrb[0].mxu0
          %v2228 = vadd.f32 0.0, %v2227
          %v2229 = vpop.f32.mrb[0].mxu0
          %2230 = vmatprep.mubr.f32.mxu0 0.0
          %2231 = vmatmul.mubr.f32.gmra.mrb[0].mxu0 %v2119
          %v2232 = vpop.f32.mrb[0].mxu0
          %v2233 = vadd.f32 0.0, %v2232
          %v2234 = vpop.f32.mrb[0].mxu0
          %2235 = vmatprep.mubr.f32.mxu0 0.0
          %2236 = vmatmul.mubr.f32.gmra.mrb[0].mxu0 %v2120
          %v2237 = vpop.f32.mrb[0].mxu0
          %v2238 = vadd.f32 0.0, %v2237
          %v2239 = vpop.f32.mrb[0].mxu0
          %2240 = vmatprep.mubr.f32.mxu0 0.0
          %2241 = vmatmul.mubr.f32.gmra.mrb[0].mxu0 %v2121
          %v2242 = vpop.f32.mrb[0].mxu0
          %v2243 = vadd.f32 0.0, %v2242
          %v2244 = vpop.f32.mrb[0].mxu0
          %2245 = vmatprep.mubr.f32.mxu0 0.0
          %2246 = vmatmul.mubr.f32.gmra.mrb[0].mxu0 %v2122
          %v2247 = vpop.f32.mrb[0].mxu0
          %v2248 = vadd.f32 0.0, %v2247
          %v2249 = vpop.f32.mrb[0].mxu0
          %2250 = vmatprep.mubr.f32.mxu0 0.0
          %2251 = vmatmul.mubr.f32.gmra.mrb[0].mxu0 %v2123
          %v2252 = vpop.f32.mrb[0].mxu0
          %v2253 = vadd.f32 0.0, %v2252
          %v2254 = vpop.f32.mrb[0].mxu0
          %2255 = vmatprep.mubr.f32.mxu0 0.0
          %2256 = vmatmul.mubr.f32.gmra.mrb[0].mxu0 %v2124
          %v2257 = vpop.f32.mrb[0].mxu0
          %v2258 = vadd.f32 0.0, %v2257
          %v2259 = vpop.f32.mrb[0].mxu0
          %2260 = vmatprep.mubr.f32.mxu0 0.0
          %2261 = vmatmul.mubr.f32.gmra.mrb[0].mxu0 %v2125
          %v2262 = vpop.f32.mrb[0].mxu0
          %v2263 = vadd.f32 0.0, %v2262
          %v2264 = vpop.f32.mrb[0].mxu0
          %2265 = vmatprep.mubr.f32.mxu0 0.0
          %2266 = vmatmul.mubr.f32.gmra.mrb[0].mxu0 %v2126
          %v2267 = vpop.f32.mrb[0].mxu0
          %v2268 = vadd.f32 0.0, %v2267
          %v2269 = vpop.f32.mrb[0].mxu0
          %2270 = vmatprep.mubr.f32.mxu0 0.0
          %2271 = vmatmul.mubr.f32.gmra.mrb[0].mxu0 %v2127
          %v2272 = vpop.f32.mrb[0].mxu0
          %v2273 = vadd.f32 0.0, %v2272
          %v2274 = vpop.f32.mrb[0].mxu0
          %2275 = vmatprep.mubr.f32.mxu0 0.0
          %2276 = vmatmul.mubr.f32.gmra.mrb[0].mxu0 %v2128
          %v2277 = vpop.f32.mrb[0].mxu0
          %v2278 = vadd.f32 0.0, %v2277
          %v2279 = vpop.f32.mrb[0].mxu0
          %2280 = vmatprep.mubr.f32.mxu0 0.0
          %2281 = vmatmul.mubr.f32.gmra.mrb[0].mxu0 %v2129
          %v2282 = vpop.f32.mrb[0].mxu0
          %v2283 = vadd.f32 0.0, %v2282
          %v2284 = vpop.f32.mrb[0].mxu0
          %2285 = vmatprep.mubr.f32.mxu0 0.0
          %2286 = vmatmul.mubr.f32.gmra.mrb[0].mxu0 %v2130
          %v2287 = vpop.f32.mrb[0].mxu0
          %v2288 = vadd.f32 0.0, %v2287
          %v2289 = vpop.f32.mrb[0].mxu0
          %2290 = vmatprep.mubr.f32.mxu0 0.0
          %2291 = vmatmul.mubr.f32.gmra.mrb[0].mxu0 %v2131
          %v2292 = vpop.f32.mrb[0].mxu0
          %v2293 = vadd.f32 0.0, %v2292
          %v2294 = vpop.f32.mrb[0].mxu0
          %2295 = vdwg.mxu0
          %2296 = vmatprep.subr.mxu0 0.0
          %2297 = vmatpush1.msra.mxu0 %v2100
          %2298 = vmatprep.subr.mxu0 0.0
          %2299 = vmatpush1.msra.mxu0 %v2101
          %2300 = vmatprep.subr.mxu0 0.0
          %2301 = vmatpush1.msra.mxu0 %v2102
          %2302 = vmatprep.subr.mxu0 0.0
          %2303 = vmatpush1.msra.mxu0 %v2103
          %2304 = vmatprep.subr.mxu0 0.0
          %2305 = vmatpush1.msra.mxu0 %v2104
          %2306 = vmatprep.subr.mxu0 0.0
          %2307 = vmatpush1.msra.mxu0 %v2105
          %2308 = vmatprep.subr.mxu0 0.0
          %2309 = vmatpush1.msra.mxu0 %v2106
          %2310 = vmatprep.subr.mxu0 0.0
          %2311 = vmatpush1.msra.mxu0 %v2107
          %2312 = vmatprep.subr.mxu0 0.0
          %2313 = vmatpush1.msra.mxu0 %v2108
          %2314 = vmatprep.subr.mxu0 0.0
          %2315 = vmatpush1.msra.mxu0 %v2109
          %2316 = vmatprep.subr.mxu0 0.0
          %2317 = vmatpush1.msra.mxu0 %v2110
          %2318 = vmatprep.subr.mxu0 0.0
          %2319 = vmatpush1.msra.mxu0 %v2111
          %2320 = vmatprep.subr.mxu0 0.0
          %2321 = vmatpush1.msra.mxu0 %v2112
          %2322 = vmatprep.subr.mxu0 0.0
          %2323 = vmatpush1.msra.mxu0 %v2113
          %2324 = vmatprep.subr.mxu0 0.0
          %2325 = vmatpush1.msra.mxu0 %v2114
          %2326 = vmatprep.subr.mxu0 0.0
          %2327 = vmatpush1.msra.mxu0 %v2115
          %2328 = vmatprep.subr.mxu0 0.0
          %2329 = vmatpush1.msra.mxu0 0.0
          %2330 = vmatprep.subr.mxu0 0.0
          %2331 = vmatpush1.msra.mxu0 0.0
          %2332 = vmatprep.subr.mxu0 0.0
          %2333 = vmatpush1.msra.mxu0 0.0
          %2334 = vmatprep.subr.mxu0 0.0
          %2335 = vmatpush1.msra.mxu0 0.0
          %2336 = vmatprep.subr.mxu0 0.0
          %2337 = vmatpush1.msra.mxu0 0.0
          %2338 = vmatprep.subr.mxu0 0.0
          %2339 = vmatpush1.msra.mxu0 0.0
          %2340 = vmatprep.subr.mxu0 0.0
          %2341 = vmatpush1.msra.mxu0 0.0
          %2342 = vmatprep.subr.mxu0 0.0
          %2343 = vmatpush1.msra.mxu0 0.0
          %2344 = vmatprep.subr.mxu0 0.0
          %2345 = vmatpush1.msra.mxu0 0.0
          %2346 = vmatprep.subr.mxu0 0.0
          %2347 = vmatpush1.msra.mxu0 0.0
          %2348 = vmatprep.subr.mxu0 0.0
          %2349 = vmatpush1.msra.mxu0 0.0
          %2350 = vmatprep.subr.mxu0 0.0
          %2351 = vmatpush1.msra.mxu0 0.0
          %2352 = vmatprep.subr.mxu0 0.0
          %2353 = vmatpush1.msra.mxu0 0.0
          %2354 = vmatprep.subr.mxu0 0.0
          %2355 = vmatpush1.msra.mxu0 0.0
          %2356 = vmatprep.subr.mxu0 0.0
          %2357 = vmatpush1.msra.mxu0 0.0
          %2358 = vmatprep.subr.mxu0 0.0
          %2359 = vmatpush1.msra.mxu0 0.0
          %2360 = vmatprep.mubr.f32.mxu0 0.0
          %2361 = vmatmul.mubr.f32.gmra.mrb[0].mxu0 %v2081
          %v2362 = vpop.f32.mrb[0].mxu0
          %v2363 = vadd.f32 %v2218, %v2362
          %v2364 = vpop.f32.mrb[0].mxu0
          %2365 = vmatprep.mubr.f32.mxu0 0.0
          %2366 = vmatmul.mubr.f32.gmra.mrb[0].mxu0 %v2082
          %v2367 = vpop.f32.mrb[0].mxu0
          %v2368 = vadd.f32 %v2223, %v2367
          %v2369 = vpop.f32.mrb[0].mxu0
          %2370 = vmatprep.mubr.f32.mxu0 0.0
          %2371 = vmatmul.mubr.f32.gmra.mrb[0].mxu0 %v2083
          %v2372 = vpop.f32.mrb[0].mxu0
          %v2373 = vadd.f32 %v2228, %v2372
          %v2374 = vpop.f32.mrb[0].mxu0
          %2375 = vmatprep.mubr.f32.mxu0 0.0
          %2376 = vmatmul.mubr.f32.gmra.mrb[0].mxu0 %v2084
          %v2377 = vpop.f32.mrb[0].mxu0
          %v2378 = vadd.f32 %v2233, %v2377
          %v2379 = vpop.f32.mrb[0].mxu0
          %2380 = vmatprep.mubr.f32.mxu0 0.0
          %2381 = vmatmul.mubr.f32.gmra.mrb[0].mxu0 %v2085
          %v2382 = vpop.f32.mrb[0].mxu0
          %v2383 = vadd.f32 %v2238, %v2382
          %v2384 = vpop.f32.mrb[0].mxu0
          %2385 = vmatprep.mubr.f32.mxu0 0.0
          %2386 = vmatmul.mubr.f32.gmra.mrb[0].mxu0 %v2086
          %v2387 = vpop.f32.mrb[0].mxu0
          %v2388 = vadd.f32 %v2243, %v2387
          %v2389 = vpop.f32.mrb[0].mxu0
          %2390 = vmatprep.mubr.f32.mxu0 0.0
          %2391 = vmatmul.mubr.f32.gmra.mrb[0].mxu0 %v2087
          %v2392 = vpop.f32.mrb[0].mxu0
          %v2393 = vadd.f32 %v2248, %v2392
          %v2394 = vpop.f32.mrb[0].mxu0
          %2395 = vmatprep.mubr.f32.mxu0 0.0
          %2396 = vmatmul.mubr.f32.gmra.mrb[0].mxu0 %v2088
          %v2397 = vpop.f32.mrb[0].mxu0
          %v2398 = vadd.f32 %v2253, %v2397
          %v2399 = vpop.f32.mrb[0].mxu0
          %2400 = vmatprep.mubr.f32.mxu0 0.0
          %2401 = vmatmul.mubr.f32.gmra.mrb[0].mxu0 %v2089
          %v2402 = vpop.f32.mrb[0].mxu0
          %v2403 = vadd.f32 %v2258, %v2402
          %v2404 = vpop.f32.mrb[0].mxu0
          %2405 = vmatprep.mubr.f32.mxu0 0.0
          %2406 = vmatmul.mubr.f32.gmra.mrb[0].mxu0 %v2090
          %v2407 = vpop.f32.mrb[0].mxu0
          %v2408 = vadd.f32 %v2263, %v2407
          %v2409 = vpop.f32.mrb[0].mxu0
          %2410 = vmatprep.mubr.f32.mxu0 0.0
          %2411 = vmatmul.mubr.f32.gmra.mrb[0].mxu0 %v2091
          %v2412 = vpop.f32.mrb[0].mxu0
          %v2413 = vadd.f32 %v2268, %v2412
          %v2414 = vpop.f32.mrb[0].mxu0
          %2415 = vmatprep.mubr.f32.mxu0 0.0
          %2416 = vmatmul.mubr.f32.gmra.mrb[0].mxu0 %v2092
          %v2417 = vpop.f32.mrb[0].mxu0
          %v2418 = vadd.f32 %v2273, %v2417
          %v2419 = vpop.f32.mrb[0].mxu0
          %2420 = vmatprep.mubr.f32.mxu0 0.0
          %2421 = vmatmul.mubr.f32.gmra.mrb[0].mxu0 %v2093
          %v2422 = vpop.f32.mrb[0].mxu0
          %v2423 = vadd.f32 %v2278, %v2422
          %v2424 = vpop.f32.mrb[0].mxu0
          %2425 = vmatprep.mubr.f32.mxu0 0.0
          %2426 = vmatmul.mubr.f32.gmra.mrb[0].mxu0 %v2094
          %v2427 = vpop.f32.mrb[0].mxu0
          %v2428 = vadd.f32 %v2283, %v2427
          %v2429 = vpop.f32.mrb[0].mxu0
          %2430 = vmatprep.mubr.f32.mxu0 0.0
          %2431 = vmatmul.mubr.f32.gmra.mrb[0].mxu0 %v2095
          %v2432 = vpop.f32.mrb[0].mxu0
          %v2433 = vadd.f32 %v2288, %v2432
          %v2434 = vpop.f32.mrb[0].mxu0
          %2435 = vmatprep.mubr.f32.mxu0 0.0
          %2436 = vmatmul.mubr.f32.gmra.mrb[0].mxu0 %v2096
          %v2437 = vpop.f32.mrb[0].mxu0
          %v2438 = vadd.f32 %v2293, %v2437
          %v2439 = vpop.f32.mrb[0].mxu0
          %2440 = vdwg.mxu0
          %v2441 = vld [vmem:[#allocation2 + $0x9] sm:$0xff]
          %v2442 = vld [vmem:[#allocation2 + $0x21] sm:$0xff]
          %v2443 = vld [vmem:[#allocation2 + $0x39] sm:$0xff]
          %v2444 = vld [vmem:[#allocation2 + $0x51] sm:$0xff]
          %v2445 = vld [vmem:[#allocation2 + $0x69] sm:$0xff]
          %v2446 = vld [vmem:[#allocation2 + $0x81] sm:$0xff]
          %v2447 = vld [vmem:[#allocation2 + $0x99] sm:$0xff]
          %v2448 = vld [vmem:[#allocation2 + $0xb1] sm:$0xff]
          %v2449 = vld [vmem:[#allocation2 + $0xc9] sm:$0xff]
          %v2450 = vld [vmem:[#allocation2 + $0xe1] sm:$0xff]
          %v2451 = vld [vmem:[#allocation2 + $0xf9] sm:$0xff]
          %v2452 = vld [vmem:[#allocation2 + $0x111] sm:$0xff]
          %v2453 = vld [vmem:[#allocation2 + $0x129] sm:$0xff]
          %v2454 = vld [vmem:[#allocation2 + $0x141] sm:$0xff]
          %v2455 = vld [vmem:[#allocation2 + $0x159] sm:$0xff]
          %v2456 = vld [vmem:[#allocation2 + $0x171] sm:$0xff]
          %s2457 = sadd.s32 %s2097, 2
          %s2458 = smul.u32 %s2457, 128
          %s2459 = scalar_lea.vmem [#allocation7], %s2458
          %v2460 = vld [vmem:[%s2459] sm:$0xff]
          %v2461 = vld [vmem:[%s2459 + $0x8] sm:$0xff]
          %v2462 = vld [vmem:[%s2459 + $0x10] sm:$0xff]
          %v2463 = vld [vmem:[%s2459 + $0x18] sm:$0xff]
          %v2464 = vld [vmem:[%s2459 + $0x20] sm:$0xff]
          %v2465 = vld [vmem:[%s2459 + $0x28] sm:$0xff]
          %v2466 = vld [vmem:[%s2459 + $0x30] sm:$0xff]
          %v2467 = vld [vmem:[%s2459 + $0x38] sm:$0xff]
          %v2468 = vld [vmem:[%s2459 + $0x40] sm:$0xff]
          %v2469 = vld [vmem:[%s2459 + $0x48] sm:$0xff]
          %v2470 = vld [vmem:[%s2459 + $0x50] sm:$0xff]
          %v2471 = vld [vmem:[%s2459 + $0x58] sm:$0xff]
          %v2472 = vld [vmem:[%s2459 + $0x60] sm:$0xff]
          %v2473 = vld [vmem:[%s2459 + $0x68] sm:$0xff]
          %v2474 = vld [vmem:[%s2459 + $0x70] sm:$0xff]
          %v2475 = vld [vmem:[%s2459 + $0x78] sm:$0xff]
          %2476 = vmatprep.subr.mxu0 0.0
          %2477 = vmatpush1.msra.mxu0 %v2460
          %2478 = vmatprep.subr.mxu0 0.0
          %2479 = vmatpush1.msra.mxu0 %v2461
          %2480 = vmatprep.subr.mxu0 0.0
          %2481 = vmatpush1.msra.mxu0 %v2462
          %2482 = vmatprep.subr.mxu0 0.0
          %2483 = vmatpush1.msra.mxu0 %v2463
          %2484 = vmatprep.subr.mxu0 0.0
          %2485 = vmatpush1.msra.mxu0 %v2464
          %2486 = vmatprep.subr.mxu0 0.0
          %2487 = vmatpush1.msra.mxu0 %v2465
          %2488 = vmatprep.subr.mxu0 0.0
          %2489 = vmatpush1.msra.mxu0 %v2466
          %2490 = vmatprep.subr.mxu0 0.0
          %2491 = vmatpush1.msra.mxu0 %v2467
          %2492 = vmatprep.subr.mxu0 0.0
          %2493 = vmatpush1.msra.mxu0 %v2468
          %2494 = vmatprep.subr.mxu0 0.0
          %2495 = vmatpush1.msra.mxu0 %v2469
          %2496 = vmatprep.subr.mxu0 0.0
          %2497 = vmatpush1.msra.mxu0 %v2470
          %2498 = vmatprep.subr.mxu0 0.0
          %2499 = vmatpush1.msra.mxu0 %v2471
          %2500 = vmatprep.subr.mxu0 0.0
          %2501 = vmatpush1.msra.mxu0 %v2472
          %2502 = vmatprep.subr.mxu0 0.0
          %2503 = vmatpush1.msra.mxu0 %v2473
          %2504 = vmatprep.subr.mxu0 0.0
          %2505 = vmatpush1.msra.mxu0 %v2474
          %2506 = vmatprep.subr.mxu0 0.0
          %2507 = vmatpush1.msra.mxu0 %v2475
          %2508 = vmatprep.subr.mxu0 0.0
          %2509 = vmatpush1.msra.mxu0 0.0
          %2510 = vmatprep.subr.mxu0 0.0
          %2511 = vmatpush1.msra.mxu0 0.0
          %2512 = vmatprep.subr.mxu0 0.0
          %2513 = vmatpush1.msra.mxu0 0.0
          %2514 = vmatprep.subr.mxu0 0.0
          %2515 = vmatpush1.msra.mxu0 0.0
          %2516 = vmatprep.subr.mxu0 0.0
          %2517 = vmatpush1.msra.mxu0 0.0
          %2518 = vmatprep.subr.mxu0 0.0
          %2519 = vmatpush1.msra.mxu0 0.0
          %2520 = vmatprep.subr.mxu0 0.0
          %2521 = vmatpush1.msra.mxu0 0.0
          %2522 = vmatprep.subr.mxu0 0.0
          %2523 = vmatpush1.msra.mxu0 0.0
          %2524 = vmatprep.subr.mxu0 0.0
          %2525 = vmatpush1.msra.mxu0 0.0
          %2526 = vmatprep.subr.mxu0 0.0
          %2527 = vmatpush1.msra.mxu0 0.0
          %2528 = vmatprep.subr.mxu0 0.0
          %2529 = vmatpush1.msra.mxu0 0.0
          %2530 = vmatprep.subr.mxu0 0.0
          %2531 = vmatpush1.msra.mxu0 0.0
          %2532 = vmatprep.subr.mxu0 0.0
          %2533 = vmatpush1.msra.mxu0 0.0
          %2534 = vmatprep.subr.mxu0 0.0
          %2535 = vmatpush1.msra.mxu0 0.0
          %2536 = vmatprep.subr.mxu0 0.0
          %2537 = vmatpush1.msra.mxu0 0.0
          %2538 = vmatprep.subr.mxu0 0.0
          %2539 = vmatpush1.msra.mxu0 0.0
          %2540 = vmatprep.mubr.f32.mxu0 0.0
          %2541 = vmatmul.mubr.f32.gmra.mrb[0].mxu0 %v2441
          %v2542 = vpop.f32.mrb[0].mxu0
          %v2543 = vadd.f32 0.0, %v2542
          %v2544 = vpop.f32.mrb[0].mxu0
          %2545 = vmatprep.mubr.f32.mxu0 0.0
          %2546 = vmatmul.mubr.f32.gmra.mrb[0].mxu0 %v2442
          %v2547 = vpop.f32.mrb[0].mxu0
          %v2548 = vadd.f32 0.0, %v2547
          %v2549 = vpop.f32.mrb[0].mxu0
          %2550 = vmatprep.mubr.f32.mxu0 0.0
          %2551 = vmatmul.mubr.f32.gmra.mrb[0].mxu0 %v2443
          %v2552 = vpop.f32.mrb[0].mxu0
          %v2553 = vadd.f32 0.0, %v2552
          %v2554 = vpop.f32.mrb[0].mxu0
          %2555 = vmatprep.mubr.f32.mxu0 0.0
          %2556 = vmatmul.mubr.f32.gmra.mrb[0].mxu0 %v2444
          %v2557 = vpop.f32.mrb[0].mxu0
          %v2558 = vadd.f32 0.0, %v2557
          %v2559 = vpop.f32.mrb[0].mxu0
          %2560 = vmatprep.mubr.f32.mxu0 0.0
          %2561 = vmatmul.mubr.f32.gmra.mrb[0].mxu0 %v2445
          %v2562 = vpop.f32.mrb[0].mxu0
          %v2563 = vadd.f32 0.0, %v2562
          %v2564 = vpop.f32.mrb[0].mxu0
          %2565 = vmatprep.mubr.f32.mxu0 0.0
          %2566 = vmatmul.mubr.f32.gmra.mrb[0].mxu0 %v2446
          %v2567 = vpop.f32.mrb[0].mxu0
          %v2568 = vadd.f32 0.0, %v2567
          %v2569 = vpop.f32.mrb[0].mxu0
          %2570 = vmatprep.mubr.f32.mxu0 0.0
          %2571 = vmatmul.mubr.f32.gmra.mrb[0].mxu0 %v2447
          %v2572 = vpop.f32.mrb[0].mxu0
          %v2573 = vadd.f32 0.0, %v2572
          %v2574 = vpop.f32.mrb[0].mxu0
          %2575 = vmatprep.mubr.f32.mxu0 0.0
          %2576 = vmatmul.mubr.f32.gmra.mrb[0].mxu0 %v2448
          %v2577 = vpop.f32.mrb[0].mxu0
          %v2578 = vadd.f32 0.0, %v2577
          %v2579 = vpop.f32.mrb[0].mxu0
          %2580 = vmatprep.mubr.f32.mxu0 0.0
          %2581 = vmatmul.mubr.f32.gmra.mrb[0].mxu0 %v2449
          %v2582 = vpop.f32.mrb[0].mxu0
          %v2583 = vadd.f32 0.0, %v2582
          %v2584 = vpop.f32.mrb[0].mxu0
          %2585 = vmatprep.mubr.f32.mxu0 0.0
          %2586 = vmatmul.mubr.f32.gmra.mrb[0].mxu0 %v2450
          %v2587 = vpop.f32.mrb[0].mxu0
          %v2588 = vadd.f32 0.0, %v2587
          %v2589 = vpop.f32.mrb[0].mxu0
          %2590 = vmatprep.mubr.f32.mxu0 0.0
          %2591 = vmatmul.mubr.f32.gmra.mrb[0].mxu0 %v2451
          %v2592 = vpop.f32.mrb[0].mxu0
          %v2593 = vadd.f32 0.0, %v2592
          %v2594 = vpop.f32.mrb[0].mxu0
          %2595 = vmatprep.mubr.f32.mxu0 0.0
          %2596 = vmatmul.mubr.f32.gmra.mrb[0].mxu0 %v2452
          %v2597 = vpop.f32.mrb[0].mxu0
          %v2598 = vadd.f32 0.0, %v2597
          %v2599 = vpop.f32.mrb[0].mxu0
          %2600 = vmatprep.mubr.f32.mxu0 0.0
          %2601 = vmatmul.mubr.f32.gmra.mrb[0].mxu0 %v2453
          %v2602 = vpop.f32.mrb[0].mxu0
          %v2603 = vadd.f32 0.0, %v2602
          %v2604 = vpop.f32.mrb[0].mxu0
          %2605 = vmatprep.mubr.f32.mxu0 0.0
          %2606 = vmatmul.mubr.f32.gmra.mrb[0].mxu0 %v2454
          %v2607 = vpop.f32.mrb[0].mxu0
          %v2608 = vadd.f32 0.0, %v2607
          %v2609 = vpop.f32.mrb[0].mxu0
          %2610 = vmatprep.mubr.f32.mxu0 0.0
          %2611 = vmatmul.mubr.f32.gmra.mrb[0].mxu0 %v2455
          %v2612 = vpop.f32.mrb[0].mxu0
          %v2613 = vadd.f32 0.0, %v2612
          %v2614 = vpop.f32.mrb[0].mxu0
          %2615 = vmatprep.mubr.f32.mxu0 0.0
          %2616 = vmatmul.mubr.f32.gmra.mrb[0].mxu0 %v2456
          %v2617 = vpop.f32.mrb[0].mxu0
          %v2618 = vadd.f32 0.0, %v2617
          %v2619 = vpop.f32.mrb[0].mxu0
          %2620 = vdwg.mxu0
          %v2621 = vadd.f32 %v2363, %v2543
          %v2622 = vadd.f32 %v2368, %v2548
          %v2623 = vadd.f32 %v2373, %v2553
          %v2624 = vadd.f32 %v2378, %v2558
          %v2625 = vadd.f32 %v2383, %v2563
          %v2626 = vadd.f32 %v2388, %v2568
          %v2627 = vadd.f32 %v2393, %v2573
          %v2628 = vadd.f32 %v2398, %v2578
          %v2629 = vadd.f32 %v2403, %v2583
          %v2630 = vadd.f32 %v2408, %v2588
          %v2631 = vadd.f32 %v2413, %v2593
          %v2632 = vadd.f32 %v2418, %v2598
          %v2633 = vadd.f32 %v2423, %v2603
          %v2634 = vadd.f32 %v2428, %v2608
          %v2635 = vadd.f32 %v2433, %v2613
          %v2636 = vadd.f32 %v2438, %v2618
          %v2637 = vld [vmem:[%s223 + $0x7] sm:$0xff]
          %v2638 = vld [vmem:[%s223 + $0x1f] sm:$0xff]
          %v2639 = vld [vmem:[%s223 + $0x37] sm:$0xff]
          %v2640 = vld [vmem:[%s223 + $0x4f] sm:$0xff]
          %v2641 = vld [vmem:[%s223 + $0x67] sm:$0xff]
          %v2642 = vld [vmem:[%s223 + $0x7f] sm:$0xff]
          %v2643 = vld [vmem:[%s223 + $0x97] sm:$0xff]
          %v2644 = vld [vmem:[%s223 + $0xaf] sm:$0xff]
          %v2645 = vld [vmem:[%s223 + $0xc7] sm:$0xff]
          %v2646 = vld [vmem:[%s223 + $0xdf] sm:$0xff]
          %v2647 = vld [vmem:[%s223 + $0xf7] sm:$0xff]
          %v2648 = vld [vmem:[%s223 + $0x10f] sm:$0xff]
          %v2649 = vld [vmem:[%s223 + $0x127] sm:$0xff]
          %v2650 = vld [vmem:[%s223 + $0x13f] sm:$0xff]
          %v2651 = vld [vmem:[%s223 + $0x157] sm:$0xff]
          %v2652 = vld [vmem:[%s223 + $0x16f] sm:$0xff]
          %s2653 = sadd.s32 %s2097, 3
          %s2654 = smul.u32 %s2653, 128
          %s2655 = scalar_lea.vmem [#allocation7], %s2654
          %v2656 = vld [vmem:[%s2655] sm:$0xff]
          %v2657 = vld [vmem:[%s2655 + $0x8] sm:$0xff]
          %v2658 = vld [vmem:[%s2655 + $0x10] sm:$0xff]
          %v2659 = vld [vmem:[%s2655 + $0x18] sm:$0xff]
          %v2660 = vld [vmem:[%s2655 + $0x20] sm:$0xff]
          %v2661 = vld [vmem:[%s2655 + $0x28] sm:$0xff]
          %v2662 = vld [vmem:[%s2655 + $0x30] sm:$0xff]
          %v2663 = vld [vmem:[%s2655 + $0x38] sm:$0xff]
          %v2664 = vld [vmem:[%s2655 + $0x40] sm:$0xff]
          %v2665 = vld [vmem:[%s2655 + $0x48] sm:$0xff]
          %v2666 = vld [vmem:[%s2655 + $0x50] sm:$0xff]
          %v2667 = vld [vmem:[%s2655 + $0x58] sm:$0xff]
          %v2668 = vld [vmem:[%s2655 + $0x60] sm:$0xff]
          %v2669 = vld [vmem:[%s2655 + $0x68] sm:$0xff]
          %v2670 = vld [vmem:[%s2655 + $0x70] sm:$0xff]
          %v2671 = vld [vmem:[%s2655 + $0x78] sm:$0xff]
          %2672 = vmatprep.subr.mxu0 0.0
          %2673 = vmatpush1.msra.mxu0 %v2656
          %2674 = vmatprep.subr.mxu0 0.0
          %2675 = vmatpush1.msra.mxu0 %v2657
          %2676 = vmatprep.subr.mxu0 0.0
          %2677 = vmatpush1.msra.mxu0 %v2658
          %2678 = vmatprep.subr.mxu0 0.0
          %2679 = vmatpush1.msra.mxu0 %v2659
          %2680 = vmatprep.subr.mxu0 0.0
          %2681 = vmatpush1.msra.mxu0 %v2660
          %2682 = vmatprep.subr.mxu0 0.0
          %2683 = vmatpush1.msra.mxu0 %v2661
          %2684 = vmatprep.subr.mxu0 0.0
          %2685 = vmatpush1.msra.mxu0 %v2662
          %2686 = vmatprep.subr.mxu0 0.0
          %2687 = vmatpush1.msra.mxu0 %v2663
          %2688 = vmatprep.subr.mxu0 0.0
          %2689 = vmatpush1.msra.mxu0 %v2664
          %2690 = vmatprep.subr.mxu0 0.0
          %2691 = vmatpush1.msra.mxu0 %v2665
          %2692 = vmatprep.subr.mxu0 0.0
          %2693 = vmatpush1.msra.mxu0 %v2666
          %2694 = vmatprep.subr.mxu0 0.0
          %2695 = vmatpush1.msra.mxu0 %v2667
          %2696 = vmatprep.subr.mxu0 0.0
          %2697 = vmatpush1.msra.mxu0 %v2668
          %2698 = vmatprep.subr.mxu0 0.0
          %2699 = vmatpush1.msra.mxu0 %v2669
          %2700 = vmatprep.subr.mxu0 0.0
          %2701 = vmatpush1.msra.mxu0 %v2670
          %2702 = vmatprep.subr.mxu0 0.0
          %2703 = vmatpush1.msra.mxu0 %v2671
          %2704 = vmatprep.subr.mxu0 0.0
          %2705 = vmatpush1.msra.mxu0 0.0
          %2706 = vmatprep.subr.mxu0 0.0
          %2707 = vmatpush1.msra.mxu0 0.0
          %2708 = vmatprep.subr.mxu0 0.0
          %2709 = vmatpush1.msra.mxu0 0.0
          %2710 = vmatprep.subr.mxu0 0.0
          %2711 = vmatpush1.msra.mxu0 0.0
          %2712 = vmatprep.subr.mxu0 0.0
          %2713 = vmatpush1.msra.mxu0 0.0
          %2714 = vmatprep.subr.mxu0 0.0
          %2715 = vmatpush1.msra.mxu0 0.0
          %2716 = vmatprep.subr.mxu0 0.0
          %2717 = vmatpush1.msra.mxu0 0.0
          %2718 = vmatprep.subr.mxu0 0.0
          %2719 = vmatpush1.msra.mxu0 0.0
          %2720 = vmatprep.subr.mxu0 0.0
          %2721 = vmatpush1.msra.mxu0 0.0
          %2722 = vmatprep.subr.mxu0 0.0
          %2723 = vmatpush1.msra.mxu0 0.0
          %2724 = vmatprep.subr.mxu0 0.0
          %2725 = vmatpush1.msra.mxu0 0.0
          %2726 = vmatprep.subr.mxu0 0.0
          %2727 = vmatpush1.msra.mxu0 0.0
          %2728 = vmatprep.subr.mxu0 0.0
          %2729 = vmatpush1.msra.mxu0 0.0
          %2730 = vmatprep.subr.mxu0 0.0
          %2731 = vmatpush1.msra.mxu0 0.0
          %2732 = vmatprep.subr.mxu0 0.0
          %2733 = vmatpush1.msra.mxu0 0.0
          %2734 = vmatprep.subr.mxu0 0.0
          %2735 = vmatpush1.msra.mxu0 0.0
          %2736 = vmatprep.mubr.f32.mxu0 0.0
          %2737 = vmatmul.mubr.f32.gmra.mrb[0].mxu0 %v2637
          %v2738 = vpop.f32.mrb[0].mxu0
          %v2739 = vadd.f32 0.0, %v2738
          %v2740 = vpop.f32.mrb[0].mxu0
          %2741 = vmatprep.mubr.f32.mxu0 0.0
          %2742 = vmatmul.mubr.f32.gmra.mrb[0].mxu0 %v2638
          %v2743 = vpop.f32.mrb[0].mxu0
          %v2744 = vadd.f32 0.0, %v2743
          %v2745 = vpop.f32.mrb[0].mxu0
          %2746 = vmatprep.mubr.f32.mxu0 0.0
          %2747 = vmatmul.mubr.f32.gmra.mrb[0].mxu0 %v2639
          %v2748 = vpop.f32.mrb[0].mxu0
          %v2749 = vadd.f32 0.0, %v2748
          %v2750 = vpop.f32.mrb[0].mxu0
          %2751 = vmatprep.mubr.f32.mxu0 0.0
          %2752 = vmatmul.mubr.f32.gmra.mrb[0].mxu0 %v2640
          %v2753 = vpop.f32.mrb[0].mxu0
          %v2754 = vadd.f32 0.0, %v2753
          %v2755 = vpop.f32.mrb[0].mxu0
          %2756 = vmatprep.mubr.f32.mxu0 0.0
          %2757 = vmatmul.mubr.f32.gmra.mrb[0].mxu0 %v2641
          %v2758 = vpop.f32.mrb[0].mxu0
          %v2759 = vadd.f32 0.0, %v2758
          %v2760 = vpop.f32.mrb[0].mxu0
          %2761 = vmatprep.mubr.f32.mxu0 0.0
          %2762 = vmatmul.mubr.f32.gmra.mrb[0].mxu0 %v2642
          %v2763 = vpop.f32.mrb[0].mxu0
          %v2764 = vadd.f32 0.0, %v2763
          %v2765 = vpop.f32.mrb[0].mxu0
          %2766 = vmatprep.mubr.f32.mxu0 0.0
          %2767 = vmatmul.mubr.f32.gmra.mrb[0].mxu0 %v2643
          %v2768 = vpop.f32.mrb[0].mxu0
          %v2769 = vadd.f32 0.0, %v2768
          %v2770 = vpop.f32.mrb[0].mxu0
          %2771 = vmatprep.mubr.f32.mxu0 0.0
          %2772 = vmatmul.mubr.f32.gmra.mrb[0].mxu0 %v2644
          %v2773 = vpop.f32.mrb[0].mxu0
          %v2774 = vadd.f32 0.0, %v2773
          %v2775 = vpop.f32.mrb[0].mxu0
          %2776 = vmatprep.mubr.f32.mxu0 0.0
          %2777 = vmatmul.mubr.f32.gmra.mrb[0].mxu0 %v2645
          %v2778 = vpop.f32.mrb[0].mxu0
          %v2779 = vadd.f32 0.0, %v2778
          %v2780 = vpop.f32.mrb[0].mxu0
          %2781 = vmatprep.mubr.f32.mxu0 0.0
          %2782 = vmatmul.mubr.f32.gmra.mrb[0].mxu0 %v2646
          %v2783 = vpop.f32.mrb[0].mxu0
          %v2784 = vadd.f32 0.0, %v2783
          %v2785 = vpop.f32.mrb[0].mxu0
          %2786 = vmatprep.mubr.f32.mxu0 0.0
          %2787 = vmatmul.mubr.f32.gmra.mrb[0].mxu0 %v2647
          %v2788 = vpop.f32.mrb[0].mxu0
          %v2789 = vadd.f32 0.0, %v2788
          %v2790 = vpop.f32.mrb[0].mxu0
          %2791 = vmatprep.mubr.f32.mxu0 0.0
          %2792 = vmatmul.mubr.f32.gmra.mrb[0].mxu0 %v2648
          %v2793 = vpop.f32.mrb[0].mxu0
          %v2794 = vadd.f32 0.0, %v2793
          %v2795 = vpop.f32.mrb[0].mxu0
          %2796 = vmatprep.mubr.f32.mxu0 0.0
          %2797 = vmatmul.mubr.f32.gmra.mrb[0].mxu0 %v2649
          %v2798 = vpop.f32.mrb[0].mxu0
          %v2799 = vadd.f32 0.0, %v2798
          %v2800 = vpop.f32.mrb[0].mxu0
          %2801 = vmatprep.mubr.f32.mxu0 0.0
          %2802 = vmatmul.mubr.f32.gmra.mrb[0].mxu0 %v2650
          %v2803 = vpop.f32.mrb[0].mxu0
          %v2804 = vadd.f32 0.0, %v2803
          %v2805 = vpop.f32.mrb[0].mxu0
          %2806 = vmatprep.mubr.f32.mxu0 0.0
          %2807 = vmatmul.mubr.f32.gmra.mrb[0].mxu0 %v2651
          %v2808 = vpop.f32.mrb[0].mxu0
          %v2809 = vadd.f32 0.0, %v2808
          %v2810 = vpop.f32.mrb[0].mxu0
          %2811 = vmatprep.mubr.f32.mxu0 0.0
          %2812 = vmatmul.mubr.f32.gmra.mrb[0].mxu0 %v2652
          %v2813 = vpop.f32.mrb[0].mxu0
          %v2814 = vadd.f32 0.0, %v2813
          %v2815 = vpop.f32.mrb[0].mxu0
          %2816 = vdwg.mxu0
          %v2817 = vadd.f32 %v2621, %v2739
          %v2818 = vadd.f32 %v2622, %v2744
          %v2819 = vadd.f32 %v2623, %v2749
          %v2820 = vadd.f32 %v2624, %v2754
          %v2821 = vadd.f32 %v2625, %v2759
          %v2822 = vadd.f32 %v2626, %v2764
          %v2823 = vadd.f32 %v2627, %v2769
          %v2824 = vadd.f32 %v2628, %v2774
          %v2825 = vadd.f32 %v2629, %v2779
          %v2826 = vadd.f32 %v2630, %v2784
          %v2827 = vadd.f32 %v2631, %v2789
          %v2828 = vadd.f32 %v2632, %v2794
          %v2829 = vadd.f32 %v2633, %v2799
          %v2830 = vadd.f32 %v2634, %v2804
          %v2831 = vadd.f32 %v2635, %v2809
          %v2832 = vadd.f32 %v2636, %v2814
          %v2833 = vld [vmem:[%s223 + $0x8] sm:$0xff]
          %v2834 = vld [vmem:[%s223 + $0x20] sm:$0xff]
          %v2835 = vld [vmem:[%s223 + $0x38] sm:$0xff]
          %v2836 = vld [vmem:[%s223 + $0x50] sm:$0xff]
          %v2837 = vld [vmem:[%s223 + $0x68] sm:$0xff]
          %v2838 = vld [vmem:[%s223 + $0x80] sm:$0xff]
          %v2839 = vld [vmem:[%s223 + $0x98] sm:$0xff]
          %v2840 = vld [vmem:[%s223 + $0xb0] sm:$0xff]
          %v2841 = vld [vmem:[%s223 + $0xc8] sm:$0xff]
          %v2842 = vld [vmem:[%s223 + $0xe0] sm:$0xff]
          %v2843 = vld [vmem:[%s223 + $0xf8] sm:$0xff]
          %v2844 = vld [vmem:[%s223 + $0x110] sm:$0xff]
          %v2845 = vld [vmem:[%s223 + $0x128] sm:$0xff]
          %v2846 = vld [vmem:[%s223 + $0x140] sm:$0xff]
          %v2847 = vld [vmem:[%s223 + $0x158] sm:$0xff]
          %v2848 = vld [vmem:[%s223 + $0x170] sm:$0xff]
          %s2849 = sadd.s32 %s2097, 4
          %s2850 = smul.u32 %s2849, 128
          %s2851 = scalar_lea.vmem [#allocation7], %s2850
          %v2852 = vld [vmem:[%s2851] sm:$0xff]
          %v2853 = vld [vmem:[%s2851 + $0x8] sm:$0xff]
          %v2854 = vld [vmem:[%s2851 + $0x10] sm:$0xff]
          %v2855 = vld [vmem:[%s2851 + $0x18] sm:$0xff]
          %v2856 = vld [vmem:[%s2851 + $0x20] sm:$0xff]
          %v2857 = vld [vmem:[%s2851 + $0x28] sm:$0xff]
          %v2858 = vld [vmem:[%s2851 + $0x30] sm:$0xff]
          %v2859 = vld [vmem:[%s2851 + $0x38] sm:$0xff]
          %v2860 = vld [vmem:[%s2851 + $0x40] sm:$0xff]
          %v2861 = vld [vmem:[%s2851 + $0x48] sm:$0xff]
          %v2862 = vld [vmem:[%s2851 + $0x50] sm:$0xff]
          %v2863 = vld [vmem:[%s2851 + $0x58] sm:$0xff]
          %v2864 = vld [vmem:[%s2851 + $0x60] sm:$0xff]
          %v2865 = vld [vmem:[%s2851 + $0x68] sm:$0xff]
          %v2866 = vld [vmem:[%s2851 + $0x70] sm:$0xff]
          %v2867 = vld [vmem:[%s2851 + $0x78] sm:$0xff]
          %2868 = vmatprep.subr.mxu0 0.0
          %2869 = vmatpush1.msra.mxu0 %v2852
          %2870 = vmatprep.subr.mxu0 0.0
          %2871 = vmatpush1.msra.mxu0 %v2853
          %2872 = vmatprep.subr.mxu0 0.0
          %2873 = vmatpush1.msra.mxu0 %v2854
          %2874 = vmatprep.subr.mxu0 0.0
          %2875 = vmatpush1.msra.mxu0 %v2855
          %2876 = vmatprep.subr.mxu0 0.0
          %2877 = vmatpush1.msra.mxu0 %v2856
          %2878 = vmatprep.subr.mxu0 0.0
          %2879 = vmatpush1.msra.mxu0 %v2857
          %2880 = vmatprep.subr.mxu0 0.0
          %2881 = vmatpush1.msra.mxu0 %v2858
          %2882 = vmatprep.subr.mxu0 0.0
          %2883 = vmatpush1.msra.mxu0 %v2859
          %2884 = vmatprep.subr.mxu0 0.0
          %2885 = vmatpush1.msra.mxu0 %v2860
          %2886 = vmatprep.subr.mxu0 0.0
          %2887 = vmatpush1.msra.mxu0 %v2861
          %2888 = vmatprep.subr.mxu0 0.0
          %2889 = vmatpush1.msra.mxu0 %v2862
          %2890 = vmatprep.subr.mxu0 0.0
          %2891 = vmatpush1.msra.mxu0 %v2863
          %2892 = vmatprep.subr.mxu0 0.0
          %2893 = vmatpush1.msra.mxu0 %v2864
          %2894 = vmatprep.subr.mxu0 0.0
          %2895 = vmatpush1.msra.mxu0 %v2865
          %2896 = vmatprep.subr.mxu0 0.0
          %2897 = vmatpush1.msra.mxu0 %v2866
          %2898 = vmatprep.subr.mxu0 0.0
          %2899 = vmatpush1.msra.mxu0 %v2867
          %2900 = vmatprep.subr.mxu0 0.0
          %2901 = vmatpush1.msra.mxu0 0.0
          %2902 = vmatprep.subr.mxu0 0.0
          %2903 = vmatpush1.msra.mxu0 0.0
          %2904 = vmatprep.subr.mxu0 0.0
          %2905 = vmatpush1.msra.mxu0 0.0
          %2906 = vmatprep.subr.mxu0 0.0
          %2907 = vmatpush1.msra.mxu0 0.0
          %2908 = vmatprep.subr.mxu0 0.0
          %2909 = vmatpush1.msra.mxu0 0.0
          %2910 = vmatprep.subr.mxu0 0.0
          %2911 = vmatpush1.msra.mxu0 0.0
          %2912 = vmatprep.subr.mxu0 0.0
          %2913 = vmatpush1.msra.mxu0 0.0
          %2914 = vmatprep.subr.mxu0 0.0
          %2915 = vmatpush1.msra.mxu0 0.0
          %2916 = vmatprep.subr.mxu0 0.0
          %2917 = vmatpush1.msra.mxu0 0.0
          %2918 = vmatprep.subr.mxu0 0.0
          %2919 = vmatpush1.msra.mxu0 0.0
          %2920 = vmatprep.subr.mxu0 0.0
          %2921 = vmatpush1.msra.mxu0 0.0
          %2922 = vmatprep.subr.mxu0 0.0
          %2923 = vmatpush1.msra.mxu0 0.0
          %2924 = vmatprep.subr.mxu0 0.0
          %2925 = vmatpush1.msra.mxu0 0.0
          %2926 = vmatprep.subr.mxu0 0.0
          %2927 = vmatpush1.msra.mxu0 0.0
          %2928 = vmatprep.subr.mxu0 0.0
          %2929 = vmatpush1.msra.mxu0 0.0
          %2930 = vmatprep.subr.mxu0 0.0
          %2931 = vmatpush1.msra.mxu0 0.0
          %2932 = vmatprep.mubr.f32.mxu0 0.0
          %2933 = vmatmul.mubr.f32.gmra.mrb[0].mxu0 %v2833
          %v2934 = vpop.f32.mrb[0].mxu0
          %v2935 = vadd.f32 0.0, %v2934
          %v2936 = vpop.f32.mrb[0].mxu0
          %2937 = vmatprep.mubr.f32.mxu0 0.0
          %2938 = vmatmul.mubr.f32.gmra.mrb[0].mxu0 %v2834
          %v2939 = vpop.f32.mrb[0].mxu0
          %v2940 = vadd.f32 0.0, %v2939
          %v2941 = vpop.f32.mrb[0].mxu0
          %2942 = vmatprep.mubr.f32.mxu0 0.0
          %2943 = vmatmul.mubr.f32.gmra.mrb[0].mxu0 %v2835
          %v2944 = vpop.f32.mrb[0].mxu0
          %v2945 = vadd.f32 0.0, %v2944
          %v2946 = vpop.f32.mrb[0].mxu0
          %2947 = vmatprep.mubr.f32.mxu0 0.0
          %2948 = vmatmul.mubr.f32.gmra.mrb[0].mxu0 %v2836
          %v2949 = vpop.f32.mrb[0].mxu0
          %v2950 = vadd.f32 0.0, %v2949
          %v2951 = vpop.f32.mrb[0].mxu0
          %2952 = vmatprep.mubr.f32.mxu0 0.0
          %2953 = vmatmul.mubr.f32.gmra.mrb[0].mxu0 %v2837
          %v2954 = vpop.f32.mrb[0].mxu0
          %v2955 = vadd.f32 0.0, %v2954
          %v2956 = vpop.f32.mrb[0].mxu0
          %2957 = vmatprep.mubr.f32.mxu0 0.0
          %2958 = vmatmul.mubr.f32.gmra.mrb[0].mxu0 %v2838
          %v2959 = vpop.f32.mrb[0].mxu0
          %v2960 = vadd.f32 0.0, %v2959
          %v2961 = vpop.f32.mrb[0].mxu0
          %2962 = vmatprep.mubr.f32.mxu0 0.0
          %2963 = vmatmul.mubr.f32.gmra.mrb[0].mxu0 %v2839
          %v2964 = vpop.f32.mrb[0].mxu0
          %v2965 = vadd.f32 0.0, %v2964
          %v2966 = vpop.f32.mrb[0].mxu0
          %2967 = vmatprep.mubr.f32.mxu0 0.0
          %2968 = vmatmul.mubr.f32.gmra.mrb[0].mxu0 %v2840
          %v2969 = vpop.f32.mrb[0].mxu0
          %v2970 = vadd.f32 0.0, %v2969
          %v2971 = vpop.f32.mrb[0].mxu0
          %2972 = vmatprep.mubr.f32.mxu0 0.0
          %2973 = vmatmul.mubr.f32.gmra.mrb[0].mxu0 %v2841
          %v2974 = vpop.f32.mrb[0].mxu0
          %v2975 = vadd.f32 0.0, %v2974
          %v2976 = vpop.f32.mrb[0].mxu0
          %2977 = vmatprep.mubr.f32.mxu0 0.0
          %2978 = vmatmul.mubr.f32.gmra.mrb[0].mxu0 %v2842
          %v2979 = vpop.f32.mrb[0].mxu0
          %v2980 = vadd.f32 0.0, %v2979
          %v2981 = vpop.f32.mrb[0].mxu0
          %2982 = vmatprep.mubr.f32.mxu0 0.0
          %2983 = vmatmul.mubr.f32.gmra.mrb[0].mxu0 %v2843
          %v2984 = vpop.f32.mrb[0].mxu0
          %v2985 = vadd.f32 0.0, %v2984
          %v2986 = vpop.f32.mrb[0].mxu0
          %2987 = vmatprep.mubr.f32.mxu0 0.0
          %2988 = vmatmul.mubr.f32.gmra.mrb[0].mxu0 %v2844
          %v2989 = vpop.f32.mrb[0].mxu0
          %v2990 = vadd.f32 0.0, %v2989
          %v2991 = vpop.f32.mrb[0].mxu0
          %2992 = vmatprep.mubr.f32.mxu0 0.0
          %2993 = vmatmul.mubr.f32.gmra.mrb[0].mxu0 %v2845
          %v2994 = vpop.f32.mrb[0].mxu0
          %v2995 = vadd.f32 0.0, %v2994
          %v2996 = vpop.f32.mrb[0].mxu0
          %2997 = vmatprep.mubr.f32.mxu0 0.0
          %2998 = vmatmul.mubr.f32.gmra.mrb[0].mxu0 %v2846
          %v2999 = vpop.f32.mrb[0].mxu0
          %v3000 = vadd.f32 0.0, %v2999
          %v3001 = vpop.f32.mrb[0].mxu0
          %3002 = vmatprep.mubr.f32.mxu0 0.0
          %3003 = vmatmul.mubr.f32.gmra.mrb[0].mxu0 %v2847
          %v3004 = vpop.f32.mrb[0].mxu0
          %v3005 = vadd.f32 0.0, %v3004
          %v3006 = vpop.f32.mrb[0].mxu0
          %3007 = vmatprep.mubr.f32.mxu0 0.0
          %3008 = vmatmul.mubr.f32.gmra.mrb[0].mxu0 %v2848
          %v3009 = vpop.f32.mrb[0].mxu0
          %v3010 = vadd.f32 0.0, %v3009
          %v3011 = vpop.f32.mrb[0].mxu0
          %3012 = vdwg.mxu0
          %v3013 = vadd.f32 %v2817, %v2935
          %v3014 = vadd.f32 %v2818, %v2940
          %v3015 = vadd.f32 %v2819, %v2945
          %v3016 = vadd.f32 %v2820, %v2950
          %v3017 = vadd.f32 %v2821, %v2955
          %v3018 = vadd.f32 %v2822, %v2960
          %v3019 = vadd.f32 %v2823, %v2965
          %v3020 = vadd.f32 %v2824, %v2970
          %v3021 = vadd.f32 %v2825, %v2975
          %v3022 = vadd.f32 %v2826, %v2980
          %v3023 = vadd.f32 %v2827, %v2985
          %v3024 = vadd.f32 %v2828, %v2990
          %v3025 = vadd.f32 %v2829, %v2995
          %v3026 = vadd.f32 %v2830, %v3000
          %v3027 = vadd.f32 %v2831, %v3005
          %v3028 = vadd.f32 %v2832, %v3010
          %v3029 = vld [vmem:[%s223 + $0x9] sm:$0xff]
          %v3030 = vld [vmem:[%s223 + $0x21] sm:$0xff]
          %v3031 = vld [vmem:[%s223 + $0x39] sm:$0xff]
          %v3032 = vld [vmem:[%s223 + $0x51] sm:$0xff]
          %v3033 = vld [vmem:[%s223 + $0x69] sm:$0xff]
          %v3034 = vld [vmem:[%s223 + $0x81] sm:$0xff]
          %v3035 = vld [vmem:[%s223 + $0x99] sm:$0xff]
          %v3036 = vld [vmem:[%s223 + $0xb1] sm:$0xff]
          %v3037 = vld [vmem:[%s223 + $0xc9] sm:$0xff]
          %v3038 = vld [vmem:[%s223 + $0xe1] sm:$0xff]
          %v3039 = vld [vmem:[%s223 + $0xf9] sm:$0xff]
          %v3040 = vld [vmem:[%s223 + $0x111] sm:$0xff]
          %v3041 = vld [vmem:[%s223 + $0x129] sm:$0xff]
          %v3042 = vld [vmem:[%s223 + $0x141] sm:$0xff]
          %v3043 = vld [vmem:[%s223 + $0x159] sm:$0xff]
          %v3044 = vld [vmem:[%s223 + $0x171] sm:$0xff]
          %s3045 = sadd.s32 %s2097, 5
          %s3046 = smul.u32 %s3045, 128
          %s3047 = scalar_lea.vmem [#allocation7], %s3046
          %v3048 = vld [vmem:[%s3047] sm:$0xff]
          %v3049 = vld [vmem:[%s3047 + $0x8] sm:$0xff]
          %v3050 = vld [vmem:[%s3047 + $0x10] sm:$0xff]
          %v3051 = vld [vmem:[%s3047 + $0x18] sm:$0xff]
          %v3052 = vld [vmem:[%s3047 + $0x20] sm:$0xff]
          %v3053 = vld [vmem:[%s3047 + $0x28] sm:$0xff]
          %v3054 = vld [vmem:[%s3047 + $0x30] sm:$0xff]
          %v3055 = vld [vmem:[%s3047 + $0x38] sm:$0xff]
          %v3056 = vld [vmem:[%s3047 + $0x40] sm:$0xff]
          %v3057 = vld [vmem:[%s3047 + $0x48] sm:$0xff]
          %v3058 = vld [vmem:[%s3047 + $0x50] sm:$0xff]
          %v3059 = vld [vmem:[%s3047 + $0x58] sm:$0xff]
          %v3060 = vld [vmem:[%s3047 + $0x60] sm:$0xff]
          %v3061 = vld [vmem:[%s3047 + $0x68] sm:$0xff]
          %v3062 = vld [vmem:[%s3047 + $0x70] sm:$0xff]
          %v3063 = vld [vmem:[%s3047 + $0x78] sm:$0xff]
          %3064 = vmatprep.subr.mxu0 0.0
          %3065 = vmatpush1.msra.mxu0 %v3048
          %3066 = vmatprep.subr.mxu0 0.0
          %3067 = vmatpush1.msra.mxu0 %v3049
          %3068 = vmatprep.subr.mxu0 0.0
          %3069 = vmatpush1.msra.mxu0 %v3050
          %3070 = vmatprep.subr.mxu0 0.0
          %3071 = vmatpush1.msra.mxu0 %v3051
          %3072 = vmatprep.subr.mxu0 0.0
          %3073 = vmatpush1.msra.mxu0 %v3052
          %3074 = vmatprep.subr.mxu0 0.0
          %3075 = vmatpush1.msra.mxu0 %v3053
          %3076 = vmatprep.subr.mxu0 0.0
          %3077 = vmatpush1.msra.mxu0 %v3054
          %3078 = vmatprep.subr.mxu0 0.0
          %3079 = vmatpush1.msra.mxu0 %v3055
          %3080 = vmatprep.subr.mxu0 0.0
          %3081 = vmatpush1.msra.mxu0 %v3056
          %3082 = vmatprep.subr.mxu0 0.0
          %3083 = vmatpush1.msra.mxu0 %v3057
          %3084 = vmatprep.subr.mxu0 0.0
          %3085 = vmatpush1.msra.mxu0 %v3058
          %3086 = vmatprep.subr.mxu0 0.0
          %3087 = vmatpush1.msra.mxu0 %v3059
          %3088 = vmatprep.subr.mxu0 0.0
          %3089 = vmatpush1.msra.mxu0 %v3060
          %3090 = vmatprep.subr.mxu0 0.0
          %3091 = vmatpush1.msra.mxu0 %v3061
          %3092 = vmatprep.subr.mxu0 0.0
          %3093 = vmatpush1.msra.mxu0 %v3062
          %3094 = vmatprep.subr.mxu0 0.0
          %3095 = vmatpush1.msra.mxu0 %v3063
          %3096 = vmatprep.subr.mxu0 0.0
          %3097 = vmatpush1.msra.mxu0 0.0
          %3098 = vmatprep.subr.mxu0 0.0
          %3099 = vmatpush1.msra.mxu0 0.0
          %3100 = vmatprep.subr.mxu0 0.0
          %3101 = vmatpush1.msra.mxu0 0.0
          %3102 = vmatprep.subr.mxu0 0.0
          %3103 = vmatpush1.msra.mxu0 0.0
          %3104 = vmatprep.subr.mxu0 0.0
          %3105 = vmatpush1.msra.mxu0 0.0
          %3106 = vmatprep.subr.mxu0 0.0
          %3107 = vmatpush1.msra.mxu0 0.0
          %3108 = vmatprep.subr.mxu0 0.0
          %3109 = vmatpush1.msra.mxu0 0.0
          %3110 = vmatprep.subr.mxu0 0.0
          %3111 = vmatpush1.msra.mxu0 0.0
          %3112 = vmatprep.subr.mxu0 0.0
          %3113 = vmatpush1.msra.mxu0 0.0
          %3114 = vmatprep.subr.mxu0 0.0
          %3115 = vmatpush1.msra.mxu0 0.0
          %3116 = vmatprep.subr.mxu0 0.0
          %3117 = vmatpush1.msra.mxu0 0.0
          %3118 = vmatprep.subr.mxu0 0.0
          %3119 = vmatpush1.msra.mxu0 0.0
          %3120 = vmatprep.subr.mxu0 0.0
          %3121 = vmatpush1.msra.mxu0 0.0
          %3122 = vmatprep.subr.mxu0 0.0
          %3123 = vmatpush1.msra.mxu0 0.0
          %3124 = vmatprep.subr.mxu0 0.0
          %3125 = vmatpush1.msra.mxu0 0.0
          %3126 = vmatprep.subr.mxu0 0.0
          %3127 = vmatpush1.msra.mxu0 0.0
          %3128 = vmatprep.mubr.f32.mxu0 0.0
          %3129 = vmatmul.mubr.f32.gmra.mrb[0].mxu0 %v3029
          %v3130 = vpop.f32.mrb[0].mxu0
          %v3131 = vadd.f32 0.0, %v3130
          %v3132 = vpop.f32.mrb[0].mxu0
          %3133 = vmatprep.mubr.f32.mxu0 0.0
          %3134 = vmatmul.mubr.f32.gmra.mrb[0].mxu0 %v3030
          %v3135 = vpop.f32.mrb[0].mxu0
          %v3136 = vadd.f32 0.0, %v3135
          %v3137 = vpop.f32.mrb[0].mxu0
          %3138 = vmatprep.mubr.f32.mxu0 0.0
          %3139 = vmatmul.mubr.f32.gmra.mrb[0].mxu0 %v3031
          %v3140 = vpop.f32.mrb[0].mxu0
          %v3141 = vadd.f32 0.0, %v3140
          %v3142 = vpop.f32.mrb[0].mxu0
          %3143 = vmatprep.mubr.f32.mxu0 0.0
          %3144 = vmatmul.mubr.f32.gmra.mrb[0].mxu0 %v3032
          %v3145 = vpop.f32.mrb[0].mxu0
          %v3146 = vadd.f32 0.0, %v3145
          %v3147 = vpop.f32.mrb[0].mxu0
          %3148 = vmatprep.mubr.f32.mxu0 0.0
          %3149 = vmatmul.mubr.f32.gmra.mrb[0].mxu0 %v3033
          %v3150 = vpop.f32.mrb[0].mxu0
          %v3151 = vadd.f32 0.0, %v3150
          %v3152 = vpop.f32.mrb[0].mxu0
          %3153 = vmatprep.mubr.f32.mxu0 0.0
          %3154 = vmatmul.mubr.f32.gmra.mrb[0].mxu0 %v3034
          %v3155 = vpop.f32.mrb[0].mxu0
          %v3156 = vadd.f32 0.0, %v3155
          %v3157 = vpop.f32.mrb[0].mxu0
          %3158 = vmatprep.mubr.f32.mxu0 0.0
          %3159 = vmatmul.mubr.f32.gmra.mrb[0].mxu0 %v3035
          %v3160 = vpop.f32.mrb[0].mxu0
          %v3161 = vadd.f32 0.0, %v3160
          %v3162 = vpop.f32.mrb[0].mxu0
          %3163 = vmatprep.mubr.f32.mxu0 0.0
          %3164 = vmatmul.mubr.f32.gmra.mrb[0].mxu0 %v3036
          %v3165 = vpop.f32.mrb[0].mxu0
          %v3166 = vadd.f32 0.0, %v3165
          %v3167 = vpop.f32.mrb[0].mxu0
          %3168 = vmatprep.mubr.f32.mxu0 0.0
          %3169 = vmatmul.mubr.f32.gmra.mrb[0].mxu0 %v3037
          %v3170 = vpop.f32.mrb[0].mxu0
          %v3171 = vadd.f32 0.0, %v3170
          %v3172 = vpop.f32.mrb[0].mxu0
          %3173 = vmatprep.mubr.f32.mxu0 0.0
          %3174 = vmatmul.mubr.f32.gmra.mrb[0].mxu0 %v3038
          %v3175 = vpop.f32.mrb[0].mxu0
          %v3176 = vadd.f32 0.0, %v3175
          %v3177 = vpop.f32.mrb[0].mxu0
          %3178 = vmatprep.mubr.f32.mxu0 0.0
          %3179 = vmatmul.mubr.f32.gmra.mrb[0].mxu0 %v3039
          %v3180 = vpop.f32.mrb[0].mxu0
          %v3181 = vadd.f32 0.0, %v3180
          %v3182 = vpop.f32.mrb[0].mxu0
          %3183 = vmatprep.mubr.f32.mxu0 0.0
          %3184 = vmatmul.mubr.f32.gmra.mrb[0].mxu0 %v3040
          %v3185 = vpop.f32.mrb[0].mxu0
          %v3186 = vadd.f32 0.0, %v3185
          %v3187 = vpop.f32.mrb[0].mxu0
          %3188 = vmatprep.mubr.f32.mxu0 0.0
          %3189 = vmatmul.mubr.f32.gmra.mrb[0].mxu0 %v3041
          %v3190 = vpop.f32.mrb[0].mxu0
          %v3191 = vadd.f32 0.0, %v3190
          %v3192 = vpop.f32.mrb[0].mxu0
          %3193 = vmatprep.mubr.f32.mxu0 0.0
          %3194 = vmatmul.mubr.f32.gmra.mrb[0].mxu0 %v3042
          %v3195 = vpop.f32.mrb[0].mxu0
          %v3196 = vadd.f32 0.0, %v3195
          %v3197 = vpop.f32.mrb[0].mxu0
          %3198 = vmatprep.mubr.f32.mxu0 0.0
          %3199 = vmatmul.mubr.f32.gmra.mrb[0].mxu0 %v3043
          %v3200 = vpop.f32.mrb[0].mxu0
          %v3201 = vadd.f32 0.0, %v3200
          %v3202 = vpop.f32.mrb[0].mxu0
          %3203 = vmatprep.mubr.f32.mxu0 0.0
          %3204 = vmatmul.mubr.f32.gmra.mrb[0].mxu0 %v3044
          %v3205 = vpop.f32.mrb[0].mxu0
          %v3206 = vadd.f32 0.0, %v3205
          %v3207 = vpop.f32.mrb[0].mxu0
          %3208 = vdwg.mxu0
          %v3209 = vadd.f32 %v3013, %v3131
          %v3210 = vadd.f32 %v3014, %v3136
          %v3211 = vadd.f32 %v3015, %v3141
          %v3212 = vadd.f32 %v3016, %v3146
          %v3213 = vadd.f32 %v3017, %v3151
          %v3214 = vadd.f32 %v3018, %v3156
          %v3215 = vadd.f32 %v3019, %v3161
          %v3216 = vadd.f32 %v3020, %v3166
          %v3217 = vadd.f32 %v3021, %v3171
          %v3218 = vadd.f32 %v3022, %v3176
          %v3219 = vadd.f32 %v3023, %v3181
          %v3220 = vadd.f32 %v3024, %v3186
          %v3221 = vadd.f32 %v3025, %v3191
          %v3222 = vadd.f32 %v3026, %v3196
          %v3223 = vadd.f32 %v3027, %v3201
          %v3224 = vadd.f32 %v3028, %v3206
          %v3225 = vld [vmem:[%s1419 + $0x7] sm:$0xff]
          %v3226 = vld [vmem:[%s1419 + $0x1f] sm:$0xff]
          %v3227 = vld [vmem:[%s1419 + $0x37] sm:$0xff]
          %v3228 = vld [vmem:[%s1419 + $0x4f] sm:$0xff]
          %v3229 = vld [vmem:[%s1419 + $0x67] sm:$0xff]
          %v3230 = vld [vmem:[%s1419 + $0x7f] sm:$0xff]
          %v3231 = vld [vmem:[%s1419 + $0x97] sm:$0xff]
          %v3232 = vld [vmem:[%s1419 + $0xaf] sm:$0xff]
          %v3233 = vld [vmem:[%s1419 + $0xc7] sm:$0xff]
          %v3234 = vld [vmem:[%s1419 + $0xdf] sm:$0xff]
          %v3235 = vld [vmem:[%s1419 + $0xf7] sm:$0xff]
          %v3236 = vld [vmem:[%s1419 + $0x10f] sm:$0xff]
          %v3237 = vld [vmem:[%s1419 + $0x127] sm:$0xff]
          %v3238 = vld [vmem:[%s1419 + $0x13f] sm:$0xff]
          %v3239 = vld [vmem:[%s1419 + $0x157] sm:$0xff]
          %v3240 = vld [vmem:[%s1419 + $0x16f] sm:$0xff]
          %s3241 = sadd.s32 %s2097, 6
          %s3242 = smul.u32 %s3241, 128
          %s3243 = scalar_lea.vmem [#allocation7], %s3242
          %v3244 = vld [vmem:[%s3243] sm:$0xff]
          %v3245 = vld [vmem:[%s3243 + $0x8] sm:$0xff]
          %v3246 = vld [vmem:[%s3243 + $0x10] sm:$0xff]
          %v3247 = vld [vmem:[%s3243 + $0x18] sm:$0xff]
          %v3248 = vld [vmem:[%s3243 + $0x20] sm:$0xff]
          %v3249 = vld [vmem:[%s3243 + $0x28] sm:$0xff]
          %v3250 = vld [vmem:[%s3243 + $0x30] sm:$0xff]
          %v3251 = vld [vmem:[%s3243 + $0x38] sm:$0xff]
          %v3252 = vld [vmem:[%s3243 + $0x40] sm:$0xff]
          %v3253 = vld [vmem:[%s3243 + $0x48] sm:$0xff]
          %v3254 = vld [vmem:[%s3243 + $0x50] sm:$0xff]
          %v3255 = vld [vmem:[%s3243 + $0x58] sm:$0xff]
          %v3256 = vld [vmem:[%s3243 + $0x60] sm:$0xff]
          %v3257 = vld [vmem:[%s3243 + $0x68] sm:$0xff]
          %v3258 = vld [vmem:[%s3243 + $0x70] sm:$0xff]
          %v3259 = vld [vmem:[%s3243 + $0x78] sm:$0xff]
          %3260 = vmatprep.subr.mxu0 0.0
          %3261 = vmatpush1.msra.mxu0 %v3244
          %3262 = vmatprep.subr.mxu0 0.0
          %3263 = vmatpush1.msra.mxu0 %v3245
          %3264 = vmatprep.subr.mxu0 0.0
          %3265 = vmatpush1.msra.mxu0 %v3246
          %3266 = vmatprep.subr.mxu0 0.0
          %3267 = vmatpush1.msra.mxu0 %v3247
          %3268 = vmatprep.subr.mxu0 0.0
          %3269 = vmatpush1.msra.mxu0 %v3248
          %3270 = vmatprep.subr.mxu0 0.0
          %3271 = vmatpush1.msra.mxu0 %v3249
          %3272 = vmatprep.subr.mxu0 0.0
          %3273 = vmatpush1.msra.mxu0 %v3250
          %3274 = vmatprep.subr.mxu0 0.0
          %3275 = vmatpush1.msra.mxu0 %v3251
          %3276 = vmatprep.subr.mxu0 0.0
          %3277 = vmatpush1.msra.mxu0 %v3252
          %3278 = vmatprep.subr.mxu0 0.0
          %3279 = vmatpush1.msra.mxu0 %v3253
          %3280 = vmatprep.subr.mxu0 0.0
          %3281 = vmatpush1.msra.mxu0 %v3254
          %3282 = vmatprep.subr.mxu0 0.0
          %3283 = vmatpush1.msra.mxu0 %v3255
          %3284 = vmatprep.subr.mxu0 0.0
          %3285 = vmatpush1.msra.mxu0 %v3256
          %3286 = vmatprep.subr.mxu0 0.0
          %3287 = vmatpush1.msra.mxu0 %v3257
          %3288 = vmatprep.subr.mxu0 0.0
          %3289 = vmatpush1.msra.mxu0 %v3258
          %3290 = vmatprep.subr.mxu0 0.0
          %3291 = vmatpush1.msra.mxu0 %v3259
          %3292 = vmatprep.subr.mxu0 0.0
          %3293 = vmatpush1.msra.mxu0 0.0
          %3294 = vmatprep.subr.mxu0 0.0
          %3295 = vmatpush1.msra.mxu0 0.0
          %3296 = vmatprep.subr.mxu0 0.0
          %3297 = vmatpush1.msra.mxu0 0.0
          %3298 = vmatprep.subr.mxu0 0.0
          %3299 = vmatpush1.msra.mxu0 0.0
          %3300 = vmatprep.subr.mxu0 0.0
          %3301 = vmatpush1.msra.mxu0 0.0
          %3302 = vmatprep.subr.mxu0 0.0
          %3303 = vmatpush1.msra.mxu0 0.0
          %3304 = vmatprep.subr.mxu0 0.0
          %3305 = vmatpush1.msra.mxu0 0.0
          %3306 = vmatprep.subr.mxu0 0.0
          %3307 = vmatpush1.msra.mxu0 0.0
          %3308 = vmatprep.subr.mxu0 0.0
          %3309 = vmatpush1.msra.mxu0 0.0
          %3310 = vmatprep.subr.mxu0 0.0
          %3311 = vmatpush1.msra.mxu0 0.0
          %3312 = vmatprep.subr.mxu0 0.0
          %3313 = vmatpush1.msra.mxu0 0.0
          %3314 = vmatprep.subr.mxu0 0.0
          %3315 = vmatpush1.msra.mxu0 0.0
          %3316 = vmatprep.subr.mxu0 0.0
          %3317 = vmatpush1.msra.mxu0 0.0
          %3318 = vmatprep.subr.mxu0 0.0
          %3319 = vmatpush1.msra.mxu0 0.0
          %3320 = vmatprep.subr.mxu0 0.0
          %3321 = vmatpush1.msra.mxu0 0.0
          %3322 = vmatprep.subr.mxu0 0.0
          %3323 = vmatpush1.msra.mxu0 0.0
          %3324 = vmatprep.mubr.f32.mxu0 0.0
          %3325 = vmatmul.mubr.f32.gmra.mrb[0].mxu0 %v3225
          %v3326 = vpop.f32.mrb[0].mxu0
          %v3327 = vadd.f32 0.0, %v3326
          %v3328 = vpop.f32.mrb[0].mxu0
          %3329 = vmatprep.mubr.f32.mxu0 0.0
          %3330 = vmatmul.mubr.f32.gmra.mrb[0].mxu0 %v3226
          %v3331 = vpop.f32.mrb[0].mxu0
          %v3332 = vadd.f32 0.0, %v3331
          %v3333 = vpop.f32.mrb[0].mxu0
          %3334 = vmatprep.mubr.f32.mxu0 0.0
          %3335 = vmatmul.mubr.f32.gmra.mrb[0].mxu0 %v3227
          %v3336 = vpop.f32.mrb[0].mxu0
          %v3337 = vadd.f32 0.0, %v3336
          %v3338 = vpop.f32.mrb[0].mxu0
          %3339 = vmatprep.mubr.f32.mxu0 0.0
          %3340 = vmatmul.mubr.f32.gmra.mrb[0].mxu0 %v3228
          %v3341 = vpop.f32.mrb[0].mxu0
          %v3342 = vadd.f32 0.0, %v3341
          %v3343 = vpop.f32.mrb[0].mxu0
          %3344 = vmatprep.mubr.f32.mxu0 0.0
          %3345 = vmatmul.mubr.f32.gmra.mrb[0].mxu0 %v3229
          %v3346 = vpop.f32.mrb[0].mxu0
          %v3347 = vadd.f32 0.0, %v3346
          %v3348 = vpop.f32.mrb[0].mxu0
          %3349 = vmatprep.mubr.f32.mxu0 0.0
          %3350 = vmatmul.mubr.f32.gmra.mrb[0].mxu0 %v3230
          %v3351 = vpop.f32.mrb[0].mxu0
          %v3352 = vadd.f32 0.0, %v3351
          %v3353 = vpop.f32.mrb[0].mxu0
          %3354 = vmatprep.mubr.f32.mxu0 0.0
          %3355 = vmatmul.mubr.f32.gmra.mrb[0].mxu0 %v3231
          %v3356 = vpop.f32.mrb[0].mxu0
          %v3357 = vadd.f32 0.0, %v3356
          %v3358 = vpop.f32.mrb[0].mxu0
          %3359 = vmatprep.mubr.f32.mxu0 0.0
          %3360 = vmatmul.mubr.f32.gmra.mrb[0].mxu0 %v3232
          %v3361 = vpop.f32.mrb[0].mxu0
          %v3362 = vadd.f32 0.0, %v3361
          %v3363 = vpop.f32.mrb[0].mxu0
          %3364 = vmatprep.mubr.f32.mxu0 0.0
          %3365 = vmatmul.mubr.f32.gmra.mrb[0].mxu0 %v3233
          %v3366 = vpop.f32.mrb[0].mxu0
          %v3367 = vadd.f32 0.0, %v3366
          %v3368 = vpop.f32.mrb[0].mxu0
          %3369 = vmatprep.mubr.f32.mxu0 0.0
          %3370 = vmatmul.mubr.f32.gmra.mrb[0].mxu0 %v3234
          %v3371 = vpop.f32.mrb[0].mxu0
          %v3372 = vadd.f32 0.0, %v3371
          %v3373 = vpop.f32.mrb[0].mxu0
          %3374 = vmatprep.mubr.f32.mxu0 0.0
          %3375 = vmatmul.mubr.f32.gmra.mrb[0].mxu0 %v3235
          %v3376 = vpop.f32.mrb[0].mxu0
          %v3377 = vadd.f32 0.0, %v3376
          %v3378 = vpop.f32.mrb[0].mxu0
          %3379 = vmatprep.mubr.f32.mxu0 0.0
          %3380 = vmatmul.mubr.f32.gmra.mrb[0].mxu0 %v3236
          %v3381 = vpop.f32.mrb[0].mxu0
          %v3382 = vadd.f32 0.0, %v3381
          %v3383 = vpop.f32.mrb[0].mxu0
          %3384 = vmatprep.mubr.f32.mxu0 0.0
          %3385 = vmatmul.mubr.f32.gmra.mrb[0].mxu0 %v3237
          %v3386 = vpop.f32.mrb[0].mxu0
          %v3387 = vadd.f32 0.0, %v3386
          %v3388 = vpop.f32.mrb[0].mxu0
          %3389 = vmatprep.mubr.f32.mxu0 0.0
          %3390 = vmatmul.mubr.f32.gmra.mrb[0].mxu0 %v3238
          %v3391 = vpop.f32.mrb[0].mxu0
          %v3392 = vadd.f32 0.0, %v3391
          %v3393 = vpop.f32.mrb[0].mxu0
          %3394 = vmatprep.mubr.f32.mxu0 0.0
          %3395 = vmatmul.mubr.f32.gmra.mrb[0].mxu0 %v3239
          %v3396 = vpop.f32.mrb[0].mxu0
          %v3397 = vadd.f32 0.0, %v3396
          %v3398 = vpop.f32.mrb[0].mxu0
          %3399 = vmatprep.mubr.f32.mxu0 0.0
          %3400 = vmatmul.mubr.f32.gmra.mrb[0].mxu0 %v3240
          %v3401 = vpop.f32.mrb[0].mxu0
          %v3402 = vadd.f32 0.0, %v3401
          %v3403 = vpop.f32.mrb[0].mxu0
          %3404 = vdwg.mxu0
          %v3405 = vadd.f32 %v3209, %v3327
          %v3406 = vadd.f32 %v3210, %v3332
          %v3407 = vadd.f32 %v3211, %v3337
          %v3408 = vadd.f32 %v3212, %v3342
          %v3409 = vadd.f32 %v3213, %v3347
          %v3410 = vadd.f32 %v3214, %v3352
          %v3411 = vadd.f32 %v3215, %v3357
          %v3412 = vadd.f32 %v3216, %v3362
          %v3413 = vadd.f32 %v3217, %v3367
          %v3414 = vadd.f32 %v3218, %v3372
          %v3415 = vadd.f32 %v3219, %v3377
          %v3416 = vadd.f32 %v3220, %v3382
          %v3417 = vadd.f32 %v3221, %v3387
          %v3418 = vadd.f32 %v3222, %v3392
          %v3419 = vadd.f32 %v3223, %v3397
          %v3420 = vadd.f32 %v3224, %v3402
          %v3421 = vld [vmem:[%s1419 + $0x8] sm:$0xff]
          %v3422 = vld [vmem:[%s1419 + $0x20] sm:$0xff]
          %v3423 = vld [vmem:[%s1419 + $0x38] sm:$0xff]
          %v3424 = vld [vmem:[%s1419 + $0x50] sm:$0xff]
          %v3425 = vld [vmem:[%s1419 + $0x68] sm:$0xff]
          %v3426 = vld [vmem:[%s1419 + $0x80] sm:$0xff]
          %v3427 = vld [vmem:[%s1419 + $0x98] sm:$0xff]
          %v3428 = vld [vmem:[%s1419 + $0xb0] sm:$0xff]
          %v3429 = vld [vmem:[%s1419 + $0xc8] sm:$0xff]
          %v3430 = vld [vmem:[%s1419 + $0xe0] sm:$0xff]
          %v3431 = vld [vmem:[%s1419 + $0xf8] sm:$0xff]
          %v3432 = vld [vmem:[%s1419 + $0x110] sm:$0xff]
          %v3433 = vld [vmem:[%s1419 + $0x128] sm:$0xff]
          %v3434 = vld [vmem:[%s1419 + $0x140] sm:$0xff]
          %v3435 = vld [vmem:[%s1419 + $0x158] sm:$0xff]
          %v3436 = vld [vmem:[%s1419 + $0x170] sm:$0xff]
          %s3437 = sadd.s32 %s2097, 7
          %s3438 = smul.u32 %s3437, 128
          %s3439 = scalar_lea.vmem [#allocation7], %s3438
          %v3440 = vld [vmem:[%s3439] sm:$0xff]
          %v3441 = vld [vmem:[%s3439 + $0x8] sm:$0xff]
          %v3442 = vld [vmem:[%s3439 + $0x10] sm:$0xff]
          %v3443 = vld [vmem:[%s3439 + $0x18] sm:$0xff]
          %v3444 = vld [vmem:[%s3439 + $0x20] sm:$0xff]
          %v3445 = vld [vmem:[%s3439 + $0x28] sm:$0xff]
          %v3446 = vld [vmem:[%s3439 + $0x30] sm:$0xff]
          %v3447 = vld [vmem:[%s3439 + $0x38] sm:$0xff]
          %v3448 = vld [vmem:[%s3439 + $0x40] sm:$0xff]
          %v3449 = vld [vmem:[%s3439 + $0x48] sm:$0xff]
          %v3450 = vld [vmem:[%s3439 + $0x50] sm:$0xff]
          %v3451 = vld [vmem:[%s3439 + $0x58] sm:$0xff]
          %v3452 = vld [vmem:[%s3439 + $0x60] sm:$0xff]
          %v3453 = vld [vmem:[%s3439 + $0x68] sm:$0xff]
          %v3454 = vld [vmem:[%s3439 + $0x70] sm:$0xff]
          %v3455 = vld [vmem:[%s3439 + $0x78] sm:$0xff]
          %3456 = vmatprep.subr.mxu0 0.0
          %3457 = vmatpush1.msra.mxu0 %v3440
          %3458 = vmatprep.subr.mxu0 0.0
          %3459 = vmatpush1.msra.mxu0 %v3441
          %3460 = vmatprep.subr.mxu0 0.0
          %3461 = vmatpush1.msra.mxu0 %v3442
          %3462 = vmatprep.subr.mxu0 0.0
          %3463 = vmatpush1.msra.mxu0 %v3443
          %3464 = vmatprep.subr.mxu0 0.0
          %3465 = vmatpush1.msra.mxu0 %v3444
          %3466 = vmatprep.subr.mxu0 0.0
          %3467 = vmatpush1.msra.mxu0 %v3445
          %3468 = vmatprep.subr.mxu0 0.0
          %3469 = vmatpush1.msra.mxu0 %v3446
          %3470 = vmatprep.subr.mxu0 0.0
          %3471 = vmatpush1.msra.mxu0 %v3447
          %3472 = vmatprep.subr.mxu0 0.0
          %3473 = vmatpush1.msra.mxu0 %v3448
          %3474 = vmatprep.subr.mxu0 0.0
          %3475 = vmatpush1.msra.mxu0 %v3449
          %3476 = vmatprep.subr.mxu0 0.0
          %3477 = vmatpush1.msra.mxu0 %v3450
          %3478 = vmatprep.subr.mxu0 0.0
          %3479 = vmatpush1.msra.mxu0 %v3451
          %3480 = vmatprep.subr.mxu0 0.0
          %3481 = vmatpush1.msra.mxu0 %v3452
          %3482 = vmatprep.subr.mxu0 0.0
          %3483 = vmatpush1.msra.mxu0 %v3453
          %3484 = vmatprep.subr.mxu0 0.0
          %3485 = vmatpush1.msra.mxu0 %v3454
          %3486 = vmatprep.subr.mxu0 0.0
          %3487 = vmatpush1.msra.mxu0 %v3455
          %3488 = vmatprep.subr.mxu0 0.0
          %3489 = vmatpush1.msra.mxu0 0.0
          %3490 = vmatprep.subr.mxu0 0.0
          %3491 = vmatpush1.msra.mxu0 0.0
          %3492 = vmatprep.subr.mxu0 0.0
          %3493 = vmatpush1.msra.mxu0 0.0
          %3494 = vmatprep.subr.mxu0 0.0
          %3495 = vmatpush1.msra.mxu0 0.0
          %3496 = vmatprep.subr.mxu0 0.0
          %3497 = vmatpush1.msra.mxu0 0.0
          %3498 = vmatprep.subr.mxu0 0.0
          %3499 = vmatpush1.msra.mxu0 0.0
          %3500 = vmatprep.subr.mxu0 0.0
          %3501 = vmatpush1.msra.mxu0 0.0
          %3502 = vmatprep.subr.mxu0 0.0
          %3503 = vmatpush1.msra.mxu0 0.0
          %3504 = vmatprep.subr.mxu0 0.0
          %3505 = vmatpush1.msra.mxu0 0.0
          %3506 = vmatprep.subr.mxu0 0.0
          %3507 = vmatpush1.msra.mxu0 0.0
          %3508 = vmatprep.subr.mxu0 0.0
          %3509 = vmatpush1.msra.mxu0 0.0
          %3510 = vmatprep.subr.mxu0 0.0
          %3511 = vmatpush1.msra.mxu0 0.0
          %3512 = vmatprep.subr.mxu0 0.0
          %3513 = vmatpush1.msra.mxu0 0.0
          %3514 = vmatprep.subr.mxu0 0.0
          %3515 = vmatpush1.msra.mxu0 0.0
          %3516 = vmatprep.subr.mxu0 0.0
          %3517 = vmatpush1.msra.mxu0 0.0
          %3518 = vmatprep.subr.mxu0 0.0
          %3519 = vmatpush1.msra.mxu0 0.0
          %3520 = vmatprep.mubr.f32.mxu0 0.0
          %3521 = vmatmul.mubr.f32.gmra.mrb[0].mxu0 %v3421
          %v3522 = vpop.f32.mrb[0].mxu0
          %v3523 = vadd.f32 0.0, %v3522
          %v3524 = vpop.f32.mrb[0].mxu0
          %3525 = vmatprep.mubr.f32.mxu0 0.0
          %3526 = vmatmul.mubr.f32.gmra.mrb[0].mxu0 %v3422
          %v3527 = vpop.f32.mrb[0].mxu0
          %v3528 = vadd.f32 0.0, %v3527
          %v3529 = vpop.f32.mrb[0].mxu0
          %3530 = vmatprep.mubr.f32.mxu0 0.0
          %3531 = vmatmul.mubr.f32.gmra.mrb[0].mxu0 %v3423
          %v3532 = vpop.f32.mrb[0].mxu0
          %v3533 = vadd.f32 0.0, %v3532
          %v3534 = vpop.f32.mrb[0].mxu0
          %3535 = vmatprep.mubr.f32.mxu0 0.0
          %3536 = vmatmul.mubr.f32.gmra.mrb[0].mxu0 %v3424
          %v3537 = vpop.f32.mrb[0].mxu0
          %v3538 = vadd.f32 0.0, %v3537
          %v3539 = vpop.f32.mrb[0].mxu0
          %3540 = vmatprep.mubr.f32.mxu0 0.0
          %3541 = vmatmul.mubr.f32.gmra.mrb[0].mxu0 %v3425
          %v3542 = vpop.f32.mrb[0].mxu0
          %v3543 = vadd.f32 0.0, %v3542
          %v3544 = vpop.f32.mrb[0].mxu0
          %3545 = vmatprep.mubr.f32.mxu0 0.0
          %3546 = vmatmul.mubr.f32.gmra.mrb[0].mxu0 %v3426
          %v3547 = vpop.f32.mrb[0].mxu0
          %v3548 = vadd.f32 0.0, %v3547
          %v3549 = vpop.f32.mrb[0].mxu0
          %3550 = vmatprep.mubr.f32.mxu0 0.0
          %3551 = vmatmul.mubr.f32.gmra.mrb[0].mxu0 %v3427
          %v3552 = vpop.f32.mrb[0].mxu0
          %v3553 = vadd.f32 0.0, %v3552
          %v3554 = vpop.f32.mrb[0].mxu0
          %3555 = vmatprep.mubr.f32.mxu0 0.0
          %3556 = vmatmul.mubr.f32.gmra.mrb[0].mxu0 %v3428
          %v3557 = vpop.f32.mrb[0].mxu0
          %v3558 = vadd.f32 0.0, %v3557
          %v3559 = vpop.f32.mrb[0].mxu0
          %3560 = vmatprep.mubr.f32.mxu0 0.0
          %3561 = vmatmul.mubr.f32.gmra.mrb[0].mxu0 %v3429
          %v3562 = vpop.f32.mrb[0].mxu0
          %v3563 = vadd.f32 0.0, %v3562
          %v3564 = vpop.f32.mrb[0].mxu0
          %3565 = vmatprep.mubr.f32.mxu0 0.0
          %3566 = vmatmul.mubr.f32.gmra.mrb[0].mxu0 %v3430
          %v3567 = vpop.f32.mrb[0].mxu0
          %v3568 = vadd.f32 0.0, %v3567
          %v3569 = vpop.f32.mrb[0].mxu0
          %3570 = vmatprep.mubr.f32.mxu0 0.0
          %3571 = vmatmul.mubr.f32.gmra.mrb[0].mxu0 %v3431
          %v3572 = vpop.f32.mrb[0].mxu0
          %v3573 = vadd.f32 0.0, %v3572
          %v3574 = vpop.f32.mrb[0].mxu0
          %3575 = vmatprep.mubr.f32.mxu0 0.0
          %3576 = vmatmul.mubr.f32.gmra.mrb[0].mxu0 %v3432
          %v3577 = vpop.f32.mrb[0].mxu0
          %v3578 = vadd.f32 0.0, %v3577
          %v3579 = vpop.f32.mrb[0].mxu0
          %3580 = vmatprep.mubr.f32.mxu0 0.0
          %3581 = vmatmul.mubr.f32.gmra.mrb[0].mxu0 %v3433
          %v3582 = vpop.f32.mrb[0].mxu0
          %v3583 = vadd.f32 0.0, %v3582
          %v3584 = vpop.f32.mrb[0].mxu0
          %3585 = vmatprep.mubr.f32.mxu0 0.0
          %3586 = vmatmul.mubr.f32.gmra.mrb[0].mxu0 %v3434
          %v3587 = vpop.f32.mrb[0].mxu0
          %v3588 = vadd.f32 0.0, %v3587
          %v3589 = vpop.f32.mrb[0].mxu0
          %3590 = vmatprep.mubr.f32.mxu0 0.0
          %3591 = vmatmul.mubr.f32.gmra.mrb[0].mxu0 %v3435
          %v3592 = vpop.f32.mrb[0].mxu0
          %v3593 = vadd.f32 0.0, %v3592
          %v3594 = vpop.f32.mrb[0].mxu0
          %3595 = vmatprep.mubr.f32.mxu0 0.0
          %3596 = vmatmul.mubr.f32.gmra.mrb[0].mxu0 %v3436
          %v3597 = vpop.f32.mrb[0].mxu0
          %v3598 = vadd.f32 0.0, %v3597
          %v3599 = vpop.f32.mrb[0].mxu0
          %3600 = vdwg.mxu0
          %v3601 = vadd.f32 %v3405, %v3523
          %v3602 = vadd.f32 %v3406, %v3528
          %v3603 = vadd.f32 %v3407, %v3533
          %v3604 = vadd.f32 %v3408, %v3538
          %v3605 = vadd.f32 %v3409, %v3543
          %v3606 = vadd.f32 %v3410, %v3548
          %v3607 = vadd.f32 %v3411, %v3553
          %v3608 = vadd.f32 %v3412, %v3558
          %v3609 = vadd.f32 %v3413, %v3563
          %v3610 = vadd.f32 %v3414, %v3568
          %v3611 = vadd.f32 %v3415, %v3573
          %v3612 = vadd.f32 %v3416, %v3578
          %v3613 = vadd.f32 %v3417, %v3583
          %v3614 = vadd.f32 %v3418, %v3588
          %v3615 = vadd.f32 %v3419, %v3593
          %v3616 = vadd.f32 %v3420, %v3598
          %v3617 = vld [vmem:[%s1419 + $0x9] sm:$0xff]
          %v3618 = vld [vmem:[%s1419 + $0x21] sm:$0xff]
          %v3619 = vld [vmem:[%s1419 + $0x39] sm:$0xff]
          %v3620 = vld [vmem:[%s1419 + $0x51] sm:$0xff]
          %v3621 = vld [vmem:[%s1419 + $0x69] sm:$0xff]
          %v3622 = vld [vmem:[%s1419 + $0x81] sm:$0xff]
          %v3623 = vld [vmem:[%s1419 + $0x99] sm:$0xff]
          %v3624 = vld [vmem:[%s1419 + $0xb1] sm:$0xff]
          %v3625 = vld [vmem:[%s1419 + $0xc9] sm:$0xff]
          %v3626 = vld [vmem:[%s1419 + $0xe1] sm:$0xff]
          %v3627 = vld [vmem:[%s1419 + $0xf9] sm:$0xff]
          %v3628 = vld [vmem:[%s1419 + $0x111] sm:$0xff]
          %v3629 = vld [vmem:[%s1419 + $0x129] sm:$0xff]
          %v3630 = vld [vmem:[%s1419 + $0x141] sm:$0xff]
          %v3631 = vld [vmem:[%s1419 + $0x159] sm:$0xff]
          %v3632 = vld [vmem:[%s1419 + $0x171] sm:$0xff]
          %s3633 = sadd.s32 %s2097, 8
          %s3634 = smul.u32 %s3633, 128
          %s3635 = scalar_lea.vmem [#allocation7], %s3634
          %v3636 = vld [vmem:[%s3635] sm:$0xff]
          %v3637 = vld [vmem:[%s3635 + $0x8] sm:$0xff]
          %v3638 = vld [vmem:[%s3635 + $0x10] sm:$0xff]
          %v3639 = vld [vmem:[%s3635 + $0x18] sm:$0xff]
          %v3640 = vld [vmem:[%s3635 + $0x20] sm:$0xff]
          %v3641 = vld [vmem:[%s3635 + $0x28] sm:$0xff]
          %v3642 = vld [vmem:[%s3635 + $0x30] sm:$0xff]
          %v3643 = vld [vmem:[%s3635 + $0x38] sm:$0xff]
          %v3644 = vld [vmem:[%s3635 + $0x40] sm:$0xff]
          %v3645 = vld [vmem:[%s3635 + $0x48] sm:$0xff]
          %v3646 = vld [vmem:[%s3635 + $0x50] sm:$0xff]
          %v3647 = vld [vmem:[%s3635 + $0x58] sm:$0xff]
          %v3648 = vld [vmem:[%s3635 + $0x60] sm:$0xff]
          %v3649 = vld [vmem:[%s3635 + $0x68] sm:$0xff]
          %v3650 = vld [vmem:[%s3635 + $0x70] sm:$0xff]
          %v3651 = vld [vmem:[%s3635 + $0x78] sm:$0xff]
          %3652 = vmatprep.subr.mxu0 0.0
          %3653 = vmatpush1.msra.mxu0 %v3636
          %3654 = vmatprep.subr.mxu0 0.0
          %3655 = vmatpush1.msra.mxu0 %v3637
          %3656 = vmatprep.subr.mxu0 0.0
          %3657 = vmatpush1.msra.mxu0 %v3638
          %3658 = vmatprep.subr.mxu0 0.0
          %3659 = vmatpush1.msra.mxu0 %v3639
          %3660 = vmatprep.subr.mxu0 0.0
          %3661 = vmatpush1.msra.mxu0 %v3640
          %3662 = vmatprep.subr.mxu0 0.0
          %3663 = vmatpush1.msra.mxu0 %v3641
          %3664 = vmatprep.subr.mxu0 0.0
          %3665 = vmatpush1.msra.mxu0 %v3642
          %3666 = vmatprep.subr.mxu0 0.0
          %3667 = vmatpush1.msra.mxu0 %v3643
          %3668 = vmatprep.subr.mxu0 0.0
          %3669 = vmatpush1.msra.mxu0 %v3644
          %3670 = vmatprep.subr.mxu0 0.0
          %3671 = vmatpush1.msra.mxu0 %v3645
          %3672 = vmatprep.subr.mxu0 0.0
          %3673 = vmatpush1.msra.mxu0 %v3646
          %3674 = vmatprep.subr.mxu0 0.0
          %3675 = vmatpush1.msra.mxu0 %v3647
          %3676 = vmatprep.subr.mxu0 0.0
          %3677 = vmatpush1.msra.mxu0 %v3648
          %3678 = vmatprep.subr.mxu0 0.0
          %3679 = vmatpush1.msra.mxu0 %v3649
          %3680 = vmatprep.subr.mxu0 0.0
          %3681 = vmatpush1.msra.mxu0 %v3650
          %3682 = vmatprep.subr.mxu0 0.0
          %3683 = vmatpush1.msra.mxu0 %v3651
          %3684 = vmatprep.subr.mxu0 0.0
          %3685 = vmatpush1.msra.mxu0 0.0
          %3686 = vmatprep.subr.mxu0 0.0
          %3687 = vmatpush1.msra.mxu0 0.0
          %3688 = vmatprep.subr.mxu0 0.0
          %3689 = vmatpush1.msra.mxu0 0.0
          %3690 = vmatprep.subr.mxu0 0.0
          %3691 = vmatpush1.msra.mxu0 0.0
          %3692 = vmatprep.subr.mxu0 0.0
          %3693 = vmatpush1.msra.mxu0 0.0
          %3694 = vmatprep.subr.mxu0 0.0
          %3695 = vmatpush1.msra.mxu0 0.0
          %3696 = vmatprep.subr.mxu0 0.0
          %3697 = vmatpush1.msra.mxu0 0.0
          %3698 = vmatprep.subr.mxu0 0.0
          %3699 = vmatpush1.msra.mxu0 0.0
          %3700 = vmatprep.subr.mxu0 0.0
          %3701 = vmatpush1.msra.mxu0 0.0
          %3702 = vmatprep.subr.mxu0 0.0
          %3703 = vmatpush1.msra.mxu0 0.0
          %3704 = vmatprep.subr.mxu0 0.0
          %3705 = vmatpush1.msra.mxu0 0.0
          %3706 = vmatprep.subr.mxu0 0.0
          %3707 = vmatpush1.msra.mxu0 0.0
          %3708 = vmatprep.subr.mxu0 0.0
          %3709 = vmatpush1.msra.mxu0 0.0
          %3710 = vmatprep.subr.mxu0 0.0
          %3711 = vmatpush1.msra.mxu0 0.0
          %3712 = vmatprep.subr.mxu0 0.0
          %3713 = vmatpush1.msra.mxu0 0.0
          %3714 = vmatprep.subr.mxu0 0.0
          %3715 = vmatpush1.msra.mxu0 0.0
          %3716 = vmatprep.mubr.f32.mxu0 0.0
          %3717 = vmatmul.mubr.f32.gmra.mrb[0].mxu0 %v3617
          %v3718 = vpop.f32.mrb[0].mxu0
          %v3719 = vadd.f32 0.0, %v3718
          %v3720 = vpop.f32.mrb[0].mxu0
          %3721 = vmatprep.mubr.f32.mxu0 0.0
          %3722 = vmatmul.mubr.f32.gmra.mrb[0].mxu0 %v3618
          %v3723 = vpop.f32.mrb[0].mxu0
          %v3724 = vadd.f32 0.0, %v3723
          %v3725 = vpop.f32.mrb[0].mxu0
          %3726 = vmatprep.mubr.f32.mxu0 0.0
          %3727 = vmatmul.mubr.f32.gmra.mrb[0].mxu0 %v3619
          %v3728 = vpop.f32.mrb[0].mxu0
          %v3729 = vadd.f32 0.0, %v3728
          %v3730 = vpop.f32.mrb[0].mxu0
          %3731 = vmatprep.mubr.f32.mxu0 0.0
          %3732 = vmatmul.mubr.f32.gmra.mrb[0].mxu0 %v3620
          %v3733 = vpop.f32.mrb[0].mxu0
          %v3734 = vadd.f32 0.0, %v3733
          %v3735 = vpop.f32.mrb[0].mxu0
          %3736 = vmatprep.mubr.f32.mxu0 0.0
          %3737 = vmatmul.mubr.f32.gmra.mrb[0].mxu0 %v3621
          %v3738 = vpop.f32.mrb[0].mxu0
          %v3739 = vadd.f32 0.0, %v3738
          %v3740 = vpop.f32.mrb[0].mxu0
          %3741 = vmatprep.mubr.f32.mxu0 0.0
          %3742 = vmatmul.mubr.f32.gmra.mrb[0].mxu0 %v3622
          %v3743 = vpop.f32.mrb[0].mxu0
          %v3744 = vadd.f32 0.0, %v3743
          %v3745 = vpop.f32.mrb[0].mxu0
          %3746 = vmatprep.mubr.f32.mxu0 0.0
          %3747 = vmatmul.mubr.f32.gmra.mrb[0].mxu0 %v3623
          %v3748 = vpop.f32.mrb[0].mxu0
          %v3749 = vadd.f32 0.0, %v3748
          %v3750 = vpop.f32.mrb[0].mxu0
          %3751 = vmatprep.mubr.f32.mxu0 0.0
          %3752 = vmatmul.mubr.f32.gmra.mrb[0].mxu0 %v3624
          %v3753 = vpop.f32.mrb[0].mxu0
          %v3754 = vadd.f32 0.0, %v3753
          %v3755 = vpop.f32.mrb[0].mxu0
          %3756 = vmatprep.mubr.f32.mxu0 0.0
          %3757 = vmatmul.mubr.f32.gmra.mrb[0].mxu0 %v3625
          %v3758 = vpop.f32.mrb[0].mxu0
          %v3759 = vadd.f32 0.0, %v3758
          %v3760 = vpop.f32.mrb[0].mxu0
          %3761 = vmatprep.mubr.f32.mxu0 0.0
          %3762 = vmatmul.mubr.f32.gmra.mrb[0].mxu0 %v3626
          %v3763 = vpop.f32.mrb[0].mxu0
          %v3764 = vadd.f32 0.0, %v3763
          %v3765 = vpop.f32.mrb[0].mxu0
          %3766 = vmatprep.mubr.f32.mxu0 0.0
          %3767 = vmatmul.mubr.f32.gmra.mrb[0].mxu0 %v3627
          %v3768 = vpop.f32.mrb[0].mxu0
          %v3769 = vadd.f32 0.0, %v3768
          %v3770 = vpop.f32.mrb[0].mxu0
          %3771 = vmatprep.mubr.f32.mxu0 0.0
          %3772 = vmatmul.mubr.f32.gmra.mrb[0].mxu0 %v3628
          %v3773 = vpop.f32.mrb[0].mxu0
          %v3774 = vadd.f32 0.0, %v3773
          %v3775 = vpop.f32.mrb[0].mxu0
          %3776 = vmatprep.mubr.f32.mxu0 0.0
          %3777 = vmatmul.mubr.f32.gmra.mrb[0].mxu0 %v3629
          %v3778 = vpop.f32.mrb[0].mxu0
          %v3779 = vadd.f32 0.0, %v3778
          %v3780 = vpop.f32.mrb[0].mxu0
          %3781 = vmatprep.mubr.f32.mxu0 0.0
          %3782 = vmatmul.mubr.f32.gmra.mrb[0].mxu0 %v3630
          %v3783 = vpop.f32.mrb[0].mxu0
          %v3784 = vadd.f32 0.0, %v3783
          %v3785 = vpop.f32.mrb[0].mxu0
          %3786 = vmatprep.mubr.f32.mxu0 0.0
          %3787 = vmatmul.mubr.f32.gmra.mrb[0].mxu0 %v3631
          %v3788 = vpop.f32.mrb[0].mxu0
          %v3789 = vadd.f32 0.0, %v3788
          %v3790 = vpop.f32.mrb[0].mxu0
          %3791 = vmatprep.mubr.f32.mxu0 0.0
          %3792 = vmatmul.mubr.f32.gmra.mrb[0].mxu0 %v3632
          %v3793 = vpop.f32.mrb[0].mxu0
          %v3794 = vadd.f32 0.0, %v3793
          %v3795 = vpop.f32.mrb[0].mxu0
          %3796 = vdwg.mxu0
          %v3797 = vadd.f32 %v3601, %v3719
          %v3798 = vadd.f32 %v3602, %v3724
          %v3799 = vadd.f32 %v3603, %v3729
          %v3800 = vadd.f32 %v3604, %v3734
          %v3801 = vadd.f32 %v3605, %v3739
          %v3802 = vadd.f32 %v3606, %v3744
          %v3803 = vadd.f32 %v3607, %v3749
          %v3804 = vadd.f32 %v3608, %v3754
          %v3805 = vadd.f32 %v3609, %v3759
          %v3806 = vadd.f32 %v3610, %v3764
          %v3807 = vadd.f32 %v3611, %v3769
          %v3808 = vadd.f32 %v3612, %v3774
          %v3809 = vadd.f32 %v3613, %v3779
          %v3810 = vadd.f32 %v3614, %v3784
          %v3811 = vadd.f32 %v3615, %v3789
          %v3812 = vadd.f32 %v3616, %v3794
          %s3813 = scalar_lea.vmem [#allocation9], %s2080
          %v3814 = vld [vmem:[%s3813] sm:$0x1]
          %v3816 = vlaneseq
          %v3817 = vshrl.u32 %v3816, 7
          %v3818 = vsub.s32 0, %v3817
          %v3819 = vrot.slane %v3814, %v3818
          %v3821 = vadd.f32 %v3797, %v3819
          %v3822 = vadd.f32 %v3798, %v3819
          %v3823 = vadd.f32 %v3799, %v3819
          %v3824 = vadd.f32 %v3800, %v3819
          %v3825 = vadd.f32 %v3801, %v3819
          %v3826 = vadd.f32 %v3802, %v3819
          %v3827 = vadd.f32 %v3803, %v3819
          %v3828 = vadd.f32 %v3804, %v3819
          %v3829 = vadd.f32 %v3805, %v3819
          %v3830 = vadd.f32 %v3806, %v3819
          %v3831 = vadd.f32 %v3807, %v3819
          %v3832 = vadd.f32 %v3808, %v3819
          %v3833 = vadd.f32 %v3809, %v3819
          %v3834 = vadd.f32 %v3810, %v3819
          %v3835 = vadd.f32 %v3811, %v3819
          %v3836 = vadd.f32 %v3812, %v3819
          %v3837 = vmax.f32 %v3821, 0.0
          %v3838 = vmax.f32 %v3822, 0.0
          %v3839 = vmax.f32 %v3823, 0.0
          %v3840 = vmax.f32 %v3824, 0.0
          %v3841 = vmax.f32 %v3825, 0.0
          %v3842 = vmax.f32 %v3826, 0.0
          %v3843 = vmax.f32 %v3827, 0.0
          %v3844 = vmax.f32 %v3828, 0.0
          %v3845 = vmax.f32 %v3829, 0.0
          %v3846 = vmax.f32 %v3830, 0.0
          %v3847 = vmax.f32 %v3831, 0.0
          %v3848 = vmax.f32 %v3832, 0.0
          %v3849 = vmax.f32 %v3833, 0.0
          %v3850 = vmax.f32 %v3834, 0.0
          %v3851 = vmax.f32 %v3835, 0.0
          %v3852 = vmax.f32 %v3836, 0.0
          %3853 = vst [vmem:[%s223 + $0x8] sm:$0xff] %v3837
          %3854 = vst [vmem:[%s223 + $0x20] sm:$0xff] %v3838
          %3855 = vst [vmem:[%s223 + $0x38] sm:$0xff] %v3839
          %3856 = vst [vmem:[%s223 + $0x50] sm:$0xff] %v3840
          %3857 = vst [vmem:[%s223 + $0x68] sm:$0xff] %v3841
          %3858 = vst [vmem:[%s223 + $0x80] sm:$0xff] %v3842
          %3859 = vst [vmem:[%s223 + $0x98] sm:$0xff] %v3843
          %3860 = vst [vmem:[%s223 + $0xb0] sm:$0xff] %v3844
          %3861 = vst [vmem:[%s223 + $0xc8] sm:$0xff] %v3845
          %3862 = vst [vmem:[%s223 + $0xe0] sm:$0xff] %v3846
          %3863 = vst [vmem:[%s223 + $0xf8] sm:$0xff] %v3847
          %3864 = vst [vmem:[%s223 + $0x110] sm:$0xff] %v3848
          %3865 = vst [vmem:[%s223 + $0x128] sm:$0xff] %v3849
          %3866 = vst [vmem:[%s223 + $0x140] sm:$0xff] %v3850
          %3867 = vst [vmem:[%s223 + $0x158] sm:$0xff] %v3851
          %3868 = vst [vmem:[%s223 + $0x170] sm:$0xff] %v3852
          %s3869 = sadd.s32 %s2079, 2
          %v3870 = vld [vmem:[#allocation2 + $0x7] sm:$0xff]
          %v3871 = vld [vmem:[#allocation2 + $0x1f] sm:$0xff]
          %v3872 = vld [vmem:[#allocation2 + $0x37] sm:$0xff]
          %v3873 = vld [vmem:[#allocation2 + $0x4f] sm:$0xff]
          %v3874 = vld [vmem:[#allocation2 + $0x67] sm:$0xff]
          %v3875 = vld [vmem:[#allocation2 + $0x7f] sm:$0xff]
          %v3876 = vld [vmem:[#allocation2 + $0x97] sm:$0xff]
          %v3877 = vld [vmem:[#allocation2 + $0xaf] sm:$0xff]
          %v3878 = vld [vmem:[#allocation2 + $0xc7] sm:$0xff]
          %v3879 = vld [vmem:[#allocation2 + $0xdf] sm:$0xff]
          %v3880 = vld [vmem:[#allocation2 + $0xf7] sm:$0xff]
          %v3881 = vld [vmem:[#allocation2 + $0x10f] sm:$0xff]
          %v3882 = vld [vmem:[#allocation2 + $0x127] sm:$0xff]
          %v3883 = vld [vmem:[#allocation2 + $0x13f] sm:$0xff]
          %v3884 = vld [vmem:[#allocation2 + $0x157] sm:$0xff]
          %v3885 = vld [vmem:[#allocation2 + $0x16f] sm:$0xff]
          %s3886 = smul.u32 %s3869, 9
          %s3887 = smul.u32 %s3886, 128
          %s3888 = scalar_lea.vmem [#allocation7], %s3887
          %v3889 = vld [vmem:[%s3888] sm:$0xff]
          %v3890 = vld [vmem:[%s3888 + $0x8] sm:$0xff]
          %v3891 = vld [vmem:[%s3888 + $0x10] sm:$0xff]
          %v3892 = vld [vmem:[%s3888 + $0x18] sm:$0xff]
          %v3893 = vld [vmem:[%s3888 + $0x20] sm:$0xff]
          %v3894 = vld [vmem:[%s3888 + $0x28] sm:$0xff]
          %v3895 = vld [vmem:[%s3888 + $0x30] sm:$0xff]
          %v3896 = vld [vmem:[%s3888 + $0x38] sm:$0xff]
          %v3897 = vld [vmem:[%s3888 + $0x40] sm:$0xff]
          %v3898 = vld [vmem:[%s3888 + $0x48] sm:$0xff]
          %v3899 = vld [vmem:[%s3888 + $0x50] sm:$0xff]
          %v3900 = vld [vmem:[%s3888 + $0x58] sm:$0xff]
          %v3901 = vld [vmem:[%s3888 + $0x60] sm:$0xff]
          %v3902 = vld [vmem:[%s3888 + $0x68] sm:$0xff]
          %v3903 = vld [vmem:[%s3888 + $0x70] sm:$0xff]
          %v3904 = vld [vmem:[%s3888 + $0x78] sm:$0xff]
          %v3905 = vld [vmem:[#allocation2 + $0x8] sm:$0xff]
          %v3906 = vld [vmem:[#allocation2 + $0x20] sm:$0xff]
          %v3907 = vld [vmem:[#allocation2 + $0x38] sm:$0xff]
          %v3908 = vld [vmem:[#allocation2 + $0x50] sm:$0xff]
          %v3909 = vld [vmem:[#allocation2 + $0x68] sm:$0xff]
          %v3910 = vld [vmem:[#allocation2 + $0x80] sm:$0xff]
          %v3911 = vld [vmem:[#allocation2 + $0x98] sm:$0xff]
          %v3912 = vld [vmem:[#allocation2 + $0xb0] sm:$0xff]
          %v3913 = vld [vmem:[#allocation2 + $0xc8] sm:$0xff]
          %v3914 = vld [vmem:[#allocation2 + $0xe0] sm:$0xff]
          %v3915 = vld [vmem:[#allocation2 + $0xf8] sm:$0xff]
          %v3916 = vld [vmem:[#allocation2 + $0x110] sm:$0xff]
          %v3917 = vld [vmem:[#allocation2 + $0x128] sm:$0xff]
          %v3918 = vld [vmem:[#allocation2 + $0x140] sm:$0xff]
          %v3919 = vld [vmem:[#allocation2 + $0x158] sm:$0xff]
          %v3920 = vld [vmem:[#allocation2 + $0x170] sm:$0xff]
          %s3921 = sadd.s32 %s3886, 1
          %s3922 = smul.u32 %s3921, 128
          %s3923 = scalar_lea.vmem [#allocation7], %s3922
          %v3924 = vld [vmem:[%s3923] sm:$0xff]
          %v3925 = vld [vmem:[%s3923 + $0x8] sm:$0xff]
          %v3926 = vld [vmem:[%s3923 + $0x10] sm:$0xff]
          %v3927 = vld [vmem:[%s3923 + $0x18] sm:$0xff]
          %v3928 = vld [vmem:[%s3923 + $0x20] sm:$0xff]
          %v3929 = vld [vmem:[%s3923 + $0x28] sm:$0xff]
          %v3930 = vld [vmem:[%s3923 + $0x30] sm:$0xff]
          %v3931 = vld [vmem:[%s3923 + $0x38] sm:$0xff]
          %v3932 = vld [vmem:[%s3923 + $0x40] sm:$0xff]
          %v3933 = vld [vmem:[%s3923 + $0x48] sm:$0xff]
          %v3934 = vld [vmem:[%s3923 + $0x50] sm:$0xff]
          %v3935 = vld [vmem:[%s3923 + $0x58] sm:$0xff]
          %v3936 = vld [vmem:[%s3923 + $0x60] sm:$0xff]
          %v3937 = vld [vmem:[%s3923 + $0x68] sm:$0xff]
          %v3938 = vld [vmem:[%s3923 + $0x70] sm:$0xff]
          %v3939 = vld [vmem:[%s3923 + $0x78] sm:$0xff]
          %3940 = vmatprep.subr.mxu0 0.0
          %3941 = vmatpush1.msra.mxu0 %v3924
          %3942 = vmatprep.subr.mxu0 0.0
          %3943 = vmatpush1.msra.mxu0 %v3925
          %3944 = vmatprep.subr.mxu0 0.0
          %3945 = vmatpush1.msra.mxu0 %v3926
          %3946 = vmatprep.subr.mxu0 0.0
          %3947 = vmatpush1.msra.mxu0 %v3927
          %3948 = vmatprep.subr.mxu0 0.0
          %3949 = vmatpush1.msra.mxu0 %v3928
          %3950 = vmatprep.subr.mxu0 0.0
          %3951 = vmatpush1.msra.mxu0 %v3929
          %3952 = vmatprep.subr.mxu0 0.0
          %3953 = vmatpush1.msra.mxu0 %v3930
          %3954 = vmatprep.subr.mxu0 0.0
          %3955 = vmatpush1.msra.mxu0 %v3931
          %3956 = vmatprep.subr.mxu0 0.0
          %3957 = vmatpush1.msra.mxu0 %v3932
          %3958 = vmatprep.subr.mxu0 0.0
          %3959 = vmatpush1.msra.mxu0 %v3933
          %3960 = vmatprep.subr.mxu0 0.0
          %3961 = vmatpush1.msra.mxu0 %v3934
          %3962 = vmatprep.subr.mxu0 0.0
          %3963 = vmatpush1.msra.mxu0 %v3935
          %3964 = vmatprep.subr.mxu0 0.0
          %3965 = vmatpush1.msra.mxu0 %v3936
          %3966 = vmatprep.subr.mxu0 0.0
          %3967 = vmatpush1.msra.mxu0 %v3937
          %3968 = vmatprep.subr.mxu0 0.0
          %3969 = vmatpush1.msra.mxu0 %v3938
          %3970 = vmatprep.subr.mxu0 0.0
          %3971 = vmatpush1.msra.mxu0 %v3939
          %3972 = vmatprep.subr.mxu0 0.0
          %3973 = vmatpush1.msra.mxu0 0.0
          %3974 = vmatprep.subr.mxu0 0.0
          %3975 = vmatpush1.msra.mxu0 0.0
          %3976 = vmatprep.subr.mxu0 0.0
          %3977 = vmatpush1.msra.mxu0 0.0
          %3978 = vmatprep.subr.mxu0 0.0
          %3979 = vmatpush1.msra.mxu0 0.0
          %3980 = vmatprep.subr.mxu0 0.0
          %3981 = vmatpush1.msra.mxu0 0.0
          %3982 = vmatprep.subr.mxu0 0.0
          %3983 = vmatpush1.msra.mxu0 0.0
          %3984 = vmatprep.subr.mxu0 0.0
          %3985 = vmatpush1.msra.mxu0 0.0
          %3986 = vmatprep.subr.mxu0 0.0
          %3987 = vmatpush1.msra.mxu0 0.0
          %3988 = vmatprep.subr.mxu0 0.0
          %3989 = vmatpush1.msra.mxu0 0.0
          %3990 = vmatprep.subr.mxu0 0.0
          %3991 = vmatpush1.msra.mxu0 0.0
          %3992 = vmatprep.subr.mxu0 0.0
          %3993 = vmatpush1.msra.mxu0 0.0
          %3994 = vmatprep.subr.mxu0 0.0
          %3995 = vmatpush1.msra.mxu0 0.0
          %3996 = vmatprep.subr.mxu0 0.0
          %3997 = vmatpush1.msra.mxu0 0.0
          %3998 = vmatprep.subr.mxu0 0.0
          %3999 = vmatpush1.msra.mxu0 0.0
          %4000 = vmatprep.subr.mxu0 0.0
          %4001 = vmatpush1.msra.mxu0 0.0
          %4002 = vmatprep.subr.mxu0 0.0
          %4003 = vmatpush1.msra.mxu0 0.0
          %4004 = vmatprep.mubr.f32.mxu0 0.0
          %4005 = vmatmul.mubr.f32.gmra.mrb[0].mxu0 %v3905
          %v4006 = vpop.f32.mrb[0].mxu0
          %v4007 = vadd.f32 0.0, %v4006
          %v4008 = vpop.f32.mrb[0].mxu0
          %4009 = vmatprep.mubr.f32.mxu0 0.0
          %4010 = vmatmul.mubr.f32.gmra.mrb[0].mxu0 %v3906
          %v4011 = vpop.f32.mrb[0].mxu0
          %v4012 = vadd.f32 0.0, %v4011
          %v4013 = vpop.f32.mrb[0].mxu0
          %4014 = vmatprep.mubr.f32.mxu0 0.0
          %4015 = vmatmul.mubr.f32.gmra.mrb[0].mxu0 %v3907
          %v4016 = vpop.f32.mrb[0].mxu0
          %v4017 = vadd.f32 0.0, %v4016
          %v4018 = vpop.f32.mrb[0].mxu0
          %4019 = vmatprep.mubr.f32.mxu0 0.0
          %4020 = vmatmul.mubr.f32.gmra.mrb[0].mxu0 %v3908
          %v4021 = vpop.f32.mrb[0].mxu0
          %v4022 = vadd.f32 0.0, %v4021
          %v4023 = vpop.f32.mrb[0].mxu0
          %4024 = vmatprep.mubr.f32.mxu0 0.0
          %4025 = vmatmul.mubr.f32.gmra.mrb[0].mxu0 %v3909
          %v4026 = vpop.f32.mrb[0].mxu0
          %v4027 = vadd.f32 0.0, %v4026
          %v4028 = vpop.f32.mrb[0].mxu0
          %4029 = vmatprep.mubr.f32.mxu0 0.0
          %4030 = vmatmul.mubr.f32.gmra.mrb[0].mxu0 %v3910
          %v4031 = vpop.f32.mrb[0].mxu0
          %v4032 = vadd.f32 0.0, %v4031
          %v4033 = vpop.f32.mrb[0].mxu0
          %4034 = vmatprep.mubr.f32.mxu0 0.0
          %4035 = vmatmul.mubr.f32.gmra.mrb[0].mxu0 %v3911
          %v4036 = vpop.f32.mrb[0].mxu0
          %v4037 = vadd.f32 0.0, %v4036
          %v4038 = vpop.f32.mrb[0].mxu0
          %4039 = vmatprep.mubr.f32.mxu0 0.0
          %4040 = vmatmul.mubr.f32.gmra.mrb[0].mxu0 %v3912
          %v4041 = vpop.f32.mrb[0].mxu0
          %v4042 = vadd.f32 0.0, %v4041
          %v4043 = vpop.f32.mrb[0].mxu0
          %4044 = vmatprep.mubr.f32.mxu0 0.0
          %4045 = vmatmul.mubr.f32.gmra.mrb[0].mxu0 %v3913
          %v4046 = vpop.f32.mrb[0].mxu0
          %v4047 = vadd.f32 0.0, %v4046
          %v4048 = vpop.f32.mrb[0].mxu0
          %4049 = vmatprep.mubr.f32.mxu0 0.0
          %4050 = vmatmul.mubr.f32.gmra.mrb[0].mxu0 %v3914
          %v4051 = vpop.f32.mrb[0].mxu0
          %v4052 = vadd.f32 0.0, %v4051
          %v4053 = vpop.f32.mrb[0].mxu0
          %4054 = vmatprep.mubr.f32.mxu0 0.0
          %4055 = vmatmul.mubr.f32.gmra.mrb[0].mxu0 %v3915
          %v4056 = vpop.f32.mrb[0].mxu0
          %v4057 = vadd.f32 0.0, %v4056
          %v4058 = vpop.f32.mrb[0].mxu0
          %4059 = vmatprep.mubr.f32.mxu0 0.0
          %4060 = vmatmul.mubr.f32.gmra.mrb[0].mxu0 %v3916
          %v4061 = vpop.f32.mrb[0].mxu0
          %v4062 = vadd.f32 0.0, %v4061
          %v4063 = vpop.f32.mrb[0].mxu0
          %4064 = vmatprep.mubr.f32.mxu0 0.0
          %4065 = vmatmul.mubr.f32.gmra.mrb[0].mxu0 %v3917
          %v4066 = vpop.f32.mrb[0].mxu0
          %v4067 = vadd.f32 0.0, %v4066
          %v4068 = vpop.f32.mrb[0].mxu0
          %4069 = vmatprep.mubr.f32.mxu0 0.0
          %4070 = vmatmul.mubr.f32.gmra.mrb[0].mxu0 %v3918
          %v4071 = vpop.f32.mrb[0].mxu0
          %v4072 = vadd.f32 0.0, %v4071
          %v4073 = vpop.f32.mrb[0].mxu0
          %4074 = vmatprep.mubr.f32.mxu0 0.0
          %4075 = vmatmul.mubr.f32.gmra.mrb[0].mxu0 %v3919
          %v4076 = vpop.f32.mrb[0].mxu0
          %v4077 = vadd.f32 0.0, %v4076
          %v4078 = vpop.f32.mrb[0].mxu0
          %4079 = vmatprep.mubr.f32.mxu0 0.0
          %4080 = vmatmul.mubr.f32.gmra.mrb[0].mxu0 %v3920
          %v4081 = vpop.f32.mrb[0].mxu0
          %v4082 = vadd.f32 0.0, %v4081
          %v4083 = vpop.f32.mrb[0].mxu0
          %4084 = vdwg.mxu0
          %4085 = vmatprep.subr.mxu0 0.0
          %4086 = vmatpush1.msra.mxu0 %v3889
          %4087 = vmatprep.subr.mxu0 0.0
          %4088 = vmatpush1.msra.mxu0 %v3890
          %4089 = vmatprep.subr.mxu0 0.0
          %4090 = vmatpush1.msra.mxu0 %v3891
          %4091 = vmatprep.subr.mxu0 0.0
          %4092 = vmatpush1.msra.mxu0 %v3892
          %4093 = vmatprep.subr.mxu0 0.0
          %4094 = vmatpush1.msra.mxu0 %v3893
          %4095 = vmatprep.subr.mxu0 0.0
          %4096 = vmatpush1.msra.mxu0 %v3894
          %4097 = vmatprep.subr.mxu0 0.0
          %4098 = vmatpush1.msra.mxu0 %v3895
          %4099 = vmatprep.subr.mxu0 0.0
          %4100 = vmatpush1.msra.mxu0 %v3896
          %4101 = vmatprep.subr.mxu0 0.0
          %4102 = vmatpush1.msra.mxu0 %v3897
          %4103 = vmatprep.subr.mxu0 0.0
          %4104 = vmatpush1.msra.mxu0 %v3898
          %4105 = vmatprep.subr.mxu0 0.0
          %4106 = vmatpush1.msra.mxu0 %v3899
          %4107 = vmatprep.subr.mxu0 0.0
          %4108 = vmatpush1.msra.mxu0 %v3900
          %4109 = vmatprep.subr.mxu0 0.0
          %4110 = vmatpush1.msra.mxu0 %v3901
          %4111 = vmatprep.subr.mxu0 0.0
          %4112 = vmatpush1.msra.mxu0 %v3902
          %4113 = vmatprep.subr.mxu0 0.0
          %4114 = vmatpush1.msra.mxu0 %v3903
          %4115 = vmatprep.subr.mxu0 0.0
          %4116 = vmatpush1.msra.mxu0 %v3904
          %4117 = vmatprep.subr.mxu0 0.0
          %4118 = vmatpush1.msra.mxu0 0.0
          %4119 = vmatprep.subr.mxu0 0.0
          %4120 = vmatpush1.msra.mxu0 0.0
          %4121 = vmatprep.subr.mxu0 0.0
          %4122 = vmatpush1.msra.mxu0 0.0
          %4123 = vmatprep.subr.mxu0 0.0
          %4124 = vmatpush1.msra.mxu0 0.0
          %4125 = vmatprep.subr.mxu0 0.0
          %4126 = vmatpush1.msra.mxu0 0.0
          %4127 = vmatprep.subr.mxu0 0.0
          %4128 = vmatpush1.msra.mxu0 0.0
          %4129 = vmatprep.subr.mxu0 0.0
          %4130 = vmatpush1.msra.mxu0 0.0
          %4131 = vmatprep.subr.mxu0 0.0
          %4132 = vmatpush1.msra.mxu0 0.0
          %4133 = vmatprep.subr.mxu0 0.0
          %4134 = vmatpush1.msra.mxu0 0.0
          %4135 = vmatprep.subr.mxu0 0.0
          %4136 = vmatpush1.msra.mxu0 0.0
          %4137 = vmatprep.subr.mxu0 0.0
          %4138 = vmatpush1.msra.mxu0 0.0
          %4139 = vmatprep.subr.mxu0 0.0
          %4140 = vmatpush1.msra.mxu0 0.0
          %4141 = vmatprep.subr.mxu0 0.0
          %4142 = vmatpush1.msra.mxu0 0.0
          %4143 = vmatprep.subr.mxu0 0.0
          %4144 = vmatpush1.msra.mxu0 0.0
          %4145 = vmatprep.subr.mxu0 0.0
          %4146 = vmatpush1.msra.mxu0 0.0
          %4147 = vmatprep.subr.mxu0 0.0
          %4148 = vmatpush1.msra.mxu0 0.0
          %4149 = vmatprep.mubr.f32.mxu0 0.0
          %4150 = vmatmul.mubr.f32.gmra.mrb[0].mxu0 %v3870
          %v4151 = vpop.f32.mrb[0].mxu0
          %v4152 = vadd.f32 %v4007, %v4151
          %v4153 = vpop.f32.mrb[0].mxu0
          %4154 = vmatprep.mubr.f32.mxu0 0.0
          %4155 = vmatmul.mubr.f32.gmra.mrb[0].mxu0 %v3871
          %v4156 = vpop.f32.mrb[0].mxu0
          %v4157 = vadd.f32 %v4012, %v4156
          %v4158 = vpop.f32.mrb[0].mxu0
          %4159 = vmatprep.mubr.f32.mxu0 0.0
          %4160 = vmatmul.mubr.f32.gmra.mrb[0].mxu0 %v3872
          %v4161 = vpop.f32.mrb[0].mxu0
          %v4162 = vadd.f32 %v4017, %v4161
          %v4163 = vpop.f32.mrb[0].mxu0
          %4164 = vmatprep.mubr.f32.mxu0 0.0
          %4165 = vmatmul.mubr.f32.gmra.mrb[0].mxu0 %v3873
          %v4166 = vpop.f32.mrb[0].mxu0
          %v4167 = vadd.f32 %v4022, %v4166
          %v4168 = vpop.f32.mrb[0].mxu0
          %4169 = vmatprep.mubr.f32.mxu0 0.0
          %4170 = vmatmul.mubr.f32.gmra.mrb[0].mxu0 %v3874
          %v4171 = vpop.f32.mrb[0].mxu0
          %v4172 = vadd.f32 %v4027, %v4171
          %v4173 = vpop.f32.mrb[0].mxu0
          %4174 = vmatprep.mubr.f32.mxu0 0.0
          %4175 = vmatmul.mubr.f32.gmra.mrb[0].mxu0 %v3875
          %v4176 = vpop.f32.mrb[0].mxu0
          %v4177 = vadd.f32 %v4032, %v4176
          %v4178 = vpop.f32.mrb[0].mxu0
          %4179 = vmatprep.mubr.f32.mxu0 0.0
          %4180 = vmatmul.mubr.f32.gmra.mrb[0].mxu0 %v3876
          %v4181 = vpop.f32.mrb[0].mxu0
          %v4182 = vadd.f32 %v4037, %v4181
          %v4183 = vpop.f32.mrb[0].mxu0
          %4184 = vmatprep.mubr.f32.mxu0 0.0
          %4185 = vmatmul.mubr.f32.gmra.mrb[0].mxu0 %v3877
          %v4186 = vpop.f32.mrb[0].mxu0
          %v4187 = vadd.f32 %v4042, %v4186
          %v4188 = vpop.f32.mrb[0].mxu0
          %4189 = vmatprep.mubr.f32.mxu0 0.0
          %4190 = vmatmul.mubr.f32.gmra.mrb[0].mxu0 %v3878
          %v4191 = vpop.f32.mrb[0].mxu0
          %v4192 = vadd.f32 %v4047, %v4191
          %v4193 = vpop.f32.mrb[0].mxu0
          %4194 = vmatprep.mubr.f32.mxu0 0.0
          %4195 = vmatmul.mubr.f32.gmra.mrb[0].mxu0 %v3879
          %v4196 = vpop.f32.mrb[0].mxu0
          %v4197 = vadd.f32 %v4052, %v4196
          %v4198 = vpop.f32.mrb[0].mxu0
          %4199 = vmatprep.mubr.f32.mxu0 0.0
          %4200 = vmatmul.mubr.f32.gmra.mrb[0].mxu0 %v3880
          %v4201 = vpop.f32.mrb[0].mxu0
          %v4202 = vadd.f32 %v4057, %v4201
          %v4203 = vpop.f32.mrb[0].mxu0
          %4204 = vmatprep.mubr.f32.mxu0 0.0
          %4205 = vmatmul.mubr.f32.gmra.mrb[0].mxu0 %v3881
          %v4206 = vpop.f32.mrb[0].mxu0
          %v4207 = vadd.f32 %v4062, %v4206
          %v4208 = vpop.f32.mrb[0].mxu0
          %4209 = vmatprep.mubr.f32.mxu0 0.0
          %4210 = vmatmul.mubr.f32.gmra.mrb[0].mxu0 %v3882
          %v4211 = vpop.f32.mrb[0].mxu0
          %v4212 = vadd.f32 %v4067, %v4211
          %v4213 = vpop.f32.mrb[0].mxu0
          %4214 = vmatprep.mubr.f32.mxu0 0.0
          %4215 = vmatmul.mubr.f32.gmra.mrb[0].mxu0 %v3883
          %v4216 = vpop.f32.mrb[0].mxu0
          %v4217 = vadd.f32 %v4072, %v4216
          %v4218 = vpop.f32.mrb[0].mxu0
          %4219 = vmatprep.mubr.f32.mxu0 0.0
          %4220 = vmatmul.mubr.f32.gmra.mrb[0].mxu0 %v3884
          %v4221 = vpop.f32.mrb[0].mxu0
          %v4222 = vadd.f32 %v4077, %v4221
          %v4223 = vpop.f32.mrb[0].mxu0
          %4224 = vmatprep.mubr.f32.mxu0 0.0
          %4225 = vmatmul.mubr.f32.gmra.mrb[0].mxu0 %v3885
          %v4226 = vpop.f32.mrb[0].mxu0
          %v4227 = vadd.f32 %v4082, %v4226
          %v4228 = vpop.f32.mrb[0].mxu0
          %4229 = vdwg.mxu0
          %v4230 = vld [vmem:[#allocation2 + $0x9] sm:$0xff]
          %v4231 = vld [vmem:[#allocation2 + $0x21] sm:$0xff]
          %v4232 = vld [vmem:[#allocation2 + $0x39] sm:$0xff]
          %v4233 = vld [vmem:[#allocation2 + $0x51] sm:$0xff]
          %v4234 = vld [vmem:[#allocation2 + $0x69] sm:$0xff]
          %v4235 = vld [vmem:[#allocation2 + $0x81] sm:$0xff]
          %v4236 = vld [vmem:[#allocation2 + $0x99] sm:$0xff]
          %v4237 = vld [vmem:[#allocation2 + $0xb1] sm:$0xff]
          %v4238 = vld [vmem:[#allocation2 + $0xc9] sm:$0xff]
          %v4239 = vld [vmem:[#allocation2 + $0xe1] sm:$0xff]
          %v4240 = vld [vmem:[#allocation2 + $0xf9] sm:$0xff]
          %v4241 = vld [vmem:[#allocation2 + $0x111] sm:$0xff]
          %v4242 = vld [vmem:[#allocation2 + $0x129] sm:$0xff]
          %v4243 = vld [vmem:[#allocation2 + $0x141] sm:$0xff]
          %v4244 = vld [vmem:[#allocation2 + $0x159] sm:$0xff]
          %v4245 = vld [vmem:[#allocation2 + $0x171] sm:$0xff]
          %s4246 = sadd.s32 %s3886, 2
          %s4247 = smul.u32 %s4246, 128
          %s4248 = scalar_lea.vmem [#allocation7], %s4247
          %v4249 = vld [vmem:[%s4248] sm:$0xff]
          %v4250 = vld [vmem:[%s4248 + $0x8] sm:$0xff]
          %v4251 = vld [vmem:[%s4248 + $0x10] sm:$0xff]
          %v4252 = vld [vmem:[%s4248 + $0x18] sm:$0xff]
          %v4253 = vld [vmem:[%s4248 + $0x20] sm:$0xff]
          %v4254 = vld [vmem:[%s4248 + $0x28] sm:$0xff]
          %v4255 = vld [vmem:[%s4248 + $0x30] sm:$0xff]
          %v4256 = vld [vmem:[%s4248 + $0x38] sm:$0xff]
          %v4257 = vld [vmem:[%s4248 + $0x40] sm:$0xff]
          %v4258 = vld [vmem:[%s4248 + $0x48] sm:$0xff]
          %v4259 = vld [vmem:[%s4248 + $0x50] sm:$0xff]
          %v4260 = vld [vmem:[%s4248 + $0x58] sm:$0xff]
          %v4261 = vld [vmem:[%s4248 + $0x60] sm:$0xff]
          %v4262 = vld [vmem:[%s4248 + $0x68] sm:$0xff]
          %v4263 = vld [vmem:[%s4248 + $0x70] sm:$0xff]
          %v4264 = vld [vmem:[%s4248 + $0x78] sm:$0xff]
          %4265 = vmatprep.subr.mxu0 0.0
          %4266 = vmatpush1.msra.mxu0 %v4249
          %4267 = vmatprep.subr.mxu0 0.0
          %4268 = vmatpush1.msra.mxu0 %v4250
          %4269 = vmatprep.subr.mxu0 0.0
          %4270 = vmatpush1.msra.mxu0 %v4251
          %4271 = vmatprep.subr.mxu0 0.0
          %4272 = vmatpush1.msra.mxu0 %v4252
          %4273 = vmatprep.subr.mxu0 0.0
          %4274 = vmatpush1.msra.mxu0 %v4253
          %4275 = vmatprep.subr.mxu0 0.0
          %4276 = vmatpush1.msra.mxu0 %v4254
          %4277 = vmatprep.subr.mxu0 0.0
          %4278 = vmatpush1.msra.mxu0 %v4255
          %4279 = vmatprep.subr.mxu0 0.0
          %4280 = vmatpush1.msra.mxu0 %v4256
          %4281 = vmatprep.subr.mxu0 0.0
          %4282 = vmatpush1.msra.mxu0 %v4257
          %4283 = vmatprep.subr.mxu0 0.0
          %4284 = vmatpush1.msra.mxu0 %v4258
          %4285 = vmatprep.subr.mxu0 0.0
          %4286 = vmatpush1.msra.mxu0 %v4259
          %4287 = vmatprep.subr.mxu0 0.0
          %4288 = vmatpush1.msra.mxu0 %v4260
          %4289 = vmatprep.subr.mxu0 0.0
          %4290 = vmatpush1.msra.mxu0 %v4261
          %4291 = vmatprep.subr.mxu0 0.0
          %4292 = vmatpush1.msra.mxu0 %v4262
          %4293 = vmatprep.subr.mxu0 0.0
          %4294 = vmatpush1.msra.mxu0 %v4263
          %4295 = vmatprep.subr.mxu0 0.0
          %4296 = vmatpush1.msra.mxu0 %v4264
          %4297 = vmatprep.subr.mxu0 0.0
          %4298 = vmatpush1.msra.mxu0 0.0
          %4299 = vmatprep.subr.mxu0 0.0
          %4300 = vmatpush1.msra.mxu0 0.0
          %4301 = vmatprep.subr.mxu0 0.0
          %4302 = vmatpush1.msra.mxu0 0.0
          %4303 = vmatprep.subr.mxu0 0.0
          %4304 = vmatpush1.msra.mxu0 0.0
          %4305 = vmatprep.subr.mxu0 0.0
          %4306 = vmatpush1.msra.mxu0 0.0
          %4307 = vmatprep.subr.mxu0 0.0
          %4308 = vmatpush1.msra.mxu0 0.0
          %4309 = vmatprep.subr.mxu0 0.0
          %4310 = vmatpush1.msra.mxu0 0.0
          %4311 = vmatprep.subr.mxu0 0.0
          %4312 = vmatpush1.msra.mxu0 0.0
          %4313 = vmatprep.subr.mxu0 0.0
          %4314 = vmatpush1.msra.mxu0 0.0
          %4315 = vmatprep.subr.mxu0 0.0
          %4316 = vmatpush1.msra.mxu0 0.0
          %4317 = vmatprep.subr.mxu0 0.0
          %4318 = vmatpush1.msra.mxu0 0.0
          %4319 = vmatprep.subr.mxu0 0.0
          %4320 = vmatpush1.msra.mxu0 0.0
          %4321 = vmatprep.subr.mxu0 0.0
          %4322 = vmatpush1.msra.mxu0 0.0
          %4323 = vmatprep.subr.mxu0 0.0
          %4324 = vmatpush1.msra.mxu0 0.0
          %4325 = vmatprep.subr.mxu0 0.0
          %4326 = vmatpush1.msra.mxu0 0.0
          %4327 = vmatprep.subr.mxu0 0.0
          %4328 = vmatpush1.msra.mxu0 0.0
          %4329 = vmatprep.mubr.f32.mxu0 0.0
          %4330 = vmatmul.mubr.f32.gmra.mrb[0].mxu0 %v4230
          %v4331 = vpop.f32.mrb[0].mxu0
          %v4332 = vadd.f32 0.0, %v4331
          %v4333 = vpop.f32.mrb[0].mxu0
          %4334 = vmatprep.mubr.f32.mxu0 0.0
          %4335 = vmatmul.mubr.f32.gmra.mrb[0].mxu0 %v4231
          %v4336 = vpop.f32.mrb[0].mxu0
          %v4337 = vadd.f32 0.0, %v4336
          %v4338 = vpop.f32.mrb[0].mxu0
          %4339 = vmatprep.mubr.f32.mxu0 0.0
          %4340 = vmatmul.mubr.f32.gmra.mrb[0].mxu0 %v4232
          %v4341 = vpop.f32.mrb[0].mxu0
          %v4342 = vadd.f32 0.0, %v4341
          %v4343 = vpop.f32.mrb[0].mxu0
          %4344 = vmatprep.mubr.f32.mxu0 0.0
          %4345 = vmatmul.mubr.f32.gmra.mrb[0].mxu0 %v4233
          %v4346 = vpop.f32.mrb[0].mxu0
          %v4347 = vadd.f32 0.0, %v4346
          %v4348 = vpop.f32.mrb[0].mxu0
          %4349 = vmatprep.mubr.f32.mxu0 0.0
          %4350 = vmatmul.mubr.f32.gmra.mrb[0].mxu0 %v4234
          %v4351 = vpop.f32.mrb[0].mxu0
          %v4352 = vadd.f32 0.0, %v4351
          %v4353 = vpop.f32.mrb[0].mxu0
          %4354 = vmatprep.mubr.f32.mxu0 0.0
          %4355 = vmatmul.mubr.f32.gmra.mrb[0].mxu0 %v4235
          %v4356 = vpop.f32.mrb[0].mxu0
          %v4357 = vadd.f32 0.0, %v4356
          %v4358 = vpop.f32.mrb[0].mxu0
          %4359 = vmatprep.mubr.f32.mxu0 0.0
          %4360 = vmatmul.mubr.f32.gmra.mrb[0].mxu0 %v4236
          %v4361 = vpop.f32.mrb[0].mxu0
          %v4362 = vadd.f32 0.0, %v4361
          %v4363 = vpop.f32.mrb[0].mxu0
          %4364 = vmatprep.mubr.f32.mxu0 0.0
          %4365 = vmatmul.mubr.f32.gmra.mrb[0].mxu0 %v4237
          %v4366 = vpop.f32.mrb[0].mxu0
          %v4367 = vadd.f32 0.0, %v4366
          %v4368 = vpop.f32.mrb[0].mxu0
          %4369 = vmatprep.mubr.f32.mxu0 0.0
          %4370 = vmatmul.mubr.f32.gmra.mrb[0].mxu0 %v4238
          %v4371 = vpop.f32.mrb[0].mxu0
          %v4372 = vadd.f32 0.0, %v4371
          %v4373 = vpop.f32.mrb[0].mxu0
          %4374 = vmatprep.mubr.f32.mxu0 0.0
          %4375 = vmatmul.mubr.f32.gmra.mrb[0].mxu0 %v4239
          %v4376 = vpop.f32.mrb[0].mxu0
          %v4377 = vadd.f32 0.0, %v4376
          %v4378 = vpop.f32.mrb[0].mxu0
          %4379 = vmatprep.mubr.f32.mxu0 0.0
          %4380 = vmatmul.mubr.f32.gmra.mrb[0].mxu0 %v4240
          %v4381 = vpop.f32.mrb[0].mxu0
          %v4382 = vadd.f32 0.0, %v4381
          %v4383 = vpop.f32.mrb[0].mxu0
          %4384 = vmatprep.mubr.f32.mxu0 0.0
          %4385 = vmatmul.mubr.f32.gmra.mrb[0].mxu0 %v4241
          %v4386 = vpop.f32.mrb[0].mxu0
          %v4387 = vadd.f32 0.0, %v4386
          %v4388 = vpop.f32.mrb[0].mxu0
          %4389 = vmatprep.mubr.f32.mxu0 0.0
          %4390 = vmatmul.mubr.f32.gmra.mrb[0].mxu0 %v4242
          %v4391 = vpop.f32.mrb[0].mxu0
          %v4392 = vadd.f32 0.0, %v4391
          %v4393 = vpop.f32.mrb[0].mxu0
          %4394 = vmatprep.mubr.f32.mxu0 0.0
          %4395 = vmatmul.mubr.f32.gmra.mrb[0].mxu0 %v4243
          %v4396 = vpop.f32.mrb[0].mxu0
          %v4397 = vadd.f32 0.0, %v4396
          %v4398 = vpop.f32.mrb[0].mxu0
          %4399 = vmatprep.mubr.f32.mxu0 0.0
          %4400 = vmatmul.mubr.f32.gmra.mrb[0].mxu0 %v4244
          %v4401 = vpop.f32.mrb[0].mxu0
          %v4402 = vadd.f32 0.0, %v4401
          %v4403 = vpop.f32.mrb[0].mxu0
          %4404 = vmatprep.mubr.f32.mxu0 0.0
          %4405 = vmatmul.mubr.f32.gmra.mrb[0].mxu0 %v4245
          %v4406 = vpop.f32.mrb[0].mxu0
          %v4407 = vadd.f32 0.0, %v4406
          %v4408 = vpop.f32.mrb[0].mxu0
          %4409 = vdwg.mxu0
          %v4410 = vadd.f32 %v4152, %v4332
          %v4411 = vadd.f32 %v4157, %v4337
          %v4412 = vadd.f32 %v4162, %v4342
          %v4413 = vadd.f32 %v4167, %v4347
          %v4414 = vadd.f32 %v4172, %v4352
          %v4415 = vadd.f32 %v4177, %v4357
          %v4416 = vadd.f32 %v4182, %v4362
          %v4417 = vadd.f32 %v4187, %v4367
          %v4418 = vadd.f32 %v4192, %v4372
          %v4419 = vadd.f32 %v4197, %v4377
          %v4420 = vadd.f32 %v4202, %v4382
          %v4421 = vadd.f32 %v4207, %v4387
          %v4422 = vadd.f32 %v4212, %v4392
          %v4423 = vadd.f32 %v4217, %v4397
          %v4424 = vadd.f32 %v4222, %v4402
          %v4425 = vadd.f32 %v4227, %v4407
          %v4426 = vld [vmem:[%s223 + $0x7] sm:$0xff]
          %v4427 = vld [vmem:[%s223 + $0x1f] sm:$0xff]
          %v4428 = vld [vmem:[%s223 + $0x37] sm:$0xff]
          %v4429 = vld [vmem:[%s223 + $0x4f] sm:$0xff]
          %v4430 = vld [vmem:[%s223 + $0x67] sm:$0xff]
          %v4431 = vld [vmem:[%s223 + $0x7f] sm:$0xff]
          %v4432 = vld [vmem:[%s223 + $0x97] sm:$0xff]
          %v4433 = vld [vmem:[%s223 + $0xaf] sm:$0xff]
          %v4434 = vld [vmem:[%s223 + $0xc7] sm:$0xff]
          %v4435 = vld [vmem:[%s223 + $0xdf] sm:$0xff]
          %v4436 = vld [vmem:[%s223 + $0xf7] sm:$0xff]
          %v4437 = vld [vmem:[%s223 + $0x10f] sm:$0xff]
          %v4438 = vld [vmem:[%s223 + $0x127] sm:$0xff]
          %v4439 = vld [vmem:[%s223 + $0x13f] sm:$0xff]
          %v4440 = vld [vmem:[%s223 + $0x157] sm:$0xff]
          %v4441 = vld [vmem:[%s223 + $0x16f] sm:$0xff]
          %s4442 = sadd.s32 %s3886, 3
          %s4443 = smul.u32 %s4442, 128
          %s4444 = scalar_lea.vmem [#allocation7], %s4443
          %v4445 = vld [vmem:[%s4444] sm:$0xff]
          %v4446 = vld [vmem:[%s4444 + $0x8] sm:$0xff]
          %v4447 = vld [vmem:[%s4444 + $0x10] sm:$0xff]
          %v4448 = vld [vmem:[%s4444 + $0x18] sm:$0xff]
          %v4449 = vld [vmem:[%s4444 + $0x20] sm:$0xff]
          %v4450 = vld [vmem:[%s4444 + $0x28] sm:$0xff]
          %v4451 = vld [vmem:[%s4444 + $0x30] sm:$0xff]
          %v4452 = vld [vmem:[%s4444 + $0x38] sm:$0xff]
          %v4453 = vld [vmem:[%s4444 + $0x40] sm:$0xff]
          %v4454 = vld [vmem:[%s4444 + $0x48] sm:$0xff]
          %v4455 = vld [vmem:[%s4444 + $0x50] sm:$0xff]
          %v4456 = vld [vmem:[%s4444 + $0x58] sm:$0xff]
          %v4457 = vld [vmem:[%s4444 + $0x60] sm:$0xff]
          %v4458 = vld [vmem:[%s4444 + $0x68] sm:$0xff]
          %v4459 = vld [vmem:[%s4444 + $0x70] sm:$0xff]
          %v4460 = vld [vmem:[%s4444 + $0x78] sm:$0xff]
          %4461 = vmatprep.subr.mxu0 0.0
          %4462 = vmatpush1.msra.mxu0 %v4445
          %4463 = vmatprep.subr.mxu0 0.0
          %4464 = vmatpush1.msra.mxu0 %v4446
          %4465 = vmatprep.subr.mxu0 0.0
          %4466 = vmatpush1.msra.mxu0 %v4447
          %4467 = vmatprep.subr.mxu0 0.0
          %4468 = vmatpush1.msra.mxu0 %v4448
          %4469 = vmatprep.subr.mxu0 0.0
          %4470 = vmatpush1.msra.mxu0 %v4449
          %4471 = vmatprep.subr.mxu0 0.0
          %4472 = vmatpush1.msra.mxu0 %v4450
          %4473 = vmatprep.subr.mxu0 0.0
          %4474 = vmatpush1.msra.mxu0 %v4451
          %4475 = vmatprep.subr.mxu0 0.0
          %4476 = vmatpush1.msra.mxu0 %v4452
          %4477 = vmatprep.subr.mxu0 0.0
          %4478 = vmatpush1.msra.mxu0 %v4453
          %4479 = vmatprep.subr.mxu0 0.0
          %4480 = vmatpush1.msra.mxu0 %v4454
          %4481 = vmatprep.subr.mxu0 0.0
          %4482 = vmatpush1.msra.mxu0 %v4455
          %4483 = vmatprep.subr.mxu0 0.0
          %4484 = vmatpush1.msra.mxu0 %v4456
          %4485 = vmatprep.subr.mxu0 0.0
          %4486 = vmatpush1.msra.mxu0 %v4457
          %4487 = vmatprep.subr.mxu0 0.0
          %4488 = vmatpush1.msra.mxu0 %v4458
          %4489 = vmatprep.subr.mxu0 0.0
          %4490 = vmatpush1.msra.mxu0 %v4459
          %4491 = vmatprep.subr.mxu0 0.0
          %4492 = vmatpush1.msra.mxu0 %v4460
          %4493 = vmatprep.subr.mxu0 0.0
          %4494 = vmatpush1.msra.mxu0 0.0
          %4495 = vmatprep.subr.mxu0 0.0
          %4496 = vmatpush1.msra.mxu0 0.0
          %4497 = vmatprep.subr.mxu0 0.0
          %4498 = vmatpush1.msra.mxu0 0.0
          %4499 = vmatprep.subr.mxu0 0.0
          %4500 = vmatpush1.msra.mxu0 0.0
          %4501 = vmatprep.subr.mxu0 0.0
          %4502 = vmatpush1.msra.mxu0 0.0
          %4503 = vmatprep.subr.mxu0 0.0
          %4504 = vmatpush1.msra.mxu0 0.0
          %4505 = vmatprep.subr.mxu0 0.0
          %4506 = vmatpush1.msra.mxu0 0.0
          %4507 = vmatprep.subr.mxu0 0.0
          %4508 = vmatpush1.msra.mxu0 0.0
          %4509 = vmatprep.subr.mxu0 0.0
          %4510 = vmatpush1.msra.mxu0 0.0
          %4511 = vmatprep.subr.mxu0 0.0
          %4512 = vmatpush1.msra.mxu0 0.0
          %4513 = vmatprep.subr.mxu0 0.0
          %4514 = vmatpush1.msra.mxu0 0.0
          %4515 = vmatprep.subr.mxu0 0.0
          %4516 = vmatpush1.msra.mxu0 0.0
          %4517 = vmatprep.subr.mxu0 0.0
          %4518 = vmatpush1.msra.mxu0 0.0
          %4519 = vmatprep.subr.mxu0 0.0
          %4520 = vmatpush1.msra.mxu0 0.0
          %4521 = vmatprep.subr.mxu0 0.0
          %4522 = vmatpush1.msra.mxu0 0.0
          %4523 = vmatprep.subr.mxu0 0.0
          %4524 = vmatpush1.msra.mxu0 0.0
          %4525 = vmatprep.mubr.f32.mxu0 0.0
          %4526 = vmatmul.mubr.f32.gmra.mrb[0].mxu0 %v4426
          %v4527 = vpop.f32.mrb[0].mxu0
          %v4528 = vadd.f32 0.0, %v4527
          %v4529 = vpop.f32.mrb[0].mxu0
          %4530 = vmatprep.mubr.f32.mxu0 0.0
          %4531 = vmatmul.mubr.f32.gmra.mrb[0].mxu0 %v4427
          %v4532 = vpop.f32.mrb[0].mxu0
          %v4533 = vadd.f32 0.0, %v4532
          %v4534 = vpop.f32.mrb[0].mxu0
          %4535 = vmatprep.mubr.f32.mxu0 0.0
          %4536 = vmatmul.mubr.f32.gmra.mrb[0].mxu0 %v4428
          %v4537 = vpop.f32.mrb[0].mxu0
          %v4538 = vadd.f32 0.0, %v4537
          %v4539 = vpop.f32.mrb[0].mxu0
          %4540 = vmatprep.mubr.f32.mxu0 0.0
          %4541 = vmatmul.mubr.f32.gmra.mrb[0].mxu0 %v4429
          %v4542 = vpop.f32.mrb[0].mxu0
          %v4543 = vadd.f32 0.0, %v4542
          %v4544 = vpop.f32.mrb[0].mxu0
          %4545 = vmatprep.mubr.f32.mxu0 0.0
          %4546 = vmatmul.mubr.f32.gmra.mrb[0].mxu0 %v4430
          %v4547 = vpop.f32.mrb[0].mxu0
          %v4548 = vadd.f32 0.0, %v4547
          %v4549 = vpop.f32.mrb[0].mxu0
          %4550 = vmatprep.mubr.f32.mxu0 0.0
          %4551 = vmatmul.mubr.f32.gmra.mrb[0].mxu0 %v4431
          %v4552 = vpop.f32.mrb[0].mxu0
          %v4553 = vadd.f32 0.0, %v4552
          %v4554 = vpop.f32.mrb[0].mxu0
          %4555 = vmatprep.mubr.f32.mxu0 0.0
          %4556 = vmatmul.mubr.f32.gmra.mrb[0].mxu0 %v4432
          %v4557 = vpop.f32.mrb[0].mxu0
          %v4558 = vadd.f32 0.0, %v4557
          %v4559 = vpop.f32.mrb[0].mxu0
          %4560 = vmatprep.mubr.f32.mxu0 0.0
          %4561 = vmatmul.mubr.f32.gmra.mrb[0].mxu0 %v4433
          %v4562 = vpop.f32.mrb[0].mxu0
          %v4563 = vadd.f32 0.0, %v4562
          %v4564 = vpop.f32.mrb[0].mxu0
          %4565 = vmatprep.mubr.f32.mxu0 0.0
          %4566 = vmatmul.mubr.f32.gmra.mrb[0].mxu0 %v4434
          %v4567 = vpop.f32.mrb[0].mxu0
          %v4568 = vadd.f32 0.0, %v4567
          %v4569 = vpop.f32.mrb[0].mxu0
          %4570 = vmatprep.mubr.f32.mxu0 0.0
          %4571 = vmatmul.mubr.f32.gmra.mrb[0].mxu0 %v4435
          %v4572 = vpop.f32.mrb[0].mxu0
          %v4573 = vadd.f32 0.0, %v4572
          %v4574 = vpop.f32.mrb[0].mxu0
          %4575 = vmatprep.mubr.f32.mxu0 0.0
          %4576 = vmatmul.mubr.f32.gmra.mrb[0].mxu0 %v4436
          %v4577 = vpop.f32.mrb[0].mxu0
          %v4578 = vadd.f32 0.0, %v4577
          %v4579 = vpop.f32.mrb[0].mxu0
          %4580 = vmatprep.mubr.f32.mxu0 0.0
          %4581 = vmatmul.mubr.f32.gmra.mrb[0].mxu0 %v4437
          %v4582 = vpop.f32.mrb[0].mxu0
          %v4583 = vadd.f32 0.0, %v4582
          %v4584 = vpop.f32.mrb[0].mxu0
          %4585 = vmatprep.mubr.f32.mxu0 0.0
          %4586 = vmatmul.mubr.f32.gmra.mrb[0].mxu0 %v4438
          %v4587 = vpop.f32.mrb[0].mxu0
          %v4588 = vadd.f32 0.0, %v4587
          %v4589 = vpop.f32.mrb[0].mxu0
          %4590 = vmatprep.mubr.f32.mxu0 0.0
          %4591 = vmatmul.mubr.f32.gmra.mrb[0].mxu0 %v4439
          %v4592 = vpop.f32.mrb[0].mxu0
          %v4593 = vadd.f32 0.0, %v4592
          %v4594 = vpop.f32.mrb[0].mxu0
          %4595 = vmatprep.mubr.f32.mxu0 0.0
          %4596 = vmatmul.mubr.f32.gmra.mrb[0].mxu0 %v4440
          %v4597 = vpop.f32.mrb[0].mxu0
          %v4598 = vadd.f32 0.0, %v4597
          %v4599 = vpop.f32.mrb[0].mxu0
          %4600 = vmatprep.mubr.f32.mxu0 0.0
          %4601 = vmatmul.mubr.f32.gmra.mrb[0].mxu0 %v4441
          %v4602 = vpop.f32.mrb[0].mxu0
          %v4603 = vadd.f32 0.0, %v4602
          %v4604 = vpop.f32.mrb[0].mxu0
          %4605 = vdwg.mxu0
          %v4606 = vadd.f32 %v4410, %v4528
          %v4607 = vadd.f32 %v4411, %v4533
          %v4608 = vadd.f32 %v4412, %v4538
          %v4609 = vadd.f32 %v4413, %v4543
          %v4610 = vadd.f32 %v4414, %v4548
          %v4611 = vadd.f32 %v4415, %v4553
          %v4612 = vadd.f32 %v4416, %v4558
          %v4613 = vadd.f32 %v4417, %v4563
          %v4614 = vadd.f32 %v4418, %v4568
          %v4615 = vadd.f32 %v4419, %v4573
          %v4616 = vadd.f32 %v4420, %v4578
          %v4617 = vadd.f32 %v4421, %v4583
          %v4618 = vadd.f32 %v4422, %v4588
          %v4619 = vadd.f32 %v4423, %v4593
          %v4620 = vadd.f32 %v4424, %v4598
          %v4621 = vadd.f32 %v4425, %v4603
          %v4622 = vld [vmem:[%s223 + $0x8] sm:$0xff]
          %v4623 = vld [vmem:[%s223 + $0x20] sm:$0xff]
          %v4624 = vld [vmem:[%s223 + $0x38] sm:$0xff]
          %v4625 = vld [vmem:[%s223 + $0x50] sm:$0xff]
          %v4626 = vld [vmem:[%s223 + $0x68] sm:$0xff]
          %v4627 = vld [vmem:[%s223 + $0x80] sm:$0xff]
          %v4628 = vld [vmem:[%s223 + $0x98] sm:$0xff]
          %v4629 = vld [vmem:[%s223 + $0xb0] sm:$0xff]
          %v4630 = vld [vmem:[%s223 + $0xc8] sm:$0xff]
          %v4631 = vld [vmem:[%s223 + $0xe0] sm:$0xff]
          %v4632 = vld [vmem:[%s223 + $0xf8] sm:$0xff]
          %v4633 = vld [vmem:[%s223 + $0x110] sm:$0xff]
          %v4634 = vld [vmem:[%s223 + $0x128] sm:$0xff]
          %v4635 = vld [vmem:[%s223 + $0x140] sm:$0xff]
          %v4636 = vld [vmem:[%s223 + $0x158] sm:$0xff]
          %v4637 = vld [vmem:[%s223 + $0x170] sm:$0xff]
          %s4638 = sadd.s32 %s3886, 4
          %s4639 = smul.u32 %s4638, 128
          %s4640 = scalar_lea.vmem [#allocation7], %s4639
          %v4641 = vld [vmem:[%s4640] sm:$0xff]
          %v4642 = vld [vmem:[%s4640 + $0x8] sm:$0xff]
          %v4643 = vld [vmem:[%s4640 + $0x10] sm:$0xff]
          %v4644 = vld [vmem:[%s4640 + $0x18] sm:$0xff]
          %v4645 = vld [vmem:[%s4640 + $0x20] sm:$0xff]
          %v4646 = vld [vmem:[%s4640 + $0x28] sm:$0xff]
          %v4647 = vld [vmem:[%s4640 + $0x30] sm:$0xff]
          %v4648 = vld [vmem:[%s4640 + $0x38] sm:$0xff]
          %v4649 = vld [vmem:[%s4640 + $0x40] sm:$0xff]
          %v4650 = vld [vmem:[%s4640 + $0x48] sm:$0xff]
          %v4651 = vld [vmem:[%s4640 + $0x50] sm:$0xff]
          %v4652 = vld [vmem:[%s4640 + $0x58] sm:$0xff]
          %v4653 = vld [vmem:[%s4640 + $0x60] sm:$0xff]
          %v4654 = vld [vmem:[%s4640 + $0x68] sm:$0xff]
          %v4655 = vld [vmem:[%s4640 + $0x70] sm:$0xff]
          %v4656 = vld [vmem:[%s4640 + $0x78] sm:$0xff]
          %4657 = vmatprep.subr.mxu0 0.0
          %4658 = vmatpush1.msra.mxu0 %v4641
          %4659 = vmatprep.subr.mxu0 0.0
          %4660 = vmatpush1.msra.mxu0 %v4642
          %4661 = vmatprep.subr.mxu0 0.0
          %4662 = vmatpush1.msra.mxu0 %v4643
          %4663 = vmatprep.subr.mxu0 0.0
          %4664 = vmatpush1.msra.mxu0 %v4644
          %4665 = vmatprep.subr.mxu0 0.0
          %4666 = vmatpush1.msra.mxu0 %v4645
          %4667 = vmatprep.subr.mxu0 0.0
          %4668 = vmatpush1.msra.mxu0 %v4646
          %4669 = vmatprep.subr.mxu0 0.0
          %4670 = vmatpush1.msra.mxu0 %v4647
          %4671 = vmatprep.subr.mxu0 0.0
          %4672 = vmatpush1.msra.mxu0 %v4648
          %4673 = vmatprep.subr.mxu0 0.0
          %4674 = vmatpush1.msra.mxu0 %v4649
          %4675 = vmatprep.subr.mxu0 0.0
          %4676 = vmatpush1.msra.mxu0 %v4650
          %4677 = vmatprep.subr.mxu0 0.0
          %4678 = vmatpush1.msra.mxu0 %v4651
          %4679 = vmatprep.subr.mxu0 0.0
          %4680 = vmatpush1.msra.mxu0 %v4652
          %4681 = vmatprep.subr.mxu0 0.0
          %4682 = vmatpush1.msra.mxu0 %v4653
          %4683 = vmatprep.subr.mxu0 0.0
          %4684 = vmatpush1.msra.mxu0 %v4654
          %4685 = vmatprep.subr.mxu0 0.0
          %4686 = vmatpush1.msra.mxu0 %v4655
          %4687 = vmatprep.subr.mxu0 0.0
          %4688 = vmatpush1.msra.mxu0 %v4656
          %4689 = vmatprep.subr.mxu0 0.0
          %4690 = vmatpush1.msra.mxu0 0.0
          %4691 = vmatprep.subr.mxu0 0.0
          %4692 = vmatpush1.msra.mxu0 0.0
          %4693 = vmatprep.subr.mxu0 0.0
          %4694 = vmatpush1.msra.mxu0 0.0
          %4695 = vmatprep.subr.mxu0 0.0
          %4696 = vmatpush1.msra.mxu0 0.0
          %4697 = vmatprep.subr.mxu0 0.0
          %4698 = vmatpush1.msra.mxu0 0.0
          %4699 = vmatprep.subr.mxu0 0.0
          %4700 = vmatpush1.msra.mxu0 0.0
          %4701 = vmatprep.subr.mxu0 0.0
          %4702 = vmatpush1.msra.mxu0 0.0
          %4703 = vmatprep.subr.mxu0 0.0
          %4704 = vmatpush1.msra.mxu0 0.0
          %4705 = vmatprep.subr.mxu0 0.0
          %4706 = vmatpush1.msra.mxu0 0.0
          %4707 = vmatprep.subr.mxu0 0.0
          %4708 = vmatpush1.msra.mxu0 0.0
          %4709 = vmatprep.subr.mxu0 0.0
          %4710 = vmatpush1.msra.mxu0 0.0
          %4711 = vmatprep.subr.mxu0 0.0
          %4712 = vmatpush1.msra.mxu0 0.0
          %4713 = vmatprep.subr.mxu0 0.0
          %4714 = vmatpush1.msra.mxu0 0.0
          %4715 = vmatprep.subr.mxu0 0.0
          %4716 = vmatpush1.msra.mxu0 0.0
          %4717 = vmatprep.subr.mxu0 0.0
          %4718 = vmatpush1.msra.mxu0 0.0
          %4719 = vmatprep.subr.mxu0 0.0
          %4720 = vmatpush1.msra.mxu0 0.0
          %4721 = vmatprep.mubr.f32.mxu0 0.0
          %4722 = vmatmul.mubr.f32.gmra.mrb[0].mxu0 %v4622
          %v4723 = vpop.f32.mrb[0].mxu0
          %v4724 = vadd.f32 0.0, %v4723
          %v4725 = vpop.f32.mrb[0].mxu0
          %4726 = vmatprep.mubr.f32.mxu0 0.0
          %4727 = vmatmul.mubr.f32.gmra.mrb[0].mxu0 %v4623
          %v4728 = vpop.f32.mrb[0].mxu0
          %v4729 = vadd.f32 0.0, %v4728
          %v4730 = vpop.f32.mrb[0].mxu0
          %4731 = vmatprep.mubr.f32.mxu0 0.0
          %4732 = vmatmul.mubr.f32.gmra.mrb[0].mxu0 %v4624
          %v4733 = vpop.f32.mrb[0].mxu0
          %v4734 = vadd.f32 0.0, %v4733
          %v4735 = vpop.f32.mrb[0].mxu0
          %4736 = vmatprep.mubr.f32.mxu0 0.0
          %4737 = vmatmul.mubr.f32.gmra.mrb[0].mxu0 %v4625
          %v4738 = vpop.f32.mrb[0].mxu0
          %v4739 = vadd.f32 0.0, %v4738
          %v4740 = vpop.f32.mrb[0].mxu0
          %4741 = vmatprep.mubr.f32.mxu0 0.0
          %4742 = vmatmul.mubr.f32.gmra.mrb[0].mxu0 %v4626
          %v4743 = vpop.f32.mrb[0].mxu0
          %v4744 = vadd.f32 0.0, %v4743
          %v4745 = vpop.f32.mrb[0].mxu0
          %4746 = vmatprep.mubr.f32.mxu0 0.0
          %4747 = vmatmul.mubr.f32.gmra.mrb[0].mxu0 %v4627
          %v4748 = vpop.f32.mrb[0].mxu0
          %v4749 = vadd.f32 0.0, %v4748
          %v4750 = vpop.f32.mrb[0].mxu0
          %4751 = vmatprep.mubr.f32.mxu0 0.0
          %4752 = vmatmul.mubr.f32.gmra.mrb[0].mxu0 %v4628
          %v4753 = vpop.f32.mrb[0].mxu0
          %v4754 = vadd.f32 0.0, %v4753
          %v4755 = vpop.f32.mrb[0].mxu0
          %4756 = vmatprep.mubr.f32.mxu0 0.0
          %4757 = vmatmul.mubr.f32.gmra.mrb[0].mxu0 %v4629
          %v4758 = vpop.f32.mrb[0].mxu0
          %v4759 = vadd.f32 0.0, %v4758
          %v4760 = vpop.f32.mrb[0].mxu0
          %4761 = vmatprep.mubr.f32.mxu0 0.0
          %4762 = vmatmul.mubr.f32.gmra.mrb[0].mxu0 %v4630
          %v4763 = vpop.f32.mrb[0].mxu0
          %v4764 = vadd.f32 0.0, %v4763
          %v4765 = vpop.f32.mrb[0].mxu0
          %4766 = vmatprep.mubr.f32.mxu0 0.0
          %4767 = vmatmul.mubr.f32.gmra.mrb[0].mxu0 %v4631
          %v4768 = vpop.f32.mrb[0].mxu0
          %v4769 = vadd.f32 0.0, %v4768
          %v4770 = vpop.f32.mrb[0].mxu0
          %4771 = vmatprep.mubr.f32.mxu0 0.0
          %4772 = vmatmul.mubr.f32.gmra.mrb[0].mxu0 %v4632
          %v4773 = vpop.f32.mrb[0].mxu0
          %v4774 = vadd.f32 0.0, %v4773
          %v4775 = vpop.f32.mrb[0].mxu0
          %4776 = vmatprep.mubr.f32.mxu0 0.0
          %4777 = vmatmul.mubr.f32.gmra.mrb[0].mxu0 %v4633
          %v4778 = vpop.f32.mrb[0].mxu0
          %v4779 = vadd.f32 0.0, %v4778
          %v4780 = vpop.f32.mrb[0].mxu0
          %4781 = vmatprep.mubr.f32.mxu0 0.0
          %4782 = vmatmul.mubr.f32.gmra.mrb[0].mxu0 %v4634
          %v4783 = vpop.f32.mrb[0].mxu0
          %v4784 = vadd.f32 0.0, %v4783
          %v4785 = vpop.f32.mrb[0].mxu0
          %4786 = vmatprep.mubr.f32.mxu0 0.0
          %4787 = vmatmul.mubr.f32.gmra.mrb[0].mxu0 %v4635
          %v4788 = vpop.f32.mrb[0].mxu0
          %v4789 = vadd.f32 0.0, %v4788
          %v4790 = vpop.f32.mrb[0].mxu0
          %4791 = vmatprep.mubr.f32.mxu0 0.0
          %4792 = vmatmul.mubr.f32.gmra.mrb[0].mxu0 %v4636
          %v4793 = vpop.f32.mrb[0].mxu0
          %v4794 = vadd.f32 0.0, %v4793
          %v4795 = vpop.f32.mrb[0].mxu0
          %4796 = vmatprep.mubr.f32.mxu0 0.0
          %4797 = vmatmul.mubr.f32.gmra.mrb[0].mxu0 %v4637
          %v4798 = vpop.f32.mrb[0].mxu0
          %v4799 = vadd.f32 0.0, %v4798
          %v4800 = vpop.f32.mrb[0].mxu0
          %4801 = vdwg.mxu0
          %v4802 = vadd.f32 %v4606, %v4724
          %v4803 = vadd.f32 %v4607, %v4729
          %v4804 = vadd.f32 %v4608, %v4734
          %v4805 = vadd.f32 %v4609, %v4739
          %v4806 = vadd.f32 %v4610, %v4744
          %v4807 = vadd.f32 %v4611, %v4749
          %v4808 = vadd.f32 %v4612, %v4754
          %v4809 = vadd.f32 %v4613, %v4759
          %v4810 = vadd.f32 %v4614, %v4764
          %v4811 = vadd.f32 %v4615, %v4769
          %v4812 = vadd.f32 %v4616, %v4774
          %v4813 = vadd.f32 %v4617, %v4779
          %v4814 = vadd.f32 %v4618, %v4784
          %v4815 = vadd.f32 %v4619, %v4789
          %v4816 = vadd.f32 %v4620, %v4794
          %v4817 = vadd.f32 %v4621, %v4799
          %v4818 = vld [vmem:[%s223 + $0x9] sm:$0xff]
          %v4819 = vld [vmem:[%s223 + $0x21] sm:$0xff]
          %v4820 = vld [vmem:[%s223 + $0x39] sm:$0xff]
          %v4821 = vld [vmem:[%s223 + $0x51] sm:$0xff]
          %v4822 = vld [vmem:[%s223 + $0x69] sm:$0xff]
          %v4823 = vld [vmem:[%s223 + $0x81] sm:$0xff]
          %v4824 = vld [vmem:[%s223 + $0x99] sm:$0xff]
          %v4825 = vld [vmem:[%s223 + $0xb1] sm:$0xff]
          %v4826 = vld [vmem:[%s223 + $0xc9] sm:$0xff]
          %v4827 = vld [vmem:[%s223 + $0xe1] sm:$0xff]
          %v4828 = vld [vmem:[%s223 + $0xf9] sm:$0xff]
          %v4829 = vld [vmem:[%s223 + $0x111] sm:$0xff]
          %v4830 = vld [vmem:[%s223 + $0x129] sm:$0xff]
          %v4831 = vld [vmem:[%s223 + $0x141] sm:$0xff]
          %v4832 = vld [vmem:[%s223 + $0x159] sm:$0xff]
          %v4833 = vld [vmem:[%s223 + $0x171] sm:$0xff]
          %s4834 = sadd.s32 %s3886, 5
          %s4835 = smul.u32 %s4834, 128
          %s4836 = scalar_lea.vmem [#allocation7], %s4835
          %v4837 = vld [vmem:[%s4836] sm:$0xff]
          %v4838 = vld [vmem:[%s4836 + $0x8] sm:$0xff]
          %v4839 = vld [vmem:[%s4836 + $0x10] sm:$0xff]
          %v4840 = vld [vmem:[%s4836 + $0x18] sm:$0xff]
          %v4841 = vld [vmem:[%s4836 + $0x20] sm:$0xff]
          %v4842 = vld [vmem:[%s4836 + $0x28] sm:$0xff]
          %v4843 = vld [vmem:[%s4836 + $0x30] sm:$0xff]
          %v4844 = vld [vmem:[%s4836 + $0x38] sm:$0xff]
          %v4845 = vld [vmem:[%s4836 + $0x40] sm:$0xff]
          %v4846 = vld [vmem:[%s4836 + $0x48] sm:$0xff]
          %v4847 = vld [vmem:[%s4836 + $0x50] sm:$0xff]
          %v4848 = vld [vmem:[%s4836 + $0x58] sm:$0xff]
          %v4849 = vld [vmem:[%s4836 + $0x60] sm:$0xff]
          %v4850 = vld [vmem:[%s4836 + $0x68] sm:$0xff]
          %v4851 = vld [vmem:[%s4836 + $0x70] sm:$0xff]
          %v4852 = vld [vmem:[%s4836 + $0x78] sm:$0xff]
          %4853 = vmatprep.subr.mxu0 0.0
          %4854 = vmatpush1.msra.mxu0 %v4837
          %4855 = vmatprep.subr.mxu0 0.0
          %4856 = vmatpush1.msra.mxu0 %v4838
          %4857 = vmatprep.subr.mxu0 0.0
          %4858 = vmatpush1.msra.mxu0 %v4839
          %4859 = vmatprep.subr.mxu0 0.0
          %4860 = vmatpush1.msra.mxu0 %v4840
          %4861 = vmatprep.subr.mxu0 0.0
          %4862 = vmatpush1.msra.mxu0 %v4841
          %4863 = vmatprep.subr.mxu0 0.0
          %4864 = vmatpush1.msra.mxu0 %v4842
          %4865 = vmatprep.subr.mxu0 0.0
          %4866 = vmatpush1.msra.mxu0 %v4843
          %4867 = vmatprep.subr.mxu0 0.0
          %4868 = vmatpush1.msra.mxu0 %v4844
          %4869 = vmatprep.subr.mxu0 0.0
          %4870 = vmatpush1.msra.mxu0 %v4845
          %4871 = vmatprep.subr.mxu0 0.0
          %4872 = vmatpush1.msra.mxu0 %v4846
          %4873 = vmatprep.subr.mxu0 0.0
          %4874 = vmatpush1.msra.mxu0 %v4847
          %4875 = vmatprep.subr.mxu0 0.0
          %4876 = vmatpush1.msra.mxu0 %v4848
          %4877 = vmatprep.subr.mxu0 0.0
          %4878 = vmatpush1.msra.mxu0 %v4849
          %4879 = vmatprep.subr.mxu0 0.0
          %4880 = vmatpush1.msra.mxu0 %v4850
          %4881 = vmatprep.subr.mxu0 0.0
          %4882 = vmatpush1.msra.mxu0 %v4851
          %4883 = vmatprep.subr.mxu0 0.0
          %4884 = vmatpush1.msra.mxu0 %v4852
          %4885 = vmatprep.subr.mxu0 0.0
          %4886 = vmatpush1.msra.mxu0 0.0
          %4887 = vmatprep.subr.mxu0 0.0
          %4888 = vmatpush1.msra.mxu0 0.0
          %4889 = vmatprep.subr.mxu0 0.0
          %4890 = vmatpush1.msra.mxu0 0.0
          %4891 = vmatprep.subr.mxu0 0.0
          %4892 = vmatpush1.msra.mxu0 0.0
          %4893 = vmatprep.subr.mxu0 0.0
          %4894 = vmatpush1.msra.mxu0 0.0
          %4895 = vmatprep.subr.mxu0 0.0
          %4896 = vmatpush1.msra.mxu0 0.0
          %4897 = vmatprep.subr.mxu0 0.0
          %4898 = vmatpush1.msra.mxu0 0.0
          %4899 = vmatprep.subr.mxu0 0.0
          %4900 = vmatpush1.msra.mxu0 0.0
          %4901 = vmatprep.subr.mxu0 0.0
          %4902 = vmatpush1.msra.mxu0 0.0
          %4903 = vmatprep.subr.mxu0 0.0
          %4904 = vmatpush1.msra.mxu0 0.0
          %4905 = vmatprep.subr.mxu0 0.0
          %4906 = vmatpush1.msra.mxu0 0.0
          %4907 = vmatprep.subr.mxu0 0.0
          %4908 = vmatpush1.msra.mxu0 0.0
          %4909 = vmatprep.subr.mxu0 0.0
          %4910 = vmatpush1.msra.mxu0 0.0
          %4911 = vmatprep.subr.mxu0 0.0
          %4912 = vmatpush1.msra.mxu0 0.0
          %4913 = vmatprep.subr.mxu0 0.0
          %4914 = vmatpush1.msra.mxu0 0.0
          %4915 = vmatprep.subr.mxu0 0.0
          %4916 = vmatpush1.msra.mxu0 0.0
          %4917 = vmatprep.mubr.f32.mxu0 0.0
          %4918 = vmatmul.mubr.f32.gmra.mrb[0].mxu0 %v4818
          %v4919 = vpop.f32.mrb[0].mxu0
          %v4920 = vadd.f32 0.0, %v4919
          %v4921 = vpop.f32.mrb[0].mxu0
          %4922 = vmatprep.mubr.f32.mxu0 0.0
          %4923 = vmatmul.mubr.f32.gmra.mrb[0].mxu0 %v4819
          %v4924 = vpop.f32.mrb[0].mxu0
          %v4925 = vadd.f32 0.0, %v4924
          %v4926 = vpop.f32.mrb[0].mxu0
          %4927 = vmatprep.mubr.f32.mxu0 0.0
          %4928 = vmatmul.mubr.f32.gmra.mrb[0].mxu0 %v4820
          %v4929 = vpop.f32.mrb[0].mxu0
          %v4930 = vadd.f32 0.0, %v4929
          %v4931 = vpop.f32.mrb[0].mxu0
          %4932 = vmatprep.mubr.f32.mxu0 0.0
          %4933 = vmatmul.mubr.f32.gmra.mrb[0].mxu0 %v4821
          %v4934 = vpop.f32.mrb[0].mxu0
          %v4935 = vadd.f32 0.0, %v4934
          %v4936 = vpop.f32.mrb[0].mxu0
          %4937 = vmatprep.mubr.f32.mxu0 0.0
          %4938 = vmatmul.mubr.f32.gmra.mrb[0].mxu0 %v4822
          %v4939 = vpop.f32.mrb[0].mxu0
          %v4940 = vadd.f32 0.0, %v4939
          %v4941 = vpop.f32.mrb[0].mxu0
          %4942 = vmatprep.mubr.f32.mxu0 0.0
          %4943 = vmatmul.mubr.f32.gmra.mrb[0].mxu0 %v4823
          %v4944 = vpop.f32.mrb[0].mxu0
          %v4945 = vadd.f32 0.0, %v4944
          %v4946 = vpop.f32.mrb[0].mxu0
          %4947 = vmatprep.mubr.f32.mxu0 0.0
          %4948 = vmatmul.mubr.f32.gmra.mrb[0].mxu0 %v4824
          %v4949 = vpop.f32.mrb[0].mxu0
          %v4950 = vadd.f32 0.0, %v4949
          %v4951 = vpop.f32.mrb[0].mxu0
          %4952 = vmatprep.mubr.f32.mxu0 0.0
          %4953 = vmatmul.mubr.f32.gmra.mrb[0].mxu0 %v4825
          %v4954 = vpop.f32.mrb[0].mxu0
          %v4955 = vadd.f32 0.0, %v4954
          %v4956 = vpop.f32.mrb[0].mxu0
          %4957 = vmatprep.mubr.f32.mxu0 0.0
          %4958 = vmatmul.mubr.f32.gmra.mrb[0].mxu0 %v4826
          %v4959 = vpop.f32.mrb[0].mxu0
          %v4960 = vadd.f32 0.0, %v4959
          %v4961 = vpop.f32.mrb[0].mxu0
          %4962 = vmatprep.mubr.f32.mxu0 0.0
          %4963 = vmatmul.mubr.f32.gmra.mrb[0].mxu0 %v4827
          %v4964 = vpop.f32.mrb[0].mxu0
          %v4965 = vadd.f32 0.0, %v4964
          %v4966 = vpop.f32.mrb[0].mxu0
          %4967 = vmatprep.mubr.f32.mxu0 0.0
          %4968 = vmatmul.mubr.f32.gmra.mrb[0].mxu0 %v4828
          %v4969 = vpop.f32.mrb[0].mxu0
          %v4970 = vadd.f32 0.0, %v4969
          %v4971 = vpop.f32.mrb[0].mxu0
          %4972 = vmatprep.mubr.f32.mxu0 0.0
          %4973 = vmatmul.mubr.f32.gmra.mrb[0].mxu0 %v4829
          %v4974 = vpop.f32.mrb[0].mxu0
          %v4975 = vadd.f32 0.0, %v4974
          %v4976 = vpop.f32.mrb[0].mxu0
          %4977 = vmatprep.mubr.f32.mxu0 0.0
          %4978 = vmatmul.mubr.f32.gmra.mrb[0].mxu0 %v4830
          %v4979 = vpop.f32.mrb[0].mxu0
          %v4980 = vadd.f32 0.0, %v4979
          %v4981 = vpop.f32.mrb[0].mxu0
          %4982 = vmatprep.mubr.f32.mxu0 0.0
          %4983 = vmatmul.mubr.f32.gmra.mrb[0].mxu0 %v4831
          %v4984 = vpop.f32.mrb[0].mxu0
          %v4985 = vadd.f32 0.0, %v4984
          %v4986 = vpop.f32.mrb[0].mxu0
          %4987 = vmatprep.mubr.f32.mxu0 0.0
          %4988 = vmatmul.mubr.f32.gmra.mrb[0].mxu0 %v4832
          %v4989 = vpop.f32.mrb[0].mxu0
          %v4990 = vadd.f32 0.0, %v4989
          %v4991 = vpop.f32.mrb[0].mxu0
          %4992 = vmatprep.mubr.f32.mxu0 0.0
          %4993 = vmatmul.mubr.f32.gmra.mrb[0].mxu0 %v4833
          %v4994 = vpop.f32.mrb[0].mxu0
          %v4995 = vadd.f32 0.0, %v4994
          %v4996 = vpop.f32.mrb[0].mxu0
          %4997 = vdwg.mxu0
          %v4998 = vadd.f32 %v4802, %v4920
          %v4999 = vadd.f32 %v4803, %v4925
          %v5000 = vadd.f32 %v4804, %v4930
          %v5001 = vadd.f32 %v4805, %v4935
          %v5002 = vadd.f32 %v4806, %v4940
          %v5003 = vadd.f32 %v4807, %v4945
          %v5004 = vadd.f32 %v4808, %v4950
          %v5005 = vadd.f32 %v4809, %v4955
          %v5006 = vadd.f32 %v4810, %v4960
          %v5007 = vadd.f32 %v4811, %v4965
          %v5008 = vadd.f32 %v4812, %v4970
          %v5009 = vadd.f32 %v4813, %v4975
          %v5010 = vadd.f32 %v4814, %v4980
          %v5011 = vadd.f32 %v4815, %v4985
          %v5012 = vadd.f32 %v4816, %v4990
          %v5013 = vadd.f32 %v4817, %v4995
          %v5014 = vld [vmem:[%s1419 + $0x7] sm:$0xff]
          %v5015 = vld [vmem:[%s1419 + $0x1f] sm:$0xff]
          %v5016 = vld [vmem:[%s1419 + $0x37] sm:$0xff]
          %v5017 = vld [vmem:[%s1419 + $0x4f] sm:$0xff]
          %v5018 = vld [vmem:[%s1419 + $0x67] sm:$0xff]
          %v5019 = vld [vmem:[%s1419 + $0x7f] sm:$0xff]
          %v5020 = vld [vmem:[%s1419 + $0x97] sm:$0xff]
          %v5021 = vld [vmem:[%s1419 + $0xaf] sm:$0xff]
          %v5022 = vld [vmem:[%s1419 + $0xc7] sm:$0xff]
          %v5023 = vld [vmem:[%s1419 + $0xdf] sm:$0xff]
          %v5024 = vld [vmem:[%s1419 + $0xf7] sm:$0xff]
          %v5025 = vld [vmem:[%s1419 + $0x10f] sm:$0xff]
          %v5026 = vld [vmem:[%s1419 + $0x127] sm:$0xff]
          %v5027 = vld [vmem:[%s1419 + $0x13f] sm:$0xff]
          %v5028 = vld [vmem:[%s1419 + $0x157] sm:$0xff]
          %v5029 = vld [vmem:[%s1419 + $0x16f] sm:$0xff]
          %s5030 = sadd.s32 %s3886, 6
          %s5031 = smul.u32 %s5030, 128
          %s5032 = scalar_lea.vmem [#allocation7], %s5031
          %v5033 = vld [vmem:[%s5032] sm:$0xff]
          %v5034 = vld [vmem:[%s5032 + $0x8] sm:$0xff]
          %v5035 = vld [vmem:[%s5032 + $0x10] sm:$0xff]
          %v5036 = vld [vmem:[%s5032 + $0x18] sm:$0xff]
          %v5037 = vld [vmem:[%s5032 + $0x20] sm:$0xff]
          %v5038 = vld [vmem:[%s5032 + $0x28] sm:$0xff]
          %v5039 = vld [vmem:[%s5032 + $0x30] sm:$0xff]
          %v5040 = vld [vmem:[%s5032 + $0x38] sm:$0xff]
          %v5041 = vld [vmem:[%s5032 + $0x40] sm:$0xff]
          %v5042 = vld [vmem:[%s5032 + $0x48] sm:$0xff]
          %v5043 = vld [vmem:[%s5032 + $0x50] sm:$0xff]
          %v5044 = vld [vmem:[%s5032 + $0x58] sm:$0xff]
          %v5045 = vld [vmem:[%s5032 + $0x60] sm:$0xff]
          %v5046 = vld [vmem:[%s5032 + $0x68] sm:$0xff]
          %v5047 = vld [vmem:[%s5032 + $0x70] sm:$0xff]
          %v5048 = vld [vmem:[%s5032 + $0x78] sm:$0xff]
          %5049 = vmatprep.subr.mxu0 0.0
          %5050 = vmatpush1.msra.mxu0 %v5033
          %5051 = vmatprep.subr.mxu0 0.0
          %5052 = vmatpush1.msra.mxu0 %v5034
          %5053 = vmatprep.subr.mxu0 0.0
          %5054 = vmatpush1.msra.mxu0 %v5035
          %5055 = vmatprep.subr.mxu0 0.0
          %5056 = vmatpush1.msra.mxu0 %v5036
          %5057 = vmatprep.subr.mxu0 0.0
          %5058 = vmatpush1.msra.mxu0 %v5037
          %5059 = vmatprep.subr.mxu0 0.0
          %5060 = vmatpush1.msra.mxu0 %v5038
          %5061 = vmatprep.subr.mxu0 0.0
          %5062 = vmatpush1.msra.mxu0 %v5039
          %5063 = vmatprep.subr.mxu0 0.0
          %5064 = vmatpush1.msra.mxu0 %v5040
          %5065 = vmatprep.subr.mxu0 0.0
          %5066 = vmatpush1.msra.mxu0 %v5041
          %5067 = vmatprep.subr.mxu0 0.0
          %5068 = vmatpush1.msra.mxu0 %v5042
          %5069 = vmatprep.subr.mxu0 0.0
          %5070 = vmatpush1.msra.mxu0 %v5043
          %5071 = vmatprep.subr.mxu0 0.0
          %5072 = vmatpush1.msra.mxu0 %v5044
          %5073 = vmatprep.subr.mxu0 0.0
          %5074 = vmatpush1.msra.mxu0 %v5045
          %5075 = vmatprep.subr.mxu0 0.0
          %5076 = vmatpush1.msra.mxu0 %v5046
          %5077 = vmatprep.subr.mxu0 0.0
          %5078 = vmatpush1.msra.mxu0 %v5047
          %5079 = vmatprep.subr.mxu0 0.0
          %5080 = vmatpush1.msra.mxu0 %v5048
          %5081 = vmatprep.subr.mxu0 0.0
          %5082 = vmatpush1.msra.mxu0 0.0
          %5083 = vmatprep.subr.mxu0 0.0
          %5084 = vmatpush1.msra.mxu0 0.0
          %5085 = vmatprep.subr.mxu0 0.0
          %5086 = vmatpush1.msra.mxu0 0.0
          %5087 = vmatprep.subr.mxu0 0.0
          %5088 = vmatpush1.msra.mxu0 0.0
          %5089 = vmatprep.subr.mxu0 0.0
          %5090 = vmatpush1.msra.mxu0 0.0
          %5091 = vmatprep.subr.mxu0 0.0
          %5092 = vmatpush1.msra.mxu0 0.0
          %5093 = vmatprep.subr.mxu0 0.0
          %5094 = vmatpush1.msra.mxu0 0.0
          %5095 = vmatprep.subr.mxu0 0.0
          %5096 = vmatpush1.msra.mxu0 0.0
          %5097 = vmatprep.subr.mxu0 0.0
          %5098 = vmatpush1.msra.mxu0 0.0
          %5099 = vmatprep.subr.mxu0 0.0
          %5100 = vmatpush1.msra.mxu0 0.0
          %5101 = vmatprep.subr.mxu0 0.0
          %5102 = vmatpush1.msra.mxu0 0.0
          %5103 = vmatprep.subr.mxu0 0.0
          %5104 = vmatpush1.msra.mxu0 0.0
          %5105 = vmatprep.subr.mxu0 0.0
          %5106 = vmatpush1.msra.mxu0 0.0
          %5107 = vmatprep.subr.mxu0 0.0
          %5108 = vmatpush1.msra.mxu0 0.0
          %5109 = vmatprep.subr.mxu0 0.0
          %5110 = vmatpush1.msra.mxu0 0.0
          %5111 = vmatprep.subr.mxu0 0.0
          %5112 = vmatpush1.msra.mxu0 0.0
          %5113 = vmatprep.mubr.f32.mxu0 0.0
          %5114 = vmatmul.mubr.f32.gmra.mrb[0].mxu0 %v5014
          %v5115 = vpop.f32.mrb[0].mxu0
          %v5116 = vadd.f32 0.0, %v5115
          %v5117 = vpop.f32.mrb[0].mxu0
          %5118 = vmatprep.mubr.f32.mxu0 0.0
          %5119 = vmatmul.mubr.f32.gmra.mrb[0].mxu0 %v5015
          %v5120 = vpop.f32.mrb[0].mxu0
          %v5121 = vadd.f32 0.0, %v5120
          %v5122 = vpop.f32.mrb[0].mxu0
          %5123 = vmatprep.mubr.f32.mxu0 0.0
          %5124 = vmatmul.mubr.f32.gmra.mrb[0].mxu0 %v5016
          %v5125 = vpop.f32.mrb[0].mxu0
          %v5126 = vadd.f32 0.0, %v5125
          %v5127 = vpop.f32.mrb[0].mxu0
          %5128 = vmatprep.mubr.f32.mxu0 0.0
          %5129 = vmatmul.mubr.f32.gmra.mrb[0].mxu0 %v5017
          %v5130 = vpop.f32.mrb[0].mxu0
          %v5131 = vadd.f32 0.0, %v5130
          %v5132 = vpop.f32.mrb[0].mxu0
          %5133 = vmatprep.mubr.f32.mxu0 0.0
          %5134 = vmatmul.mubr.f32.gmra.mrb[0].mxu0 %v5018
          %v5135 = vpop.f32.mrb[0].mxu0
          %v5136 = vadd.f32 0.0, %v5135
          %v5137 = vpop.f32.mrb[0].mxu0
          %5138 = vmatprep.mubr.f32.mxu0 0.0
          %5139 = vmatmul.mubr.f32.gmra.mrb[0].mxu0 %v5019
          %v5140 = vpop.f32.mrb[0].mxu0
          %v5141 = vadd.f32 0.0, %v5140
          %v5142 = vpop.f32.mrb[0].mxu0
          %5143 = vmatprep.mubr.f32.mxu0 0.0
          %5144 = vmatmul.mubr.f32.gmra.mrb[0].mxu0 %v5020
          %v5145 = vpop.f32.mrb[0].mxu0
          %v5146 = vadd.f32 0.0, %v5145
          %v5147 = vpop.f32.mrb[0].mxu0
          %5148 = vmatprep.mubr.f32.mxu0 0.0
          %5149 = vmatmul.mubr.f32.gmra.mrb[0].mxu0 %v5021
          %v5150 = vpop.f32.mrb[0].mxu0
          %v5151 = vadd.f32 0.0, %v5150
          %v5152 = vpop.f32.mrb[0].mxu0
          %5153 = vmatprep.mubr.f32.mxu0 0.0
          %5154 = vmatmul.mubr.f32.gmra.mrb[0].mxu0 %v5022
          %v5155 = vpop.f32.mrb[0].mxu0
          %v5156 = vadd.f32 0.0, %v5155
          %v5157 = vpop.f32.mrb[0].mxu0
          %5158 = vmatprep.mubr.f32.mxu0 0.0
          %5159 = vmatmul.mubr.f32.gmra.mrb[0].mxu0 %v5023
          %v5160 = vpop.f32.mrb[0].mxu0
          %v5161 = vadd.f32 0.0, %v5160
          %v5162 = vpop.f32.mrb[0].mxu0
          %5163 = vmatprep.mubr.f32.mxu0 0.0
          %5164 = vmatmul.mubr.f32.gmra.mrb[0].mxu0 %v5024
          %v5165 = vpop.f32.mrb[0].mxu0
          %v5166 = vadd.f32 0.0, %v5165
          %v5167 = vpop.f32.mrb[0].mxu0
          %5168 = vmatprep.mubr.f32.mxu0 0.0
          %5169 = vmatmul.mubr.f32.gmra.mrb[0].mxu0 %v5025
          %v5170 = vpop.f32.mrb[0].mxu0
          %v5171 = vadd.f32 0.0, %v5170
          %v5172 = vpop.f32.mrb[0].mxu0
          %5173 = vmatprep.mubr.f32.mxu0 0.0
          %5174 = vmatmul.mubr.f32.gmra.mrb[0].mxu0 %v5026
          %v5175 = vpop.f32.mrb[0].mxu0
          %v5176 = vadd.f32 0.0, %v5175
          %v5177 = vpop.f32.mrb[0].mxu0
          %5178 = vmatprep.mubr.f32.mxu0 0.0
          %5179 = vmatmul.mubr.f32.gmra.mrb[0].mxu0 %v5027
          %v5180 = vpop.f32.mrb[0].mxu0
          %v5181 = vadd.f32 0.0, %v5180
          %v5182 = vpop.f32.mrb[0].mxu0
          %5183 = vmatprep.mubr.f32.mxu0 0.0
          %5184 = vmatmul.mubr.f32.gmra.mrb[0].mxu0 %v5028
          %v5185 = vpop.f32.mrb[0].mxu0
          %v5186 = vadd.f32 0.0, %v5185
          %v5187 = vpop.f32.mrb[0].mxu0
          %5188 = vmatprep.mubr.f32.mxu0 0.0
          %5189 = vmatmul.mubr.f32.gmra.mrb[0].mxu0 %v5029
          %v5190 = vpop.f32.mrb[0].mxu0
          %v5191 = vadd.f32 0.0, %v5190
          %v5192 = vpop.f32.mrb[0].mxu0
          %5193 = vdwg.mxu0
          %v5194 = vadd.f32 %v4998, %v5116
          %v5195 = vadd.f32 %v4999, %v5121
          %v5196 = vadd.f32 %v5000, %v5126
          %v5197 = vadd.f32 %v5001, %v5131
          %v5198 = vadd.f32 %v5002, %v5136
          %v5199 = vadd.f32 %v5003, %v5141
          %v5200 = vadd.f32 %v5004, %v5146
          %v5201 = vadd.f32 %v5005, %v5151
          %v5202 = vadd.f32 %v5006, %v5156
          %v5203 = vadd.f32 %v5007, %v5161
          %v5204 = vadd.f32 %v5008, %v5166
          %v5205 = vadd.f32 %v5009, %v5171
          %v5206 = vadd.f32 %v5010, %v5176
          %v5207 = vadd.f32 %v5011, %v5181
          %v5208 = vadd.f32 %v5012, %v5186
          %v5209 = vadd.f32 %v5013, %v5191
          %v5210 = vld [vmem:[%s1419 + $0x8] sm:$0xff]
          %v5211 = vld [vmem:[%s1419 + $0x20] sm:$0xff]
          %v5212 = vld [vmem:[%s1419 + $0x38] sm:$0xff]
          %v5213 = vld [vmem:[%s1419 + $0x50] sm:$0xff]
          %v5214 = vld [vmem:[%s1419 + $0x68] sm:$0xff]
          %v5215 = vld [vmem:[%s1419 + $0x80] sm:$0xff]
          %v5216 = vld [vmem:[%s1419 + $0x98] sm:$0xff]
          %v5217 = vld [vmem:[%s1419 + $0xb0] sm:$0xff]
          %v5218 = vld [vmem:[%s1419 + $0xc8] sm:$0xff]
          %v5219 = vld [vmem:[%s1419 + $0xe0] sm:$0xff]
          %v5220 = vld [vmem:[%s1419 + $0xf8] sm:$0xff]
          %v5221 = vld [vmem:[%s1419 + $0x110] sm:$0xff]
          %v5222 = vld [vmem:[%s1419 + $0x128] sm:$0xff]
          %v5223 = vld [vmem:[%s1419 + $0x140] sm:$0xff]
          %v5224 = vld [vmem:[%s1419 + $0x158] sm:$0xff]
          %v5225 = vld [vmem:[%s1419 + $0x170] sm:$0xff]
          %s5226 = sadd.s32 %s3886, 7
          %s5227 = smul.u32 %s5226, 128
          %s5228 = scalar_lea.vmem [#allocation7], %s5227
          %v5229 = vld [vmem:[%s5228] sm:$0xff]
          %v5230 = vld [vmem:[%s5228 + $0x8] sm:$0xff]
          %v5231 = vld [vmem:[%s5228 + $0x10] sm:$0xff]
          %v5232 = vld [vmem:[%s5228 + $0x18] sm:$0xff]
          %v5233 = vld [vmem:[%s5228 + $0x20] sm:$0xff]
          %v5234 = vld [vmem:[%s5228 + $0x28] sm:$0xff]
          %v5235 = vld [vmem:[%s5228 + $0x30] sm:$0xff]
          %v5236 = vld [vmem:[%s5228 + $0x38] sm:$0xff]
          %v5237 = vld [vmem:[%s5228 + $0x40] sm:$0xff]
          %v5238 = vld [vmem:[%s5228 + $0x48] sm:$0xff]
          %v5239 = vld [vmem:[%s5228 + $0x50] sm:$0xff]
          %v5240 = vld [vmem:[%s5228 + $0x58] sm:$0xff]
          %v5241 = vld [vmem:[%s5228 + $0x60] sm:$0xff]
          %v5242 = vld [vmem:[%s5228 + $0x68] sm:$0xff]
          %v5243 = vld [vmem:[%s5228 + $0x70] sm:$0xff]
          %v5244 = vld [vmem:[%s5228 + $0x78] sm:$0xff]
          %5245 = vmatprep.subr.mxu0 0.0
          %5246 = vmatpush1.msra.mxu0 %v5229
          %5247 = vmatprep.subr.mxu0 0.0
          %5248 = vmatpush1.msra.mxu0 %v5230
          %5249 = vmatprep.subr.mxu0 0.0
          %5250 = vmatpush1.msra.mxu0 %v5231
          %5251 = vmatprep.subr.mxu0 0.0
          %5252 = vmatpush1.msra.mxu0 %v5232
          %5253 = vmatprep.subr.mxu0 0.0
          %5254 = vmatpush1.msra.mxu0 %v5233
          %5255 = vmatprep.subr.mxu0 0.0
          %5256 = vmatpush1.msra.mxu0 %v5234
          %5257 = vmatprep.subr.mxu0 0.0
          %5258 = vmatpush1.msra.mxu0 %v5235
          %5259 = vmatprep.subr.mxu0 0.0
          %5260 = vmatpush1.msra.mxu0 %v5236
          %5261 = vmatprep.subr.mxu0 0.0
          %5262 = vmatpush1.msra.mxu0 %v5237
          %5263 = vmatprep.subr.mxu0 0.0
          %5264 = vmatpush1.msra.mxu0 %v5238
          %5265 = vmatprep.subr.mxu0 0.0
          %5266 = vmatpush1.msra.mxu0 %v5239
          %5267 = vmatprep.subr.mxu0 0.0
          %5268 = vmatpush1.msra.mxu0 %v5240
          %5269 = vmatprep.subr.mxu0 0.0
          %5270 = vmatpush1.msra.mxu0 %v5241
          %5271 = vmatprep.subr.mxu0 0.0
          %5272 = vmatpush1.msra.mxu0 %v5242
          %5273 = vmatprep.subr.mxu0 0.0
          %5274 = vmatpush1.msra.mxu0 %v5243
          %5275 = vmatprep.subr.mxu0 0.0
          %5276 = vmatpush1.msra.mxu0 %v5244
          %5277 = vmatprep.subr.mxu0 0.0
          %5278 = vmatpush1.msra.mxu0 0.0
          %5279 = vmatprep.subr.mxu0 0.0
          %5280 = vmatpush1.msra.mxu0 0.0
          %5281 = vmatprep.subr.mxu0 0.0
          %5282 = vmatpush1.msra.mxu0 0.0
          %5283 = vmatprep.subr.mxu0 0.0
          %5284 = vmatpush1.msra.mxu0 0.0
          %5285 = vmatprep.subr.mxu0 0.0
          %5286 = vmatpush1.msra.mxu0 0.0
          %5287 = vmatprep.subr.mxu0 0.0
          %5288 = vmatpush1.msra.mxu0 0.0
          %5289 = vmatprep.subr.mxu0 0.0
          %5290 = vmatpush1.msra.mxu0 0.0
          %5291 = vmatprep.subr.mxu0 0.0
          %5292 = vmatpush1.msra.mxu0 0.0
          %5293 = vmatprep.subr.mxu0 0.0
          %5294 = vmatpush1.msra.mxu0 0.0
          %5295 = vmatprep.subr.mxu0 0.0
          %5296 = vmatpush1.msra.mxu0 0.0
          %5297 = vmatprep.subr.mxu0 0.0
          %5298 = vmatpush1.msra.mxu0 0.0
          %5299 = vmatprep.subr.mxu0 0.0
          %5300 = vmatpush1.msra.mxu0 0.0
          %5301 = vmatprep.subr.mxu0 0.0
          %5302 = vmatpush1.msra.mxu0 0.0
          %5303 = vmatprep.subr.mxu0 0.0
          %5304 = vmatpush1.msra.mxu0 0.0
          %5305 = vmatprep.subr.mxu0 0.0
          %5306 = vmatpush1.msra.mxu0 0.0
          %5307 = vmatprep.subr.mxu0 0.0
          %5308 = vmatpush1.msra.mxu0 0.0
          %5309 = vmatprep.mubr.f32.mxu0 0.0
          %5310 = vmatmul.mubr.f32.gmra.mrb[0].mxu0 %v5210
          %v5311 = vpop.f32.mrb[0].mxu0
          %v5312 = vadd.f32 0.0, %v5311
          %v5313 = vpop.f32.mrb[0].mxu0
          %5314 = vmatprep.mubr.f32.mxu0 0.0
          %5315 = vmatmul.mubr.f32.gmra.mrb[0].mxu0 %v5211
          %v5316 = vpop.f32.mrb[0].mxu0
          %v5317 = vadd.f32 0.0, %v5316
          %v5318 = vpop.f32.mrb[0].mxu0
          %5319 = vmatprep.mubr.f32.mxu0 0.0
          %5320 = vmatmul.mubr.f32.gmra.mrb[0].mxu0 %v5212
          %v5321 = vpop.f32.mrb[0].mxu0
          %v5322 = vadd.f32 0.0, %v5321
          %v5323 = vpop.f32.mrb[0].mxu0
          %5324 = vmatprep.mubr.f32.mxu0 0.0
          %5325 = vmatmul.mubr.f32.gmra.mrb[0].mxu0 %v5213
          %v5326 = vpop.f32.mrb[0].mxu0
          %v5327 = vadd.f32 0.0, %v5326
          %v5328 = vpop.f32.mrb[0].mxu0
          %5329 = vmatprep.mubr.f32.mxu0 0.0
          %5330 = vmatmul.mubr.f32.gmra.mrb[0].mxu0 %v5214
          %v5331 = vpop.f32.mrb[0].mxu0
          %v5332 = vadd.f32 0.0, %v5331
          %v5333 = vpop.f32.mrb[0].mxu0
          %5334 = vmatprep.mubr.f32.mxu0 0.0
          %5335 = vmatmul.mubr.f32.gmra.mrb[0].mxu0 %v5215
          %v5336 = vpop.f32.mrb[0].mxu0
          %v5337 = vadd.f32 0.0, %v5336
          %v5338 = vpop.f32.mrb[0].mxu0
          %5339 = vmatprep.mubr.f32.mxu0 0.0
          %5340 = vmatmul.mubr.f32.gmra.mrb[0].mxu0 %v5216
          %v5341 = vpop.f32.mrb[0].mxu0
          %v5342 = vadd.f32 0.0, %v5341
          %v5343 = vpop.f32.mrb[0].mxu0
          %5344 = vmatprep.mubr.f32.mxu0 0.0
          %5345 = vmatmul.mubr.f32.gmra.mrb[0].mxu0 %v5217
          %v5346 = vpop.f32.mrb[0].mxu0
          %v5347 = vadd.f32 0.0, %v5346
          %v5348 = vpop.f32.mrb[0].mxu0
          %5349 = vmatprep.mubr.f32.mxu0 0.0
          %5350 = vmatmul.mubr.f32.gmra.mrb[0].mxu0 %v5218
          %v5351 = vpop.f32.mrb[0].mxu0
          %v5352 = vadd.f32 0.0, %v5351
          %v5353 = vpop.f32.mrb[0].mxu0
          %5354 = vmatprep.mubr.f32.mxu0 0.0
          %5355 = vmatmul.mubr.f32.gmra.mrb[0].mxu0 %v5219
          %v5356 = vpop.f32.mrb[0].mxu0
          %v5357 = vadd.f32 0.0, %v5356
          %v5358 = vpop.f32.mrb[0].mxu0
          %5359 = vmatprep.mubr.f32.mxu0 0.0
          %5360 = vmatmul.mubr.f32.gmra.mrb[0].mxu0 %v5220
          %v5361 = vpop.f32.mrb[0].mxu0
          %v5362 = vadd.f32 0.0, %v5361
          %v5363 = vpop.f32.mrb[0].mxu0
          %5364 = vmatprep.mubr.f32.mxu0 0.0
          %5365 = vmatmul.mubr.f32.gmra.mrb[0].mxu0 %v5221
          %v5366 = vpop.f32.mrb[0].mxu0
          %v5367 = vadd.f32 0.0, %v5366
          %v5368 = vpop.f32.mrb[0].mxu0
          %5369 = vmatprep.mubr.f32.mxu0 0.0
          %5370 = vmatmul.mubr.f32.gmra.mrb[0].mxu0 %v5222
          %v5371 = vpop.f32.mrb[0].mxu0
          %v5372 = vadd.f32 0.0, %v5371
          %v5373 = vpop.f32.mrb[0].mxu0
          %5374 = vmatprep.mubr.f32.mxu0 0.0
          %5375 = vmatmul.mubr.f32.gmra.mrb[0].mxu0 %v5223
          %v5376 = vpop.f32.mrb[0].mxu0
          %v5377 = vadd.f32 0.0, %v5376
          %v5378 = vpop.f32.mrb[0].mxu0
          %5379 = vmatprep.mubr.f32.mxu0 0.0
          %5380 = vmatmul.mubr.f32.gmra.mrb[0].mxu0 %v5224
          %v5381 = vpop.f32.mrb[0].mxu0
          %v5382 = vadd.f32 0.0, %v5381
          %v5383 = vpop.f32.mrb[0].mxu0
          %5384 = vmatprep.mubr.f32.mxu0 0.0
          %5385 = vmatmul.mubr.f32.gmra.mrb[0].mxu0 %v5225
          %v5386 = vpop.f32.mrb[0].mxu0
          %v5387 = vadd.f32 0.0, %v5386
          %v5388 = vpop.f32.mrb[0].mxu0
          %5389 = vdwg.mxu0
          %v5390 = vadd.f32 %v5194, %v5312
          %v5391 = vadd.f32 %v5195, %v5317
          %v5392 = vadd.f32 %v5196, %v5322
          %v5393 = vadd.f32 %v5197, %v5327
          %v5394 = vadd.f32 %v5198, %v5332
          %v5395 = vadd.f32 %v5199, %v5337
          %v5396 = vadd.f32 %v5200, %v5342
          %v5397 = vadd.f32 %v5201, %v5347
          %v5398 = vadd.f32 %v5202, %v5352
          %v5399 = vadd.f32 %v5203, %v5357
          %v5400 = vadd.f32 %v5204, %v5362
          %v5401 = vadd.f32 %v5205, %v5367
          %v5402 = vadd.f32 %v5206, %v5372
          %v5403 = vadd.f32 %v5207, %v5377
          %v5404 = vadd.f32 %v5208, %v5382
          %v5405 = vadd.f32 %v5209, %v5387
          %v5406 = vld [vmem:[%s1419 + $0x9] sm:$0xff]
          %v5407 = vld [vmem:[%s1419 + $0x21] sm:$0xff]
          %v5408 = vld [vmem:[%s1419 + $0x39] sm:$0xff]
          %v5409 = vld [vmem:[%s1419 + $0x51] sm:$0xff]
          %v5410 = vld [vmem:[%s1419 + $0x69] sm:$0xff]
          %v5411 = vld [vmem:[%s1419 + $0x81] sm:$0xff]
          %v5412 = vld [vmem:[%s1419 + $0x99] sm:$0xff]
          %v5413 = vld [vmem:[%s1419 + $0xb1] sm:$0xff]
          %v5414 = vld [vmem:[%s1419 + $0xc9] sm:$0xff]
          %v5415 = vld [vmem:[%s1419 + $0xe1] sm:$0xff]
          %v5416 = vld [vmem:[%s1419 + $0xf9] sm:$0xff]
          %v5417 = vld [vmem:[%s1419 + $0x111] sm:$0xff]
          %v5418 = vld [vmem:[%s1419 + $0x129] sm:$0xff]
          %v5419 = vld [vmem:[%s1419 + $0x141] sm:$0xff]
          %v5420 = vld [vmem:[%s1419 + $0x159] sm:$0xff]
          %v5421 = vld [vmem:[%s1419 + $0x171] sm:$0xff]
          %s5422 = sadd.s32 %s3886, 8
          %s5423 = smul.u32 %s5422, 128
          %s5424 = scalar_lea.vmem [#allocation7], %s5423
          %v5425 = vld [vmem:[%s5424] sm:$0xff]
          %v5426 = vld [vmem:[%s5424 + $0x8] sm:$0xff]
          %v5427 = vld [vmem:[%s5424 + $0x10] sm:$0xff]
          %v5428 = vld [vmem:[%s5424 + $0x18] sm:$0xff]
          %v5429 = vld [vmem:[%s5424 + $0x20] sm:$0xff]
          %v5430 = vld [vmem:[%s5424 + $0x28] sm:$0xff]
          %v5431 = vld [vmem:[%s5424 + $0x30] sm:$0xff]
          %v5432 = vld [vmem:[%s5424 + $0x38] sm:$0xff]
          %v5433 = vld [vmem:[%s5424 + $0x40] sm:$0xff]
          %v5434 = vld [vmem:[%s5424 + $0x48] sm:$0xff]
          %v5435 = vld [vmem:[%s5424 + $0x50] sm:$0xff]
          %v5436 = vld [vmem:[%s5424 + $0x58] sm:$0xff]
          %v5437 = vld [vmem:[%s5424 + $0x60] sm:$0xff]
          %v5438 = vld [vmem:[%s5424 + $0x68] sm:$0xff]
          %v5439 = vld [vmem:[%s5424 + $0x70] sm:$0xff]
          %v5440 = vld [vmem:[%s5424 + $0x78] sm:$0xff]
          %5441 = vmatprep.subr.mxu0 0.0
          %5442 = vmatpush1.msra.mxu0 %v5425
          %5443 = vmatprep.subr.mxu0 0.0
          %5444 = vmatpush1.msra.mxu0 %v5426
          %5445 = vmatprep.subr.mxu0 0.0
          %5446 = vmatpush1.msra.mxu0 %v5427
          %5447 = vmatprep.subr.mxu0 0.0
          %5448 = vmatpush1.msra.mxu0 %v5428
          %5449 = vmatprep.subr.mxu0 0.0
          %5450 = vmatpush1.msra.mxu0 %v5429
          %5451 = vmatprep.subr.mxu0 0.0
          %5452 = vmatpush1.msra.mxu0 %v5430
          %5453 = vmatprep.subr.mxu0 0.0
          %5454 = vmatpush1.msra.mxu0 %v5431
          %5455 = vmatprep.subr.mxu0 0.0
          %5456 = vmatpush1.msra.mxu0 %v5432
          %5457 = vmatprep.subr.mxu0 0.0
          %5458 = vmatpush1.msra.mxu0 %v5433
          %5459 = vmatprep.subr.mxu0 0.0
          %5460 = vmatpush1.msra.mxu0 %v5434
          %5461 = vmatprep.subr.mxu0 0.0
          %5462 = vmatpush1.msra.mxu0 %v5435
          %5463 = vmatprep.subr.mxu0 0.0
          %5464 = vmatpush1.msra.mxu0 %v5436
          %5465 = vmatprep.subr.mxu0 0.0
          %5466 = vmatpush1.msra.mxu0 %v5437
          %5467 = vmatprep.subr.mxu0 0.0
          %5468 = vmatpush1.msra.mxu0 %v5438
          %5469 = vmatprep.subr.mxu0 0.0
          %5470 = vmatpush1.msra.mxu0 %v5439
          %5471 = vmatprep.subr.mxu0 0.0
          %5472 = vmatpush1.msra.mxu0 %v5440
          %5473 = vmatprep.subr.mxu0 0.0
          %5474 = vmatpush1.msra.mxu0 0.0
          %5475 = vmatprep.subr.mxu0 0.0
          %5476 = vmatpush1.msra.mxu0 0.0
          %5477 = vmatprep.subr.mxu0 0.0
          %5478 = vmatpush1.msra.mxu0 0.0
          %5479 = vmatprep.subr.mxu0 0.0
          %5480 = vmatpush1.msra.mxu0 0.0
          %5481 = vmatprep.subr.mxu0 0.0
          %5482 = vmatpush1.msra.mxu0 0.0
          %5483 = vmatprep.subr.mxu0 0.0
          %5484 = vmatpush1.msra.mxu0 0.0
          %5485 = vmatprep.subr.mxu0 0.0
          %5486 = vmatpush1.msra.mxu0 0.0
          %5487 = vmatprep.subr.mxu0 0.0
          %5488 = vmatpush1.msra.mxu0 0.0
          %5489 = vmatprep.subr.mxu0 0.0
          %5490 = vmatpush1.msra.mxu0 0.0
          %5491 = vmatprep.subr.mxu0 0.0
          %5492 = vmatpush1.msra.mxu0 0.0
          %5493 = vmatprep.subr.mxu0 0.0
          %5494 = vmatpush1.msra.mxu0 0.0
          %5495 = vmatprep.subr.mxu0 0.0
          %5496 = vmatpush1.msra.mxu0 0.0
          %5497 = vmatprep.subr.mxu0 0.0
          %5498 = vmatpush1.msra.mxu0 0.0
          %5499 = vmatprep.subr.mxu0 0.0
          %5500 = vmatpush1.msra.mxu0 0.0
          %5501 = vmatprep.subr.mxu0 0.0
          %5502 = vmatpush1.msra.mxu0 0.0
          %5503 = vmatprep.subr.mxu0 0.0
          %5504 = vmatpush1.msra.mxu0 0.0
          %5505 = vmatprep.mubr.f32.mxu0 0.0
          %5506 = vmatmul.mubr.f32.gmra.mrb[0].mxu0 %v5406
          %v5507 = vpop.f32.mrb[0].mxu0
          %v5508 = vadd.f32 0.0, %v5507
          %v5509 = vpop.f32.mrb[0].mxu0
          %5510 = vmatprep.mubr.f32.mxu0 0.0
          %5511 = vmatmul.mubr.f32.gmra.mrb[0].mxu0 %v5407
          %v5512 = vpop.f32.mrb[0].mxu0
          %v5513 = vadd.f32 0.0, %v5512
          %v5514 = vpop.f32.mrb[0].mxu0
          %5515 = vmatprep.mubr.f32.mxu0 0.0
          %5516 = vmatmul.mubr.f32.gmra.mrb[0].mxu0 %v5408
          %v5517 = vpop.f32.mrb[0].mxu0
          %v5518 = vadd.f32 0.0, %v5517
          %v5519 = vpop.f32.mrb[0].mxu0
          %5520 = vmatprep.mubr.f32.mxu0 0.0
          %5521 = vmatmul.mubr.f32.gmra.mrb[0].mxu0 %v5409
          %v5522 = vpop.f32.mrb[0].mxu0
          %v5523 = vadd.f32 0.0, %v5522
          %v5524 = vpop.f32.mrb[0].mxu0
          %5525 = vmatprep.mubr.f32.mxu0 0.0
          %5526 = vmatmul.mubr.f32.gmra.mrb[0].mxu0 %v5410
          %v5527 = vpop.f32.mrb[0].mxu0
          %v5528 = vadd.f32 0.0, %v5527
          %v5529 = vpop.f32.mrb[0].mxu0
          %5530 = vmatprep.mubr.f32.mxu0 0.0
          %5531 = vmatmul.mubr.f32.gmra.mrb[0].mxu0 %v5411
          %v5532 = vpop.f32.mrb[0].mxu0
          %v5533 = vadd.f32 0.0, %v5532
          %v5534 = vpop.f32.mrb[0].mxu0
          %5535 = vmatprep.mubr.f32.mxu0 0.0
          %5536 = vmatmul.mubr.f32.gmra.mrb[0].mxu0 %v5412
          %v5537 = vpop.f32.mrb[0].mxu0
          %v5538 = vadd.f32 0.0, %v5537
          %v5539 = vpop.f32.mrb[0].mxu0
          %5540 = vmatprep.mubr.f32.mxu0 0.0
          %5541 = vmatmul.mubr.f32.gmra.mrb[0].mxu0 %v5413
          %v5542 = vpop.f32.mrb[0].mxu0
          %v5543 = vadd.f32 0.0, %v5542
          %v5544 = vpop.f32.mrb[0].mxu0
          %5545 = vmatprep.mubr.f32.mxu0 0.0
          %5546 = vmatmul.mubr.f32.gmra.mrb[0].mxu0 %v5414
          %v5547 = vpop.f32.mrb[0].mxu0
          %v5548 = vadd.f32 0.0, %v5547
          %v5549 = vpop.f32.mrb[0].mxu0
          %5550 = vmatprep.mubr.f32.mxu0 0.0
          %5551 = vmatmul.mubr.f32.gmra.mrb[0].mxu0 %v5415
          %v5552 = vpop.f32.mrb[0].mxu0
          %v5553 = vadd.f32 0.0, %v5552
          %v5554 = vpop.f32.mrb[0].mxu0
          %5555 = vmatprep.mubr.f32.mxu0 0.0
          %5556 = vmatmul.mubr.f32.gmra.mrb[0].mxu0 %v5416
          %v5557 = vpop.f32.mrb[0].mxu0
          %v5558 = vadd.f32 0.0, %v5557
          %v5559 = vpop.f32.mrb[0].mxu0
          %5560 = vmatprep.mubr.f32.mxu0 0.0
          %5561 = vmatmul.mubr.f32.gmra.mrb[0].mxu0 %v5417
          %v5562 = vpop.f32.mrb[0].mxu0
          %v5563 = vadd.f32 0.0, %v5562
          %v5564 = vpop.f32.mrb[0].mxu0
          %5565 = vmatprep.mubr.f32.mxu0 0.0
          %5566 = vmatmul.mubr.f32.gmra.mrb[0].mxu0 %v5418
          %v5567 = vpop.f32.mrb[0].mxu0
          %v5568 = vadd.f32 0.0, %v5567
          %v5569 = vpop.f32.mrb[0].mxu0
          %5570 = vmatprep.mubr.f32.mxu0 0.0
          %5571 = vmatmul.mubr.f32.gmra.mrb[0].mxu0 %v5419
          %v5572 = vpop.f32.mrb[0].mxu0
          %v5573 = vadd.f32 0.0, %v5572
          %v5574 = vpop.f32.mrb[0].mxu0
          %5575 = vmatprep.mubr.f32.mxu0 0.0
          %5576 = vmatmul.mubr.f32.gmra.mrb[0].mxu0 %v5420
          %v5577 = vpop.f32.mrb[0].mxu0
          %v5578 = vadd.f32 0.0, %v5577
          %v5579 = vpop.f32.mrb[0].mxu0
          %5580 = vmatprep.mubr.f32.mxu0 0.0
          %5581 = vmatmul.mubr.f32.gmra.mrb[0].mxu0 %v5421
          %v5582 = vpop.f32.mrb[0].mxu0
          %v5583 = vadd.f32 0.0, %v5582
          %v5584 = vpop.f32.mrb[0].mxu0
          %5585 = vdwg.mxu0
          %v5586 = vadd.f32 %v5390, %v5508
          %v5587 = vadd.f32 %v5391, %v5513
          %v5588 = vadd.f32 %v5392, %v5518
          %v5589 = vadd.f32 %v5393, %v5523
          %v5590 = vadd.f32 %v5394, %v5528
          %v5591 = vadd.f32 %v5395, %v5533
          %v5592 = vadd.f32 %v5396, %v5538
          %v5593 = vadd.f32 %v5397, %v5543
          %v5594 = vadd.f32 %v5398, %v5548
          %v5595 = vadd.f32 %v5399, %v5553
          %v5596 = vadd.f32 %v5400, %v5558
          %v5597 = vadd.f32 %v5401, %v5563
          %v5598 = vadd.f32 %v5402, %v5568
          %v5599 = vadd.f32 %v5403, %v5573
          %v5600 = vadd.f32 %v5404, %v5578
          %v5601 = vadd.f32 %v5405, %v5583
          %s5602 = scalar_lea.vmem [#allocation9], %s3869
          %v5603 = vld [vmem:[%s5602] sm:$0x1]
          %v5605 = vlaneseq
          %v5606 = vshrl.u32 %v5605, 7
          %v5607 = vsub.s32 0, %v5606
          %v5608 = vrot.slane %v5603, %v5607
          %v5610 = vadd.f32 %v5586, %v5608
          %v5611 = vadd.f32 %v5587, %v5608
          %v5612 = vadd.f32 %v5588, %v5608
          %v5613 = vadd.f32 %v5589, %v5608
          %v5614 = vadd.f32 %v5590, %v5608
          %v5615 = vadd.f32 %v5591, %v5608
          %v5616 = vadd.f32 %v5592, %v5608
          %v5617 = vadd.f32 %v5593, %v5608
          %v5618 = vadd.f32 %v5594, %v5608
          %v5619 = vadd.f32 %v5595, %v5608
          %v5620 = vadd.f32 %v5596, %v5608
          %v5621 = vadd.f32 %v5597, %v5608
          %v5622 = vadd.f32 %v5598, %v5608
          %v5623 = vadd.f32 %v5599, %v5608
          %v5624 = vadd.f32 %v5600, %v5608
          %v5625 = vadd.f32 %v5601, %v5608
          %v5626 = vld [vmem:[#allocation3] sm:$0xff]
          %v5627 = vld [vmem:[#allocation3 + $0x8] sm:$0xff]
          %v5628 = vld [vmem:[#allocation3 + $0x10] sm:$0xff]
          %v5629 = vld [vmem:[#allocation3 + $0x18] sm:$0xff]
          %v5630 = vld [vmem:[#allocation3 + $0x20] sm:$0xff]
          %v5631 = vld [vmem:[#allocation3 + $0x28] sm:$0xff]
          %v5632 = vld [vmem:[#allocation3 + $0x30] sm:$0xff]
          %v5633 = vld [vmem:[#allocation3 + $0x38] sm:$0xff]
          %v5634 = vld [vmem:[#allocation3 + $0x40] sm:$0xff]
          %v5635 = vld [vmem:[#allocation3 + $0x48] sm:$0xff]
          %v5636 = vld [vmem:[#allocation3 + $0x50] sm:$0xff]
          %v5637 = vld [vmem:[#allocation3 + $0x58] sm:$0xff]
          %v5638 = vld [vmem:[#allocation3 + $0x60] sm:$0xff]
          %v5639 = vld [vmem:[#allocation3 + $0x68] sm:$0xff]
          %v5640 = vld [vmem:[#allocation3 + $0x70] sm:$0xff]
          %v5641 = vld [vmem:[#allocation3 + $0x78] sm:$0xff]
          %v5642 = vadd.f32 %v5610, %v5626
          %v5643 = vadd.f32 %v5611, %v5627
          %v5644 = vadd.f32 %v5612, %v5628
          %v5645 = vadd.f32 %v5613, %v5629
          %v5646 = vadd.f32 %v5614, %v5630
          %v5647 = vadd.f32 %v5615, %v5631
          %v5648 = vadd.f32 %v5616, %v5632
          %v5649 = vadd.f32 %v5617, %v5633
          %v5650 = vadd.f32 %v5618, %v5634
          %v5651 = vadd.f32 %v5619, %v5635
          %v5652 = vadd.f32 %v5620, %v5636
          %v5653 = vadd.f32 %v5621, %v5637
          %v5654 = vadd.f32 %v5622, %v5638
          %v5655 = vadd.f32 %v5623, %v5639
          %v5656 = vadd.f32 %v5624, %v5640
          %v5657 = vadd.f32 %v5625, %v5641
          %v5658 = vmax.f32 %v5642, 0.0
          %v5659 = vmax.f32 %v5643, 0.0
          %v5660 = vmax.f32 %v5644, 0.0
          %v5661 = vmax.f32 %v5645, 0.0
          %v5662 = vmax.f32 %v5646, 0.0
          %v5663 = vmax.f32 %v5647, 0.0
          %v5664 = vmax.f32 %v5648, 0.0
          %v5665 = vmax.f32 %v5649, 0.0
          %v5666 = vmax.f32 %v5650, 0.0
          %v5667 = vmax.f32 %v5651, 0.0
          %v5668 = vmax.f32 %v5652, 0.0
          %v5669 = vmax.f32 %v5653, 0.0
          %v5670 = vmax.f32 %v5654, 0.0
          %v5671 = vmax.f32 %v5655, 0.0
          %v5672 = vmax.f32 %v5656, 0.0
          %v5673 = vmax.f32 %v5657, 0.0
          %5674 = vst [vmem:[%s223 + $0x8] sm:$0xff] %v5658
          %5675 = vst [vmem:[%s223 + $0x20] sm:$0xff] %v5659
          %5676 = vst [vmem:[%s223 + $0x38] sm:$0xff] %v5660
          %5677 = vst [vmem:[%s223 + $0x50] sm:$0xff] %v5661
          %5678 = vst [vmem:[%s223 + $0x68] sm:$0xff] %v5662
          %5679 = vst [vmem:[%s223 + $0x80] sm:$0xff] %v5663
          %5680 = vst [vmem:[%s223 + $0x98] sm:$0xff] %v5664
          %5681 = vst [vmem:[%s223 + $0xb0] sm:$0xff] %v5665
          %5682 = vst [vmem:[%s223 + $0xc8] sm:$0xff] %v5666
          %5683 = vst [vmem:[%s223 + $0xe0] sm:$0xff] %v5667
          %5684 = vst [vmem:[%s223 + $0xf8] sm:$0xff] %v5668
          %5685 = vst [vmem:[%s223 + $0x110] sm:$0xff] %v5669
          %5686 = vst [vmem:[%s223 + $0x128] sm:$0xff] %v5670
          %5687 = vst [vmem:[%s223 + $0x140] sm:$0xff] %v5671
          %5688 = vst [vmem:[%s223 + $0x158] sm:$0xff] %v5672
          %5689 = vst [vmem:[%s223 + $0x170] sm:$0xff] %v5673
          %5690 = vst [vmem:[#allocation3] sm:$0xff] %v5658
          %5691 = vst [vmem:[#allocation3 + $0x8] sm:$0xff] %v5659
          %5692 = vst [vmem:[#allocation3 + $0x10] sm:$0xff] %v5660
          %5693 = vst [vmem:[#allocation3 + $0x18] sm:$0xff] %v5661
          %5694 = vst [vmem:[#allocation3 + $0x20] sm:$0xff] %v5662
          %5695 = vst [vmem:[#allocation3 + $0x28] sm:$0xff] %v5663
          %5696 = vst [vmem:[#allocation3 + $0x30] sm:$0xff] %v5664
          %5697 = vst [vmem:[#allocation3 + $0x38] sm:$0xff] %v5665
          %5698 = vst [vmem:[#allocation3 + $0x40] sm:$0xff] %v5666
          %5699 = vst [vmem:[#allocation3 + $0x48] sm:$0xff] %v5667
          %5700 = vst [vmem:[#allocation3 + $0x50] sm:$0xff] %v5668
          %5701 = vst [vmem:[#allocation3 + $0x58] sm:$0xff] %v5669
          %5702 = vst [vmem:[#allocation3 + $0x60] sm:$0xff] %v5670
          %5703 = vst [vmem:[#allocation3 + $0x68] sm:$0xff] %v5671
          %5704 = vst [vmem:[#allocation3 + $0x70] sm:$0xff] %v5672
          %5705 = vst [vmem:[#allocation3 + $0x78] sm:$0xff] %v5673
        $region49: #{tpu_custom_call.1} parent=31 // loop_footer
          %s2078 = sadd.s32 1, %s2074
        $region50: #{tpu_custom_call.1} parent=31 // loop_footer_branch
          %2073 = sbr.rel target = $region46
        $region51: #{tpu_custom_call.1} parent=31 // loop_exit
          _
        %v5706 = vld [vmem:[#allocation2 + $0x7] sm:$0xff]
        %v5707 = vld [vmem:[#allocation2 + $0x1f] sm:$0xff]
        %v5708 = vld [vmem:[#allocation2 + $0x37] sm:$0xff]
        %v5709 = vld [vmem:[#allocation2 + $0x4f] sm:$0xff]
        %v5710 = vld [vmem:[#allocation2 + $0x67] sm:$0xff]
        %v5711 = vld [vmem:[#allocation2 + $0x7f] sm:$0xff]
        %v5712 = vld [vmem:[#allocation2 + $0x97] sm:$0xff]
        %v5713 = vld [vmem:[#allocation2 + $0xaf] sm:$0xff]
        %v5714 = vld [vmem:[#allocation2 + $0xc7] sm:$0xff]
        %v5715 = vld [vmem:[#allocation2 + $0xdf] sm:$0xff]
        %v5716 = vld [vmem:[#allocation2 + $0xf7] sm:$0xff]
        %v5717 = vld [vmem:[#allocation2 + $0x10f] sm:$0xff]
        %v5718 = vld [vmem:[#allocation2 + $0x127] sm:$0xff]
        %v5719 = vld [vmem:[#allocation2 + $0x13f] sm:$0xff]
        %v5720 = vld [vmem:[#allocation2 + $0x157] sm:$0xff]
        %v5721 = vld [vmem:[#allocation2 + $0x16f] sm:$0xff]
        %s5722 = scalar_lea.vmem [#allocation7], 12672
        %v5723 = vld [vmem:[%s5722] sm:$0xff]
        %v5724 = vld [vmem:[%s5722 + $0x8] sm:$0xff]
        %v5725 = vld [vmem:[%s5722 + $0x10] sm:$0xff]
        %v5726 = vld [vmem:[%s5722 + $0x18] sm:$0xff]
        %v5727 = vld [vmem:[%s5722 + $0x20] sm:$0xff]
        %v5728 = vld [vmem:[%s5722 + $0x28] sm:$0xff]
        %v5729 = vld [vmem:[%s5722 + $0x30] sm:$0xff]
        %v5730 = vld [vmem:[%s5722 + $0x38] sm:$0xff]
        %v5731 = vld [vmem:[%s5722 + $0x40] sm:$0xff]
        %v5732 = vld [vmem:[%s5722 + $0x48] sm:$0xff]
        %v5733 = vld [vmem:[%s5722 + $0x50] sm:$0xff]
        %v5734 = vld [vmem:[%s5722 + $0x58] sm:$0xff]
        %v5735 = vld [vmem:[%s5722 + $0x60] sm:$0xff]
        %v5736 = vld [vmem:[%s5722 + $0x68] sm:$0xff]
        %v5737 = vld [vmem:[%s5722 + $0x70] sm:$0xff]
        %v5738 = vld [vmem:[%s5722 + $0x78] sm:$0xff]
        %v5739 = vld [vmem:[#allocation2 + $0x8] sm:$0xff]
        %v5740 = vld [vmem:[#allocation2 + $0x20] sm:$0xff]
        %v5741 = vld [vmem:[#allocation2 + $0x38] sm:$0xff]
        %v5742 = vld [vmem:[#allocation2 + $0x50] sm:$0xff]
        %v5743 = vld [vmem:[#allocation2 + $0x68] sm:$0xff]
        %v5744 = vld [vmem:[#allocation2 + $0x80] sm:$0xff]
        %v5745 = vld [vmem:[#allocation2 + $0x98] sm:$0xff]
        %v5746 = vld [vmem:[#allocation2 + $0xb0] sm:$0xff]
        %v5747 = vld [vmem:[#allocation2 + $0xc8] sm:$0xff]
        %v5748 = vld [vmem:[#allocation2 + $0xe0] sm:$0xff]
        %v5749 = vld [vmem:[#allocation2 + $0xf8] sm:$0xff]
        %v5750 = vld [vmem:[#allocation2 + $0x110] sm:$0xff]
        %v5751 = vld [vmem:[#allocation2 + $0x128] sm:$0xff]
        %v5752 = vld [vmem:[#allocation2 + $0x140] sm:$0xff]
        %v5753 = vld [vmem:[#allocation2 + $0x158] sm:$0xff]
        %v5754 = vld [vmem:[#allocation2 + $0x170] sm:$0xff]
        %s5755 = scalar_lea.vmem [#allocation7], 12800
        %v5756 = vld [vmem:[%s5755] sm:$0xff]
        %v5757 = vld [vmem:[%s5755 + $0x8] sm:$0xff]
        %v5758 = vld [vmem:[%s5755 + $0x10] sm:$0xff]
        %v5759 = vld [vmem:[%s5755 + $0x18] sm:$0xff]
        %v5760 = vld [vmem:[%s5755 + $0x20] sm:$0xff]
        %v5761 = vld [vmem:[%s5755 + $0x28] sm:$0xff]
        %v5762 = vld [vmem:[%s5755 + $0x30] sm:$0xff]
        %v5763 = vld [vmem:[%s5755 + $0x38] sm:$0xff]
        %v5764 = vld [vmem:[%s5755 + $0x40] sm:$0xff]
        %v5765 = vld [vmem:[%s5755 + $0x48] sm:$0xff]
        %v5766 = vld [vmem:[%s5755 + $0x50] sm:$0xff]
        %v5767 = vld [vmem:[%s5755 + $0x58] sm:$0xff]
        %v5768 = vld [vmem:[%s5755 + $0x60] sm:$0xff]
        %v5769 = vld [vmem:[%s5755 + $0x68] sm:$0xff]
        %v5770 = vld [vmem:[%s5755 + $0x70] sm:$0xff]
        %v5771 = vld [vmem:[%s5755 + $0x78] sm:$0xff]
        %5772 = vmatprep.subr.mxu0 0.0
        %5773 = vmatpush1.msra.mxu0 %v5756
        %5774 = vmatprep.subr.mxu0 0.0
        %5775 = vmatpush1.msra.mxu0 %v5757
        %5776 = vmatprep.subr.mxu0 0.0
        %5777 = vmatpush1.msra.mxu0 %v5758
        %5778 = vmatprep.subr.mxu0 0.0
        %5779 = vmatpush1.msra.mxu0 %v5759
        %5780 = vmatprep.subr.mxu0 0.0
        %5781 = vmatpush1.msra.mxu0 %v5760
        %5782 = vmatprep.subr.mxu0 0.0
        %5783 = vmatpush1.msra.mxu0 %v5761
        %5784 = vmatprep.subr.mxu0 0.0
        %5785 = vmatpush1.msra.mxu0 %v5762
        %5786 = vmatprep.subr.mxu0 0.0
        %5787 = vmatpush1.msra.mxu0 %v5763
        %5788 = vmatprep.subr.mxu0 0.0
        %5789 = vmatpush1.msra.mxu0 %v5764
        %5790 = vmatprep.subr.mxu0 0.0
        %5791 = vmatpush1.msra.mxu0 %v5765
        %5792 = vmatprep.subr.mxu0 0.0
        %5793 = vmatpush1.msra.mxu0 %v5766
        %5794 = vmatprep.subr.mxu0 0.0
        %5795 = vmatpush1.msra.mxu0 %v5767
        %5796 = vmatprep.subr.mxu0 0.0
        %5797 = vmatpush1.msra.mxu0 %v5768
        %5798 = vmatprep.subr.mxu0 0.0
        %5799 = vmatpush1.msra.mxu0 %v5769
        %5800 = vmatprep.subr.mxu0 0.0
        %5801 = vmatpush1.msra.mxu0 %v5770
        %5802 = vmatprep.subr.mxu0 0.0
        %5803 = vmatpush1.msra.mxu0 %v5771
        %5804 = vmatprep.subr.mxu0 0.0
        %5805 = vmatpush1.msra.mxu0 0.0
        %5806 = vmatprep.subr.mxu0 0.0
        %5807 = vmatpush1.msra.mxu0 0.0
        %5808 = vmatprep.subr.mxu0 0.0
        %5809 = vmatpush1.msra.mxu0 0.0
        %5810 = vmatprep.subr.mxu0 0.0
        %5811 = vmatpush1.msra.mxu0 0.0
        %5812 = vmatprep.subr.mxu0 0.0
        %5813 = vmatpush1.msra.mxu0 0.0
        %5814 = vmatprep.subr.mxu0 0.0
        %5815 = vmatpush1.msra.mxu0 0.0
        %5816 = vmatprep.subr.mxu0 0.0
        %5817 = vmatpush1.msra.mxu0 0.0
        %5818 = vmatprep.subr.mxu0 0.0
        %5819 = vmatpush1.msra.mxu0 0.0
        %5820 = vmatprep.subr.mxu0 0.0
        %5821 = vmatpush1.msra.mxu0 0.0
        %5822 = vmatprep.subr.mxu0 0.0
        %5823 = vmatpush1.msra.mxu0 0.0
        %5824 = vmatprep.subr.mxu0 0.0
        %5825 = vmatpush1.msra.mxu0 0.0
        %5826 = vmatprep.subr.mxu0 0.0
        %5827 = vmatpush1.msra.mxu0 0.0
        %5828 = vmatprep.subr.mxu0 0.0
        %5829 = vmatpush1.msra.mxu0 0.0
        %5830 = vmatprep.subr.mxu0 0.0
        %5831 = vmatpush1.msra.mxu0 0.0
        %5832 = vmatprep.subr.mxu0 0.0
        %5833 = vmatpush1.msra.mxu0 0.0
        %5834 = vmatprep.subr.mxu0 0.0
        %5835 = vmatpush1.msra.mxu0 0.0
        %5836 = vmatprep.mubr.f32.mxu0 0.0
        %5837 = vmatmul.mubr.f32.gmra.mrb[0].mxu0 %v5739
        %v5838 = vpop.f32.mrb[0].mxu0
        %v5839 = vadd.f32 0.0, %v5838
        %v5840 = vpop.f32.mrb[0].mxu0
        %5841 = vmatprep.mubr.f32.mxu0 0.0
        %5842 = vmatmul.mubr.f32.gmra.mrb[0].mxu0 %v5740
        %v5843 = vpop.f32.mrb[0].mxu0
        %v5844 = vadd.f32 0.0, %v5843
        %v5845 = vpop.f32.mrb[0].mxu0
        %5846 = vmatprep.mubr.f32.mxu0 0.0
        %5847 = vmatmul.mubr.f32.gmra.mrb[0].mxu0 %v5741
        %v5848 = vpop.f32.mrb[0].mxu0
        %v5849 = vadd.f32 0.0, %v5848
        %v5850 = vpop.f32.mrb[0].mxu0
        %5851 = vmatprep.mubr.f32.mxu0 0.0
        %5852 = vmatmul.mubr.f32.gmra.mrb[0].mxu0 %v5742
        %v5853 = vpop.f32.mrb[0].mxu0
        %v5854 = vadd.f32 0.0, %v5853
        %v5855 = vpop.f32.mrb[0].mxu0
        %5856 = vmatprep.mubr.f32.mxu0 0.0
        %5857 = vmatmul.mubr.f32.gmra.mrb[0].mxu0 %v5743
        %v5858 = vpop.f32.mrb[0].mxu0
        %v5859 = vadd.f32 0.0, %v5858
        %v5860 = vpop.f32.mrb[0].mxu0
        %5861 = vmatprep.mubr.f32.mxu0 0.0
        %5862 = vmatmul.mubr.f32.gmra.mrb[0].mxu0 %v5744
        %v5863 = vpop.f32.mrb[0].mxu0
        %v5864 = vadd.f32 0.0, %v5863
        %v5865 = vpop.f32.mrb[0].mxu0
        %5866 = vmatprep.mubr.f32.mxu0 0.0
        %5867 = vmatmul.mubr.f32.gmra.mrb[0].mxu0 %v5745
        %v5868 = vpop.f32.mrb[0].mxu0
        %v5869 = vadd.f32 0.0, %v5868
        %v5870 = vpop.f32.mrb[0].mxu0
        %5871 = vmatprep.mubr.f32.mxu0 0.0
        %5872 = vmatmul.mubr.f32.gmra.mrb[0].mxu0 %v5746
        %v5873 = vpop.f32.mrb[0].mxu0
        %v5874 = vadd.f32 0.0, %v5873
        %v5875 = vpop.f32.mrb[0].mxu0
        %5876 = vmatprep.mubr.f32.mxu0 0.0
        %5877 = vmatmul.mubr.f32.gmra.mrb[0].mxu0 %v5747
        %v5878 = vpop.f32.mrb[0].mxu0
        %v5879 = vadd.f32 0.0, %v5878
        %v5880 = vpop.f32.mrb[0].mxu0
        %5881 = vmatprep.mubr.f32.mxu0 0.0
        %5882 = vmatmul.mubr.f32.gmra.mrb[0].mxu0 %v5748
        %v5883 = vpop.f32.mrb[0].mxu0
        %v5884 = vadd.f32 0.0, %v5883
        %v5885 = vpop.f32.mrb[0].mxu0
        %5886 = vmatprep.mubr.f32.mxu0 0.0
        %5887 = vmatmul.mubr.f32.gmra.mrb[0].mxu0 %v5749
        %v5888 = vpop.f32.mrb[0].mxu0
        %v5889 = vadd.f32 0.0, %v5888
        %v5890 = vpop.f32.mrb[0].mxu0
        %5891 = vmatprep.mubr.f32.mxu0 0.0
        %5892 = vmatmul.mubr.f32.gmra.mrb[0].mxu0 %v5750
        %v5893 = vpop.f32.mrb[0].mxu0
        %v5894 = vadd.f32 0.0, %v5893
        %v5895 = vpop.f32.mrb[0].mxu0
        %5896 = vmatprep.mubr.f32.mxu0 0.0
        %5897 = vmatmul.mubr.f32.gmra.mrb[0].mxu0 %v5751
        %v5898 = vpop.f32.mrb[0].mxu0
        %v5899 = vadd.f32 0.0, %v5898
        %v5900 = vpop.f32.mrb[0].mxu0
        %5901 = vmatprep.mubr.f32.mxu0 0.0
        %5902 = vmatmul.mubr.f32.gmra.mrb[0].mxu0 %v5752
        %v5903 = vpop.f32.mrb[0].mxu0
        %v5904 = vadd.f32 0.0, %v5903
        %v5905 = vpop.f32.mrb[0].mxu0
        %5906 = vmatprep.mubr.f32.mxu0 0.0
        %5907 = vmatmul.mubr.f32.gmra.mrb[0].mxu0 %v5753
        %v5908 = vpop.f32.mrb[0].mxu0
        %v5909 = vadd.f32 0.0, %v5908
        %v5910 = vpop.f32.mrb[0].mxu0
        %5911 = vmatprep.mubr.f32.mxu0 0.0
        %5912 = vmatmul.mubr.f32.gmra.mrb[0].mxu0 %v5754
        %v5913 = vpop.f32.mrb[0].mxu0
        %v5914 = vadd.f32 0.0, %v5913
        %v5915 = vpop.f32.mrb[0].mxu0
        %5916 = vdwg.mxu0
        %5917 = vmatprep.subr.mxu0 0.0
        %5918 = vmatpush1.msra.mxu0 %v5723
        %5919 = vmatprep.subr.mxu0 0.0
        %5920 = vmatpush1.msra.mxu0 %v5724
        %5921 = vmatprep.subr.mxu0 0.0
        %5922 = vmatpush1.msra.mxu0 %v5725
        %5923 = vmatprep.subr.mxu0 0.0
        %5924 = vmatpush1.msra.mxu0 %v5726
        %5925 = vmatprep.subr.mxu0 0.0
        %5926 = vmatpush1.msra.mxu0 %v5727
        %5927 = vmatprep.subr.mxu0 0.0
        %5928 = vmatpush1.msra.mxu0 %v5728
        %5929 = vmatprep.subr.mxu0 0.0
        %5930 = vmatpush1.msra.mxu0 %v5729
        %5931 = vmatprep.subr.mxu0 0.0
        %5932 = vmatpush1.msra.mxu0 %v5730
        %5933 = vmatprep.subr.mxu0 0.0
        %5934 = vmatpush1.msra.mxu0 %v5731
        %5935 = vmatprep.subr.mxu0 0.0
        %5936 = vmatpush1.msra.mxu0 %v5732
        %5937 = vmatprep.subr.mxu0 0.0
        %5938 = vmatpush1.msra.mxu0 %v5733
        %5939 = vmatprep.subr.mxu0 0.0
        %5940 = vmatpush1.msra.mxu0 %v5734
        %5941 = vmatprep.subr.mxu0 0.0
        %5942 = vmatpush1.msra.mxu0 %v5735
        %5943 = vmatprep.subr.mxu0 0.0
        %5944 = vmatpush1.msra.mxu0 %v5736
        %5945 = vmatprep.subr.mxu0 0.0
        %5946 = vmatpush1.msra.mxu0 %v5737
        %5947 = vmatprep.subr.mxu0 0.0
        %5948 = vmatpush1.msra.mxu0 %v5738
        %5949 = vmatprep.subr.mxu0 0.0
        %5950 = vmatpush1.msra.mxu0 0.0
        %5951 = vmatprep.subr.mxu0 0.0
        %5952 = vmatpush1.msra.mxu0 0.0
        %5953 = vmatprep.subr.mxu0 0.0
        %5954 = vmatpush1.msra.mxu0 0.0
        %5955 = vmatprep.subr.mxu0 0.0
        %5956 = vmatpush1.msra.mxu0 0.0
        %5957 = vmatprep.subr.mxu0 0.0
        %5958 = vmatpush1.msra.mxu0 0.0
        %5959 = vmatprep.subr.mxu0 0.0
        %5960 = vmatpush1.msra.mxu0 0.0
        %5961 = vmatprep.subr.mxu0 0.0
        %5962 = vmatpush1.msra.mxu0 0.0
        %5963 = vmatprep.subr.mxu0 0.0
        %5964 = vmatpush1.msra.mxu0 0.0
        %5965 = vmatprep.subr.mxu0 0.0
        %5966 = vmatpush1.msra.mxu0 0.0
        %5967 = vmatprep.subr.mxu0 0.0
        %5968 = vmatpush1.msra.mxu0 0.0
        %5969 = vmatprep.subr.mxu0 0.0
        %5970 = vmatpush1.msra.mxu0 0.0
        %5971 = vmatprep.subr.mxu0 0.0
        %5972 = vmatpush1.msra.mxu0 0.0
        %5973 = vmatprep.subr.mxu0 0.0
        %5974 = vmatpush1.msra.mxu0 0.0
        %5975 = vmatprep.subr.mxu0 0.0
        %5976 = vmatpush1.msra.mxu0 0.0
        %5977 = vmatprep.subr.mxu0 0.0
        %5978 = vmatpush1.msra.mxu0 0.0
        %5979 = vmatprep.subr.mxu0 0.0
        %5980 = vmatpush1.msra.mxu0 0.0
        %5981 = vmatprep.mubr.f32.mxu0 0.0
        %5982 = vmatmul.mubr.f32.gmra.mrb[0].mxu0 %v5706
        %v5983 = vpop.f32.mrb[0].mxu0
        %v5984 = vadd.f32 %v5839, %v5983
        %v5985 = vpop.f32.mrb[0].mxu0
        %5986 = vmatprep.mubr.f32.mxu0 0.0
        %5987 = vmatmul.mubr.f32.gmra.mrb[0].mxu0 %v5707
        %v5988 = vpop.f32.mrb[0].mxu0
        %v5989 = vadd.f32 %v5844, %v5988
        %v5990 = vpop.f32.mrb[0].mxu0
        %5991 = vmatprep.mubr.f32.mxu0 0.0
        %5992 = vmatmul.mubr.f32.gmra.mrb[0].mxu0 %v5708
        %v5993 = vpop.f32.mrb[0].mxu0
        %v5994 = vadd.f32 %v5849, %v5993
        %v5995 = vpop.f32.mrb[0].mxu0
        %5996 = vmatprep.mubr.f32.mxu0 0.0
        %5997 = vmatmul.mubr.f32.gmra.mrb[0].mxu0 %v5709
        %v5998 = vpop.f32.mrb[0].mxu0
        %v5999 = vadd.f32 %v5854, %v5998
        %v6000 = vpop.f32.mrb[0].mxu0
        %6001 = vmatprep.mubr.f32.mxu0 0.0
        %6002 = vmatmul.mubr.f32.gmra.mrb[0].mxu0 %v5710
        %v6003 = vpop.f32.mrb[0].mxu0
        %v6004 = vadd.f32 %v5859, %v6003
        %v6005 = vpop.f32.mrb[0].mxu0
        %6006 = vmatprep.mubr.f32.mxu0 0.0
        %6007 = vmatmul.mubr.f32.gmra.mrb[0].mxu0 %v5711
        %v6008 = vpop.f32.mrb[0].mxu0
        %v6009 = vadd.f32 %v5864, %v6008
        %v6010 = vpop.f32.mrb[0].mxu0
        %6011 = vmatprep.mubr.f32.mxu0 0.0
        %6012 = vmatmul.mubr.f32.gmra.mrb[0].mxu0 %v5712
        %v6013 = vpop.f32.mrb[0].mxu0
        %v6014 = vadd.f32 %v5869, %v6013
        %v6015 = vpop.f32.mrb[0].mxu0
        %6016 = vmatprep.mubr.f32.mxu0 0.0
        %6017 = vmatmul.mubr.f32.gmra.mrb[0].mxu0 %v5713
        %v6018 = vpop.f32.mrb[0].mxu0
        %v6019 = vadd.f32 %v5874, %v6018
        %v6020 = vpop.f32.mrb[0].mxu0
        %6021 = vmatprep.mubr.f32.mxu0 0.0
        %6022 = vmatmul.mubr.f32.gmra.mrb[0].mxu0 %v5714
        %v6023 = vpop.f32.mrb[0].mxu0
        %v6024 = vadd.f32 %v5879, %v6023
        %v6025 = vpop.f32.mrb[0].mxu0
        %6026 = vmatprep.mubr.f32.mxu0 0.0
        %6027 = vmatmul.mubr.f32.gmra.mrb[0].mxu0 %v5715
        %v6028 = vpop.f32.mrb[0].mxu0
        %v6029 = vadd.f32 %v5884, %v6028
        %v6030 = vpop.f32.mrb[0].mxu0
        %6031 = vmatprep.mubr.f32.mxu0 0.0
        %6032 = vmatmul.mubr.f32.gmra.mrb[0].mxu0 %v5716
        %v6033 = vpop.f32.mrb[0].mxu0
        %v6034 = vadd.f32 %v5889, %v6033
        %v6035 = vpop.f32.mrb[0].mxu0
        %6036 = vmatprep.mubr.f32.mxu0 0.0
        %6037 = vmatmul.mubr.f32.gmra.mrb[0].mxu0 %v5717
        %v6038 = vpop.f32.mrb[0].mxu0
        %v6039 = vadd.f32 %v5894, %v6038
        %v6040 = vpop.f32.mrb[0].mxu0
        %6041 = vmatprep.mubr.f32.mxu0 0.0
        %6042 = vmatmul.mubr.f32.gmra.mrb[0].mxu0 %v5718
        %v6043 = vpop.f32.mrb[0].mxu0
        %v6044 = vadd.f32 %v5899, %v6043
        %v6045 = vpop.f32.mrb[0].mxu0
        %6046 = vmatprep.mubr.f32.mxu0 0.0
        %6047 = vmatmul.mubr.f32.gmra.mrb[0].mxu0 %v5719
        %v6048 = vpop.f32.mrb[0].mxu0
        %v6049 = vadd.f32 %v5904, %v6048
        %v6050 = vpop.f32.mrb[0].mxu0
        %6051 = vmatprep.mubr.f32.mxu0 0.0
        %6052 = vmatmul.mubr.f32.gmra.mrb[0].mxu0 %v5720
        %v6053 = vpop.f32.mrb[0].mxu0
        %v6054 = vadd.f32 %v5909, %v6053
        %v6055 = vpop.f32.mrb[0].mxu0
        %6056 = vmatprep.mubr.f32.mxu0 0.0
        %6057 = vmatmul.mubr.f32.gmra.mrb[0].mxu0 %v5721
        %v6058 = vpop.f32.mrb[0].mxu0
        %v6059 = vadd.f32 %v5914, %v6058
        %v6060 = vpop.f32.mrb[0].mxu0
        %6061 = vdwg.mxu0
        %v6062 = vld [vmem:[#allocation2 + $0x9] sm:$0xff]
        %v6063 = vld [vmem:[#allocation2 + $0x21] sm:$0xff]
        %v6064 = vld [vmem:[#allocation2 + $0x39] sm:$0xff]
        %v6065 = vld [vmem:[#allocation2 + $0x51] sm:$0xff]
        %v6066 = vld [vmem:[#allocation2 + $0x69] sm:$0xff]
        %v6067 = vld [vmem:[#allocation2 + $0x81] sm:$0xff]
        %v6068 = vld [vmem:[#allocation2 + $0x99] sm:$0xff]
        %v6069 = vld [vmem:[#allocation2 + $0xb1] sm:$0xff]
        %v6070 = vld [vmem:[#allocation2 + $0xc9] sm:$0xff]
        %v6071 = vld [vmem:[#allocation2 + $0xe1] sm:$0xff]
        %v6072 = vld [vmem:[#allocation2 + $0xf9] sm:$0xff]
        %v6073 = vld [vmem:[#allocation2 + $0x111] sm:$0xff]
        %v6074 = vld [vmem:[#allocation2 + $0x129] sm:$0xff]
        %v6075 = vld [vmem:[#allocation2 + $0x141] sm:$0xff]
        %v6076 = vld [vmem:[#allocation2 + $0x159] sm:$0xff]
        %v6077 = vld [vmem:[#allocation2 + $0x171] sm:$0xff]
        %s6078 = scalar_lea.vmem [#allocation7], 12928
        %v6079 = vld [vmem:[%s6078] sm:$0xff]
        %v6080 = vld [vmem:[%s6078 + $0x8] sm:$0xff]
        %v6081 = vld [vmem:[%s6078 + $0x10] sm:$0xff]
        %v6082 = vld [vmem:[%s6078 + $0x18] sm:$0xff]
        %v6083 = vld [vmem:[%s6078 + $0x20] sm:$0xff]
        %v6084 = vld [vmem:[%s6078 + $0x28] sm:$0xff]
        %v6085 = vld [vmem:[%s6078 + $0x30] sm:$0xff]
        %v6086 = vld [vmem:[%s6078 + $0x38] sm:$0xff]
        %v6087 = vld [vmem:[%s6078 + $0x40] sm:$0xff]
        %v6088 = vld [vmem:[%s6078 + $0x48] sm:$0xff]
        %v6089 = vld [vmem:[%s6078 + $0x50] sm:$0xff]
        %v6090 = vld [vmem:[%s6078 + $0x58] sm:$0xff]
        %v6091 = vld [vmem:[%s6078 + $0x60] sm:$0xff]
        %v6092 = vld [vmem:[%s6078 + $0x68] sm:$0xff]
        %v6093 = vld [vmem:[%s6078 + $0x70] sm:$0xff]
        %v6094 = vld [vmem:[%s6078 + $0x78] sm:$0xff]
        %6095 = vmatprep.subr.mxu0 0.0
        %6096 = vmatpush1.msra.mxu0 %v6079
        %6097 = vmatprep.subr.mxu0 0.0
        %6098 = vmatpush1.msra.mxu0 %v6080
        %6099 = vmatprep.subr.mxu0 0.0
        %6100 = vmatpush1.msra.mxu0 %v6081
        %6101 = vmatprep.subr.mxu0 0.0
        %6102 = vmatpush1.msra.mxu0 %v6082
        %6103 = vmatprep.subr.mxu0 0.0
        %6104 = vmatpush1.msra.mxu0 %v6083
        %6105 = vmatprep.subr.mxu0 0.0
        %6106 = vmatpush1.msra.mxu0 %v6084
        %6107 = vmatprep.subr.mxu0 0.0
        %6108 = vmatpush1.msra.mxu0 %v6085
        %6109 = vmatprep.subr.mxu0 0.0
        %6110 = vmatpush1.msra.mxu0 %v6086
        %6111 = vmatprep.subr.mxu0 0.0
        %6112 = vmatpush1.msra.mxu0 %v6087
        %6113 = vmatprep.subr.mxu0 0.0
        %6114 = vmatpush1.msra.mxu0 %v6088
        %6115 = vmatprep.subr.mxu0 0.0
        %6116 = vmatpush1.msra.mxu0 %v6089
        %6117 = vmatprep.subr.mxu0 0.0
        %6118 = vmatpush1.msra.mxu0 %v6090
        %6119 = vmatprep.subr.mxu0 0.0
        %6120 = vmatpush1.msra.mxu0 %v6091
        %6121 = vmatprep.subr.mxu0 0.0
        %6122 = vmatpush1.msra.mxu0 %v6092
        %6123 = vmatprep.subr.mxu0 0.0
        %6124 = vmatpush1.msra.mxu0 %v6093
        %6125 = vmatprep.subr.mxu0 0.0
        %6126 = vmatpush1.msra.mxu0 %v6094
        %6127 = vmatprep.subr.mxu0 0.0
        %6128 = vmatpush1.msra.mxu0 0.0
        %6129 = vmatprep.subr.mxu0 0.0
        %6130 = vmatpush1.msra.mxu0 0.0
        %6131 = vmatprep.subr.mxu0 0.0
        %6132 = vmatpush1.msra.mxu0 0.0
        %6133 = vmatprep.subr.mxu0 0.0
        %6134 = vmatpush1.msra.mxu0 0.0
        %6135 = vmatprep.subr.mxu0 0.0
        %6136 = vmatpush1.msra.mxu0 0.0
        %6137 = vmatprep.subr.mxu0 0.0
        %6138 = vmatpush1.msra.mxu0 0.0
        %6139 = vmatprep.subr.mxu0 0.0
        %6140 = vmatpush1.msra.mxu0 0.0
        %6141 = vmatprep.subr.mxu0 0.0
        %6142 = vmatpush1.msra.mxu0 0.0
        %6143 = vmatprep.subr.mxu0 0.0
        %6144 = vmatpush1.msra.mxu0 0.0
        %6145 = vmatprep.subr.mxu0 0.0
        %6146 = vmatpush1.msra.mxu0 0.0
        %6147 = vmatprep.subr.mxu0 0.0
        %6148 = vmatpush1.msra.mxu0 0.0
        %6149 = vmatprep.subr.mxu0 0.0
        %6150 = vmatpush1.msra.mxu0 0.0
        %6151 = vmatprep.subr.mxu0 0.0
        %6152 = vmatpush1.msra.mxu0 0.0
        %6153 = vmatprep.subr.mxu0 0.0
        %6154 = vmatpush1.msra.mxu0 0.0
        %6155 = vmatprep.subr.mxu0 0.0
        %6156 = vmatpush1.msra.mxu0 0.0
        %6157 = vmatprep.subr.mxu0 0.0
        %6158 = vmatpush1.msra.mxu0 0.0
        %6159 = vmatprep.mubr.f32.mxu0 0.0
        %6160 = vmatmul.mubr.f32.gmra.mrb[0].mxu0 %v6062
        %v6161 = vpop.f32.mrb[0].mxu0
        %v6162 = vadd.f32 0.0, %v6161
        %v6163 = vpop.f32.mrb[0].mxu0
        %6164 = vmatprep.mubr.f32.mxu0 0.0
        %6165 = vmatmul.mubr.f32.gmra.mrb[0].mxu0 %v6063
        %v6166 = vpop.f32.mrb[0].mxu0
        %v6167 = vadd.f32 0.0, %v6166
        %v6168 = vpop.f32.mrb[0].mxu0
        %6169 = vmatprep.mubr.f32.mxu0 0.0
        %6170 = vmatmul.mubr.f32.gmra.mrb[0].mxu0 %v6064
        %v6171 = vpop.f32.mrb[0].mxu0
        %v6172 = vadd.f32 0.0, %v6171
        %v6173 = vpop.f32.mrb[0].mxu0
        %6174 = vmatprep.mubr.f32.mxu0 0.0
        %6175 = vmatmul.mubr.f32.gmra.mrb[0].mxu0 %v6065
        %v6176 = vpop.f32.mrb[0].mxu0
        %v6177 = vadd.f32 0.0, %v6176
        %v6178 = vpop.f32.mrb[0].mxu0
        %6179 = vmatprep.mubr.f32.mxu0 0.0
        %6180 = vmatmul.mubr.f32.gmra.mrb[0].mxu0 %v6066
        %v6181 = vpop.f32.mrb[0].mxu0
        %v6182 = vadd.f32 0.0, %v6181
        %v6183 = vpop.f32.mrb[0].mxu0
        %6184 = vmatprep.mubr.f32.mxu0 0.0
        %6185 = vmatmul.mubr.f32.gmra.mrb[0].mxu0 %v6067
        %v6186 = vpop.f32.mrb[0].mxu0
        %v6187 = vadd.f32 0.0, %v6186
        %v6188 = vpop.f32.mrb[0].mxu0
        %6189 = vmatprep.mubr.f32.mxu0 0.0
        %6190 = vmatmul.mubr.f32.gmra.mrb[0].mxu0 %v6068
        %v6191 = vpop.f32.mrb[0].mxu0
        %v6192 = vadd.f32 0.0, %v6191
        %v6193 = vpop.f32.mrb[0].mxu0
        %6194 = vmatprep.mubr.f32.mxu0 0.0
        %6195 = vmatmul.mubr.f32.gmra.mrb[0].mxu0 %v6069
        %v6196 = vpop.f32.mrb[0].mxu0
        %v6197 = vadd.f32 0.0, %v6196
        %v6198 = vpop.f32.mrb[0].mxu0
        %6199 = vmatprep.mubr.f32.mxu0 0.0
        %6200 = vmatmul.mubr.f32.gmra.mrb[0].mxu0 %v6070
        %v6201 = vpop.f32.mrb[0].mxu0
        %v6202 = vadd.f32 0.0, %v6201
        %v6203 = vpop.f32.mrb[0].mxu0
        %6204 = vmatprep.mubr.f32.mxu0 0.0
        %6205 = vmatmul.mubr.f32.gmra.mrb[0].mxu0 %v6071
        %v6206 = vpop.f32.mrb[0].mxu0
        %v6207 = vadd.f32 0.0, %v6206
        %v6208 = vpop.f32.mrb[0].mxu0
        %6209 = vmatprep.mubr.f32.mxu0 0.0
        %6210 = vmatmul.mubr.f32.gmra.mrb[0].mxu0 %v6072
        %v6211 = vpop.f32.mrb[0].mxu0
        %v6212 = vadd.f32 0.0, %v6211
        %v6213 = vpop.f32.mrb[0].mxu0
        %6214 = vmatprep.mubr.f32.mxu0 0.0
        %6215 = vmatmul.mubr.f32.gmra.mrb[0].mxu0 %v6073
        %v6216 = vpop.f32.mrb[0].mxu0
        %v6217 = vadd.f32 0.0, %v6216
        %v6218 = vpop.f32.mrb[0].mxu0
        %6219 = vmatprep.mubr.f32.mxu0 0.0
        %6220 = vmatmul.mubr.f32.gmra.mrb[0].mxu0 %v6074
        %v6221 = vpop.f32.mrb[0].mxu0
        %v6222 = vadd.f32 0.0, %v6221
        %v6223 = vpop.f32.mrb[0].mxu0
        %6224 = vmatprep.mubr.f32.mxu0 0.0
        %6225 = vmatmul.mubr.f32.gmra.mrb[0].mxu0 %v6075
        %v6226 = vpop.f32.mrb[0].mxu0
        %v6227 = vadd.f32 0.0, %v6226
        %v6228 = vpop.f32.mrb[0].mxu0
        %6229 = vmatprep.mubr.f32.mxu0 0.0
        %6230 = vmatmul.mubr.f32.gmra.mrb[0].mxu0 %v6076
        %v6231 = vpop.f32.mrb[0].mxu0
        %v6232 = vadd.f32 0.0, %v6231
        %v6233 = vpop.f32.mrb[0].mxu0
        %6234 = vmatprep.mubr.f32.mxu0 0.0
        %6235 = vmatmul.mubr.f32.gmra.mrb[0].mxu0 %v6077
        %v6236 = vpop.f32.mrb[0].mxu0
        %v6237 = vadd.f32 0.0, %v6236
        %v6238 = vpop.f32.mrb[0].mxu0
        %6239 = vdwg.mxu0
        %v6240 = vadd.f32 %v5984, %v6162
        %v6241 = vadd.f32 %v5989, %v6167
        %v6242 = vadd.f32 %v5994, %v6172
        %v6243 = vadd.f32 %v5999, %v6177
        %v6244 = vadd.f32 %v6004, %v6182
        %v6245 = vadd.f32 %v6009, %v6187
        %v6246 = vadd.f32 %v6014, %v6192
        %v6247 = vadd.f32 %v6019, %v6197
        %v6248 = vadd.f32 %v6024, %v6202
        %v6249 = vadd.f32 %v6029, %v6207
        %v6250 = vadd.f32 %v6034, %v6212
        %v6251 = vadd.f32 %v6039, %v6217
        %v6252 = vadd.f32 %v6044, %v6222
        %v6253 = vadd.f32 %v6049, %v6227
        %v6254 = vadd.f32 %v6054, %v6232
        %v6255 = vadd.f32 %v6059, %v6237
        %v6256 = vld [vmem:[%s223 + $0x7] sm:$0xff]
        %v6257 = vld [vmem:[%s223 + $0x1f] sm:$0xff]
        %v6258 = vld [vmem:[%s223 + $0x37] sm:$0xff]
        %v6259 = vld [vmem:[%s223 + $0x4f] sm:$0xff]
        %v6260 = vld [vmem:[%s223 + $0x67] sm:$0xff]
        %v6261 = vld [vmem:[%s223 + $0x7f] sm:$0xff]
        %v6262 = vld [vmem:[%s223 + $0x97] sm:$0xff]
        %v6263 = vld [vmem:[%s223 + $0xaf] sm:$0xff]
        %v6264 = vld [vmem:[%s223 + $0xc7] sm:$0xff]
        %v6265 = vld [vmem:[%s223 + $0xdf] sm:$0xff]
        %v6266 = vld [vmem:[%s223 + $0xf7] sm:$0xff]
        %v6267 = vld [vmem:[%s223 + $0x10f] sm:$0xff]
        %v6268 = vld [vmem:[%s223 + $0x127] sm:$0xff]
        %v6269 = vld [vmem:[%s223 + $0x13f] sm:$0xff]
        %v6270 = vld [vmem:[%s223 + $0x157] sm:$0xff]
        %v6271 = vld [vmem:[%s223 + $0x16f] sm:$0xff]
        %s6272 = scalar_lea.vmem [#allocation7], 13056
        %v6273 = vld [vmem:[%s6272] sm:$0xff]
        %v6274 = vld [vmem:[%s6272 + $0x8] sm:$0xff]
        %v6275 = vld [vmem:[%s6272 + $0x10] sm:$0xff]
        %v6276 = vld [vmem:[%s6272 + $0x18] sm:$0xff]
        %v6277 = vld [vmem:[%s6272 + $0x20] sm:$0xff]
        %v6278 = vld [vmem:[%s6272 + $0x28] sm:$0xff]
        %v6279 = vld [vmem:[%s6272 + $0x30] sm:$0xff]
        %v6280 = vld [vmem:[%s6272 + $0x38] sm:$0xff]
        %v6281 = vld [vmem:[%s6272 + $0x40] sm:$0xff]
        %v6282 = vld [vmem:[%s6272 + $0x48] sm:$0xff]
        %v6283 = vld [vmem:[%s6272 + $0x50] sm:$0xff]
        %v6284 = vld [vmem:[%s6272 + $0x58] sm:$0xff]
        %v6285 = vld [vmem:[%s6272 + $0x60] sm:$0xff]
        %v6286 = vld [vmem:[%s6272 + $0x68] sm:$0xff]
        %v6287 = vld [vmem:[%s6272 + $0x70] sm:$0xff]
        %v6288 = vld [vmem:[%s6272 + $0x78] sm:$0xff]
        %6289 = vmatprep.subr.mxu0 0.0
        %6290 = vmatpush1.msra.mxu0 %v6273
        %6291 = vmatprep.subr.mxu0 0.0
        %6292 = vmatpush1.msra.mxu0 %v6274
        %6293 = vmatprep.subr.mxu0 0.0
        %6294 = vmatpush1.msra.mxu0 %v6275
        %6295 = vmatprep.subr.mxu0 0.0
        %6296 = vmatpush1.msra.mxu0 %v6276
        %6297 = vmatprep.subr.mxu0 0.0
        %6298 = vmatpush1.msra.mxu0 %v6277
        %6299 = vmatprep.subr.mxu0 0.0
        %6300 = vmatpush1.msra.mxu0 %v6278
        %6301 = vmatprep.subr.mxu0 0.0
        %6302 = vmatpush1.msra.mxu0 %v6279
        %6303 = vmatprep.subr.mxu0 0.0
        %6304 = vmatpush1.msra.mxu0 %v6280
        %6305 = vmatprep.subr.mxu0 0.0
        %6306 = vmatpush1.msra.mxu0 %v6281
        %6307 = vmatprep.subr.mxu0 0.0
        %6308 = vmatpush1.msra.mxu0 %v6282
        %6309 = vmatprep.subr.mxu0 0.0
        %6310 = vmatpush1.msra.mxu0 %v6283
        %6311 = vmatprep.subr.mxu0 0.0
        %6312 = vmatpush1.msra.mxu0 %v6284
        %6313 = vmatprep.subr.mxu0 0.0
        %6314 = vmatpush1.msra.mxu0 %v6285
        %6315 = vmatprep.subr.mxu0 0.0
        %6316 = vmatpush1.msra.mxu0 %v6286
        %6317 = vmatprep.subr.mxu0 0.0
        %6318 = vmatpush1.msra.mxu0 %v6287
        %6319 = vmatprep.subr.mxu0 0.0
        %6320 = vmatpush1.msra.mxu0 %v6288
        %6321 = vmatprep.subr.mxu0 0.0
        %6322 = vmatpush1.msra.mxu0 0.0
        %6323 = vmatprep.subr.mxu0 0.0
        %6324 = vmatpush1.msra.mxu0 0.0
        %6325 = vmatprep.subr.mxu0 0.0
        %6326 = vmatpush1.msra.mxu0 0.0
        %6327 = vmatprep.subr.mxu0 0.0
        %6328 = vmatpush1.msra.mxu0 0.0
        %6329 = vmatprep.subr.mxu0 0.0
        %6330 = vmatpush1.msra.mxu0 0.0
        %6331 = vmatprep.subr.mxu0 0.0
        %6332 = vmatpush1.msra.mxu0 0.0
        %6333 = vmatprep.subr.mxu0 0.0
        %6334 = vmatpush1.msra.mxu0 0.0
        %6335 = vmatprep.subr.mxu0 0.0
        %6336 = vmatpush1.msra.mxu0 0.0
        %6337 = vmatprep.subr.mxu0 0.0
        %6338 = vmatpush1.msra.mxu0 0.0
        %6339 = vmatprep.subr.mxu0 0.0
        %6340 = vmatpush1.msra.mxu0 0.0
        %6341 = vmatprep.subr.mxu0 0.0
        %6342 = vmatpush1.msra.mxu0 0.0
        %6343 = vmatprep.subr.mxu0 0.0
        %6344 = vmatpush1.msra.mxu0 0.0
        %6345 = vmatprep.subr.mxu0 0.0
        %6346 = vmatpush1.msra.mxu0 0.0
        %6347 = vmatprep.subr.mxu0 0.0
        %6348 = vmatpush1.msra.mxu0 0.0
        %6349 = vmatprep.subr.mxu0 0.0
        %6350 = vmatpush1.msra.mxu0 0.0
        %6351 = vmatprep.subr.mxu0 0.0
        %6352 = vmatpush1.msra.mxu0 0.0
        %6353 = vmatprep.mubr.f32.mxu0 0.0
        %6354 = vmatmul.mubr.f32.gmra.mrb[0].mxu0 %v6256
        %v6355 = vpop.f32.mrb[0].mxu0
        %v6356 = vadd.f32 0.0, %v6355
        %v6357 = vpop.f32.mrb[0].mxu0
        %6358 = vmatprep.mubr.f32.mxu0 0.0
        %6359 = vmatmul.mubr.f32.gmra.mrb[0].mxu0 %v6257
        %v6360 = vpop.f32.mrb[0].mxu0
        %v6361 = vadd.f32 0.0, %v6360
        %v6362 = vpop.f32.mrb[0].mxu0
        %6363 = vmatprep.mubr.f32.mxu0 0.0
        %6364 = vmatmul.mubr.f32.gmra.mrb[0].mxu0 %v6258
        %v6365 = vpop.f32.mrb[0].mxu0
        %v6366 = vadd.f32 0.0, %v6365
        %v6367 = vpop.f32.mrb[0].mxu0
        %6368 = vmatprep.mubr.f32.mxu0 0.0
        %6369 = vmatmul.mubr.f32.gmra.mrb[0].mxu0 %v6259
        %v6370 = vpop.f32.mrb[0].mxu0
        %v6371 = vadd.f32 0.0, %v6370
        %v6372 = vpop.f32.mrb[0].mxu0
        %6373 = vmatprep.mubr.f32.mxu0 0.0
        %6374 = vmatmul.mubr.f32.gmra.mrb[0].mxu0 %v6260
        %v6375 = vpop.f32.mrb[0].mxu0
        %v6376 = vadd.f32 0.0, %v6375
        %v6377 = vpop.f32.mrb[0].mxu0
        %6378 = vmatprep.mubr.f32.mxu0 0.0
        %6379 = vmatmul.mubr.f32.gmra.mrb[0].mxu0 %v6261
        %v6380 = vpop.f32.mrb[0].mxu0
        %v6381 = vadd.f32 0.0, %v6380
        %v6382 = vpop.f32.mrb[0].mxu0
        %6383 = vmatprep.mubr.f32.mxu0 0.0
        %6384 = vmatmul.mubr.f32.gmra.mrb[0].mxu0 %v6262
        %v6385 = vpop.f32.mrb[0].mxu0
        %v6386 = vadd.f32 0.0, %v6385
        %v6387 = vpop.f32.mrb[0].mxu0
        %6388 = vmatprep.mubr.f32.mxu0 0.0
        %6389 = vmatmul.mubr.f32.gmra.mrb[0].mxu0 %v6263
        %v6390 = vpop.f32.mrb[0].mxu0
        %v6391 = vadd.f32 0.0, %v6390
        %v6392 = vpop.f32.mrb[0].mxu0
        %6393 = vmatprep.mubr.f32.mxu0 0.0
        %6394 = vmatmul.mubr.f32.gmra.mrb[0].mxu0 %v6264
        %v6395 = vpop.f32.mrb[0].mxu0
        %v6396 = vadd.f32 0.0, %v6395
        %v6397 = vpop.f32.mrb[0].mxu0
        %6398 = vmatprep.mubr.f32.mxu0 0.0
        %6399 = vmatmul.mubr.f32.gmra.mrb[0].mxu0 %v6265
        %v6400 = vpop.f32.mrb[0].mxu0
        %v6401 = vadd.f32 0.0, %v6400
        %v6402 = vpop.f32.mrb[0].mxu0
        %6403 = vmatprep.mubr.f32.mxu0 0.0
        %6404 = vmatmul.mubr.f32.gmra.mrb[0].mxu0 %v6266
        %v6405 = vpop.f32.mrb[0].mxu0
        %v6406 = vadd.f32 0.0, %v6405
        %v6407 = vpop.f32.mrb[0].mxu0
        %6408 = vmatprep.mubr.f32.mxu0 0.0
        %6409 = vmatmul.mubr.f32.gmra.mrb[0].mxu0 %v6267
        %v6410 = vpop.f32.mrb[0].mxu0
        %v6411 = vadd.f32 0.0, %v6410
        %v6412 = vpop.f32.mrb[0].mxu0
        %6413 = vmatprep.mubr.f32.mxu0 0.0
        %6414 = vmatmul.mubr.f32.gmra.mrb[0].mxu0 %v6268
        %v6415 = vpop.f32.mrb[0].mxu0
        %v6416 = vadd.f32 0.0, %v6415
        %v6417 = vpop.f32.mrb[0].mxu0
        %6418 = vmatprep.mubr.f32.mxu0 0.0
        %6419 = vmatmul.mubr.f32.gmra.mrb[0].mxu0 %v6269
        %v6420 = vpop.f32.mrb[0].mxu0
        %v6421 = vadd.f32 0.0, %v6420
        %v6422 = vpop.f32.mrb[0].mxu0
        %6423 = vmatprep.mubr.f32.mxu0 0.0
        %6424 = vmatmul.mubr.f32.gmra.mrb[0].mxu0 %v6270
        %v6425 = vpop.f32.mrb[0].mxu0
        %v6426 = vadd.f32 0.0, %v6425
        %v6427 = vpop.f32.mrb[0].mxu0
        %6428 = vmatprep.mubr.f32.mxu0 0.0
        %6429 = vmatmul.mubr.f32.gmra.mrb[0].mxu0 %v6271
        %v6430 = vpop.f32.mrb[0].mxu0
        %v6431 = vadd.f32 0.0, %v6430
        %v6432 = vpop.f32.mrb[0].mxu0
        %6433 = vdwg.mxu0
        %v6434 = vadd.f32 %v6240, %v6356
        %v6435 = vadd.f32 %v6241, %v6361
        %v6436 = vadd.f32 %v6242, %v6366
        %v6437 = vadd.f32 %v6243, %v6371
        %v6438 = vadd.f32 %v6244, %v6376
        %v6439 = vadd.f32 %v6245, %v6381
        %v6440 = vadd.f32 %v6246, %v6386
        %v6441 = vadd.f32 %v6247, %v6391
        %v6442 = vadd.f32 %v6248, %v6396
        %v6443 = vadd.f32 %v6249, %v6401
        %v6444 = vadd.f32 %v6250, %v6406
        %v6445 = vadd.f32 %v6251, %v6411
        %v6446 = vadd.f32 %v6252, %v6416
        %v6447 = vadd.f32 %v6253, %v6421
        %v6448 = vadd.f32 %v6254, %v6426
        %v6449 = vadd.f32 %v6255, %v6431
        %v6450 = vld [vmem:[%s223 + $0x8] sm:$0xff]
        %v6451 = vld [vmem:[%s223 + $0x20] sm:$0xff]
        %v6452 = vld [vmem:[%s223 + $0x38] sm:$0xff]
        %v6453 = vld [vmem:[%s223 + $0x50] sm:$0xff]
        %v6454 = vld [vmem:[%s223 + $0x68] sm:$0xff]
        %v6455 = vld [vmem:[%s223 + $0x80] sm:$0xff]
        %v6456 = vld [vmem:[%s223 + $0x98] sm:$0xff]
        %v6457 = vld [vmem:[%s223 + $0xb0] sm:$0xff]
        %v6458 = vld [vmem:[%s223 + $0xc8] sm:$0xff]
        %v6459 = vld [vmem:[%s223 + $0xe0] sm:$0xff]
        %v6460 = vld [vmem:[%s223 + $0xf8] sm:$0xff]
        %v6461 = vld [vmem:[%s223 + $0x110] sm:$0xff]
        %v6462 = vld [vmem:[%s223 + $0x128] sm:$0xff]
        %v6463 = vld [vmem:[%s223 + $0x140] sm:$0xff]
        %v6464 = vld [vmem:[%s223 + $0x158] sm:$0xff]
        %v6465 = vld [vmem:[%s223 + $0x170] sm:$0xff]
        %s6466 = scalar_lea.vmem [#allocation7], 13184
        %v6467 = vld [vmem:[%s6466] sm:$0xff]
        %v6468 = vld [vmem:[%s6466 + $0x8] sm:$0xff]
        %v6469 = vld [vmem:[%s6466 + $0x10] sm:$0xff]
        %v6470 = vld [vmem:[%s6466 + $0x18] sm:$0xff]
        %v6471 = vld [vmem:[%s6466 + $0x20] sm:$0xff]
        %v6472 = vld [vmem:[%s6466 + $0x28] sm:$0xff]
        %v6473 = vld [vmem:[%s6466 + $0x30] sm:$0xff]
        %v6474 = vld [vmem:[%s6466 + $0x38] sm:$0xff]
        %v6475 = vld [vmem:[%s6466 + $0x40] sm:$0xff]
        %v6476 = vld [vmem:[%s6466 + $0x48] sm:$0xff]
        %v6477 = vld [vmem:[%s6466 + $0x50] sm:$0xff]
        %v6478 = vld [vmem:[%s6466 + $0x58] sm:$0xff]
        %v6479 = vld [vmem:[%s6466 + $0x60] sm:$0xff]
        %v6480 = vld [vmem:[%s6466 + $0x68] sm:$0xff]
        %v6481 = vld [vmem:[%s6466 + $0x70] sm:$0xff]
        %v6482 = vld [vmem:[%s6466 + $0x78] sm:$0xff]
        %6483 = vmatprep.subr.mxu0 0.0
        %6484 = vmatpush1.msra.mxu0 %v6467
        %6485 = vmatprep.subr.mxu0 0.0
        %6486 = vmatpush1.msra.mxu0 %v6468
        %6487 = vmatprep.subr.mxu0 0.0
        %6488 = vmatpush1.msra.mxu0 %v6469
        %6489 = vmatprep.subr.mxu0 0.0
        %6490 = vmatpush1.msra.mxu0 %v6470
        %6491 = vmatprep.subr.mxu0 0.0
        %6492 = vmatpush1.msra.mxu0 %v6471
        %6493 = vmatprep.subr.mxu0 0.0
        %6494 = vmatpush1.msra.mxu0 %v6472
        %6495 = vmatprep.subr.mxu0 0.0
        %6496 = vmatpush1.msra.mxu0 %v6473
        %6497 = vmatprep.subr.mxu0 0.0
        %6498 = vmatpush1.msra.mxu0 %v6474
        %6499 = vmatprep.subr.mxu0 0.0
        %6500 = vmatpush1.msra.mxu0 %v6475
        %6501 = vmatprep.subr.mxu0 0.0
        %6502 = vmatpush1.msra.mxu0 %v6476
        %6503 = vmatprep.subr.mxu0 0.0
        %6504 = vmatpush1.msra.mxu0 %v6477
        %6505 = vmatprep.subr.mxu0 0.0
        %6506 = vmatpush1.msra.mxu0 %v6478
        %6507 = vmatprep.subr.mxu0 0.0
        %6508 = vmatpush1.msra.mxu0 %v6479
        %6509 = vmatprep.subr.mxu0 0.0
        %6510 = vmatpush1.msra.mxu0 %v6480
        %6511 = vmatprep.subr.mxu0 0.0
        %6512 = vmatpush1.msra.mxu0 %v6481
        %6513 = vmatprep.subr.mxu0 0.0
        %6514 = vmatpush1.msra.mxu0 %v6482
        %6515 = vmatprep.subr.mxu0 0.0
        %6516 = vmatpush1.msra.mxu0 0.0
        %6517 = vmatprep.subr.mxu0 0.0
        %6518 = vmatpush1.msra.mxu0 0.0
        %6519 = vmatprep.subr.mxu0 0.0
        %6520 = vmatpush1.msra.mxu0 0.0
        %6521 = vmatprep.subr.mxu0 0.0
        %6522 = vmatpush1.msra.mxu0 0.0
        %6523 = vmatprep.subr.mxu0 0.0
        %6524 = vmatpush1.msra.mxu0 0.0
        %6525 = vmatprep.subr.mxu0 0.0
        %6526 = vmatpush1.msra.mxu0 0.0
        %6527 = vmatprep.subr.mxu0 0.0
        %6528 = vmatpush1.msra.mxu0 0.0
        %6529 = vmatprep.subr.mxu0 0.0
        %6530 = vmatpush1.msra.mxu0 0.0
        %6531 = vmatprep.subr.mxu0 0.0
        %6532 = vmatpush1.msra.mxu0 0.0
        %6533 = vmatprep.subr.mxu0 0.0
        %6534 = vmatpush1.msra.mxu0 0.0
        %6535 = vmatprep.subr.mxu0 0.0
        %6536 = vmatpush1.msra.mxu0 0.0
        %6537 = vmatprep.subr.mxu0 0.0
        %6538 = vmatpush1.msra.mxu0 0.0
        %6539 = vmatprep.subr.mxu0 0.0
        %6540 = vmatpush1.msra.mxu0 0.0
        %6541 = vmatprep.subr.mxu0 0.0
        %6542 = vmatpush1.msra.mxu0 0.0
        %6543 = vmatprep.subr.mxu0 0.0
        %6544 = vmatpush1.msra.mxu0 0.0
        %6545 = vmatprep.subr.mxu0 0.0
        %6546 = vmatpush1.msra.mxu0 0.0
        %6547 = vmatprep.mubr.f32.mxu0 0.0
        %6548 = vmatmul.mubr.f32.gmra.mrb[0].mxu0 %v6450
        %v6549 = vpop.f32.mrb[0].mxu0
        %v6550 = vadd.f32 0.0, %v6549
        %v6551 = vpop.f32.mrb[0].mxu0
        %6552 = vmatprep.mubr.f32.mxu0 0.0
        %6553 = vmatmul.mubr.f32.gmra.mrb[0].mxu0 %v6451
        %v6554 = vpop.f32.mrb[0].mxu0
        %v6555 = vadd.f32 0.0, %v6554
        %v6556 = vpop.f32.mrb[0].mxu0
        %6557 = vmatprep.mubr.f32.mxu0 0.0
        %6558 = vmatmul.mubr.f32.gmra.mrb[0].mxu0 %v6452
        %v6559 = vpop.f32.mrb[0].mxu0
        %v6560 = vadd.f32 0.0, %v6559
        %v6561 = vpop.f32.mrb[0].mxu0
        %6562 = vmatprep.mubr.f32.mxu0 0.0
        %6563 = vmatmul.mubr.f32.gmra.mrb[0].mxu0 %v6453
        %v6564 = vpop.f32.mrb[0].mxu0
        %v6565 = vadd.f32 0.0, %v6564
        %v6566 = vpop.f32.mrb[0].mxu0
        %6567 = vmatprep.mubr.f32.mxu0 0.0
        %6568 = vmatmul.mubr.f32.gmra.mrb[0].mxu0 %v6454
        %v6569 = vpop.f32.mrb[0].mxu0
        %v6570 = vadd.f32 0.0, %v6569
        %v6571 = vpop.f32.mrb[0].mxu0
        %6572 = vmatprep.mubr.f32.mxu0 0.0
        %6573 = vmatmul.mubr.f32.gmra.mrb[0].mxu0 %v6455
        %v6574 = vpop.f32.mrb[0].mxu0
        %v6575 = vadd.f32 0.0, %v6574
        %v6576 = vpop.f32.mrb[0].mxu0
        %6577 = vmatprep.mubr.f32.mxu0 0.0
        %6578 = vmatmul.mubr.f32.gmra.mrb[0].mxu0 %v6456
        %v6579 = vpop.f32.mrb[0].mxu0
        %v6580 = vadd.f32 0.0, %v6579
        %v6581 = vpop.f32.mrb[0].mxu0
        %6582 = vmatprep.mubr.f32.mxu0 0.0
        %6583 = vmatmul.mubr.f32.gmra.mrb[0].mxu0 %v6457
        %v6584 = vpop.f32.mrb[0].mxu0
        %v6585 = vadd.f32 0.0, %v6584
        %v6586 = vpop.f32.mrb[0].mxu0
        %6587 = vmatprep.mubr.f32.mxu0 0.0
        %6588 = vmatmul.mubr.f32.gmra.mrb[0].mxu0 %v6458
        %v6589 = vpop.f32.mrb[0].mxu0
        %v6590 = vadd.f32 0.0, %v6589
        %v6591 = vpop.f32.mrb[0].mxu0
        %6592 = vmatprep.mubr.f32.mxu0 0.0
        %6593 = vmatmul.mubr.f32.gmra.mrb[0].mxu0 %v6459
        %v6594 = vpop.f32.mrb[0].mxu0
        %v6595 = vadd.f32 0.0, %v6594
        %v6596 = vpop.f32.mrb[0].mxu0
        %6597 = vmatprep.mubr.f32.mxu0 0.0
        %6598 = vmatmul.mubr.f32.gmra.mrb[0].mxu0 %v6460
        %v6599 = vpop.f32.mrb[0].mxu0
        %v6600 = vadd.f32 0.0, %v6599
        %v6601 = vpop.f32.mrb[0].mxu0
        %6602 = vmatprep.mubr.f32.mxu0 0.0
        %6603 = vmatmul.mubr.f32.gmra.mrb[0].mxu0 %v6461
        %v6604 = vpop.f32.mrb[0].mxu0
        %v6605 = vadd.f32 0.0, %v6604
        %v6606 = vpop.f32.mrb[0].mxu0
        %6607 = vmatprep.mubr.f32.mxu0 0.0
        %6608 = vmatmul.mubr.f32.gmra.mrb[0].mxu0 %v6462
        %v6609 = vpop.f32.mrb[0].mxu0
        %v6610 = vadd.f32 0.0, %v6609
        %v6611 = vpop.f32.mrb[0].mxu0
        %6612 = vmatprep.mubr.f32.mxu0 0.0
        %6613 = vmatmul.mubr.f32.gmra.mrb[0].mxu0 %v6463
        %v6614 = vpop.f32.mrb[0].mxu0
        %v6615 = vadd.f32 0.0, %v6614
        %v6616 = vpop.f32.mrb[0].mxu0
        %6617 = vmatprep.mubr.f32.mxu0 0.0
        %6618 = vmatmul.mubr.f32.gmra.mrb[0].mxu0 %v6464
        %v6619 = vpop.f32.mrb[0].mxu0
        %v6620 = vadd.f32 0.0, %v6619
        %v6621 = vpop.f32.mrb[0].mxu0
        %6622 = vmatprep.mubr.f32.mxu0 0.0
        %6623 = vmatmul.mubr.f32.gmra.mrb[0].mxu0 %v6465
        %v6624 = vpop.f32.mrb[0].mxu0
        %v6625 = vadd.f32 0.0, %v6624
        %v6626 = vpop.f32.mrb[0].mxu0
        %6627 = vdwg.mxu0
        %v6628 = vadd.f32 %v6434, %v6550
        %v6629 = vadd.f32 %v6435, %v6555
        %v6630 = vadd.f32 %v6436, %v6560
        %v6631 = vadd.f32 %v6437, %v6565
        %v6632 = vadd.f32 %v6438, %v6570
        %v6633 = vadd.f32 %v6439, %v6575
        %v6634 = vadd.f32 %v6440, %v6580
        %v6635 = vadd.f32 %v6441, %v6585
        %v6636 = vadd.f32 %v6442, %v6590
        %v6637 = vadd.f32 %v6443, %v6595
        %v6638 = vadd.f32 %v6444, %v6600
        %v6639 = vadd.f32 %v6445, %v6605
        %v6640 = vadd.f32 %v6446, %v6610
        %v6641 = vadd.f32 %v6447, %v6615
        %v6642 = vadd.f32 %v6448, %v6620
        %v6643 = vadd.f32 %v6449, %v6625
        %v6644 = vld [vmem:[%s223 + $0x9] sm:$0xff]
        %v6645 = vld [vmem:[%s223 + $0x21] sm:$0xff]
        %v6646 = vld [vmem:[%s223 + $0x39] sm:$0xff]
        %v6647 = vld [vmem:[%s223 + $0x51] sm:$0xff]
        %v6648 = vld [vmem:[%s223 + $0x69] sm:$0xff]
        %v6649 = vld [vmem:[%s223 + $0x81] sm:$0xff]
        %v6650 = vld [vmem:[%s223 + $0x99] sm:$0xff]
        %v6651 = vld [vmem:[%s223 + $0xb1] sm:$0xff]
        %v6652 = vld [vmem:[%s223 + $0xc9] sm:$0xff]
        %v6653 = vld [vmem:[%s223 + $0xe1] sm:$0xff]
        %v6654 = vld [vmem:[%s223 + $0xf9] sm:$0xff]
        %v6655 = vld [vmem:[%s223 + $0x111] sm:$0xff]
        %v6656 = vld [vmem:[%s223 + $0x129] sm:$0xff]
        %v6657 = vld [vmem:[%s223 + $0x141] sm:$0xff]
        %v6658 = vld [vmem:[%s223 + $0x159] sm:$0xff]
        %v6659 = vld [vmem:[%s223 + $0x171] sm:$0xff]
        %s6660 = scalar_lea.vmem [#allocation7], 13312
        %v6661 = vld [vmem:[%s6660] sm:$0xff]
        %v6662 = vld [vmem:[%s6660 + $0x8] sm:$0xff]
        %v6663 = vld [vmem:[%s6660 + $0x10] sm:$0xff]
        %v6664 = vld [vmem:[%s6660 + $0x18] sm:$0xff]
        %v6665 = vld [vmem:[%s6660 + $0x20] sm:$0xff]
        %v6666 = vld [vmem:[%s6660 + $0x28] sm:$0xff]
        %v6667 = vld [vmem:[%s6660 + $0x30] sm:$0xff]
        %v6668 = vld [vmem:[%s6660 + $0x38] sm:$0xff]
        %v6669 = vld [vmem:[%s6660 + $0x40] sm:$0xff]
        %v6670 = vld [vmem:[%s6660 + $0x48] sm:$0xff]
        %v6671 = vld [vmem:[%s6660 + $0x50] sm:$0xff]
        %v6672 = vld [vmem:[%s6660 + $0x58] sm:$0xff]
        %v6673 = vld [vmem:[%s6660 + $0x60] sm:$0xff]
        %v6674 = vld [vmem:[%s6660 + $0x68] sm:$0xff]
        %v6675 = vld [vmem:[%s6660 + $0x70] sm:$0xff]
        %v6676 = vld [vmem:[%s6660 + $0x78] sm:$0xff]
        %6677 = vmatprep.subr.mxu0 0.0
        %6678 = vmatpush1.msra.mxu0 %v6661
        %6679 = vmatprep.subr.mxu0 0.0
        %6680 = vmatpush1.msra.mxu0 %v6662
        %6681 = vmatprep.subr.mxu0 0.0
        %6682 = vmatpush1.msra.mxu0 %v6663
        %6683 = vmatprep.subr.mxu0 0.0
        %6684 = vmatpush1.msra.mxu0 %v6664
        %6685 = vmatprep.subr.mxu0 0.0
        %6686 = vmatpush1.msra.mxu0 %v6665
        %6687 = vmatprep.subr.mxu0 0.0
        %6688 = vmatpush1.msra.mxu0 %v6666
        %6689 = vmatprep.subr.mxu0 0.0
        %6690 = vmatpush1.msra.mxu0 %v6667
        %6691 = vmatprep.subr.mxu0 0.0
        %6692 = vmatpush1.msra.mxu0 %v6668
        %6693 = vmatprep.subr.mxu0 0.0
        %6694 = vmatpush1.msra.mxu0 %v6669
        %6695 = vmatprep.subr.mxu0 0.0
        %6696 = vmatpush1.msra.mxu0 %v6670
        %6697 = vmatprep.subr.mxu0 0.0
        %6698 = vmatpush1.msra.mxu0 %v6671
        %6699 = vmatprep.subr.mxu0 0.0
        %6700 = vmatpush1.msra.mxu0 %v6672
        %6701 = vmatprep.subr.mxu0 0.0
        %6702 = vmatpush1.msra.mxu0 %v6673
        %6703 = vmatprep.subr.mxu0 0.0
        %6704 = vmatpush1.msra.mxu0 %v6674
        %6705 = vmatprep.subr.mxu0 0.0
        %6706 = vmatpush1.msra.mxu0 %v6675
        %6707 = vmatprep.subr.mxu0 0.0
        %6708 = vmatpush1.msra.mxu0 %v6676
        %6709 = vmatprep.subr.mxu0 0.0
        %6710 = vmatpush1.msra.mxu0 0.0
        %6711 = vmatprep.subr.mxu0 0.0
        %6712 = vmatpush1.msra.mxu0 0.0
        %6713 = vmatprep.subr.mxu0 0.0
        %6714 = vmatpush1.msra.mxu0 0.0
        %6715 = vmatprep.subr.mxu0 0.0
        %6716 = vmatpush1.msra.mxu0 0.0
        %6717 = vmatprep.subr.mxu0 0.0
        %6718 = vmatpush1.msra.mxu0 0.0
        %6719 = vmatprep.subr.mxu0 0.0
        %6720 = vmatpush1.msra.mxu0 0.0
        %6721 = vmatprep.subr.mxu0 0.0
        %6722 = vmatpush1.msra.mxu0 0.0
        %6723 = vmatprep.subr.mxu0 0.0
        %6724 = vmatpush1.msra.mxu0 0.0
        %6725 = vmatprep.subr.mxu0 0.0
        %6726 = vmatpush1.msra.mxu0 0.0
        %6727 = vmatprep.subr.mxu0 0.0
        %6728 = vmatpush1.msra.mxu0 0.0
        %6729 = vmatprep.subr.mxu0 0.0
        %6730 = vmatpush1.msra.mxu0 0.0
        %6731 = vmatprep.subr.mxu0 0.0
        %6732 = vmatpush1.msra.mxu0 0.0
        %6733 = vmatprep.subr.mxu0 0.0
        %6734 = vmatpush1.msra.mxu0 0.0
        %6735 = vmatprep.subr.mxu0 0.0
        %6736 = vmatpush1.msra.mxu0 0.0
        %6737 = vmatprep.subr.mxu0 0.0
        %6738 = vmatpush1.msra.mxu0 0.0
        %6739 = vmatprep.subr.mxu0 0.0
        %6740 = vmatpush1.msra.mxu0 0.0
        %6741 = vmatprep.mubr.f32.mxu0 0.0
        %6742 = vmatmul.mubr.f32.gmra.mrb[0].mxu0 %v6644
        %v6743 = vpop.f32.mrb[0].mxu0
        %v6744 = vadd.f32 0.0, %v6743
        %v6745 = vpop.f32.mrb[0].mxu0
        %6746 = vmatprep.mubr.f32.mxu0 0.0
        %6747 = vmatmul.mubr.f32.gmra.mrb[0].mxu0 %v6645
        %v6748 = vpop.f32.mrb[0].mxu0
        %v6749 = vadd.f32 0.0, %v6748
        %v6750 = vpop.f32.mrb[0].mxu0
        %6751 = vmatprep.mubr.f32.mxu0 0.0
        %6752 = vmatmul.mubr.f32.gmra.mrb[0].mxu0 %v6646
        %v6753 = vpop.f32.mrb[0].mxu0
        %v6754 = vadd.f32 0.0, %v6753
        %v6755 = vpop.f32.mrb[0].mxu0
        %6756 = vmatprep.mubr.f32.mxu0 0.0
        %6757 = vmatmul.mubr.f32.gmra.mrb[0].mxu0 %v6647
        %v6758 = vpop.f32.mrb[0].mxu0
        %v6759 = vadd.f32 0.0, %v6758
        %v6760 = vpop.f32.mrb[0].mxu0
        %6761 = vmatprep.mubr.f32.mxu0 0.0
        %6762 = vmatmul.mubr.f32.gmra.mrb[0].mxu0 %v6648
        %v6763 = vpop.f32.mrb[0].mxu0
        %v6764 = vadd.f32 0.0, %v6763
        %v6765 = vpop.f32.mrb[0].mxu0
        %6766 = vmatprep.mubr.f32.mxu0 0.0
        %6767 = vmatmul.mubr.f32.gmra.mrb[0].mxu0 %v6649
        %v6768 = vpop.f32.mrb[0].mxu0
        %v6769 = vadd.f32 0.0, %v6768
        %v6770 = vpop.f32.mrb[0].mxu0
        %6771 = vmatprep.mubr.f32.mxu0 0.0
        %6772 = vmatmul.mubr.f32.gmra.mrb[0].mxu0 %v6650
        %v6773 = vpop.f32.mrb[0].mxu0
        %v6774 = vadd.f32 0.0, %v6773
        %v6775 = vpop.f32.mrb[0].mxu0
        %6776 = vmatprep.mubr.f32.mxu0 0.0
        %6777 = vmatmul.mubr.f32.gmra.mrb[0].mxu0 %v6651
        %v6778 = vpop.f32.mrb[0].mxu0
        %v6779 = vadd.f32 0.0, %v6778
        %v6780 = vpop.f32.mrb[0].mxu0
        %6781 = vmatprep.mubr.f32.mxu0 0.0
        %6782 = vmatmul.mubr.f32.gmra.mrb[0].mxu0 %v6652
        %v6783 = vpop.f32.mrb[0].mxu0
        %v6784 = vadd.f32 0.0, %v6783
        %v6785 = vpop.f32.mrb[0].mxu0
        %6786 = vmatprep.mubr.f32.mxu0 0.0
        %6787 = vmatmul.mubr.f32.gmra.mrb[0].mxu0 %v6653
        %v6788 = vpop.f32.mrb[0].mxu0
        %v6789 = vadd.f32 0.0, %v6788
        %v6790 = vpop.f32.mrb[0].mxu0
        %6791 = vmatprep.mubr.f32.mxu0 0.0
        %6792 = vmatmul.mubr.f32.gmra.mrb[0].mxu0 %v6654
        %v6793 = vpop.f32.mrb[0].mxu0
        %v6794 = vadd.f32 0.0, %v6793
        %v6795 = vpop.f32.mrb[0].mxu0
        %6796 = vmatprep.mubr.f32.mxu0 0.0
        %6797 = vmatmul.mubr.f32.gmra.mrb[0].mxu0 %v6655
        %v6798 = vpop.f32.mrb[0].mxu0
        %v6799 = vadd.f32 0.0, %v6798
        %v6800 = vpop.f32.mrb[0].mxu0
        %6801 = vmatprep.mubr.f32.mxu0 0.0
        %6802 = vmatmul.mubr.f32.gmra.mrb[0].mxu0 %v6656
        %v6803 = vpop.f32.mrb[0].mxu0
        %v6804 = vadd.f32 0.0, %v6803
        %v6805 = vpop.f32.mrb[0].mxu0
        %6806 = vmatprep.mubr.f32.mxu0 0.0
        %6807 = vmatmul.mubr.f32.gmra.mrb[0].mxu0 %v6657
        %v6808 = vpop.f32.mrb[0].mxu0
        %v6809 = vadd.f32 0.0, %v6808
        %v6810 = vpop.f32.mrb[0].mxu0
        %6811 = vmatprep.mubr.f32.mxu0 0.0
        %6812 = vmatmul.mubr.f32.gmra.mrb[0].mxu0 %v6658
        %v6813 = vpop.f32.mrb[0].mxu0
        %v6814 = vadd.f32 0.0, %v6813
        %v6815 = vpop.f32.mrb[0].mxu0
        %6816 = vmatprep.mubr.f32.mxu0 0.0
        %6817 = vmatmul.mubr.f32.gmra.mrb[0].mxu0 %v6659
        %v6818 = vpop.f32.mrb[0].mxu0
        %v6819 = vadd.f32 0.0, %v6818
        %v6820 = vpop.f32.mrb[0].mxu0
        %6821 = vdwg.mxu0
        %v6822 = vadd.f32 %v6628, %v6744
        %v6823 = vadd.f32 %v6629, %v6749
        %v6824 = vadd.f32 %v6630, %v6754
        %v6825 = vadd.f32 %v6631, %v6759
        %v6826 = vadd.f32 %v6632, %v6764
        %v6827 = vadd.f32 %v6633, %v6769
        %v6828 = vadd.f32 %v6634, %v6774
        %v6829 = vadd.f32 %v6635, %v6779
        %v6830 = vadd.f32 %v6636, %v6784
        %v6831 = vadd.f32 %v6637, %v6789
        %v6832 = vadd.f32 %v6638, %v6794
        %v6833 = vadd.f32 %v6639, %v6799
        %v6834 = vadd.f32 %v6640, %v6804
        %v6835 = vadd.f32 %v6641, %v6809
        %v6836 = vadd.f32 %v6642, %v6814
        %v6837 = vadd.f32 %v6643, %v6819
        %v6838 = vld [vmem:[%s1419 + $0x7] sm:$0xff]
        %v6839 = vld [vmem:[%s1419 + $0x1f] sm:$0xff]
        %v6840 = vld [vmem:[%s1419 + $0x37] sm:$0xff]
        %v6841 = vld [vmem:[%s1419 + $0x4f] sm:$0xff]
        %v6842 = vld [vmem:[%s1419 + $0x67] sm:$0xff]
        %v6843 = vld [vmem:[%s1419 + $0x7f] sm:$0xff]
        %v6844 = vld [vmem:[%s1419 + $0x97] sm:$0xff]
        %v6845 = vld [vmem:[%s1419 + $0xaf] sm:$0xff]
        %v6846 = vld [vmem:[%s1419 + $0xc7] sm:$0xff]
        %v6847 = vld [vmem:[%s1419 + $0xdf] sm:$0xff]
        %v6848 = vld [vmem:[%s1419 + $0xf7] sm:$0xff]
        %v6849 = vld [vmem:[%s1419 + $0x10f] sm:$0xff]
        %v6850 = vld [vmem:[%s1419 + $0x127] sm:$0xff]
        %v6851 = vld [vmem:[%s1419 + $0x13f] sm:$0xff]
        %v6852 = vld [vmem:[%s1419 + $0x157] sm:$0xff]
        %v6853 = vld [vmem:[%s1419 + $0x16f] sm:$0xff]
        %s6854 = scalar_lea.vmem [#allocation7], 13440
        %v6855 = vld [vmem:[%s6854] sm:$0xff]
        %v6856 = vld [vmem:[%s6854 + $0x8] sm:$0xff]
        %v6857 = vld [vmem:[%s6854 + $0x10] sm:$0xff]
        %v6858 = vld [vmem:[%s6854 + $0x18] sm:$0xff]
        %v6859 = vld [vmem:[%s6854 + $0x20] sm:$0xff]
        %v6860 = vld [vmem:[%s6854 + $0x28] sm:$0xff]
        %v6861 = vld [vmem:[%s6854 + $0x30] sm:$0xff]
        %v6862 = vld [vmem:[%s6854 + $0x38] sm:$0xff]
        %v6863 = vld [vmem:[%s6854 + $0x40] sm:$0xff]
        %v6864 = vld [vmem:[%s6854 + $0x48] sm:$0xff]
        %v6865 = vld [vmem:[%s6854 + $0x50] sm:$0xff]
        %v6866 = vld [vmem:[%s6854 + $0x58] sm:$0xff]
        %v6867 = vld [vmem:[%s6854 + $0x60] sm:$0xff]
        %v6868 = vld [vmem:[%s6854 + $0x68] sm:$0xff]
        %v6869 = vld [vmem:[%s6854 + $0x70] sm:$0xff]
        %v6870 = vld [vmem:[%s6854 + $0x78] sm:$0xff]
        %6871 = vmatprep.subr.mxu0 0.0
        %6872 = vmatpush1.msra.mxu0 %v6855
        %6873 = vmatprep.subr.mxu0 0.0
        %6874 = vmatpush1.msra.mxu0 %v6856
        %6875 = vmatprep.subr.mxu0 0.0
        %6876 = vmatpush1.msra.mxu0 %v6857
        %6877 = vmatprep.subr.mxu0 0.0
        %6878 = vmatpush1.msra.mxu0 %v6858
        %6879 = vmatprep.subr.mxu0 0.0
        %6880 = vmatpush1.msra.mxu0 %v6859
        %6881 = vmatprep.subr.mxu0 0.0
        %6882 = vmatpush1.msra.mxu0 %v6860
        %6883 = vmatprep.subr.mxu0 0.0
        %6884 = vmatpush1.msra.mxu0 %v6861
        %6885 = vmatprep.subr.mxu0 0.0
        %6886 = vmatpush1.msra.mxu0 %v6862
        %6887 = vmatprep.subr.mxu0 0.0
        %6888 = vmatpush1.msra.mxu0 %v6863
        %6889 = vmatprep.subr.mxu0 0.0
        %6890 = vmatpush1.msra.mxu0 %v6864
        %6891 = vmatprep.subr.mxu0 0.0
        %6892 = vmatpush1.msra.mxu0 %v6865
        %6893 = vmatprep.subr.mxu0 0.0
        %6894 = vmatpush1.msra.mxu0 %v6866
        %6895 = vmatprep.subr.mxu0 0.0
        %6896 = vmatpush1.msra.mxu0 %v6867
        %6897 = vmatprep.subr.mxu0 0.0
        %6898 = vmatpush1.msra.mxu0 %v6868
        %6899 = vmatprep.subr.mxu0 0.0
        %6900 = vmatpush1.msra.mxu0 %v6869
        %6901 = vmatprep.subr.mxu0 0.0
        %6902 = vmatpush1.msra.mxu0 %v6870
        %6903 = vmatprep.subr.mxu0 0.0
        %6904 = vmatpush1.msra.mxu0 0.0
        %6905 = vmatprep.subr.mxu0 0.0
        %6906 = vmatpush1.msra.mxu0 0.0
        %6907 = vmatprep.subr.mxu0 0.0
        %6908 = vmatpush1.msra.mxu0 0.0
        %6909 = vmatprep.subr.mxu0 0.0
        %6910 = vmatpush1.msra.mxu0 0.0
        %6911 = vmatprep.subr.mxu0 0.0
        %6912 = vmatpush1.msra.mxu0 0.0
        %6913 = vmatprep.subr.mxu0 0.0
        %6914 = vmatpush1.msra.mxu0 0.0
        %6915 = vmatprep.subr.mxu0 0.0
        %6916 = vmatpush1.msra.mxu0 0.0
        %6917 = vmatprep.subr.mxu0 0.0
        %6918 = vmatpush1.msra.mxu0 0.0
        %6919 = vmatprep.subr.mxu0 0.0
        %6920 = vmatpush1.msra.mxu0 0.0
        %6921 = vmatprep.subr.mxu0 0.0
        %6922 = vmatpush1.msra.mxu0 0.0
        %6923 = vmatprep.subr.mxu0 0.0
        %6924 = vmatpush1.msra.mxu0 0.0
        %6925 = vmatprep.subr.mxu0 0.0
        %6926 = vmatpush1.msra.mxu0 0.0
        %6927 = vmatprep.subr.mxu0 0.0
        %6928 = vmatpush1.msra.mxu0 0.0
        %6929 = vmatprep.subr.mxu0 0.0
        %6930 = vmatpush1.msra.mxu0 0.0
        %6931 = vmatprep.subr.mxu0 0.0
        %6932 = vmatpush1.msra.mxu0 0.0
        %6933 = vmatprep.subr.mxu0 0.0
        %6934 = vmatpush1.msra.mxu0 0.0
        %6935 = vmatprep.mubr.f32.mxu0 0.0
        %6936 = vmatmul.mubr.f32.gmra.mrb[0].mxu0 %v6838
        %v6937 = vpop.f32.mrb[0].mxu0
        %v6938 = vadd.f32 0.0, %v6937
        %v6939 = vpop.f32.mrb[0].mxu0
        %6940 = vmatprep.mubr.f32.mxu0 0.0
        %6941 = vmatmul.mubr.f32.gmra.mrb[0].mxu0 %v6839
        %v6942 = vpop.f32.mrb[0].mxu0
        %v6943 = vadd.f32 0.0, %v6942
        %v6944 = vpop.f32.mrb[0].mxu0
        %6945 = vmatprep.mubr.f32.mxu0 0.0
        %6946 = vmatmul.mubr.f32.gmra.mrb[0].mxu0 %v6840
        %v6947 = vpop.f32.mrb[0].mxu0
        %v6948 = vadd.f32 0.0, %v6947
        %v6949 = vpop.f32.mrb[0].mxu0
        %6950 = vmatprep.mubr.f32.mxu0 0.0
        %6951 = vmatmul.mubr.f32.gmra.mrb[0].mxu0 %v6841
        %v6952 = vpop.f32.mrb[0].mxu0
        %v6953 = vadd.f32 0.0, %v6952
        %v6954 = vpop.f32.mrb[0].mxu0
        %6955 = vmatprep.mubr.f32.mxu0 0.0
        %6956 = vmatmul.mubr.f32.gmra.mrb[0].mxu0 %v6842
        %v6957 = vpop.f32.mrb[0].mxu0
        %v6958 = vadd.f32 0.0, %v6957
        %v6959 = vpop.f32.mrb[0].mxu0
        %6960 = vmatprep.mubr.f32.mxu0 0.0
        %6961 = vmatmul.mubr.f32.gmra.mrb[0].mxu0 %v6843
        %v6962 = vpop.f32.mrb[0].mxu0
        %v6963 = vadd.f32 0.0, %v6962
        %v6964 = vpop.f32.mrb[0].mxu0
        %6965 = vmatprep.mubr.f32.mxu0 0.0
        %6966 = vmatmul.mubr.f32.gmra.mrb[0].mxu0 %v6844
        %v6967 = vpop.f32.mrb[0].mxu0
        %v6968 = vadd.f32 0.0, %v6967
        %v6969 = vpop.f32.mrb[0].mxu0
        %6970 = vmatprep.mubr.f32.mxu0 0.0
        %6971 = vmatmul.mubr.f32.gmra.mrb[0].mxu0 %v6845
        %v6972 = vpop.f32.mrb[0].mxu0
        %v6973 = vadd.f32 0.0, %v6972
        %v6974 = vpop.f32.mrb[0].mxu0
        %6975 = vmatprep.mubr.f32.mxu0 0.0
        %6976 = vmatmul.mubr.f32.gmra.mrb[0].mxu0 %v6846
        %v6977 = vpop.f32.mrb[0].mxu0
        %v6978 = vadd.f32 0.0, %v6977
        %v6979 = vpop.f32.mrb[0].mxu0
        %6980 = vmatprep.mubr.f32.mxu0 0.0
        %6981 = vmatmul.mubr.f32.gmra.mrb[0].mxu0 %v6847
        %v6982 = vpop.f32.mrb[0].mxu0
        %v6983 = vadd.f32 0.0, %v6982
        %v6984 = vpop.f32.mrb[0].mxu0
        %6985 = vmatprep.mubr.f32.mxu0 0.0
        %6986 = vmatmul.mubr.f32.gmra.mrb[0].mxu0 %v6848
        %v6987 = vpop.f32.mrb[0].mxu0
        %v6988 = vadd.f32 0.0, %v6987
        %v6989 = vpop.f32.mrb[0].mxu0
        %6990 = vmatprep.mubr.f32.mxu0 0.0
        %6991 = vmatmul.mubr.f32.gmra.mrb[0].mxu0 %v6849
        %v6992 = vpop.f32.mrb[0].mxu0
        %v6993 = vadd.f32 0.0, %v6992
        %v6994 = vpop.f32.mrb[0].mxu0
        %6995 = vmatprep.mubr.f32.mxu0 0.0
        %6996 = vmatmul.mubr.f32.gmra.mrb[0].mxu0 %v6850
        %v6997 = vpop.f32.mrb[0].mxu0
        %v6998 = vadd.f32 0.0, %v6997
        %v6999 = vpop.f32.mrb[0].mxu0
        %7000 = vmatprep.mubr.f32.mxu0 0.0
        %7001 = vmatmul.mubr.f32.gmra.mrb[0].mxu0 %v6851
        %v7002 = vpop.f32.mrb[0].mxu0
        %v7003 = vadd.f32 0.0, %v7002
        %v7004 = vpop.f32.mrb[0].mxu0
        %7005 = vmatprep.mubr.f32.mxu0 0.0
        %7006 = vmatmul.mubr.f32.gmra.mrb[0].mxu0 %v6852
        %v7007 = vpop.f32.mrb[0].mxu0
        %v7008 = vadd.f32 0.0, %v7007
        %v7009 = vpop.f32.mrb[0].mxu0
        %7010 = vmatprep.mubr.f32.mxu0 0.0
        %7011 = vmatmul.mubr.f32.gmra.mrb[0].mxu0 %v6853
        %v7012 = vpop.f32.mrb[0].mxu0
        %v7013 = vadd.f32 0.0, %v7012
        %v7014 = vpop.f32.mrb[0].mxu0
        %7015 = vdwg.mxu0
        %v7016 = vadd.f32 %v6822, %v6938
        %v7017 = vadd.f32 %v6823, %v6943
        %v7018 = vadd.f32 %v6824, %v6948
        %v7019 = vadd.f32 %v6825, %v6953
        %v7020 = vadd.f32 %v6826, %v6958
        %v7021 = vadd.f32 %v6827, %v6963
        %v7022 = vadd.f32 %v6828, %v6968
        %v7023 = vadd.f32 %v6829, %v6973
        %v7024 = vadd.f32 %v6830, %v6978
        %v7025 = vadd.f32 %v6831, %v6983
        %v7026 = vadd.f32 %v6832, %v6988
        %v7027 = vadd.f32 %v6833, %v6993
        %v7028 = vadd.f32 %v6834, %v6998
        %v7029 = vadd.f32 %v6835, %v7003
        %v7030 = vadd.f32 %v6836, %v7008
        %v7031 = vadd.f32 %v6837, %v7013
        %v7032 = vld [vmem:[%s1419 + $0x8] sm:$0xff]
        %v7033 = vld [vmem:[%s1419 + $0x20] sm:$0xff]
        %v7034 = vld [vmem:[%s1419 + $0x38] sm:$0xff]
        %v7035 = vld [vmem:[%s1419 + $0x50] sm:$0xff]
        %v7036 = vld [vmem:[%s1419 + $0x68] sm:$0xff]
        %v7037 = vld [vmem:[%s1419 + $0x80] sm:$0xff]
        %v7038 = vld [vmem:[%s1419 + $0x98] sm:$0xff]
        %v7039 = vld [vmem:[%s1419 + $0xb0] sm:$0xff]
        %v7040 = vld [vmem:[%s1419 + $0xc8] sm:$0xff]
        %v7041 = vld [vmem:[%s1419 + $0xe0] sm:$0xff]
        %v7042 = vld [vmem:[%s1419 + $0xf8] sm:$0xff]
        %v7043 = vld [vmem:[%s1419 + $0x110] sm:$0xff]
        %v7044 = vld [vmem:[%s1419 + $0x128] sm:$0xff]
        %v7045 = vld [vmem:[%s1419 + $0x140] sm:$0xff]
        %v7046 = vld [vmem:[%s1419 + $0x158] sm:$0xff]
        %v7047 = vld [vmem:[%s1419 + $0x170] sm:$0xff]
        %s7048 = scalar_lea.vmem [#allocation7], 13568
        %v7049 = vld [vmem:[%s7048] sm:$0xff]
        %v7050 = vld [vmem:[%s7048 + $0x8] sm:$0xff]
        %v7051 = vld [vmem:[%s7048 + $0x10] sm:$0xff]
        %v7052 = vld [vmem:[%s7048 + $0x18] sm:$0xff]
        %v7053 = vld [vmem:[%s7048 + $0x20] sm:$0xff]
        %v7054 = vld [vmem:[%s7048 + $0x28] sm:$0xff]
        %v7055 = vld [vmem:[%s7048 + $0x30] sm:$0xff]
        %v7056 = vld [vmem:[%s7048 + $0x38] sm:$0xff]
        %v7057 = vld [vmem:[%s7048 + $0x40] sm:$0xff]
        %v7058 = vld [vmem:[%s7048 + $0x48] sm:$0xff]
        %v7059 = vld [vmem:[%s7048 + $0x50] sm:$0xff]
        %v7060 = vld [vmem:[%s7048 + $0x58] sm:$0xff]
        %v7061 = vld [vmem:[%s7048 + $0x60] sm:$0xff]
        %v7062 = vld [vmem:[%s7048 + $0x68] sm:$0xff]
        %v7063 = vld [vmem:[%s7048 + $0x70] sm:$0xff]
        %v7064 = vld [vmem:[%s7048 + $0x78] sm:$0xff]
        %7065 = vmatprep.subr.mxu0 0.0
        %7066 = vmatpush1.msra.mxu0 %v7049
        %7067 = vmatprep.subr.mxu0 0.0
        %7068 = vmatpush1.msra.mxu0 %v7050
        %7069 = vmatprep.subr.mxu0 0.0
        %7070 = vmatpush1.msra.mxu0 %v7051
        %7071 = vmatprep.subr.mxu0 0.0
        %7072 = vmatpush1.msra.mxu0 %v7052
        %7073 = vmatprep.subr.mxu0 0.0
        %7074 = vmatpush1.msra.mxu0 %v7053
        %7075 = vmatprep.subr.mxu0 0.0
        %7076 = vmatpush1.msra.mxu0 %v7054
        %7077 = vmatprep.subr.mxu0 0.0
        %7078 = vmatpush1.msra.mxu0 %v7055
        %7079 = vmatprep.subr.mxu0 0.0
        %7080 = vmatpush1.msra.mxu0 %v7056
        %7081 = vmatprep.subr.mxu0 0.0
        %7082 = vmatpush1.msra.mxu0 %v7057
        %7083 = vmatprep.subr.mxu0 0.0
        %7084 = vmatpush1.msra.mxu0 %v7058
        %7085 = vmatprep.subr.mxu0 0.0
        %7086 = vmatpush1.msra.mxu0 %v7059
        %7087 = vmatprep.subr.mxu0 0.0
        %7088 = vmatpush1.msra.mxu0 %v7060
        %7089 = vmatprep.subr.mxu0 0.0
        %7090 = vmatpush1.msra.mxu0 %v7061
        %7091 = vmatprep.subr.mxu0 0.0
        %7092 = vmatpush1.msra.mxu0 %v7062
        %7093 = vmatprep.subr.mxu0 0.0
        %7094 = vmatpush1.msra.mxu0 %v7063
        %7095 = vmatprep.subr.mxu0 0.0
        %7096 = vmatpush1.msra.mxu0 %v7064
        %7097 = vmatprep.subr.mxu0 0.0
        %7098 = vmatpush1.msra.mxu0 0.0
        %7099 = vmatprep.subr.mxu0 0.0
        %7100 = vmatpush1.msra.mxu0 0.0
        %7101 = vmatprep.subr.mxu0 0.0
        %7102 = vmatpush1.msra.mxu0 0.0
        %7103 = vmatprep.subr.mxu0 0.0
        %7104 = vmatpush1.msra.mxu0 0.0
        %7105 = vmatprep.subr.mxu0 0.0
        %7106 = vmatpush1.msra.mxu0 0.0
        %7107 = vmatprep.subr.mxu0 0.0
        %7108 = vmatpush1.msra.mxu0 0.0
        %7109 = vmatprep.subr.mxu0 0.0
        %7110 = vmatpush1.msra.mxu0 0.0
        %7111 = vmatprep.subr.mxu0 0.0
        %7112 = vmatpush1.msra.mxu0 0.0
        %7113 = vmatprep.subr.mxu0 0.0
        %7114 = vmatpush1.msra.mxu0 0.0
        %7115 = vmatprep.subr.mxu0 0.0
        %7116 = vmatpush1.msra.mxu0 0.0
        %7117 = vmatprep.subr.mxu0 0.0
        %7118 = vmatpush1.msra.mxu0 0.0
        %7119 = vmatprep.subr.mxu0 0.0
        %7120 = vmatpush1.msra.mxu0 0.0
        %7121 = vmatprep.subr.mxu0 0.0
        %7122 = vmatpush1.msra.mxu0 0.0
        %7123 = vmatprep.subr.mxu0 0.0
        %7124 = vmatpush1.msra.mxu0 0.0
        %7125 = vmatprep.subr.mxu0 0.0
        %7126 = vmatpush1.msra.mxu0 0.0
        %7127 = vmatprep.subr.mxu0 0.0
        %7128 = vmatpush1.msra.mxu0 0.0
        %7129 = vmatprep.mubr.f32.mxu0 0.0
        %7130 = vmatmul.mubr.f32.gmra.mrb[0].mxu0 %v7032
        %v7131 = vpop.f32.mrb[0].mxu0
        %v7132 = vadd.f32 0.0, %v7131
        %v7133 = vpop.f32.mrb[0].mxu0
        %7134 = vmatprep.mubr.f32.mxu0 0.0
        %7135 = vmatmul.mubr.f32.gmra.mrb[0].mxu0 %v7033
        %v7136 = vpop.f32.mrb[0].mxu0
        %v7137 = vadd.f32 0.0, %v7136
        %v7138 = vpop.f32.mrb[0].mxu0
        %7139 = vmatprep.mubr.f32.mxu0 0.0
        %7140 = vmatmul.mubr.f32.gmra.mrb[0].mxu0 %v7034
        %v7141 = vpop.f32.mrb[0].mxu0
        %v7142 = vadd.f32 0.0, %v7141
        %v7143 = vpop.f32.mrb[0].mxu0
        %7144 = vmatprep.mubr.f32.mxu0 0.0
        %7145 = vmatmul.mubr.f32.gmra.mrb[0].mxu0 %v7035
        %v7146 = vpop.f32.mrb[0].mxu0
        %v7147 = vadd.f32 0.0, %v7146
        %v7148 = vpop.f32.mrb[0].mxu0
        %7149 = vmatprep.mubr.f32.mxu0 0.0
        %7150 = vmatmul.mubr.f32.gmra.mrb[0].mxu0 %v7036
        %v7151 = vpop.f32.mrb[0].mxu0
        %v7152 = vadd.f32 0.0, %v7151
        %v7153 = vpop.f32.mrb[0].mxu0
        %7154 = vmatprep.mubr.f32.mxu0 0.0
        %7155 = vmatmul.mubr.f32.gmra.mrb[0].mxu0 %v7037
        %v7156 = vpop.f32.mrb[0].mxu0
        %v7157 = vadd.f32 0.0, %v7156
        %v7158 = vpop.f32.mrb[0].mxu0
        %7159 = vmatprep.mubr.f32.mxu0 0.0
        %7160 = vmatmul.mubr.f32.gmra.mrb[0].mxu0 %v7038
        %v7161 = vpop.f32.mrb[0].mxu0
        %v7162 = vadd.f32 0.0, %v7161
        %v7163 = vpop.f32.mrb[0].mxu0
        %7164 = vmatprep.mubr.f32.mxu0 0.0
        %7165 = vmatmul.mubr.f32.gmra.mrb[0].mxu0 %v7039
        %v7166 = vpop.f32.mrb[0].mxu0
        %v7167 = vadd.f32 0.0, %v7166
        %v7168 = vpop.f32.mrb[0].mxu0
        %7169 = vmatprep.mubr.f32.mxu0 0.0
        %7170 = vmatmul.mubr.f32.gmra.mrb[0].mxu0 %v7040
        %v7171 = vpop.f32.mrb[0].mxu0
        %v7172 = vadd.f32 0.0, %v7171
        %v7173 = vpop.f32.mrb[0].mxu0
        %7174 = vmatprep.mubr.f32.mxu0 0.0
        %7175 = vmatmul.mubr.f32.gmra.mrb[0].mxu0 %v7041
        %v7176 = vpop.f32.mrb[0].mxu0
        %v7177 = vadd.f32 0.0, %v7176
        %v7178 = vpop.f32.mrb[0].mxu0
        %7179 = vmatprep.mubr.f32.mxu0 0.0
        %7180 = vmatmul.mubr.f32.gmra.mrb[0].mxu0 %v7042
        %v7181 = vpop.f32.mrb[0].mxu0
        %v7182 = vadd.f32 0.0, %v7181
        %v7183 = vpop.f32.mrb[0].mxu0
        %7184 = vmatprep.mubr.f32.mxu0 0.0
        %7185 = vmatmul.mubr.f32.gmra.mrb[0].mxu0 %v7043
        %v7186 = vpop.f32.mrb[0].mxu0
        %v7187 = vadd.f32 0.0, %v7186
        %v7188 = vpop.f32.mrb[0].mxu0
        %7189 = vmatprep.mubr.f32.mxu0 0.0
        %7190 = vmatmul.mubr.f32.gmra.mrb[0].mxu0 %v7044
        %v7191 = vpop.f32.mrb[0].mxu0
        %v7192 = vadd.f32 0.0, %v7191
        %v7193 = vpop.f32.mrb[0].mxu0
        %7194 = vmatprep.mubr.f32.mxu0 0.0
        %7195 = vmatmul.mubr.f32.gmra.mrb[0].mxu0 %v7045
        %v7196 = vpop.f32.mrb[0].mxu0
        %v7197 = vadd.f32 0.0, %v7196
        %v7198 = vpop.f32.mrb[0].mxu0
        %7199 = vmatprep.mubr.f32.mxu0 0.0
        %7200 = vmatmul.mubr.f32.gmra.mrb[0].mxu0 %v7046
        %v7201 = vpop.f32.mrb[0].mxu0
        %v7202 = vadd.f32 0.0, %v7201
        %v7203 = vpop.f32.mrb[0].mxu0
        %7204 = vmatprep.mubr.f32.mxu0 0.0
        %7205 = vmatmul.mubr.f32.gmra.mrb[0].mxu0 %v7047
        %v7206 = vpop.f32.mrb[0].mxu0
        %v7207 = vadd.f32 0.0, %v7206
        %v7208 = vpop.f32.mrb[0].mxu0
        %7209 = vdwg.mxu0
        %v7210 = vadd.f32 %v7016, %v7132
        %v7211 = vadd.f32 %v7017, %v7137
        %v7212 = vadd.f32 %v7018, %v7142
        %v7213 = vadd.f32 %v7019, %v7147
        %v7214 = vadd.f32 %v7020, %v7152
        %v7215 = vadd.f32 %v7021, %v7157
        %v7216 = vadd.f32 %v7022, %v7162
        %v7217 = vadd.f32 %v7023, %v7167
        %v7218 = vadd.f32 %v7024, %v7172
        %v7219 = vadd.f32 %v7025, %v7177
        %v7220 = vadd.f32 %v7026, %v7182
        %v7221 = vadd.f32 %v7027, %v7187
        %v7222 = vadd.f32 %v7028, %v7192
        %v7223 = vadd.f32 %v7029, %v7197
        %v7224 = vadd.f32 %v7030, %v7202
        %v7225 = vadd.f32 %v7031, %v7207
        %v7226 = vld [vmem:[%s1419 + $0x9] sm:$0xff]
        %v7227 = vld [vmem:[%s1419 + $0x21] sm:$0xff]
        %v7228 = vld [vmem:[%s1419 + $0x39] sm:$0xff]
        %v7229 = vld [vmem:[%s1419 + $0x51] sm:$0xff]
        %v7230 = vld [vmem:[%s1419 + $0x69] sm:$0xff]
        %v7231 = vld [vmem:[%s1419 + $0x81] sm:$0xff]
        %v7232 = vld [vmem:[%s1419 + $0x99] sm:$0xff]
        %v7233 = vld [vmem:[%s1419 + $0xb1] sm:$0xff]
        %v7234 = vld [vmem:[%s1419 + $0xc9] sm:$0xff]
        %v7235 = vld [vmem:[%s1419 + $0xe1] sm:$0xff]
        %v7236 = vld [vmem:[%s1419 + $0xf9] sm:$0xff]
        %v7237 = vld [vmem:[%s1419 + $0x111] sm:$0xff]
        %v7238 = vld [vmem:[%s1419 + $0x129] sm:$0xff]
        %v7239 = vld [vmem:[%s1419 + $0x141] sm:$0xff]
        %v7240 = vld [vmem:[%s1419 + $0x159] sm:$0xff]
        %v7241 = vld [vmem:[%s1419 + $0x171] sm:$0xff]
        %s7242 = scalar_lea.vmem [#allocation7], 13696
        %v7243 = vld [vmem:[%s7242] sm:$0xff]
        %v7244 = vld [vmem:[%s7242 + $0x8] sm:$0xff]
        %v7245 = vld [vmem:[%s7242 + $0x10] sm:$0xff]
        %v7246 = vld [vmem:[%s7242 + $0x18] sm:$0xff]
        %v7247 = vld [vmem:[%s7242 + $0x20] sm:$0xff]
        %v7248 = vld [vmem:[%s7242 + $0x28] sm:$0xff]
        %v7249 = vld [vmem:[%s7242 + $0x30] sm:$0xff]
        %v7250 = vld [vmem:[%s7242 + $0x38] sm:$0xff]
        %v7251 = vld [vmem:[%s7242 + $0x40] sm:$0xff]
        %v7252 = vld [vmem:[%s7242 + $0x48] sm:$0xff]
        %v7253 = vld [vmem:[%s7242 + $0x50] sm:$0xff]
        %v7254 = vld [vmem:[%s7242 + $0x58] sm:$0xff]
        %v7255 = vld [vmem:[%s7242 + $0x60] sm:$0xff]
        %v7256 = vld [vmem:[%s7242 + $0x68] sm:$0xff]
        %v7257 = vld [vmem:[%s7242 + $0x70] sm:$0xff]
        %v7258 = vld [vmem:[%s7242 + $0x78] sm:$0xff]
        %7259 = vmatprep.subr.mxu0 0.0
        %7260 = vmatpush1.msra.mxu0 %v7243
        %7261 = vmatprep.subr.mxu0 0.0
        %7262 = vmatpush1.msra.mxu0 %v7244
        %7263 = vmatprep.subr.mxu0 0.0
        %7264 = vmatpush1.msra.mxu0 %v7245
        %7265 = vmatprep.subr.mxu0 0.0
        %7266 = vmatpush1.msra.mxu0 %v7246
        %7267 = vmatprep.subr.mxu0 0.0
        %7268 = vmatpush1.msra.mxu0 %v7247
        %7269 = vmatprep.subr.mxu0 0.0
        %7270 = vmatpush1.msra.mxu0 %v7248
        %7271 = vmatprep.subr.mxu0 0.0
        %7272 = vmatpush1.msra.mxu0 %v7249
        %7273 = vmatprep.subr.mxu0 0.0
        %7274 = vmatpush1.msra.mxu0 %v7250
        %7275 = vmatprep.subr.mxu0 0.0
        %7276 = vmatpush1.msra.mxu0 %v7251
        %7277 = vmatprep.subr.mxu0 0.0
        %7278 = vmatpush1.msra.mxu0 %v7252
        %7279 = vmatprep.subr.mxu0 0.0
        %7280 = vmatpush1.msra.mxu0 %v7253
        %7281 = vmatprep.subr.mxu0 0.0
        %7282 = vmatpush1.msra.mxu0 %v7254
        %7283 = vmatprep.subr.mxu0 0.0
        %7284 = vmatpush1.msra.mxu0 %v7255
        %7285 = vmatprep.subr.mxu0 0.0
        %7286 = vmatpush1.msra.mxu0 %v7256
        %7287 = vmatprep.subr.mxu0 0.0
        %7288 = vmatpush1.msra.mxu0 %v7257
        %7289 = vmatprep.subr.mxu0 0.0
        %7290 = vmatpush1.msra.mxu0 %v7258
        %7291 = vmatprep.subr.mxu0 0.0
        %7292 = vmatpush1.msra.mxu0 0.0
        %7293 = vmatprep.subr.mxu0 0.0
        %7294 = vmatpush1.msra.mxu0 0.0
        %7295 = vmatprep.subr.mxu0 0.0
        %7296 = vmatpush1.msra.mxu0 0.0
        %7297 = vmatprep.subr.mxu0 0.0
        %7298 = vmatpush1.msra.mxu0 0.0
        %7299 = vmatprep.subr.mxu0 0.0
        %7300 = vmatpush1.msra.mxu0 0.0
        %7301 = vmatprep.subr.mxu0 0.0
        %7302 = vmatpush1.msra.mxu0 0.0
        %7303 = vmatprep.subr.mxu0 0.0
        %7304 = vmatpush1.msra.mxu0 0.0
        %7305 = vmatprep.subr.mxu0 0.0
        %7306 = vmatpush1.msra.mxu0 0.0
        %7307 = vmatprep.subr.mxu0 0.0
        %7308 = vmatpush1.msra.mxu0 0.0
        %7309 = vmatprep.subr.mxu0 0.0
        %7310 = vmatpush1.msra.mxu0 0.0
        %7311 = vmatprep.subr.mxu0 0.0
        %7312 = vmatpush1.msra.mxu0 0.0
        %7313 = vmatprep.subr.mxu0 0.0
        %7314 = vmatpush1.msra.mxu0 0.0
        %7315 = vmatprep.subr.mxu0 0.0
        %7316 = vmatpush1.msra.mxu0 0.0
        %7317 = vmatprep.subr.mxu0 0.0
        %7318 = vmatpush1.msra.mxu0 0.0
        %7319 = vmatprep.subr.mxu0 0.0
        %7320 = vmatpush1.msra.mxu0 0.0
        %7321 = vmatprep.subr.mxu0 0.0
        %7322 = vmatpush1.msra.mxu0 0.0
        %7323 = vmatprep.mubr.f32.mxu0 0.0
        %7324 = vmatmul.mubr.f32.gmra.mrb[0].mxu0 %v7226
        %v7325 = vpop.f32.mrb[0].mxu0
        %v7326 = vadd.f32 0.0, %v7325
        %v7327 = vpop.f32.mrb[0].mxu0
        %7328 = vmatprep.mubr.f32.mxu0 0.0
        %7329 = vmatmul.mubr.f32.gmra.mrb[0].mxu0 %v7227
        %v7330 = vpop.f32.mrb[0].mxu0
        %v7331 = vadd.f32 0.0, %v7330
        %v7332 = vpop.f32.mrb[0].mxu0
        %7333 = vmatprep.mubr.f32.mxu0 0.0
        %7334 = vmatmul.mubr.f32.gmra.mrb[0].mxu0 %v7228
        %v7335 = vpop.f32.mrb[0].mxu0
        %v7336 = vadd.f32 0.0, %v7335
        %v7337 = vpop.f32.mrb[0].mxu0
        %7338 = vmatprep.mubr.f32.mxu0 0.0
        %7339 = vmatmul.mubr.f32.gmra.mrb[0].mxu0 %v7229
        %v7340 = vpop.f32.mrb[0].mxu0
        %v7341 = vadd.f32 0.0, %v7340
        %v7342 = vpop.f32.mrb[0].mxu0
        %7343 = vmatprep.mubr.f32.mxu0 0.0
        %7344 = vmatmul.mubr.f32.gmra.mrb[0].mxu0 %v7230
        %v7345 = vpop.f32.mrb[0].mxu0
        %v7346 = vadd.f32 0.0, %v7345
        %v7347 = vpop.f32.mrb[0].mxu0
        %7348 = vmatprep.mubr.f32.mxu0 0.0
        %7349 = vmatmul.mubr.f32.gmra.mrb[0].mxu0 %v7231
        %v7350 = vpop.f32.mrb[0].mxu0
        %v7351 = vadd.f32 0.0, %v7350
        %v7352 = vpop.f32.mrb[0].mxu0
        %7353 = vmatprep.mubr.f32.mxu0 0.0
        %7354 = vmatmul.mubr.f32.gmra.mrb[0].mxu0 %v7232
        %v7355 = vpop.f32.mrb[0].mxu0
        %v7356 = vadd.f32 0.0, %v7355
        %v7357 = vpop.f32.mrb[0].mxu0
        %7358 = vmatprep.mubr.f32.mxu0 0.0
        %7359 = vmatmul.mubr.f32.gmra.mrb[0].mxu0 %v7233
        %v7360 = vpop.f32.mrb[0].mxu0
        %v7361 = vadd.f32 0.0, %v7360
        %v7362 = vpop.f32.mrb[0].mxu0
        %7363 = vmatprep.mubr.f32.mxu0 0.0
        %7364 = vmatmul.mubr.f32.gmra.mrb[0].mxu0 %v7234
        %v7365 = vpop.f32.mrb[0].mxu0
        %v7366 = vadd.f32 0.0, %v7365
        %v7367 = vpop.f32.mrb[0].mxu0
        %7368 = vmatprep.mubr.f32.mxu0 0.0
        %7369 = vmatmul.mubr.f32.gmra.mrb[0].mxu0 %v7235
        %v7370 = vpop.f32.mrb[0].mxu0
        %v7371 = vadd.f32 0.0, %v7370
        %v7372 = vpop.f32.mrb[0].mxu0
        %7373 = vmatprep.mubr.f32.mxu0 0.0
        %7374 = vmatmul.mubr.f32.gmra.mrb[0].mxu0 %v7236
        %v7375 = vpop.f32.mrb[0].mxu0
        %v7376 = vadd.f32 0.0, %v7375
        %v7377 = vpop.f32.mrb[0].mxu0
        %7378 = vmatprep.mubr.f32.mxu0 0.0
        %7379 = vmatmul.mubr.f32.gmra.mrb[0].mxu0 %v7237
        %v7380 = vpop.f32.mrb[0].mxu0
        %v7381 = vadd.f32 0.0, %v7380
        %v7382 = vpop.f32.mrb[0].mxu0
        %7383 = vmatprep.mubr.f32.mxu0 0.0
        %7384 = vmatmul.mubr.f32.gmra.mrb[0].mxu0 %v7238
        %v7385 = vpop.f32.mrb[0].mxu0
        %v7386 = vadd.f32 0.0, %v7385
        %v7387 = vpop.f32.mrb[0].mxu0
        %7388 = vmatprep.mubr.f32.mxu0 0.0
        %7389 = vmatmul.mubr.f32.gmra.mrb[0].mxu0 %v7239
        %v7390 = vpop.f32.mrb[0].mxu0
        %v7391 = vadd.f32 0.0, %v7390
        %v7392 = vpop.f32.mrb[0].mxu0
        %7393 = vmatprep.mubr.f32.mxu0 0.0
        %7394 = vmatmul.mubr.f32.gmra.mrb[0].mxu0 %v7240
        %v7395 = vpop.f32.mrb[0].mxu0
        %v7396 = vadd.f32 0.0, %v7395
        %v7397 = vpop.f32.mrb[0].mxu0
        %7398 = vmatprep.mubr.f32.mxu0 0.0
        %7399 = vmatmul.mubr.f32.gmra.mrb[0].mxu0 %v7241
        %v7400 = vpop.f32.mrb[0].mxu0
        %v7401 = vadd.f32 0.0, %v7400
        %v7402 = vpop.f32.mrb[0].mxu0
        %7403 = vdwg.mxu0
        %v7404 = vadd.f32 %v7210, %v7326
        %v7405 = vadd.f32 %v7211, %v7331
        %v7406 = vadd.f32 %v7212, %v7336
        %v7407 = vadd.f32 %v7213, %v7341
        %v7408 = vadd.f32 %v7214, %v7346
        %v7409 = vadd.f32 %v7215, %v7351
        %v7410 = vadd.f32 %v7216, %v7356
        %v7411 = vadd.f32 %v7217, %v7361
        %v7412 = vadd.f32 %v7218, %v7366
        %v7413 = vadd.f32 %v7219, %v7371
        %v7414 = vadd.f32 %v7220, %v7376
        %v7415 = vadd.f32 %v7221, %v7381
        %v7416 = vadd.f32 %v7222, %v7386
        %v7417 = vadd.f32 %v7223, %v7391
        %v7418 = vadd.f32 %v7224, %v7396
        %v7419 = vadd.f32 %v7225, %v7401
        %s7420 = scalar_lea.vmem [#allocation9], 11
        %v7421 = vld [vmem:[%s7420] sm:$0x1]
        %v7423 = vlaneseq
        %v7424 = vshrl.u32 %v7423, 7
        %v7425 = vsub.s32 0, %v7424
        %v7426 = vrot.slane %v7421, %v7425
        %v7428 = vadd.f32 %v7404, %v7426
        %v7429 = vadd.f32 %v7405, %v7426
        %v7430 = vadd.f32 %v7406, %v7426
        %v7431 = vadd.f32 %v7407, %v7426
        %v7432 = vadd.f32 %v7408, %v7426
        %v7433 = vadd.f32 %v7409, %v7426
        %v7434 = vadd.f32 %v7410, %v7426
        %v7435 = vadd.f32 %v7411, %v7426
        %v7436 = vadd.f32 %v7412, %v7426
        %v7437 = vadd.f32 %v7413, %v7426
        %v7438 = vadd.f32 %v7414, %v7426
        %v7439 = vadd.f32 %v7415, %v7426
        %v7440 = vadd.f32 %v7416, %v7426
        %v7441 = vadd.f32 %v7417, %v7426
        %v7442 = vadd.f32 %v7418, %v7426
        %v7443 = vadd.f32 %v7419, %v7426
        %7444 = vst [vmem:[%s217] sm:$0xff] %v7428
        %7445 = vst [vmem:[%s217 + $0x8] sm:$0xff] %v7429
        %7446 = vst [vmem:[%s217 + $0x10] sm:$0xff] %v7430
        %7447 = vst [vmem:[%s217 + $0x18] sm:$0xff] %v7431
        %7448 = vst [vmem:[%s217 + $0x20] sm:$0xff] %v7432
        %7449 = vst [vmem:[%s217 + $0x28] sm:$0xff] %v7433
        %7450 = vst [vmem:[%s217 + $0x30] sm:$0xff] %v7434
        %7451 = vst [vmem:[%s217 + $0x38] sm:$0xff] %v7435
        %7452 = vst [vmem:[%s217 + $0x40] sm:$0xff] %v7436
        %7453 = vst [vmem:[%s217 + $0x48] sm:$0xff] %v7437
        %7454 = vst [vmem:[%s217 + $0x50] sm:$0xff] %v7438
        %7455 = vst [vmem:[%s217 + $0x58] sm:$0xff] %v7439
        %7456 = vst [vmem:[%s217 + $0x60] sm:$0xff] %v7440
        %7457 = vst [vmem:[%s217 + $0x68] sm:$0xff] %v7441
        %7458 = vst [vmem:[%s217 + $0x70] sm:$0xff] %v7442
        %7459 = vst [vmem:[%s217 + $0x78] sm:$0xff] %v7443
        %s7460 = sand.u32 %s97, 1
        %s7461 = scalar_lea.sflag [#allocation6], %s7460
        %s7462 = sand.u32 %s97, 1
        %s7463 = smul.addr %s7462, 128
        %s7464 = scalar_lea.vmem [#allocation10], %s7463
        // Predicated region
        $region52: #{tpu_custom_call.1} parent=31 // pred_check
          %p7465 = pneg %p107
        $region53: #{tpu_custom_call.1} parent=31 // pred_check_branch
          %7467 = sbr.rel (%p7465) target = $region55
        $region54: #{tpu_custom_call.1} parent=31 // pred_region
          %s7469 = ssub.s32 2048, 2048
          %7470 = vsyncadd %s7461, %s7469
          %s7471 = smul.addr %s21, 16
          %s7472 = smul.addr %s7471, 128
          %s7473 = scalar_lea.hbm %s3, %s7472
          %s7474 = sshll.u32 %s7464, 4
          %s7475 = int_to_ptr.vmem [resolvable:$true] %s7474
          %7480 = dma.vmem_to_hbm [thread:$0]  %s7475, 2048, %s7473, %s7461, 128, 128, 8
        $region55: #{tpu_custom_call.1} parent=31 // pred_fallthru
          _
      $region32: #{tpu_custom_call.1} parent=5 // pred_fallthru
        _
      %p7481 = scmp.le.s32.totalorder 2, %s16
      // Predicated region
      $region56: #{tpu_custom_call.1} parent=5 // pred_check
        %p7482 = pneg %p7481
      $region57: #{tpu_custom_call.1} parent=5 // pred_check_branch
        %7484 = sbr.rel (%p7482) target = $region59
      $region58: #{tpu_custom_call.1} parent=5 // pred_region
        %s7485 = ssub.s32 %s16, 2
        // Predicated region
        $region60: #{tpu_custom_call.1} parent=58 // pred_check
          %p7486 = pneg %p113
        $region61: #{tpu_custom_call.1} parent=58 // pred_check_branch
          %7488 = sbr.rel (%p7486) target = $region63
        $region62: #{tpu_custom_call.1} parent=58 // pred_region
          %s7489 = sand.u32 %s98, 1
          %s7490 = scalar_lea.sflag [#allocation6], %s7489
          %s7491 = sand.u32 %s98, 1
          %s7492 = smul.addr %s7491, 128
          %s7493 = scalar_lea.vmem [#allocation10], %s7492
          %7494 = dma.done %s7490, 2048
        $region63: #{tpu_custom_call.1} parent=58 // pred_fallthru
          _
      $region59: #{tpu_custom_call.1} parent=5 // pred_fallthru
        _
    $region6: #{tpu_custom_call.1} parent=1 // loop_footer
      %s20 = sadd.s32 1, %s16
    $region7: #{tpu_custom_call.1} parent=1 // loop_footer_branch
      %15 = sbr.rel target = $region3
    $region8: #{tpu_custom_call.1} parent=1 // loop_exit
      _
    %7495 = vsyncpa [#allocation5], 1
    %s7496 = scalar_lea.sflag [#allocation5], 1
    %7497 = vsyncpa %s7496, 1
    %7498 = vsyncpa [#allocation8], 1
    %7499 = vsyncpa [#allocation6], 1
    %s7500 = scalar_lea.sflag [#allocation6], 1
    %7501 = vsyncpa %s7500, 1

</llo_original>
